<compile_context>
chip_gen: v7x
topology: tpu7x:2x2x1
jax: 0.10.0
libtpu: 0.0.40
codegen_flags: <defaults>
</compile_context>

<pallas_src>
import functools

import jax
import jax.numpy as jnp
from jax import lax
from jax.experimental import pallas as pl
from jax.experimental.pallas import tpu as pltpu

BN_EPS = 1e-5
SHARE_CLS_REG = False   # PicoFeat default
NUM_CONVS = 2           # PicoFeat default


def _hardswish(x):
    # matches torch F.hardswish: x * relu6(x + 3) / 6
    return x * jnp.clip(x + 3.0, 0.0, 6.0) * (1.0 / 6.0)


# ----------------------------------------------------------------------------
# Fused per-FPN-level Pallas kernel
# ----------------------------------------------------------------------------
def _gfl_level_kernel(x_ref, dww_ref, dwb_ref, pww_ref, pwb_ref,
                      clsw_ref, clsb_ref, regw_ref, regb_ref, mask_ref,
                      cls_ref, reg_ref, pad_ref, *, H, W, num_convs):
    """One batch element per grid step; the whole layer chain stays in VMEM.

      x_ref    : (1, C, H*W)            input feature (NCHW, spatial flattened)
      dww_ref  : (num_convs, C, 25)     depthwise 5x5 taps (BN scale folded), tap = kh*5+kw
      dwb_ref  : (num_convs, C, 1)      folded BN bias
      pww_ref  : (num_convs+1, C, C)    pointwise weights: cls blocks + the one live reg layer
      pwb_ref  : (num_convs+1, C, 1)
      clsw_ref : (9, n_cls, C)          gfl_head_cls 3x3 taps, tap = kh*3+kw
      clsb_ref : (n_cls, 1)
      regw_ref : (9, n_reg, C)          gfl_head_reg 3x3 taps (ScaleReg folded)
      regb_ref : (n_reg, 1)
      mask_ref : (5, (H+4)*W)           per-kw W-boundary validity masks (flattened line)
      cls_ref  : (1, n_cls, H*W)        cls logits out
      reg_ref  : (1, n_reg, H*W)        bbox distribution logits out
      pad_ref  : (C, (H+4)*W + 4)       VMEM scratch: zero-padded flattened spatial line
    """
    HW = H * W
    C = x_ref.shape[1]
    LP = (H + 4) * W + 4
    mask = mask_ref[...]                              # (5, (H+4)*W)

    def dw_conv5x5(act, layer):
        # depthwise 5x5, stride 1, pad 2, folded-BN bias + hardswish (VPU MACs, lane dense)
        pad_ref[...] = jnp.zeros((C, LP), jnp.float32)
        pad_ref[:, 2 * W + 2: 2 * W + 2 + HW] = act   # interior at flat offset 2W+2
        xpad = pad_ref[...]
        w_taps = dww_ref[layer]                       # (C, 25)
        acc = jnp.zeros((C, HW), jnp.float32)
        for kw in range(5):
            # one masked kw column-shift; the 5 kh row-shifts are static lane slices of it
            z = xpad[:, kw: kw + (H + 4) * W] * mask[kw:kw + 1, :]
            for kh in range(5):
                tap = kh * 5 + kw
                acc = acc + z[:, kh * W: kh * W + HW] * w_taps[:, tap:tap + 1]
        return _hardswish(acc + dwb_ref[layer])

    def pw_conv1x1(act, layer):
        # 1x1 conv as (C,C)@(C,HW) MXU matmul, folded-BN bias + hardswish
        y = jnp.dot(pww_ref[layer], act, preferred_element_type=jnp.float32)
        return _hardswish(y + pwb_ref[layer])

    def head_conv3x3(act, w9_ref, b_ref):
        # dense 3x3 conv, stride 1, pad 1, + bias; 9 MXU matmuls in channel-major layout
        pad_ref[...] = jnp.zeros((C, LP), jnp.float32)
        pad_ref[:, W + 1: W + 1 + HW] = act           # interior at flat offset W+1 (pad=1)
        xpad = pad_ref[...]
        cout = w9_ref.shape[1]
        acc = jnp.zeros((cout, HW), jnp.float32)
        for kw in range(3):
            # pad-1 validity == pad-2 validity shifted by one -> reuse mask rows 1..3
            z = xpad[:, kw: kw + (H + 2) * W] * mask[kw + 1:kw + 2, : (H + 2) * W]
            for kh in range(3):
                acc = acc + jnp.dot(w9_ref[kh * 3 + kw], z[:, kh * W: kh * W + HW],
                                    preferred_element_type=jnp.float32)
        return acc + b_ref[...]

    act = x_ref[0].astype(jnp.float32)                # (C, HW)
    for i in range(num_convs):                        # PicoFeat cls branch
        act = dw_conv5x5(act, i)
        act = pw_conv1x1(act, i)
    cls_feat = act
    # Only the final reg-branch conv (a pointwise layer) reaches the output:
    # reg_feat is reset to cls_feat every iteration of the PyTorch loop.
    reg_feat = pw_conv1x1(cls_feat, num_convs)

    cls_ref[0] = head_conv3x3(cls_feat, clsw_ref, clsb_ref).astype(cls_ref.dtype)
    reg_ref[0] = head_conv3x3(reg_feat, regw_ref, regb_ref).astype(reg_ref.dtype)


def gfl_head_level_forward(fpn_feat_nchw, kp, scale_reg=1.0):
    """Fused GFLHead forward for one FPN level. NCHW in -> (cls NCHW, bbox NCHW)."""
    N, C, H, W = fpn_feat_nchw.shape
    HW = H * W
    LP = (H + 4) * W + 4
    num_convs = kp['dw_w'].shape[0]
    n_cls = kp['cls_w'].shape[1]
    n_reg = kp['reg_w'].shape[1]

    # ScaleReg (ones, non-trainable) folded into the reg head conv — exact (linear op).
    reg_w = kp['reg_w'] * jnp.float32(scale_reg)
    reg_b = kp['reg_b'] * jnp.float32(scale_reg)

    # per-kw W-boundary validity masks over the flattened (H+4)*W padded line
    t = jnp.arange((H + 4) * W, dtype=jnp.int32) % W
    mask = jnp.stack(
        [((t + kw - 2 >= 0) & (t + kw - 2 < W)).astype(jnp.float32) for kw in range(5)],
        axis=0)

    x = fpn_feat_nchw.reshape(N, C, HW)               # free reshape, stays NCHW

    def bcast_spec(arr):
        shp = arr.shape
        return pl.BlockSpec(shp, lambda n, _s=shp: (0,) * len(_s))

    kernel = functools.partial(_gfl_level_kernel, H=H, W=W, num_convs=num_convs)
    cls_flat, reg_flat = pl.pallas_call(
        kernel,
        out_shape=(jax.ShapeDtypeStruct((N, n_cls, HW), fpn_feat_nchw.dtype),
                   jax.ShapeDtypeStruct((N, n_reg, HW), fpn_feat_nchw.dtype)),
        grid=(N,),
        in_specs=[
            pl.BlockSpec((1, C, HW), lambda n: (n, 0, 0)),
            bcast_spec(kp['dw_w']), bcast_spec(kp['dw_b']),
            bcast_spec(kp['pw_w']), bcast_spec(kp['pw_b']),
            bcast_spec(kp['cls_w']), bcast_spec(kp['cls_b']),
            bcast_spec(reg_w), bcast_spec(reg_b),
            bcast_spec(mask),
        ],
        out_specs=(pl.BlockSpec((1, n_cls, HW), lambda n: (n, 0, 0)),
                   pl.BlockSpec((1, n_reg, HW), lambda n: (n, 0, 0))),
        scratch_shapes=[pltpu.VMEM((C, LP), jnp.float32)],
        compiler_params=pltpu.CompilerParams(dimension_semantics=("parallel",)),
    )(x, kp['dw_w'], kp['dw_b'], kp['pw_w'], kp['pw_b'],
      kp['cls_w'], kp['cls_b'], reg_w, reg_b, mask)
    return cls_flat.reshape(N, n_cls, H, W), reg_flat.reshape(N, n_reg, H, W)


def gfl_head_forward(fpn_feats, kp, fpn_scale_regs):
    """Mirrors GFLHead.forward (training mode): one fused kernel per FPN level."""
    assert len(fpn_feats) == len(fpn_scale_regs)
    cls_logits_list, bboxes_reg_list = [], []
    for feat, sr in zip(fpn_feats, fpn_scale_regs):
        cls_score, bbox_pred = gfl_head_level_forward(feat, kp, sr)
        cls_logits_list.append(cls_score)
        bboxes_reg_list.append(bbox_pred)
    return cls_logits_list, bboxes_reg_list


# ----------------------------------------------------------------------------
# Pure-JAX reference (literal mirror of the PyTorch forward, incl. dead reg layers)
# ----------------------------------------------------------------------------
def _ref_gfl_level(x, p, scale_reg):
    def dw(h, wt, b):
        c = h.shape[1]
        y = lax.conv_general_dilated(h, wt, (1, 1), ((2, 2), (2, 2)),
                                     dimension_numbers=('NCHW', 'OIHW', 'NCHW'),
                                     feature_group_count=c)
        return _hardswish(y + b.reshape(1, -1, 1, 1))

    def pw(h, wt, b):
        y = lax.conv_general_dilated(h, wt, (1, 1), ((0, 0), (0, 0)),
                                     dimension_numbers=('NCHW', 'OIHW', 'NCHW'))
        return _hardswish(y + b.reshape(1, -1, 1, 1))

    def conv3(h, wt, b):
        y = lax.conv_general_dilated(h, wt, (1, 1), ((1, 1), (1, 1)),
                                     dimension_numbers=('NCHW', 'OIHW', 'NCHW'))
        return y + b.reshape(1, -1, 1, 1)

    apply = {'dw': dw, 'pw': pw}
    cls_feat, reg_feat = x, x
    for i in range(len(p['cls_layers'])):
        kind, wt, b = p['cls_layers'][i]
        cls_feat = apply[kind](cls_feat, wt, b)
        reg_feat = cls_feat
        if not SHARE_CLS_REG:
            kind, wt, b = p['reg_layers'][i]
            reg_feat = apply[kind](reg_feat, wt, b)
    cls_score = conv3(cls_feat, p['cls_head_w'], p['cls_head_b'])
    bbox_pred = scale_reg * conv3(reg_feat, p['reg_head_w'], p['reg_head_b'])
    return cls_score, bbox_pred


# ----------------------------------------------------------------------------
# Deterministic synthetic parameters (eval-mode BN folded into weights)
# ----------------------------------------------------------------------------
def init_gfl_params(key, feat_channels, num_classes, reg_max, num_convs):
    n_cls = num_classes
    n_reg = 4 * (reg_max + 1)
    C = feat_channels

    def folded_bn(k, c):
        kg, kb, km, kv = jax.random.split(k, 4)
        gamma = 1.0 + 0.1 * jax.random.normal(kg, (c,), jnp.float32)
        beta = 0.1 * jax.random.normal(kb, (c,), jnp.float32)
        mean = 0.1 * jax.random.normal(km, (c,), jnp.float32)
        var = 1.0 + 0.1 * jnp.abs(jax.random.normal(kv, (c,), jnp.float32))
        scale = gamma * lax.rsqrt(var + BN_EPS)
        bias = beta - mean * scale
        return scale, bias

    cls_layers, reg_layers = [], []
    for _ in range(num_convs):
        for layers in (cls_layers, reg_layers):
            key, kdw, kdbn, kpw, kpbn = jax.random.split(key, 5)
            w_dw = 0.2 * jax.random.normal(kdw, (C, 1, 5, 5), jnp.float32)
            s, b = folded_bn(kdbn, C)
            layers.append(('dw', w_dw * s.reshape(-1, 1, 1, 1), b))
            w_pw = 0.18 * jax.random.normal(kpw, (C, C, 1, 1), jnp.float32)
            s, b = folded_bn(kpbn, C)
            layers.append(('pw', w_pw * s.reshape(-1, 1, 1, 1), b))

    key, k1, k2, k3, k4 = jax.random.split(key, 5)
    return {
        'cls_layers': cls_layers,
        'reg_layers': reg_layers,
        'cls_head_w': 0.06 * jax.random.normal(k1, (n_cls, C, 3, 3), jnp.float32),
        'cls_head_b': 0.1 * jax.random.normal(k2, (n_cls,), jnp.float32),
        'reg_head_w': 0.06 * jax.random.normal(k3, (n_reg, C, 3, 3), jnp.float32),
        'reg_head_b': 0.1 * jax.random.normal(k4, (n_reg,), jnp.float32),
    }


def make_kernel_params(p, num_convs):
    cls_layers, reg_layers = p['cls_layers'], p['reg_layers']
    C = cls_layers[0][1].shape[0]
    dw_w = jnp.stack([cls_layers[2 * i][1].reshape(C, 25) for i in range(num_convs)])
    dw_b = jnp.stack([cls_layers[2 * i][2].reshape(C, 1) for i in range(num_convs)])
    # cls pointwise layers + the single live reg-branch layer (the last reg conv)
    pw_layers = [cls_layers[2 * i + 1] for i in range(num_convs)] + [reg_layers[2 * num_convs - 1]]
    pw_w = jnp.stack([l[1].reshape(l[1].shape[0], l[1].shape[1]) for l in pw_layers])
    pw_b = jnp.stack([l[2].reshape(-1, 1) for l in pw_layers])

    def taps3x3(wt):   # (Co, Ci, 3, 3) -> (9, Co, Ci), tap index = kh*3+kw
        co, ci = wt.shape[:2]
        return jnp.transpose(wt.reshape(co, ci, 9), (2, 0, 1))

    return {
        'dw_w': dw_w, 'dw_b': dw_b, 'pw_w': pw_w, 'pw_b': pw_b,
        'cls_w': taps3x3(p['cls_head_w']), 'cls_b': p['cls_head_b'].reshape(-1, 1),
        'reg_w': taps3x3(p['reg_head_w']), 'reg_b': p['reg_head_b'].reshape(-1, 1),
    }


# ----------------------------------------------------------------------------
if __name__ == "__main__":
    N, C = 2, 32                       # batch, FPN feature channels (feat_in == feat_out)
    NUM_CLASSES, REG_MAX = 80, 16      # GFLHead defaults -> 80 cls, 68 reg channels
    FPN_SHAPES = [(16, 16), (8, 8)]    # two small FPN levels
    SCALE_REGS = [1.0, 1.0]            # ScaleReg params (ones, non-trainable)

    key = jax.random.PRNGKey(0)
    key, kparam = jax.random.split(key)
    params = init_gfl_params(kparam, C, NUM_CLASSES, REG_MAX, NUM_CONVS)
    kparams = make_kernel_params(params, NUM_CONVS)

    fpn_feats = []
    for (H, W) in FPN_SHAPES:
        key, kx = jax.random.split(key)
        fpn_feats.append(jax.random.normal(kx, (N, C, H, W), jnp.float32))  # NCHW

    cls_list, reg_list = gfl_head_forward(fpn_feats, kparams, SCALE_REGS)
    jax.block_until_ready((cls_list, reg_list))

    # numerical validation against a pure-JAX mirror of the PyTorch forward
    for x, sr, cls_k, reg_k, (H, W) in zip(fpn_feats, SCALE_REGS, cls_list, reg_list, FPN_SHAPES):
        cls_r, reg_r = _ref_gfl_level(x, params, sr)
        assert cls_k.shape == (N, NUM_CLASSES, H, W)
        assert reg_k.shape == (N, 4 * (REG_MAX + 1), H, W)
        assert jnp.allclose(cls_k, cls_r, atol=1e-3, rtol=1e-3)
        assert jnp.allclose(reg_k, reg_r, atol=1e-3, rtol=1e-3)

    print("KERNEL_OK")
</pallas_src>

<mosaic_0001>
module attributes {stable_mosaic.version = 11 : i64} {
  func.func @_gfl_level_kernel(%arg0: i32, %arg1: memref<1x32x256xf32, #tpu.memory_space<vmem>>, %arg2: memref<2x32x25xf32, #tpu.memory_space<vmem>>, %arg3: memref<2x32x1xf32, #tpu.memory_space<vmem>>, %arg4: memref<3x32x32xf32, #tpu.memory_space<vmem>>, %arg5: memref<3x32x1xf32, #tpu.memory_space<vmem>>, %arg6: memref<9x80x32xf32, #tpu.memory_space<vmem>>, %arg7: memref<80x1xf32, #tpu.memory_space<vmem>>, %arg8: memref<9x68x32xf32, #tpu.memory_space<vmem>>, %arg9: memref<68x1xf32, #tpu.memory_space<vmem>>, %arg10: memref<5x320xf32, #tpu.memory_space<vmem>>, %arg11: memref<1x80x256xf32, #tpu.memory_space<vmem>>, %arg12: memref<1x68x256xf32, #tpu.memory_space<vmem>>, %arg13: memref<32x324xf32, #tpu.memory_space<vmem>>) attributes {dimension_semantics = [#tpu.dimension_semantics<parallel>], iteration_bounds = array<i64: 2>, scalar_prefetch = 0 : i64, scratch_operands = 1 : i64, tpu.core_type = #tpu.core_type<tc>, window_params = [{transform_indices = @transform_0, window_bounds = array<i64: 1, 32, 256>}, {pipeline_mode = #tpu.pipeline_mode<synchronous>, transform_indices = @transform_1, window_bounds = array<i64: 2, 32, 25>}, {pipeline_mode = #tpu.pipeline_mode<synchronous>, transform_indices = @transform_2, window_bounds = array<i64: 2, 32, 1>}, {pipeline_mode = #tpu.pipeline_mode<synchronous>, transform_indices = @transform_3, window_bounds = array<i64: 3, 32, 32>}, {pipeline_mode = #tpu.pipeline_mode<synchronous>, transform_indices = @transform_4, window_bounds = array<i64: 3, 32, 1>}, {pipeline_mode = #tpu.pipeline_mode<synchronous>, transform_indices = @transform_5, window_bounds = array<i64: 9, 80, 32>}, {pipeline_mode = #tpu.pipeline_mode<synchronous>, transform_indices = @transform_6, window_bounds = array<i64: 80, 1>}, {pipeline_mode = #tpu.pipeline_mode<synchronous>, transform_indices = @transform_7, window_bounds = array<i64: 9, 68, 32>}, {pipeline_mode = #tpu.pipeline_mode<synchronous>, transform_indices = @transform_8, window_bounds = array<i64: 68, 1>}, {pipeline_mode = #tpu.pipeline_mode<synchronous>, transform_indices = @transform_9, window_bounds = array<i64: 5, 320>}, {transform_indices = @transform_10, window_bounds = array<i64: 1, 80, 256>}, {transform_indices = @transform_11, window_bounds = array<i64: 1, 68, 256>}]} {
    %c0 = arith.constant 0 : index
    %c0_0 = arith.constant 0 : index
    %0 = vector.load %arg10[%c0, %c0_0] : memref<5x320xf32, #tpu.memory_space<vmem>>, vector<5x320xf32>
    %c0_1 = arith.constant 0 : index
    %c0_2 = arith.constant 0 : index
    %c0_3 = arith.constant 0 : index
    %1 = vector.load %arg1[%c0_1, %c0_2, %c0_3] : memref<1x32x256xf32, #tpu.memory_space<vmem>>, vector<1x32x256xf32>
    %2 = vector.shape_cast %1 : vector<1x32x256xf32> to vector<32x256xf32>
    %cst = arith.constant 0.000000e+00 : f32
    %3 = vector.broadcast %cst : f32 to vector<32x324xf32>
    %c0_4 = arith.constant 0 : index
    %c0_5 = arith.constant 0 : index
    %4 = vector.load %arg13[%c0_4, %c0_5] : memref<32x324xf32, #tpu.memory_space<vmem>>, vector<32x324xf32>
    tpu.vector_store %arg13[%c0_4, %c0_5], %3 {strides = array<i32>} : memref<32x324xf32, #tpu.memory_space<vmem>>, vector<32x324xf32>,
    %c0_6 = arith.constant 0 : index
    %c34 = arith.constant 34 : index
    %5 = vector.load %arg13[%c0_6, %c34] : memref<32x324xf32, #tpu.memory_space<vmem>>, vector<32x256xf32>
    tpu.vector_store %arg13[%c0_6, %c34], %2 {strides = array<i32>} : memref<32x324xf32, #tpu.memory_space<vmem>>, vector<32x256xf32>,
    %c0_7 = arith.constant 0 : index
    %c0_8 = arith.constant 0 : index
    %6 = vector.load %arg13[%c0_7, %c0_8] : memref<32x324xf32, #tpu.memory_space<vmem>>, vector<32x324xf32>
    %c0_9 = arith.constant 0 : index
    %c0_10 = arith.constant 0 : index
    %c0_11 = arith.constant 0 : index
    %7 = vector.load %arg2[%c0_9, %c0_10, %c0_11] : memref<2x32x25xf32, #tpu.memory_space<vmem>>, vector<1x32x25xf32>
    %8 = vector.shape_cast %7 : vector<1x32x25xf32> to vector<32x25xf32>
    %cst_12 = arith.constant 0.000000e+00 : f32
    %9 = vector.broadcast %cst_12 : f32 to vector<32x256xf32>
    %10 = vector.extract_strided_slice %6 {offsets = [0, 0], sizes = [32, 320], strides = [1, 1]} : vector<32x324xf32> to vector<32x320xf32>
    %11 = vector.extract_strided_slice %0 {offsets = [0, 0], sizes = [1, 320], strides = [1, 1]} : vector<5x320xf32> to vector<1x320xf32>
    %12 = vector.broadcast %11 : vector<1x320xf32> to vector<32x320xf32>
    %13 = arith.mulf %10, %12 : vector<32x320xf32>
    %14 = vector.extract_strided_slice %13 {offsets = [0, 0], sizes = [32, 256], strides = [1, 1]} : vector<32x320xf32> to vector<32x256xf32>
    %15 = vector.extract_strided_slice %8 {offsets = [0, 0], sizes = [32, 1], strides = [1, 1]} : vector<32x25xf32> to vector<32x1xf32>
    %16 = vector.broadcast %15 : vector<32x1xf32> to vector<32x256xf32>
    %17 = arith.mulf %14, %16 : vector<32x256xf32>
    %18 = arith.addf %9, %17 : vector<32x256xf32>
    %19 = vector.extract_strided_slice %13 {offsets = [0, 16], sizes = [32, 256], strides = [1, 1]} : vector<32x320xf32> to vector<32x256xf32>
    %20 = vector.extract_strided_slice %8 {offsets = [0, 5], sizes = [32, 1], strides = [1, 1]} : vector<32x25xf32> to vector<32x1xf32>
    %21 = vector.broadcast %20 : vector<32x1xf32> to vector<32x256xf32>
    %22 = arith.mulf %19, %21 : vector<32x256xf32>
    %23 = arith.addf %18, %22 : vector<32x256xf32>
    %24 = vector.extract_strided_slice %13 {offsets = [0, 32], sizes = [32, 256], strides = [1, 1]} : vector<32x320xf32> to vector<32x256xf32>
    %25 = vector.extract_strided_slice %8 {offsets = [0, 10], sizes = [32, 1], strides = [1, 1]} : vector<32x25xf32> to vector<32x1xf32>
    %26 = vector.broadcast %25 : vector<32x1xf32> to vector<32x256xf32>
    %27 = arith.mulf %24, %26 : vector<32x256xf32>
    %28 = arith.addf %23, %27 : vector<32x256xf32>
    %29 = vector.extract_strided_slice %13 {offsets = [0, 48], sizes = [32, 256], strides = [1, 1]} : vector<32x320xf32> to vector<32x256xf32>
    %30 = vector.extract_strided_slice %8 {offsets = [0, 15], sizes = [32, 1], strides = [1, 1]} : vector<32x25xf32> to vector<32x1xf32>
    %31 = vector.broadcast %30 : vector<32x1xf32> to vector<32x256xf32>
    %32 = arith.mulf %29, %31 : vector<32x256xf32>
    %33 = arith.addf %28, %32 : vector<32x256xf32>
    %34 = vector.extract_strided_slice %13 {offsets = [0, 64], sizes = [32, 256], strides = [1, 1]} : vector<32x320xf32> to vector<32x256xf32>
    %35 = vector.extract_strided_slice %8 {offsets = [0, 20], sizes = [32, 1], strides = [1, 1]} : vector<32x25xf32> to vector<32x1xf32>
    %36 = vector.broadcast %35 : vector<32x1xf32> to vector<32x256xf32>
    %37 = arith.mulf %34, %36 : vector<32x256xf32>
    %38 = arith.addf %33, %37 : vector<32x256xf32>
    %39 = vector.extract_strided_slice %6 {offsets = [0, 1], sizes = [32, 320], strides = [1, 1]} : vector<32x324xf32> to vector<32x320xf32>
    %40 = vector.extract_strided_slice %0 {offsets = [1, 0], sizes = [1, 320], strides = [1, 1]} : vector<5x320xf32> to vector<1x320xf32>
    %41 = vector.broadcast %40 : vector<1x320xf32> to vector<32x320xf32>
    %42 = arith.mulf %39, %41 : vector<32x320xf32>
    %43 = vector.extract_strided_slice %42 {offsets = [0, 0], sizes = [32, 256], strides = [1, 1]} : vector<32x320xf32> to vector<32x256xf32>
    %44 = vector.extract_strided_slice %8 {offsets = [0, 1], sizes = [32, 1], strides = [1, 1]} : vector<32x25xf32> to vector<32x1xf32>
    %45 = vector.broadcast %44 : vector<32x1xf32> to vector<32x256xf32>
    %46 = arith.mulf %43, %45 : vector<32x256xf32>
    %47 = arith.addf %38, %46 : vector<32x256xf32>
    %48 = vector.extract_strided_slice %42 {offsets = [0, 16], sizes = [32, 256], strides = [1, 1]} : vector<32x320xf32> to vector<32x256xf32>
    %49 = vector.extract_strided_slice %8 {offsets = [0, 6], sizes = [32, 1], strides = [1, 1]} : vector<32x25xf32> to vector<32x1xf32>
    %50 = vector.broadcast %49 : vector<32x1xf32> to vector<32x256xf32>
    %51 = arith.mulf %48, %50 : vector<32x256xf32>
    %52 = arith.addf %47, %51 : vector<32x256xf32>
    %53 = vector.extract_strided_slice %42 {offsets = [0, 32], sizes = [32, 256], strides = [1, 1]} : vector<32x320xf32> to vector<32x256xf32>
    %54 = vector.extract_strided_slice %8 {offsets = [0, 11], sizes = [32, 1], strides = [1, 1]} : vector<32x25xf32> to vector<32x1xf32>
    %55 = vector.broadcast %54 : vector<32x1xf32> to vector<32x256xf32>
    %56 = arith.mulf %53, %55 : vector<32x256xf32>
    %57 = arith.addf %52, %56 : vector<32x256xf32>
    %58 = vector.extract_strided_slice %42 {offsets = [0, 48], sizes = [32, 256], strides = [1, 1]} : vector<32x320xf32> to vector<32x256xf32>
    %59 = vector.extract_strided_slice %8 {offsets = [0, 16], sizes = [32, 1], strides = [1, 1]} : vector<32x25xf32> to vector<32x1xf32>
    %60 = vector.broadcast %59 : vector<32x1xf32> to vector<32x256xf32>
    %61 = arith.mulf %58, %60 : vector<32x256xf32>
    %62 = arith.addf %57, %61 : vector<32x256xf32>
    %63 = vector.extract_strided_slice %42 {offsets = [0, 64], sizes = [32, 256], strides = [1, 1]} : vector<32x320xf32> to vector<32x256xf32>
    %64 = vector.extract_strided_slice %8 {offsets = [0, 21], sizes = [32, 1], strides = [1, 1]} : vector<32x25xf32> to vector<32x1xf32>
    %65 = vector.broadcast %64 : vector<32x1xf32> to vector<32x256xf32>
    %66 = arith.mulf %63, %65 : vector<32x256xf32>
    %67 = arith.addf %62, %66 : vector<32x256xf32>
    %68 = vector.extract_strided_slice %6 {offsets = [0, 2], sizes = [32, 320], strides = [1, 1]} : vector<32x324xf32> to vector<32x320xf32>
    %69 = vector.extract_strided_slice %0 {offsets = [2, 0], sizes = [1, 320], strides = [1, 1]} : vector<5x320xf32> to vector<1x320xf32>
    %70 = vector.broadcast %69 : vector<1x320xf32> to vector<32x320xf32>
    %71 = arith.mulf %68, %70 : vector<32x320xf32>
    %72 = vector.extract_strided_slice %71 {offsets = [0, 0], sizes = [32, 256], strides = [1, 1]} : vector<32x320xf32> to vector<32x256xf32>
    %73 = vector.extract_strided_slice %8 {offsets = [0, 2], sizes = [32, 1], strides = [1, 1]} : vector<32x25xf32> to vector<32x1xf32>
    %74 = vector.broadcast %73 : vector<32x1xf32> to vector<32x256xf32>
    %75 = arith.mulf %72, %74 : vector<32x256xf32>
    %76 = arith.addf %67, %75 : vector<32x256xf32>
    %77 = vector.extract_strided_slice %71 {offsets = [0, 16], sizes = [32, 256], strides = [1, 1]} : vector<32x320xf32> to vector<32x256xf32>
    %78 = vector.extract_strided_slice %8 {offsets = [0, 7], sizes = [32, 1], strides = [1, 1]} : vector<32x25xf32> to vector<32x1xf32>
    %79 = vector.broadcast %78 : vector<32x1xf32> to vector<32x256xf32>
    %80 = arith.mulf %77, %79 : vector<32x256xf32>
    %81 = arith.addf %76, %80 : vector<32x256xf32>
    %82 = vector.extract_strided_slice %71 {offsets = [0, 32], sizes = [32, 256], strides = [1, 1]} : vector<32x320xf32> to vector<32x256xf32>
    %83 = vector.extract_strided_slice %8 {offsets = [0, 12], sizes = [32, 1], strides = [1, 1]} : vector<32x25xf32> to vector<32x1xf32>
    %84 = vector.broadcast %83 : vector<32x1xf32> to vector<32x256xf32>
    %85 = arith.mulf %82, %84 : vector<32x256xf32>
    %86 = arith.addf %81, %85 : vector<32x256xf32>
    %87 = vector.extract_strided_slice %71 {offsets = [0, 48], sizes = [32, 256], strides = [1, 1]} : vector<32x320xf32> to vector<32x256xf32>
    %88 = vector.extract_strided_slice %8 {offsets = [0, 17], sizes = [32, 1], strides = [1, 1]} : vector<32x25xf32> to vector<32x1xf32>
    %89 = vector.broadcast %88 : vector<32x1xf32> to vector<32x256xf32>
    %90 = arith.mulf %87, %89 : vector<32x256xf32>
    %91 = arith.addf %86, %90 : vector<32x256xf32>
    %92 = vector.extract_strided_slice %71 {offsets = [0, 64], sizes = [32, 256], strides = [1, 1]} : vector<32x320xf32> to vector<32x256xf32>
    %93 = vector.extract_strided_slice %8 {offsets = [0, 22], sizes = [32, 1], strides = [1, 1]} : vector<32x25xf32> to vector<32x1xf32>
    %94 = vector.broadcast %93 : vector<32x1xf32> to vector<32x256xf32>
    %95 = arith.mulf %92, %94 : vector<32x256xf32>
    %96 = arith.addf %91, %95 : vector<32x256xf32>
    %97 = vector.extract_strided_slice %6 {offsets = [0, 3], sizes = [32, 320], strides = [1, 1]} : vector<32x324xf32> to vector<32x320xf32>
    %98 = vector.extract_strided_slice %0 {offsets = [3, 0], sizes = [1, 320], strides = [1, 1]} : vector<5x320xf32> to vector<1x320xf32>
    %99 = vector.broadcast %98 : vector<1x320xf32> to vector<32x320xf32>
    %100 = arith.mulf %97, %99 : vector<32x320xf32>
    %101 = vector.extract_strided_slice %100 {offsets = [0, 0], sizes = [32, 256], strides = [1, 1]} : vector<32x320xf32> to vector<32x256xf32>
    %102 = vector.extract_strided_slice %8 {offsets = [0, 3], sizes = [32, 1], strides = [1, 1]} : vector<32x25xf32> to vector<32x1xf32>
    %103 = vector.broadcast %102 : vector<32x1xf32> to vector<32x256xf32>
    %104 = arith.mulf %101, %103 : vector<32x256xf32>
    %105 = arith.addf %96, %104 : vector<32x256xf32>
    %106 = vector.extract_strided_slice %100 {offsets = [0, 16], sizes = [32, 256], strides = [1, 1]} : vector<32x320xf32> to vector<32x256xf32>
    %107 = vector.extract_strided_slice %8 {offsets = [0, 8], sizes = [32, 1], strides = [1, 1]} : vector<32x25xf32> to vector<32x1xf32>
    %108 = vector.broadcast %107 : vector<32x1xf32> to vector<32x256xf32>
    %109 = arith.mulf %106, %108 : vector<32x256xf32>
    %110 = arith.addf %105, %109 : vector<32x256xf32>
    %111 = vector.extract_strided_slice %100 {offsets = [0, 32], sizes = [32, 256], strides = [1, 1]} : vector<32x320xf32> to vector<32x256xf32>
    %112 = vector.extract_strided_slice %8 {offsets = [0, 13], sizes = [32, 1], strides = [1, 1]} : vector<32x25xf32> to vector<32x1xf32>
    %113 = vector.broadcast %112 : vector<32x1xf32> to vector<32x256xf32>
    %114 = arith.mulf %111, %113 : vector<32x256xf32>
    %115 = arith.addf %110, %114 : vector<32x256xf32>
    %116 = vector.extract_strided_slice %100 {offsets = [0, 48], sizes = [32, 256], strides = [1, 1]} : vector<32x320xf32> to vector<32x256xf32>
    %117 = vector.extract_strided_slice %8 {offsets = [0, 18], sizes = [32, 1], strides = [1, 1]} : vector<32x25xf32> to vector<32x1xf32>
    %118 = vector.broadcast %117 : vector<32x1xf32> to vector<32x256xf32>
    %119 = arith.mulf %116, %118 : vector<32x256xf32>
    %120 = arith.addf %115, %119 : vector<32x256xf32>
    %121 = vector.extract_strided_slice %100 {offsets = [0, 64], sizes = [32, 256], strides = [1, 1]} : vector<32x320xf32> to vector<32x256xf32>
    %122 = vector.extract_strided_slice %8 {offsets = [0, 23], sizes = [32, 1], strides = [1, 1]} : vector<32x25xf32> to vector<32x1xf32>
    %123 = vector.broadcast %122 : vector<32x1xf32> to vector<32x256xf32>
    %124 = arith.mulf %121, %123 : vector<32x256xf32>
    %125 = arith.addf %120, %124 : vector<32x256xf32>
    %126 = vector.extract_strided_slice %6 {offsets = [0, 4], sizes = [32, 320], strides = [1, 1]} : vector<32x324xf32> to vector<32x320xf32>
    %127 = vector.extract_strided_slice %0 {offsets = [4, 0], sizes = [1, 320], strides = [1, 1]} : vector<5x320xf32> to vector<1x320xf32>
    %128 = vector.broadcast %127 : vector<1x320xf32> to vector<32x320xf32>
    %129 = arith.mulf %126, %128 : vector<32x320xf32>
    %130 = vector.extract_strided_slice %129 {offsets = [0, 0], sizes = [32, 256], strides = [1, 1]} : vector<32x320xf32> to vector<32x256xf32>
    %131 = vector.extract_strided_slice %8 {offsets = [0, 4], sizes = [32, 1], strides = [1, 1]} : vector<32x25xf32> to vector<32x1xf32>
    %132 = vector.broadcast %131 : vector<32x1xf32> to vector<32x256xf32>
    %133 = arith.mulf %130, %132 : vector<32x256xf32>
    %134 = arith.addf %125, %133 : vector<32x256xf32>
    %135 = vector.extract_strided_slice %129 {offsets = [0, 16], sizes = [32, 256], strides = [1, 1]} : vector<32x320xf32> to vector<32x256xf32>
    %136 = vector.extract_strided_slice %8 {offsets = [0, 9], sizes = [32, 1], strides = [1, 1]} : vector<32x25xf32> to vector<32x1xf32>
    %137 = vector.broadcast %136 : vector<32x1xf32> to vector<32x256xf32>
    %138 = arith.mulf %135, %137 : vector<32x256xf32>
    %139 = arith.addf %134, %138 : vector<32x256xf32>
    %140 = vector.extract_strided_slice %129 {offsets = [0, 32], sizes = [32, 256], strides = [1, 1]} : vector<32x320xf32> to vector<32x256xf32>
    %141 = vector.extract_strided_slice %8 {offsets = [0, 14], sizes = [32, 1], strides = [1, 1]} : vector<32x25xf32> to vector<32x1xf32>
    %142 = vector.broadcast %141 : vector<32x1xf32> to vector<32x256xf32>
    %143 = arith.mulf %140, %142 : vector<32x256xf32>
    %144 = arith.addf %139, %143 : vector<32x256xf32>
    %145 = vector.extract_strided_slice %129 {offsets = [0, 48], sizes = [32, 256], strides = [1, 1]} : vector<32x320xf32> to vector<32x256xf32>
    %146 = vector.extract_strided_slice %8 {offsets = [0, 19], sizes = [32, 1], strides = [1, 1]} : vector<32x25xf32> to vector<32x1xf32>
    %147 = vector.broadcast %146 : vector<32x1xf32> to vector<32x256xf32>
    %148 = arith.mulf %145, %147 : vector<32x256xf32>
    %149 = arith.addf %144, %148 : vector<32x256xf32>
    %150 = vector.extract_strided_slice %129 {offsets = [0, 64], sizes = [32, 256], strides = [1, 1]} : vector<32x320xf32> to vector<32x256xf32>
    %151 = vector.extract_strided_slice %8 {offsets = [0, 24], sizes = [32, 1], strides = [1, 1]} : vector<32x25xf32> to vector<32x1xf32>
    %152 = vector.broadcast %151 : vector<32x1xf32> to vector<32x256xf32>
    %153 = arith.mulf %150, %152 : vector<32x256xf32>
    %154 = arith.addf %149, %153 : vector<32x256xf32>
    %c0_13 = arith.constant 0 : index
    %c0_14 = arith.constant 0 : index
    %c0_15 = arith.constant 0 : index
    %155 = vector.load %arg3[%c0_13, %c0_14, %c0_15] : memref<2x32x1xf32, #tpu.memory_space<vmem>>, vector<1x32x1xf32>
    %156 = vector.shape_cast %155 : vector<1x32x1xf32> to vector<32x1xf32>
    %157 = vector.broadcast %156 : vector<32x1xf32> to vector<32x256xf32>
    %158 = arith.addf %154, %157 : vector<32x256xf32>
    %cst_16 = arith.constant 3.000000e+00 : f32
    %159 = vector.broadcast %cst_16 : f32 to vector<32x256xf32>
    %160 = arith.addf %158, %159 : vector<32x256xf32>
    %cst_17 = arith.constant 0.000000e+00 : f32
    %cst_18 = arith.constant 6.000000e+00 : f32
    %161 = vector.broadcast %cst_17 : f32 to vector<32x256xf32>
    %162 = arith.maximumf %161, %160 : vector<32x256xf32>
    %163 = vector.broadcast %cst_18 : f32 to vector<32x256xf32>
    %164 = arith.minimumf %163, %162 : vector<32x256xf32>
    %165 = arith.mulf %158, %164 : vector<32x256xf32>
    %cst_19 = arith.constant 0.166666672 : f32
    %166 = vector.broadcast %cst_19 : f32 to vector<32x256xf32>
    %167 = arith.mulf %165, %166 : vector<32x256xf32>
    %c0_20 = arith.constant 0 : index
    %c0_21 = arith.constant 0 : index
    %c0_22 = arith.constant 0 : index
    %168 = vector.load %arg4[%c0_20, %c0_21, %c0_22] : memref<3x32x32xf32, #tpu.memory_space<vmem>>, vector<1x32x32xf32>
    %169 = vector.shape_cast %168 : vector<1x32x32xf32> to vector<32x32xf32>
    %cst_23 = arith.constant dense<0.000000e+00> : vector<32x256xf32>
    %170 = tpu.matmul %169, %167, %cst_23 {dimension_numbers = #tpu.dot_dimension_numbers<[1], [0], [0], [1], [0, 0, 1, 1], [], []>} : vector<32x32xf32>, vector<32x256xf32>, vector<32x256xf32> -> vector<32x256xf32>
    %c0_24 = arith.constant 0 : index
    %c0_25 = arith.constant 0 : index
    %c0_26 = arith.constant 0 : index
    %171 = vector.load %arg5[%c0_24, %c0_25, %c0_26] : memref<3x32x1xf32, #tpu.memory_space<vmem>>, vector<1x32x1xf32>
    %172 = vector.shape_cast %171 : vector<1x32x1xf32> to vector<32x1xf32>
    %173 = vector.broadcast %172 : vector<32x1xf32> to vector<32x256xf32>
    %174 = arith.addf %170, %173 : vector<32x256xf32>
    %cst_27 = arith.constant 3.000000e+00 : f32
    %175 = vector.broadcast %cst_27 : f32 to vector<32x256xf32>
    %176 = arith.addf %174, %175 : vector<32x256xf32>
    %cst_28 = arith.constant 0.000000e+00 : f32
    %cst_29 = arith.constant 6.000000e+00 : f32
    %177 = vector.broadcast %cst_28 : f32 to vector<32x256xf32>
    %178 = arith.maximumf %177, %176 : vector<32x256xf32>
    %179 = vector.broadcast %cst_29 : f32 to vector<32x256xf32>
    %180 = arith.minimumf %179, %178 : vector<32x256xf32>
    %181 = arith.mulf %174, %180 : vector<32x256xf32>
    %cst_30 = arith.constant 0.166666672 : f32
    %182 = vector.broadcast %cst_30 : f32 to vector<32x256xf32>
    %183 = arith.mulf %181, %182 : vector<32x256xf32>
    %cst_31 = arith.constant 0.000000e+00 : f32
    %184 = vector.broadcast %cst_31 : f32 to vector<32x324xf32>
    %c0_32 = arith.constant 0 : index
    %c0_33 = arith.constant 0 : index
    %185 = vector.load %arg13[%c0_32, %c0_33] : memref<32x324xf32, #tpu.memory_space<vmem>>, vector<32x324xf32>
    tpu.vector_store %arg13[%c0_32, %c0_33], %184 {strides = array<i32>} : memref<32x324xf32, #tpu.memory_space<vmem>>, vector<32x324xf32>,
    %c0_34 = arith.constant 0 : index
    %c34_35 = arith.constant 34 : index
    %186 = vector.load %arg13[%c0_34, %c34_35] : memref<32x324xf32, #tpu.memory_space<vmem>>, vector<32x256xf32>
    tpu.vector_store %arg13[%c0_34, %c34_35], %183 {strides = array<i32>} : memref<32x324xf32, #tpu.memory_space<vmem>>, vector<32x256xf32>,
    %c0_36 = arith.constant 0 : index
    %c0_37 = arith.constant 0 : index
    %187 = vector.load %arg13[%c0_36, %c0_37] : memref<32x324xf32, #tpu.memory_space<vmem>>, vector<32x324xf32>
    %c1 = arith.constant 1 : index
    %c0_38 = arith.constant 0 : index
    %c0_39 = arith.constant 0 : index
    %188 = vector.load %arg2[%c1, %c0_38, %c0_39] : memref<2x32x25xf32, #tpu.memory_space<vmem>>, vector<1x32x25xf32>
    %189 = vector.shape_cast %188 : vector<1x32x25xf32> to vector<32x25xf32>
    %cst_40 = arith.constant 0.000000e+00 : f32
    %190 = vector.broadcast %cst_40 : f32 to vector<32x256xf32>
    %191 = vector.extract_strided_slice %187 {offsets = [0, 0], sizes = [32, 320], strides = [1, 1]} : vector<32x324xf32> to vector<32x320xf32>
    %192 = vector.extract_strided_slice %0 {offsets = [0, 0], sizes = [1, 320], strides = [1, 1]} : vector<5x320xf32> to vector<1x320xf32>
    %193 = vector.broadcast %192 : vector<1x320xf32> to vector<32x320xf32>
    %194 = arith.mulf %191, %193 : vector<32x320xf32>
    %195 = vector.extract_strided_slice %194 {offsets = [0, 0], sizes = [32, 256], strides = [1, 1]} : vector<32x320xf32> to vector<32x256xf32>
    %196 = vector.extract_strided_slice %189 {offsets = [0, 0], sizes = [32, 1], strides = [1, 1]} : vector<32x25xf32> to vector<32x1xf32>
    %197 = vector.broadcast %196 : vector<32x1xf32> to vector<32x256xf32>
    %198 = arith.mulf %195, %197 : vector<32x256xf32>
    %199 = arith.addf %190, %198 : vector<32x256xf32>
    %200 = vector.extract_strided_slice %194 {offsets = [0, 16], sizes = [32, 256], strides = [1, 1]} : vector<32x320xf32> to vector<32x256xf32>
    %201 = vector.extract_strided_slice %189 {offsets = [0, 5], sizes = [32, 1], strides = [1, 1]} : vector<32x25xf32> to vector<32x1xf32>
    %202 = vector.broadcast %201 : vector<32x1xf32> to vector<32x256xf32>
    %203 = arith.mulf %200, %202 : vector<32x256xf32>
    %204 = arith.addf %199, %203 : vector<32x256xf32>
    %205 = vector.extract_strided_slice %194 {offsets = [0, 32], sizes = [32, 256], strides = [1, 1]} : vector<32x320xf32> to vector<32x256xf32>
    %206 = vector.extract_strided_slice %189 {offsets = [0, 10], sizes = [32, 1], strides = [1, 1]} : vector<32x25xf32> to vector<32x1xf32>
    %207 = vector.broadcast %206 : vector<32x1xf32> to vector<32x256xf32>
    %208 = arith.mulf %205, %207 : vector<32x256xf32>
    %209 = arith.addf %204, %208 : vector<32x256xf32>
    %210 = vector.extract_strided_slice %194 {offsets = [0, 48], sizes = [32, 256], strides = [1, 1]} : vector<32x320xf32> to vector<32x256xf32>
    %211 = vector.extract_strided_slice %189 {offsets = [0, 15], sizes = [32, 1], strides = [1, 1]} : vector<32x25xf32> to vector<32x1xf32>
    %212 = vector.broadcast %211 : vector<32x1xf32> to vector<32x256xf32>
    %213 = arith.mulf %210, %212 : vector<32x256xf32>
    %214 = arith.addf %209, %213 : vector<32x256xf32>
    %215 = vector.extract_strided_slice %194 {offsets = [0, 64], sizes = [32, 256], strides = [1, 1]} : vector<32x320xf32> to vector<32x256xf32>
    %216 = vector.extract_strided_slice %189 {offsets = [0, 20], sizes = [32, 1], strides = [1, 1]} : vector<32x25xf32> to vector<32x1xf32>
    %217 = vector.broadcast %216 : vector<32x1xf32> to vector<32x256xf32>
    %218 = arith.mulf %215, %217 : vector<32x256xf32>
    %219 = arith.addf %214, %218 : vector<32x256xf32>
    %220 = vector.extract_strided_slice %187 {offsets = [0, 1], sizes = [32, 320], strides = [1, 1]} : vector<32x324xf32> to vector<32x320xf32>
    %221 = vector.extract_strided_slice %0 {offsets = [1, 0], sizes = [1, 320], strides = [1, 1]} : vector<5x320xf32> to vector<1x320xf32>
    %222 = vector.broadcast %221 : vector<1x320xf32> to vector<32x320xf32>
    %223 = arith.mulf %220, %222 : vector<32x320xf32>
    %224 = vector.extract_strided_slice %223 {offsets = [0, 0], sizes = [32, 256], strides = [1, 1]} : vector<32x320xf32> to vector<32x256xf32>
    %225 = vector.extract_strided_slice %189 {offsets = [0, 1], sizes = [32, 1], strides = [1, 1]} : vector<32x25xf32> to vector<32x1xf32>
    %226 = vector.broadcast %225 : vector<32x1xf32> to vector<32x256xf32>
    %227 = arith.mulf %224, %226 : vector<32x256xf32>
    %228 = arith.addf %219, %227 : vector<32x256xf32>
    %229 = vector.extract_strided_slice %223 {offsets = [0, 16], sizes = [32, 256], strides = [1, 1]} : vector<32x320xf32> to vector<32x256xf32>
    %230 = vector.extract_strided_slice %189 {offsets = [0, 6], sizes = [32, 1], strides = [1, 1]} : vector<32x25xf32> to vector<32x1xf32>
    %231 = vector.broadcast %230 : vector<32x1xf32> to vector<32x256xf32>
    %232 = arith.mulf %229, %231 : vector<32x256xf32>
    %233 = arith.addf %228, %232 : vector<32x256xf32>
    %234 = vector.extract_strided_slice %223 {offsets = [0, 32], sizes = [32, 256], strides = [1, 1]} : vector<32x320xf32> to vector<32x256xf32>
    %235 = vector.extract_strided_slice %189 {offsets = [0, 11], sizes = [32, 1], strides = [1, 1]} : vector<32x25xf32> to vector<32x1xf32>
    %236 = vector.broadcast %235 : vector<32x1xf32> to vector<32x256xf32>
    %237 = arith.mulf %234, %236 : vector<32x256xf32>
    %238 = arith.addf %233, %237 : vector<32x256xf32>
    %239 = vector.extract_strided_slice %223 {offsets = [0, 48], sizes = [32, 256], strides = [1, 1]} : vector<32x320xf32> to vector<32x256xf32>
    %240 = vector.extract_strided_slice %189 {offsets = [0, 16], sizes = [32, 1], strides = [1, 1]} : vector<32x25xf32> to vector<32x1xf32>
    %241 = vector.broadcast %240 : vector<32x1xf32> to vector<32x256xf32>
    %242 = arith.mulf %239, %241 : vector<32x256xf32>
    %243 = arith.addf %238, %242 : vector<32x256xf32>
    %244 = vector.extract_strided_slice %223 {offsets = [0, 64], sizes = [32, 256], strides = [1, 1]} : vector<32x320xf32> to vector<32x256xf32>
    %245 = vector.extract_strided_slice %189 {offsets = [0, 21], sizes = [32, 1], strides = [1, 1]} : vector<32x25xf32> to vector<32x1xf32>
    %246 = vector.broadcast %245 : vector<32x1xf32> to vector<32x256xf32>
    %247 = arith.mulf %244, %246 : vector<32x256xf32>
    %248 = arith.addf %243, %247 : vector<32x256xf32>
    %249 = vector.extract_strided_slice %187 {offsets = [0, 2], sizes = [32, 320], strides = [1, 1]} : vector<32x324xf32> to vector<32x320xf32>
    %250 = vector.extract_strided_slice %0 {offsets = [2, 0], sizes = [1, 320], strides = [1, 1]} : vector<5x320xf32> to vector<1x320xf32>
    %251 = vector.broadcast %250 : vector<1x320xf32> to vector<32x320xf32>
    %252 = arith.mulf %249, %251 : vector<32x320xf32>
    %253 = vector.extract_strided_slice %252 {offsets = [0, 0], sizes = [32, 256], strides = [1, 1]} : vector<32x320xf32> to vector<32x256xf32>
    %254 = vector.extract_strided_slice %189 {offsets = [0, 2], sizes = [32, 1], strides = [1, 1]} : vector<32x25xf32> to vector<32x1xf32>
    %255 = vector.broadcast %254 : vector<32x1xf32> to vector<32x256xf32>
    %256 = arith.mulf %253, %255 : vector<32x256xf32>
    %257 = arith.addf %248, %256 : vector<32x256xf32>
    %258 = vector.extract_strided_slice %252 {offsets = [0, 16], sizes = [32, 256], strides = [1, 1]} : vector<32x320xf32> to vector<32x256xf32>
    %259 = vector.extract_strided_slice %189 {offsets = [0, 7], sizes = [32, 1], strides = [1, 1]} : vector<32x25xf32> to vector<32x1xf32>
    %260 = vector.broadcast %259 : vector<32x1xf32> to vector<32x256xf32>
    %261 = arith.mulf %258, %260 : vector<32x256xf32>
    %262 = arith.addf %257, %261 : vector<32x256xf32>
    %263 = vector.extract_strided_slice %252 {offsets = [0, 32], sizes = [32, 256], strides = [1, 1]} : vector<32x320xf32> to vector<32x256xf32>
    %264 = vector.extract_strided_slice %189 {offsets = [0, 12], sizes = [32, 1], strides = [1, 1]} : vector<32x25xf32> to vector<32x1xf32>
    %265 = vector.broadcast %264 : vector<32x1xf32> to vector<32x256xf32>
    %266 = arith.mulf %263, %265 : vector<32x256xf32>
    %267 = arith.addf %262, %266 : vector<32x256xf32>
    %268 = vector.extract_strided_slice %252 {offsets = [0, 48], sizes = [32, 256], strides = [1, 1]} : vector<32x320xf32> to vector<32x256xf32>
    %269 = vector.extract_strided_slice %189 {offsets = [0, 17], sizes = [32, 1], strides = [1, 1]} : vector<32x25xf32> to vector<32x1xf32>
    %270 = vector.broadcast %269 : vector<32x1xf32> to vector<32x256xf32>
    %271 = arith.mulf %268, %270 : vector<32x256xf32>
    %272 = arith.addf %267, %271 : vector<32x256xf32>
    %273 = vector.extract_strided_slice %252 {offsets = [0, 64], sizes = [32, 256], strides = [1, 1]} : vector<32x320xf32> to vector<32x256xf32>
    %274 = vector.extract_strided_slice %189 {offsets = [0, 22], sizes = [32, 1], strides = [1, 1]} : vector<32x25xf32> to vector<32x1xf32>
    %275 = vector.broadcast %274 : vector<32x1xf32> to vector<32x256xf32>
    %276 = arith.mulf %273, %275 : vector<32x256xf32>
    %277 = arith.addf %272, %276 : vector<32x256xf32>
    %278 = vector.extract_strided_slice %187 {offsets = [0, 3], sizes = [32, 320], strides = [1, 1]} : vector<32x324xf32> to vector<32x320xf32>
    %279 = vector.extract_strided_slice %0 {offsets = [3, 0], sizes = [1, 320], strides = [1, 1]} : vector<5x320xf32> to vector<1x320xf32>
    %280 = vector.broadcast %279 : vector<1x320xf32> to vector<32x320xf32>
    %281 = arith.mulf %278, %280 : vector<32x320xf32>
    %282 = vector.extract_strided_slice %281 {offsets = [0, 0], sizes = [32, 256], strides = [1, 1]} : vector<32x320xf32> to vector<32x256xf32>
    %283 = vector.extract_strided_slice %189 {offsets = [0, 3], sizes = [32, 1], strides = [1, 1]} : vector<32x25xf32> to vector<32x1xf32>
    %284 = vector.broadcast %283 : vector<32x1xf32> to vector<32x256xf32>
    %285 = arith.mulf %282, %284 : vector<32x256xf32>
    %286 = arith.addf %277, %285 : vector<32x256xf32>
    %287 = vector.extract_strided_slice %281 {offsets = [0, 16], sizes = [32, 256], strides = [1, 1]} : vector<32x320xf32> to vector<32x256xf32>
    %288 = vector.extract_strided_slice %189 {offsets = [0, 8], sizes = [32, 1], strides = [1, 1]} : vector<32x25xf32> to vector<32x1xf32>
    %289 = vector.broadcast %288 : vector<32x1xf32> to vector<32x256xf32>
    %290 = arith.mulf %287, %289 : vector<32x256xf32>
    %291 = arith.addf %286, %290 : vector<32x256xf32>
    %292 = vector.extract_strided_slice %281 {offsets = [0, 32], sizes = [32, 256], strides = [1, 1]} : vector<32x320xf32> to vector<32x256xf32>
    %293 = vector.extract_strided_slice %189 {offsets = [0, 13], sizes = [32, 1], strides = [1, 1]} : vector<32x25xf32> to vector<32x1xf32>
    %294 = vector.broadcast %293 : vector<32x1xf32> to vector<32x256xf32>
    %295 = arith.mulf %292, %294 : vector<32x256xf32>
    %296 = arith.addf %291, %295 : vector<32x256xf32>
    %297 = vector.extract_strided_slice %281 {offsets = [0, 48], sizes = [32, 256], strides = [1, 1]} : vector<32x320xf32> to vector<32x256xf32>
    %298 = vector.extract_strided_slice %189 {offsets = [0, 18], sizes = [32, 1], strides = [1, 1]} : vector<32x25xf32> to vector<32x1xf32>
    %299 = vector.broadcast %298 : vector<32x1xf32> to vector<32x256xf32>
    %300 = arith.mulf %297, %299 : vector<32x256xf32>
    %301 = arith.addf %296, %300 : vector<32x256xf32>
    %302 = vector.extract_strided_slice %281 {offsets = [0, 64], sizes = [32, 256], strides = [1, 1]} : vector<32x320xf32> to vector<32x256xf32>
    %303 = vector.extract_strided_slice %189 {offsets = [0, 23], sizes = [32, 1], strides = [1, 1]} : vector<32x25xf32> to vector<32x1xf32>
    %304 = vector.broadcast %303 : vector<32x1xf32> to vector<32x256xf32>
    %305 = arith.mulf %302, %304 : vector<32x256xf32>
    %306 = arith.addf %301, %305 : vector<32x256xf32>
    %307 = vector.extract_strided_slice %187 {offsets = [0, 4], sizes = [32, 320], strides = [1, 1]} : vector<32x324xf32> to vector<32x320xf32>
    %308 = vector.extract_strided_slice %0 {offsets = [4, 0], sizes = [1, 320], strides = [1, 1]} : vector<5x320xf32> to vector<1x320xf32>
    %309 = vector.broadcast %308 : vector<1x320xf32> to vector<32x320xf32>
    %310 = arith.mulf %307, %309 : vector<32x320xf32>
    %311 = vector.extract_strided_slice %310 {offsets = [0, 0], sizes = [32, 256], strides = [1, 1]} : vector<32x320xf32> to vector<32x256xf32>
    %312 = vector.extract_strided_slice %189 {offsets = [0, 4], sizes = [32, 1], strides = [1, 1]} : vector<32x25xf32> to vector<32x1xf32>
    %313 = vector.broadcast %312 : vector<32x1xf32> to vector<32x256xf32>
    %314 = arith.mulf %311, %313 : vector<32x256xf32>
    %315 = arith.addf %306, %314 : vector<32x256xf32>
    %316 = vector.extract_strided_slice %310 {offsets = [0, 16], sizes = [32, 256], strides = [1, 1]} : vector<32x320xf32> to vector<32x256xf32>
    %317 = vector.extract_strided_slice %189 {offsets = [0, 9], sizes = [32, 1], strides = [1, 1]} : vector<32x25xf32> to vector<32x1xf32>
    %318 = vector.broadcast %317 : vector<32x1xf32> to vector<32x256xf32>
    %319 = arith.mulf %316, %318 : vector<32x256xf32>
    %320 = arith.addf %315, %319 : vector<32x256xf32>
    %321 = vector.extract_strided_slice %310 {offsets = [0, 32], sizes = [32, 256], strides = [1, 1]} : vector<32x320xf32> to vector<32x256xf32>
    %322 = vector.extract_strided_slice %189 {offsets = [0, 14], sizes = [32, 1], strides = [1, 1]} : vector<32x25xf32> to vector<32x1xf32>
    %323 = vector.broadcast %322 : vector<32x1xf32> to vector<32x256xf32>
    %324 = arith.mulf %321, %323 : vector<32x256xf32>
    %325 = arith.addf %320, %324 : vector<32x256xf32>
    %326 = vector.extract_strided_slice %310 {offsets = [0, 48], sizes = [32, 256], strides = [1, 1]} : vector<32x320xf32> to vector<32x256xf32>
    %327 = vector.extract_strided_slice %189 {offsets = [0, 19], sizes = [32, 1], strides = [1, 1]} : vector<32x25xf32> to vector<32x1xf32>
    %328 = vector.broadcast %327 : vector<32x1xf32> to vector<32x256xf32>
    %329 = arith.mulf %326, %328 : vector<32x256xf32>
    %330 = arith.addf %325, %329 : vector<32x256xf32>
    %331 = vector.extract_strided_slice %310 {offsets = [0, 64], sizes = [32, 256], strides = [1, 1]} : vector<32x320xf32> to vector<32x256xf32>
    %332 = vector.extract_strided_slice %189 {offsets = [0, 24], sizes = [32, 1], strides = [1, 1]} : vector<32x25xf32> to vector<32x1xf32>
    %333 = vector.broadcast %332 : vector<32x1xf32> to vector<32x256xf32>
    %334 = arith.mulf %331, %333 : vector<32x256xf32>
    %335 = arith.addf %330, %334 : vector<32x256xf32>
    %c1_41 = arith.constant 1 : index
    %c0_42 = arith.constant 0 : index
    %c0_43 = arith.constant 0 : index
    %336 = vector.load %arg3[%c1_41, %c0_42, %c0_43] : memref<2x32x1xf32, #tpu.memory_space<vmem>>, vector<1x32x1xf32>
    %337 = vector.shape_cast %336 : vector<1x32x1xf32> to vector<32x1xf32>
    %338 = vector.broadcast %337 : vector<32x1xf32> to vector<32x256xf32>
    %339 = arith.addf %335, %338 : vector<32x256xf32>
    %cst_44 = arith.constant 3.000000e+00 : f32
    %340 = vector.broadcast %cst_44 : f32 to vector<32x256xf32>
    %341 = arith.addf %339, %340 : vector<32x256xf32>
    %cst_45 = arith.constant 0.000000e+00 : f32
    %cst_46 = arith.constant 6.000000e+00 : f32
    %342 = vector.broadcast %cst_45 : f32 to vector<32x256xf32>
    %343 = arith.maximumf %342, %341 : vector<32x256xf32>
    %344 = vector.broadcast %cst_46 : f32 to vector<32x256xf32>
    %345 = arith.minimumf %344, %343 : vector<32x256xf32>
    %346 = arith.mulf %339, %345 : vector<32x256xf32>
    %cst_47 = arith.constant 0.166666672 : f32
    %347 = vector.broadcast %cst_47 : f32 to vector<32x256xf32>
    %348 = arith.mulf %346, %347 : vector<32x256xf32>
    %c1_48 = arith.constant 1 : index
    %c0_49 = arith.constant 0 : index
    %c0_50 = arith.constant 0 : index
    %349 = vector.load %arg4[%c1_48, %c0_49, %c0_50] : memref<3x32x32xf32, #tpu.memory_space<vmem>>, vector<1x32x32xf32>
    %350 = vector.shape_cast %349 : vector<1x32x32xf32> to vector<32x32xf32>
    %cst_51 = arith.constant dense<0.000000e+00> : vector<32x256xf32>
    %351 = tpu.matmul %350, %348, %cst_51 {dimension_numbers = #tpu.dot_dimension_numbers<[1], [0], [0], [1], [0, 0, 1, 1], [], []>} : vector<32x32xf32>, vector<32x256xf32>, vector<32x256xf32> -> vector<32x256xf32>
    %c1_52 = arith.constant 1 : index
    %c0_53 = arith.constant 0 : index
    %c0_54 = arith.constant 0 : index
    %352 = vector.load %arg5[%c1_52, %c0_53, %c0_54] : memref<3x32x1xf32, #tpu.memory_space<vmem>>, vector<1x32x1xf32>
    %353 = vector.shape_cast %352 : vector<1x32x1xf32> to vector<32x1xf32>
    %354 = vector.broadcast %353 : vector<32x1xf32> to vector<32x256xf32>
    %355 = arith.addf %351, %354 : vector<32x256xf32>
    %cst_55 = arith.constant 3.000000e+00 : f32
    %356 = vector.broadcast %cst_55 : f32 to vector<32x256xf32>
    %357 = arith.addf %355, %356 : vector<32x256xf32>
    %cst_56 = arith.constant 0.000000e+00 : f32
    %cst_57 = arith.constant 6.000000e+00 : f32
    %358 = vector.broadcast %cst_56 : f32 to vector<32x256xf32>
    %359 = arith.maximumf %358, %357 : vector<32x256xf32>
    %360 = vector.broadcast %cst_57 : f32 to vector<32x256xf32>
    %361 = arith.minimumf %360, %359 : vector<32x256xf32>
    %362 = arith.mulf %355, %361 : vector<32x256xf32>
    %cst_58 = arith.constant 0.166666672 : f32
    %363 = vector.broadcast %cst_58 : f32 to vector<32x256xf32>
    %364 = arith.mulf %362, %363 : vector<32x256xf32>
    %c2 = arith.constant 2 : index
    %c0_59 = arith.constant 0 : index
    %c0_60 = arith.constant 0 : index
    %365 = vector.load %arg4[%c2, %c0_59, %c0_60] : memref<3x32x32xf32, #tpu.memory_space<vmem>>, vector<1x32x32xf32>
    %366 = vector.shape_cast %365 : vector<1x32x32xf32> to vector<32x32xf32>
    %cst_61 = arith.constant dense<0.000000e+00> : vector<32x256xf32>
    %367 = tpu.matmul %366, %364, %cst_61 {dimension_numbers = #tpu.dot_dimension_numbers<[1], [0], [0], [1], [0, 0, 1, 1], [], []>} : vector<32x32xf32>, vector<32x256xf32>, vector<32x256xf32> -> vector<32x256xf32>
    %c2_62 = arith.constant 2 : index
    %c0_63 = arith.constant 0 : index
    %c0_64 = arith.constant 0 : index
    %368 = vector.load %arg5[%c2_62, %c0_63, %c0_64] : memref<3x32x1xf32, #tpu.memory_space<vmem>>, vector<1x32x1xf32>
    %369 = vector.shape_cast %368 : vector<1x32x1xf32> to vector<32x1xf32>
    %370 = vector.broadcast %369 : vector<32x1xf32> to vector<32x256xf32>
    %371 = arith.addf %367, %370 : vector<32x256xf32>
    %cst_65 = arith.constant 3.000000e+00 : f32
    %372 = vector.broadcast %cst_65 : f32 to vector<32x256xf32>
    %373 = arith.addf %371, %372 : vector<32x256xf32>
    %cst_66 = arith.constant 0.000000e+00 : f32
    %cst_67 = arith.constant 6.000000e+00 : f32
    %374 = vector.broadcast %cst_66 : f32 to vector<32x256xf32>
    %375 = arith.maximumf %374, %373 : vector<32x256xf32>
    %376 = vector.broadcast %cst_67 : f32 to vector<32x256xf32>
    %377 = arith.minimumf %376, %375 : vector<32x256xf32>
    %378 = arith.mulf %371, %377 : vector<32x256xf32>
    %cst_68 = arith.constant 0.166666672 : f32
    %379 = vector.broadcast %cst_68 : f32 to vector<32x256xf32>
    %380 = arith.mulf %378, %379 : vector<32x256xf32>
    %cst_69 = arith.constant 0.000000e+00 : f32
    %381 = vector.broadcast %cst_69 : f32 to vector<32x324xf32>
    %c0_70 = arith.constant 0 : index
    %c0_71 = arith.constant 0 : index
    %382 = vector.load %arg13[%c0_70, %c0_71] : memref<32x324xf32, #tpu.memory_space<vmem>>, vector<32x324xf32>
    tpu.vector_store %arg13[%c0_70, %c0_71], %381 {strides = array<i32>} : memref<32x324xf32, #tpu.memory_space<vmem>>, vector<32x324xf32>,
    %c0_72 = arith.constant 0 : index
    %c17 = arith.constant 17 : index
    %383 = vector.load %arg13[%c0_72, %c17] : memref<32x324xf32, #tpu.memory_space<vmem>>, vector<32x256xf32>
    tpu.vector_store %arg13[%c0_72, %c17], %364 {strides = array<i32>} : memref<32x324xf32, #tpu.memory_space<vmem>>, vector<32x256xf32>,
    %c0_73 = arith.constant 0 : index
    %c0_74 = arith.constant 0 : index
    %384 = vector.load %arg13[%c0_73, %c0_74] : memref<32x324xf32, #tpu.memory_space<vmem>>, vector<32x324xf32>
    %cst_75 = arith.constant 0.000000e+00 : f32
    %385 = vector.broadcast %cst_75 : f32 to vector<80x256xf32>
    %386 = vector.extract_strided_slice %384 {offsets = [0, 0], sizes = [32, 288], strides = [1, 1]} : vector<32x324xf32> to vector<32x288xf32>
    %387 = vector.extract_strided_slice %0 {offsets = [1, 0], sizes = [1, 288], strides = [1, 1]} : vector<5x320xf32> to vector<1x288xf32>
    %388 = vector.broadcast %387 : vector<1x288xf32> to vector<32x288xf32>
    %389 = arith.mulf %386, %388 : vector<32x288xf32>
    %c0_76 = arith.constant 0 : index
    %c0_77 = arith.constant 0 : index
    %c0_78 = arith.constant 0 : index
    %390 = vector.load %arg6[%c0_76, %c0_77, %c0_78] : memref<9x80x32xf32, #tpu.memory_space<vmem>>, vector<1x80x32xf32>
    %391 = vector.shape_cast %390 : vector<1x80x32xf32> to vector<80x32xf32>
    %392 = vector.extract_strided_slice %389 {offsets = [0, 0], sizes = [32, 256], strides = [1, 1]} : vector<32x288xf32> to vector<32x256xf32>
    %cst_79 = arith.constant dense<0.000000e+00> : vector<80x256xf32>
    %393 = tpu.matmul %391, %392, %cst_79 {dimension_numbers = #tpu.dot_dimension_numbers<[1], [0], [0], [1], [0, 0, 1, 1], [], []>} : vector<80x32xf32>, vector<32x256xf32>, vector<80x256xf32> -> vector<80x256xf32>
    %394 = arith.addf %385, %393 : vector<80x256xf32>
    %c3 = arith.constant 3 : index
    %c0_80 = arith.constant 0 : index
    %c0_81 = arith.constant 0 : index
    %395 = vector.load %arg6[%c3, %c0_80, %c0_81] : memref<9x80x32xf32, #tpu.memory_space<vmem>>, vector<1x80x32xf32>
    %396 = vector.shape_cast %395 : vector<1x80x32xf32> to vector<80x32xf32>
    %397 = vector.extract_strided_slice %389 {offsets = [0, 16], sizes = [32, 256], strides = [1, 1]} : vector<32x288xf32> to vector<32x256xf32>
    %cst_82 = arith.constant dense<0.000000e+00> : vector<80x256xf32>
    %398 = tpu.matmul %396, %397, %cst_82 {dimension_numbers = #tpu.dot_dimension_numbers<[1], [0], [0], [1], [0, 0, 1, 1], [], []>} : vector<80x32xf32>, vector<32x256xf32>, vector<80x256xf32> -> vector<80x256xf32>
    %399 = arith.addf %394, %398 : vector<80x256xf32>
    %c6 = arith.constant 6 : index
    %c0_83 = arith.constant 0 : index
    %c0_84 = arith.constant 0 : index
    %400 = vector.load %arg6[%c6, %c0_83, %c0_84] : memref<9x80x32xf32, #tpu.memory_space<vmem>>, vector<1x80x32xf32>
    %401 = vector.shape_cast %400 : vector<1x80x32xf32> to vector<80x32xf32>
    %402 = vector.extract_strided_slice %389 {offsets = [0, 32], sizes = [32, 256], strides = [1, 1]} : vector<32x288xf32> to vector<32x256xf32>
    %cst_85 = arith.constant dense<0.000000e+00> : vector<80x256xf32>
    %403 = tpu.matmul %401, %402, %cst_85 {dimension_numbers = #tpu.dot_dimension_numbers<[1], [0], [0], [1], [0, 0, 1, 1], [], []>} : vector<80x32xf32>, vector<32x256xf32>, vector<80x256xf32> -> vector<80x256xf32>
    %404 = arith.addf %399, %403 : vector<80x256xf32>
    %405 = vector.extract_strided_slice %384 {offsets = [0, 1], sizes = [32, 288], strides = [1, 1]} : vector<32x324xf32> to vector<32x288xf32>
    %406 = vector.extract_strided_slice %0 {offsets = [2, 0], sizes = [1, 288], strides = [1, 1]} : vector<5x320xf32> to vector<1x288xf32>
    %407 = vector.broadcast %406 : vector<1x288xf32> to vector<32x288xf32>
    %408 = arith.mulf %405, %407 : vector<32x288xf32>
    %c1_86 = arith.constant 1 : index
    %c0_87 = arith.constant 0 : index
    %c0_88 = arith.constant 0 : index
    %409 = vector.load %arg6[%c1_86, %c0_87, %c0_88] : memref<9x80x32xf32, #tpu.memory_space<vmem>>, vector<1x80x32xf32>
    %410 = vector.shape_cast %409 : vector<1x80x32xf32> to vector<80x32xf32>
    %411 = vector.extract_strided_slice %408 {offsets = [0, 0], sizes = [32, 256], strides = [1, 1]} : vector<32x288xf32> to vector<32x256xf32>
    %cst_89 = arith.constant dense<0.000000e+00> : vector<80x256xf32>
    %412 = tpu.matmul %410, %411, %cst_89 {dimension_numbers = #tpu.dot_dimension_numbers<[1], [0], [0], [1], [0, 0, 1, 1], [], []>} : vector<80x32xf32>, vector<32x256xf32>, vector<80x256xf32> -> vector<80x256xf32>
    %413 = arith.addf %404, %412 : vector<80x256xf32>
    %c4 = arith.constant 4 : index
    %c0_90 = arith.constant 0 : index
    %c0_91 = arith.constant 0 : index
    %414 = vector.load %arg6[%c4, %c0_90, %c0_91] : memref<9x80x32xf32, #tpu.memory_space<vmem>>, vector<1x80x32xf32>
    %415 = vector.shape_cast %414 : vector<1x80x32xf32> to vector<80x32xf32>
    %416 = vector.extract_strided_slice %408 {offsets = [0, 16], sizes = [32, 256], strides = [1, 1]} : vector<32x288xf32> to vector<32x256xf32>
    %cst_92 = arith.constant dense<0.000000e+00> : vector<80x256xf32>
    %417 = tpu.matmul %415, %416, %cst_92 {dimension_numbers = #tpu.dot_dimension_numbers<[1], [0], [0], [1], [0, 0, 1, 1], [], []>} : vector<80x32xf32>, vector<32x256xf32>, vector<80x256xf32> -> vector<80x256xf32>
    %418 = arith.addf %413, %417 : vector<80x256xf32>
    %c7 = arith.constant 7 : index
    %c0_93 = arith.constant 0 : index
    %c0_94 = arith.constant 0 : index
    %419 = vector.load %arg6[%c7, %c0_93, %c0_94] : memref<9x80x32xf32, #tpu.memory_space<vmem>>, vector<1x80x32xf32>
    %420 = vector.shape_cast %419 : vector<1x80x32xf32> to vector<80x32xf32>
    %421 = vector.extract_strided_slice %408 {offsets = [0, 32], sizes = [32, 256], strides = [1, 1]} : vector<32x288xf32> to vector<32x256xf32>
    %cst_95 = arith.constant dense<0.000000e+00> : vector<80x256xf32>
    %422 = tpu.matmul %420, %421, %cst_95 {dimension_numbers = #tpu.dot_dimension_numbers<[1], [0], [0], [1], [0, 0, 1, 1], [], []>} : vector<80x32xf32>, vector<32x256xf32>, vector<80x256xf32> -> vector<80x256xf32>
    %423 = arith.addf %418, %422 : vector<80x256xf32>
    %424 = vector.extract_strided_slice %384 {offsets = [0, 2], sizes = [32, 288], strides = [1, 1]} : vector<32x324xf32> to vector<32x288xf32>
    %425 = vector.extract_strided_slice %0 {offsets = [3, 0], sizes = [1, 288], strides = [1, 1]} : vector<5x320xf32> to vector<1x288xf32>
    %426 = vector.broadcast %425 : vector<1x288xf32> to vector<32x288xf32>
    %427 = arith.mulf %424, %426 : vector<32x288xf32>
    %c2_96 = arith.constant 2 : index
    %c0_97 = arith.constant 0 : index
    %c0_98 = arith.constant 0 : index
    %428 = vector.load %arg6[%c2_96, %c0_97, %c0_98] : memref<9x80x32xf32, #tpu.memory_space<vmem>>, vector<1x80x32xf32>
    %429 = vector.shape_cast %428 : vector<1x80x32xf32> to vector<80x32xf32>
    %430 = vector.extract_strided_slice %427 {offsets = [0, 0], sizes = [32, 256], strides = [1, 1]} : vector<32x288xf32> to vector<32x256xf32>
    %cst_99 = arith.constant dense<0.000000e+00> : vector<80x256xf32>
    %431 = tpu.matmul %429, %430, %cst_99 {dimension_numbers = #tpu.dot_dimension_numbers<[1], [0], [0], [1], [0, 0, 1, 1], [], []>} : vector<80x32xf32>, vector<32x256xf32>, vector<80x256xf32> -> vector<80x256xf32>
    %432 = arith.addf %423, %431 : vector<80x256xf32>
    %c5 = arith.constant 5 : index
    %c0_100 = arith.constant 0 : index
    %c0_101 = arith.constant 0 : index
    %433 = vector.load %arg6[%c5, %c0_100, %c0_101] : memref<9x80x32xf32, #tpu.memory_space<vmem>>, vector<1x80x32xf32>
    %434 = vector.shape_cast %433 : vector<1x80x32xf32> to vector<80x32xf32>
    %435 = vector.extract_strided_slice %427 {offsets = [0, 16], sizes = [32, 256], strides = [1, 1]} : vector<32x288xf32> to vector<32x256xf32>
    %cst_102 = arith.constant dense<0.000000e+00> : vector<80x256xf32>
    %436 = tpu.matmul %434, %435, %cst_102 {dimension_numbers = #tpu.dot_dimension_numbers<[1], [0], [0], [1], [0, 0, 1, 1], [], []>} : vector<80x32xf32>, vector<32x256xf32>, vector<80x256xf32> -> vector<80x256xf32>
    %437 = arith.addf %432, %436 : vector<80x256xf32>
    %c8 = arith.constant 8 : index
    %c0_103 = arith.constant 0 : index
    %c0_104 = arith.constant 0 : index
    %438 = vector.load %arg6[%c8, %c0_103, %c0_104] : memref<9x80x32xf32, #tpu.memory_space<vmem>>, vector<1x80x32xf32>
    %439 = vector.shape_cast %438 : vector<1x80x32xf32> to vector<80x32xf32>
    %440 = vector.extract_strided_slice %427 {offsets = [0, 32], sizes = [32, 256], strides = [1, 1]} : vector<32x288xf32> to vector<32x256xf32>
    %cst_105 = arith.constant dense<0.000000e+00> : vector<80x256xf32>
    %441 = tpu.matmul %439, %440, %cst_105 {dimension_numbers = #tpu.dot_dimension_numbers<[1], [0], [0], [1], [0, 0, 1, 1], [], []>} : vector<80x32xf32>, vector<32x256xf32>, vector<80x256xf32> -> vector<80x256xf32>
    %442 = arith.addf %437, %441 : vector<80x256xf32>
    %c0_106 = arith.constant 0 : index
    %c0_107 = arith.constant 0 : index
    %443 = vector.load %arg7[%c0_106, %c0_107] : memref<80x1xf32, #tpu.memory_space<vmem>>, vector<80x1xf32>
    %444 = vector.broadcast %443 : vector<80x1xf32> to vector<80x256xf32>
    %445 = arith.addf %442, %444 : vector<80x256xf32>
    %c0_108 = arith.constant 0 : index
    %c0_109 = arith.constant 0 : index
    %c0_110 = arith.constant 0 : index
    %446 = vector.load %arg11[%c0_108, %c0_109, %c0_110] : memref<1x80x256xf32, #tpu.memory_space<vmem>>, vector<1x80x256xf32>
    %447 = vector.shape_cast %446 : vector<1x80x256xf32> to vector<80x256xf32>
    %448 = vector.shape_cast %445 : vector<80x256xf32> to vector<1x80x256xf32>
    tpu.vector_store %arg11[%c0_108, %c0_109, %c0_110], %448 {strides = array<i32>} : memref<1x80x256xf32, #tpu.memory_space<vmem>>, vector<1x80x256xf32>,
    %cst_111 = arith.constant 0.000000e+00 : f32
    %449 = vector.broadcast %cst_111 : f32 to vector<32x324xf32>
    %c0_112 = arith.constant 0 : index
    %c0_113 = arith.constant 0 : index
    %450 = vector.load %arg13[%c0_112, %c0_113] : memref<32x324xf32, #tpu.memory_space<vmem>>, vector<32x324xf32>
    tpu.vector_store %arg13[%c0_112, %c0_113], %449 {strides = array<i32>} : memref<32x324xf32, #tpu.memory_space<vmem>>, vector<32x324xf32>,
    %c0_114 = arith.constant 0 : index
    %c17_115 = arith.constant 17 : index
    %451 = vector.load %arg13[%c0_114, %c17_115] : memref<32x324xf32, #tpu.memory_space<vmem>>, vector<32x256xf32>
    tpu.vector_store %arg13[%c0_114, %c17_115], %380 {strides = array<i32>} : memref<32x324xf32, #tpu.memory_space<vmem>>, vector<32x256xf32>,
    %c0_116 = arith.constant 0 : index
    %c0_117 = arith.constant 0 : index
    %452 = vector.load %arg13[%c0_116, %c0_117] : memref<32x324xf32, #tpu.memory_space<vmem>>, vector<32x324xf32>
    %cst_118 = arith.constant 0.000000e+00 : f32
    %453 = vector.broadcast %cst_118 : f32 to vector<68x256xf32>
    %454 = vector.extract_strided_slice %452 {offsets = [0, 0], sizes = [32, 288], strides = [1, 1]} : vector<32x324xf32> to vector<32x288xf32>
    %455 = vector.extract_strided_slice %0 {offsets = [1, 0], sizes = [1, 288], strides = [1, 1]} : vector<5x320xf32> to vector<1x288xf32>
    %456 = vector.broadcast %455 : vector<1x288xf32> to vector<32x288xf32>
    %457 = arith.mulf %454, %456 : vector<32x288xf32>
    %c0_119 = arith.constant 0 : index
    %c0_120 = arith.constant 0 : index
    %c0_121 = arith.constant 0 : index
    %458 = vector.load %arg8[%c0_119, %c0_120, %c0_121] : memref<9x68x32xf32, #tpu.memory_space<vmem>>, vector<1x68x32xf32>
    %459 = vector.shape_cast %458 : vector<1x68x32xf32> to vector<68x32xf32>
    %460 = vector.extract_strided_slice %457 {offsets = [0, 0], sizes = [32, 256], strides = [1, 1]} : vector<32x288xf32> to vector<32x256xf32>
    %cst_122 = arith.constant dense<0.000000e+00> : vector<68x256xf32>
    %461 = tpu.matmul %459, %460, %cst_122 {dimension_numbers = #tpu.dot_dimension_numbers<[1], [0], [0], [1], [0, 0, 1, 1], [], []>} : vector<68x32xf32>, vector<32x256xf32>, vector<68x256xf32> -> vector<68x256xf32>
    %462 = arith.addf %453, %461 : vector<68x256xf32>
    %c3_123 = arith.constant 3 : index
    %c0_124 = arith.constant 0 : index
    %c0_125 = arith.constant 0 : index
    %463 = vector.load %arg8[%c3_123, %c0_124, %c0_125] : memref<9x68x32xf32, #tpu.memory_space<vmem>>, vector<1x68x32xf32>
    %464 = vector.shape_cast %463 : vector<1x68x32xf32> to vector<68x32xf32>
    %465 = vector.extract_strided_slice %457 {offsets = [0, 16], sizes = [32, 256], strides = [1, 1]} : vector<32x288xf32> to vector<32x256xf32>
    %cst_126 = arith.constant dense<0.000000e+00> : vector<68x256xf32>
    %466 = tpu.matmul %464, %465, %cst_126 {dimension_numbers = #tpu.dot_dimension_numbers<[1], [0], [0], [1], [0, 0, 1, 1], [], []>} : vector<68x32xf32>, vector<32x256xf32>, vector<68x256xf32> -> vector<68x256xf32>
    %467 = arith.addf %462, %466 : vector<68x256xf32>
    %c6_127 = arith.constant 6 : index
    %c0_128 = arith.constant 0 : index
    %c0_129 = arith.constant 0 : index
    %468 = vector.load %arg8[%c6_127, %c0_128, %c0_129] : memref<9x68x32xf32, #tpu.memory_space<vmem>>, vector<1x68x32xf32>
    %469 = vector.shape_cast %468 : vector<1x68x32xf32> to vector<68x32xf32>
    %470 = vector.extract_strided_slice %457 {offsets = [0, 32], sizes = [32, 256], strides = [1, 1]} : vector<32x288xf32> to vector<32x256xf32>
    %cst_130 = arith.constant dense<0.000000e+00> : vector<68x256xf32>
    %471 = tpu.matmul %469, %470, %cst_130 {dimension_numbers = #tpu.dot_dimension_numbers<[1], [0], [0], [1], [0, 0, 1, 1], [], []>} : vector<68x32xf32>, vector<32x256xf32>, vector<68x256xf32> -> vector<68x256xf32>
    %472 = arith.addf %467, %471 : vector<68x256xf32>
    %473 = vector.extract_strided_slice %452 {offsets = [0, 1], sizes = [32, 288], strides = [1, 1]} : vector<32x324xf32> to vector<32x288xf32>
    %474 = vector.extract_strided_slice %0 {offsets = [2, 0], sizes = [1, 288], strides = [1, 1]} : vector<5x320xf32> to vector<1x288xf32>
    %475 = vector.broadcast %474 : vector<1x288xf32> to vector<32x288xf32>
    %476 = arith.mulf %473, %475 : vector<32x288xf32>
    %c1_131 = arith.constant 1 : index
    %c0_132 = arith.constant 0 : index
    %c0_133 = arith.constant 0 : index
    %477 = vector.load %arg8[%c1_131, %c0_132, %c0_133] : memref<9x68x32xf32, #tpu.memory_space<vmem>>, vector<1x68x32xf32>
    %478 = vector.shape_cast %477 : vector<1x68x32xf32> to vector<68x32xf32>
    %479 = vector.extract_strided_slice %476 {offsets = [0, 0], sizes = [32, 256], strides = [1, 1]} : vector<32x288xf32> to vector<32x256xf32>
    %cst_134 = arith.constant dense<0.000000e+00> : vector<68x256xf32>
    %480 = tpu.matmul %478, %479, %cst_134 {dimension_numbers = #tpu.dot_dimension_numbers<[1], [0], [0], [1], [0, 0, 1, 1], [], []>} : vector<68x32xf32>, vector<32x256xf32>, vector<68x256xf32> -> vector<68x256xf32>
    %481 = arith.addf %472, %480 : vector<68x256xf32>
    %c4_135 = arith.constant 4 : index
    %c0_136 = arith.constant 0 : index
    %c0_137 = arith.constant 0 : index
    %482 = vector.load %arg8[%c4_135, %c0_136, %c0_137] : memref<9x68x32xf32, #tpu.memory_space<vmem>>, vector<1x68x32xf32>
    %483 = vector.shape_cast %482 : vector<1x68x32xf32> to vector<68x32xf32>
    %484 = vector.extract_strided_slice %476 {offsets = [0, 16], sizes = [32, 256], strides = [1, 1]} : vector<32x288xf32> to vector<32x256xf32>
    %cst_138 = arith.constant dense<0.000000e+00> : vector<68x256xf32>
    %485 = tpu.matmul %483, %484, %cst_138 {dimension_numbers = #tpu.dot_dimension_numbers<[1], [0], [0], [1], [0, 0, 1, 1], [], []>} : vector<68x32xf32>, vector<32x256xf32>, vector<68x256xf32> -> vector<68x256xf32>
    %486 = arith.addf %481, %485 : vector<68x256xf32>
    %c7_139 = arith.constant 7 : index
    %c0_140 = arith.constant 0 : index
    %c0_141 = arith.constant 0 : index
    %487 = vector.load %arg8[%c7_139, %c0_140, %c0_141] : memref<9x68x32xf32, #tpu.memory_space<vmem>>, vector<1x68x32xf32>
    %488 = vector.shape_cast %487 : vector<1x68x32xf32> to vector<68x32xf32>
    %489 = vector.extract_strided_slice %476 {offsets = [0, 32], sizes = [32, 256], strides = [1, 1]} : vector<32x288xf32> to vector<32x256xf32>
    %cst_142 = arith.constant dense<0.000000e+00> : vector<68x256xf32>
    %490 = tpu.matmul %488, %489, %cst_142 {dimension_numbers = #tpu.dot_dimension_numbers<[1], [0], [0], [1], [0, 0, 1, 1], [], []>} : vector<68x32xf32>, vector<32x256xf32>, vector<68x256xf32> -> vector<68x256xf32>
    %491 = arith.addf %486, %490 : vector<68x256xf32>
    %492 = vector.extract_strided_slice %452 {offsets = [0, 2], sizes = [32, 288], strides = [1, 1]} : vector<32x324xf32> to vector<32x288xf32>
    %493 = vector.extract_strided_slice %0 {offsets = [3, 0], sizes = [1, 288], strides = [1, 1]} : vector<5x320xf32> to vector<1x288xf32>
    %494 = vector.broadcast %493 : vector<1x288xf32> to vector<32x288xf32>
    %495 = arith.mulf %492, %494 : vector<32x288xf32>
    %c2_143 = arith.constant 2 : index
    %c0_144 = arith.constant 0 : index
    %c0_145 = arith.constant 0 : index
    %496 = vector.load %arg8[%c2_143, %c0_144, %c0_145] : memref<9x68x32xf32, #tpu.memory_space<vmem>>, vector<1x68x32xf32>
    %497 = vector.shape_cast %496 : vector<1x68x32xf32> to vector<68x32xf32>
    %498 = vector.extract_strided_slice %495 {offsets = [0, 0], sizes = [32, 256], strides = [1, 1]} : vector<32x288xf32> to vector<32x256xf32>
    %cst_146 = arith.constant dense<0.000000e+00> : vector<68x256xf32>
    %499 = tpu.matmul %497, %498, %cst_146 {dimension_numbers = #tpu.dot_dimension_numbers<[1], [0], [0], [1], [0, 0, 1, 1], [], []>} : vector<68x32xf32>, vector<32x256xf32>, vector<68x256xf32> -> vector<68x256xf32>
    %500 = arith.addf %491, %499 : vector<68x256xf32>
    %c5_147 = arith.constant 5 : index
    %c0_148 = arith.constant 0 : index
    %c0_149 = arith.constant 0 : index
    %501 = vector.load %arg8[%c5_147, %c0_148, %c0_149] : memref<9x68x32xf32, #tpu.memory_space<vmem>>, vector<1x68x32xf32>
    %502 = vector.shape_cast %501 : vector<1x68x32xf32> to vector<68x32xf32>
    %503 = vector.extract_strided_slice %495 {offsets = [0, 16], sizes = [32, 256], strides = [1, 1]} : vector<32x288xf32> to vector<32x256xf32>
    %cst_150 = arith.constant dense<0.000000e+00> : vector<68x256xf32>
    %504 = tpu.matmul %502, %503, %cst_150 {dimension_numbers = #tpu.dot_dimension_numbers<[1], [0], [0], [1], [0, 0, 1, 1], [], []>} : vector<68x32xf32>, vector<32x256xf32>, vector<68x256xf32> -> vector<68x256xf32>
    %505 = arith.addf %500, %504 : vector<68x256xf32>
    %c8_151 = arith.constant 8 : index
    %c0_152 = arith.constant 0 : index
    %c0_153 = arith.constant 0 : index
    %506 = vector.load %arg8[%c8_151, %c0_152, %c0_153] : memref<9x68x32xf32, #tpu.memory_space<vmem>>, vector<1x68x32xf32>
    %507 = vector.shape_cast %506 : vector<1x68x32xf32> to vector<68x32xf32>
    %508 = vector.extract_strided_slice %495 {offsets = [0, 32], sizes = [32, 256], strides = [1, 1]} : vector<32x288xf32> to vector<32x256xf32>
    %cst_154 = arith.constant dense<0.000000e+00> : vector<68x256xf32>
    %509 = tpu.matmul %507, %508, %cst_154 {dimension_numbers = #tpu.dot_dimension_numbers<[1], [0], [0], [1], [0, 0, 1, 1], [], []>} : vector<68x32xf32>, vector<32x256xf32>, vector<68x256xf32> -> vector<68x256xf32>
    %510 = arith.addf %505, %509 : vector<68x256xf32>
    %c0_155 = arith.constant 0 : index
    %c0_156 = arith.constant 0 : index
    %511 = vector.load %arg9[%c0_155, %c0_156] : memref<68x1xf32, #tpu.memory_space<vmem>>, vector<68x1xf32>
    %512 = vector.broadcast %511 : vector<68x1xf32> to vector<68x256xf32>
    %513 = arith.addf %510, %512 : vector<68x256xf32>
    %c0_157 = arith.constant 0 : index
    %c0_158 = arith.constant 0 : index
    %c0_159 = arith.constant 0 : index
    %514 = vector.load %arg12[%c0_157, %c0_158, %c0_159] : memref<1x68x256xf32, #tpu.memory_space<vmem>>, vector<1x68x256xf32>
    %515 = vector.shape_cast %514 : vector<1x68x256xf32> to vector<68x256xf32>
    %516 = vector.shape_cast %513 : vector<68x256xf32> to vector<1x68x256xf32>
    tpu.vector_store %arg12[%c0_157, %c0_158, %c0_159], %516 {strides = array<i32>} : memref<1x68x256xf32, #tpu.memory_space<vmem>>, vector<1x68x256xf32>,
    return
  }
  func.func @transform_0(%arg0: i32) -> (i32, i32, i32) {
    %c0_i32 = arith.constant 0 : i32
    %c0_i32_0 = arith.constant 0 : i32
    %c0_i32_1 = arith.constant 0 : i32
    return %arg0, %c0_i32, %c0_i32_0 : i32, i32, i32
  }
  func.func @transform_1(%arg0: i32) -> (i32, i32, i32) {
    %c0_i32 = arith.constant 0 : i32
    %c0_i32_0 = arith.constant 0 : i32
    %c0_i32_1 = arith.constant 0 : i32
    %c0_i32_2 = arith.constant 0 : i32
    return %c0_i32, %c0_i32_0, %c0_i32_1 : i32, i32, i32
  }
  func.func @transform_2(%arg0: i32) -> (i32, i32, i32) {
    %c0_i32 = arith.constant 0 : i32
    %c0_i32_0 = arith.constant 0 : i32
    %c0_i32_1 = arith.constant 0 : i32
    %c0_i32_2 = arith.constant 0 : i32
    return %c0_i32, %c0_i32_0, %c0_i32_1 : i32, i32, i32
  }
  func.func @transform_3(%arg0: i32) -> (i32, i32, i32) {
    %c0_i32 = arith.constant 0 : i32
    %c0_i32_0 = arith.constant 0 : i32
    %c0_i32_1 = arith.constant 0 : i32
    %c0_i32_2 = arith.constant 0 : i32
    return %c0_i32, %c0_i32_0, %c0_i32_1 : i32, i32, i32
  }
  func.func @transform_4(%arg0: i32) -> (i32, i32, i32) {
    %c0_i32 = arith.constant 0 : i32
    %c0_i32_0 = arith.constant 0 : i32
    %c0_i32_1 = arith.constant 0 : i32
    %c0_i32_2 = arith.constant 0 : i32
    return %c0_i32, %c0_i32_0, %c0_i32_1 : i32, i32, i32
  }
  func.func @transform_5(%arg0: i32) -> (i32, i32, i32) {
    %c0_i32 = arith.constant 0 : i32
    %c0_i32_0 = arith.constant 0 : i32
    %c0_i32_1 = arith.constant 0 : i32
    %c0_i32_2 = arith.constant 0 : i32
    return %c0_i32, %c0_i32_0, %c0_i32_1 : i32, i32, i32
  }
  func.func @transform_6(%arg0: i32) -> (i32, i32) {
    %c0_i32 = arith.constant 0 : i32
    %c0_i32_0 = arith.constant 0 : i32
    %c0_i32_1 = arith.constant 0 : i32
    return %c0_i32, %c0_i32_0 : i32, i32
  }
  func.func @transform_7(%arg0: i32) -> (i32, i32, i32) {
    %c0_i32 = arith.constant 0 : i32
    %c0_i32_0 = arith.constant 0 : i32
    %c0_i32_1 = arith.constant 0 : i32
    %c0_i32_2 = arith.constant 0 : i32
    return %c0_i32, %c0_i32_0, %c0_i32_1 : i32, i32, i32
  }
  func.func @transform_8(%arg0: i32) -> (i32, i32) {
    %c0_i32 = arith.constant 0 : i32
    %c0_i32_0 = arith.constant 0 : i32
    %c0_i32_1 = arith.constant 0 : i32
    return %c0_i32, %c0_i32_0 : i32, i32
  }
  func.func @transform_9(%arg0: i32) -> (i32, i32) {
    %c0_i32 = arith.constant 0 : i32
    %c0_i32_0 = arith.constant 0 : i32
    %c0_i32_1 = arith.constant 0 : i32
    return %c0_i32, %c0_i32_0 : i32, i32
  }
  func.func @transform_10(%arg0: i32) -> (i32, i32, i32) {
    %c0_i32 = arith.constant 0 : i32
    %c0_i32_0 = arith.constant 0 : i32
    %c0_i32_1 = arith.constant 0 : i32
    return %arg0, %c0_i32, %c0_i32_0 : i32, i32, i32
  }
  func.func @transform_11(%arg0: i32) -> (i32, i32, i32) {
    %c0_i32 = arith.constant 0 : i32
    %c0_i32_0 = arith.constant 0 : i32
    %c0_i32_1 = arith.constant 0 : i32
    return %arg0, %c0_i32, %c0_i32_0 : i32, i32, i32
  }
}

</mosaic_0001>

<llo_original>
// kernel: tpu_custom_call.1
$region0: #{tpu_custom_call.1}
  #allocation0 [shape = 'u32[]', space=smem, size = 0x4, offset = 0x4, fixed_abs, tag = 'smem constant byte address 0x4 - core index']
  #allocation1 [shape = 'u32[144,128]{1,0:T(1,128)}', space=vmem, size = 0x12000, scoped, tag = 'internal scratch']
  #allocation2 [shape = 'f32[32,324]{1,0:T(8,128)}', space=vmem, size = 0xc000, scoped, tag = 'scratch operand']
  %s0 = inlined_call_operand.vmem [shape: f32[2,32,256], index: 0, kind: input, shape index: {}]
  %s1 = inlined_call_operand.vmem [shape: f32[2,32,25], index: 1, kind: input, shape index: {}]
  %s2 = inlined_call_operand.vmem [shape: f32[2,32,1], index: 2, kind: input, shape index: {}]
  %s3 = inlined_call_operand.vmem [shape: f32[3,32,32], index: 3, kind: input, shape index: {}]
  %s4 = inlined_call_operand.vmem [shape: f32[3,32,1], index: 4, kind: input, shape index: {}]
  %s5 = inlined_call_operand.vmem [shape: f32[9,80,32], index: 5, kind: input, shape index: {}]
  %s6 = inlined_call_operand.vmem [shape: f32[80,1], index: 6, kind: input, shape index: {}]
  %s7 = inlined_call_operand.vmem [shape: f32[9,68,32], index: 7, kind: input, shape index: {}]
  %s8 = inlined_call_operand.vmem [shape: f32[68,1], index: 8, kind: input, shape index: {}]
  %s9 = inlined_call_operand.vmem [shape: f32[5,320], index: 9, kind: input, shape index: {}]
  %s10 = inlined_call_operand.hbm [shape: f32[2,80,256], index: 10, kind: output, shape index: {0}]
  %s11 = inlined_call_operand.vmem [shape: f32[2,68,256], index: 11, kind: output, shape index: {1}]
  %12 = xla_tuple %s10, %s11
  %s13 = sld [smem:[#allocation0]]
  $region81: #{tpu_custom_call.1} parent=0
    _
  %s15 = ssub.s32 1, %s13
  %s16 = scalar_select 0, %s15, %s13
  $region1: #{tpu_custom_call.1} parent=0
    #allocation3 [shape = 'u8[163840]{0}', space=vmem, size = 0x28000, scoped, tag = 'output window, operand 0']
    #allocation4 [shape = 's32[2]{0}', space=sflag, size = 0x8, scoped, tag = 'scoped memory for tpu_custom_call.1']
    %17 = vsyncpa [#allocation4], 0
    %s18 = scalar_lea.sflag [#allocation4], 1
    %19 = vsyncpa %s18, 0
    loop: start=0, step=1, limit=4
    $region2: #{tpu_custom_call.1} parent=1 // loop_pre_header
      _
    $region3: #{tpu_custom_call.1} parent=1 // loop_header
      %s21 = sphi 0, %s25
      %p22 = scmp.ge.s32.totalorder %s21, 4
      %s31 = sphi 0, %s33
      %s34 = sphi 0, %s31
      %s35 = sphi 0, %s34
      %s51 = sphi 0, %s35
      %s55 = sphi 0, %s55
      %s57 = sphi 0, %s55
      %s58 = sphi 0, %s57
      %s72 = sphi 0, %s58
      %s76 = sphi 0, %s76
      %s78 = sphi 0, %s76
      %s79 = sphi 0, %s78
      %s93 = sphi 0, %s79
      %s97 = sphi 0, %s97
      %s99 = sphi 0, %s97
      %s100 = sphi 0, %s99
      %s114 = sphi 0, %s100
      %s118 = sphi 0, %s118
      %s120 = sphi 0, %s118
      %s121 = sphi 0, %s120
      %s135 = sphi 0, %s121
      %s139 = sphi 0, %s139
      %s141 = sphi 0, %s139
      %s142 = sphi 0, %s141
      %s156 = sphi 0, %s142
      %s160 = sphi 0, %s160
      %s162 = sphi 0, %s160
      %s163 = sphi 0, %s162
      %s177 = sphi 0, %s163
      %s181 = sphi 0, %s181
      %s183 = sphi 0, %s181
      %s184 = sphi 0, %s183
      %s198 = sphi 0, %s184
      %s202 = sphi 0, %s202
      %s204 = sphi 0, %s202
      %s205 = sphi 0, %s204
      %s219 = sphi 0, %s205
      %s223 = sphi 0, %s223
      %s225 = sphi 0, %s223
      %s226 = sphi 0, %s225
      %s240 = sphi 0, %s226
      %s246 = sphi 0, %s248
      %s249 = sphi 0, %s246
      %s250 = sphi 0, %s249
      %s266 = sphi 0, %s250
      %s272 = sphi 0, %s274
      %s275 = sphi 0, %s272
      %s276 = sphi 0, %s275
      %s292 = sphi 0, %s276
    $region4: #{tpu_custom_call.1} parent=1 // loop_header_branch
      %24 = sbr.rel (%p22) target = $region8
    $region5: #{tpu_custom_call.1} parent=1 // loop_body
      %s26 = ssub.s32 %s21, 1
      %s27 = ssub.s32 %s21, 2
      %s28 = sadd.s32 %s21, 1
      %s29 = ssub.s32 %s21, %s28
      %p30 = scmp.eq.s32.totalorder %s29, 0
      %s32 = sadd.s32 %s31, 1
      %s33 = scalar_select %p30, %s31, %s32
      %p36 = pneg %p30
      %p37 = scmp.eq.s32.totalorder %s21, 1
      %p38 = por %p36, %p37
      %p39 = scmp.ne.s32.totalorder %s31, %s34
      %p40 = scmp.eq.s32.totalorder %s21, 0
      %p41 = por %p39, %p40
      %p42 = scmp.ne.s32.totalorder %s31, %s34
      %p43 = scmp.eq.s32.totalorder %s26, 1
      %p44 = por %p42, %p43
      %p45 = scmp.ne.s32.totalorder %s34, %s35
      %p46 = scmp.eq.s32.totalorder %s26, 0
      %p47 = por %p45, %p46
      %p48 = scmp.ne.s32.totalorder %s34, %s35
      %p49 = scmp.eq.s32.totalorder %s27, 1
      %p50 = por %p48, %p49
      %p52 = scmp.ne.s32.totalorder %s35, %s51
      %p53 = scmp.eq.s32.totalorder %s27, 0
      %p54 = por %p52, %p53
      %s56 = sadd.s32 %s55, 1
      %p59 = scmp.eq.s32.totalorder %s21, 1
      %p60 = scmp.ne.s32.totalorder %s55, %s57
      %p61 = scmp.eq.s32.totalorder %s21, 0
      %p62 = por %p60, %p61
      %p63 = scmp.ne.s32.totalorder %s55, %s57
      %p64 = scmp.eq.s32.totalorder %s26, 1
      %p65 = por %p63, %p64
      %p66 = scmp.ne.s32.totalorder %s57, %s58
      %p67 = scmp.eq.s32.totalorder %s26, 0
      %p68 = por %p66, %p67
      %p69 = scmp.ne.s32.totalorder %s57, %s58
      %p70 = scmp.eq.s32.totalorder %s27, 1
      %p71 = por %p69, %p70
      %p73 = scmp.ne.s32.totalorder %s58, %s72
      %p74 = scmp.eq.s32.totalorder %s27, 0
      %p75 = por %p73, %p74
      %s77 = sadd.s32 %s76, 1
      %p80 = scmp.eq.s32.totalorder %s21, 1
      %p81 = scmp.ne.s32.totalorder %s76, %s78
      %p82 = scmp.eq.s32.totalorder %s21, 0
      %p83 = por %p81, %p82
      %p84 = scmp.ne.s32.totalorder %s76, %s78
      %p85 = scmp.eq.s32.totalorder %s26, 1
      %p86 = por %p84, %p85
      %p87 = scmp.ne.s32.totalorder %s78, %s79
      %p88 = scmp.eq.s32.totalorder %s26, 0
      %p89 = por %p87, %p88
      %p90 = scmp.ne.s32.totalorder %s78, %s79
      %p91 = scmp.eq.s32.totalorder %s27, 1
      %p92 = por %p90, %p91
      %p94 = scmp.ne.s32.totalorder %s79, %s93
      %p95 = scmp.eq.s32.totalorder %s27, 0
      %p96 = por %p94, %p95
      %s98 = sadd.s32 %s97, 1
      %p101 = scmp.eq.s32.totalorder %s21, 1
      %p102 = scmp.ne.s32.totalorder %s97, %s99
      %p103 = scmp.eq.s32.totalorder %s21, 0
      %p104 = por %p102, %p103
      %p105 = scmp.ne.s32.totalorder %s97, %s99
      %p106 = scmp.eq.s32.totalorder %s26, 1
      %p107 = por %p105, %p106
      %p108 = scmp.ne.s32.totalorder %s99, %s100
      %p109 = scmp.eq.s32.totalorder %s26, 0
      %p110 = por %p108, %p109
      %p111 = scmp.ne.s32.totalorder %s99, %s100
      %p112 = scmp.eq.s32.totalorder %s27, 1
      %p113 = por %p111, %p112
      %p115 = scmp.ne.s32.totalorder %s100, %s114
      %p116 = scmp.eq.s32.totalorder %s27, 0
      %p117 = por %p115, %p116
      %s119 = sadd.s32 %s118, 1
      %p122 = scmp.eq.s32.totalorder %s21, 1
      %p123 = scmp.ne.s32.totalorder %s118, %s120
      %p124 = scmp.eq.s32.totalorder %s21, 0
      %p125 = por %p123, %p124
      %p126 = scmp.ne.s32.totalorder %s118, %s120
      %p127 = scmp.eq.s32.totalorder %s26, 1
      %p128 = por %p126, %p127
      %p129 = scmp.ne.s32.totalorder %s120, %s121
      %p130 = scmp.eq.s32.totalorder %s26, 0
      %p131 = por %p129, %p130
      %p132 = scmp.ne.s32.totalorder %s120, %s121
      %p133 = scmp.eq.s32.totalorder %s27, 1
      %p134 = por %p132, %p133
      %p136 = scmp.ne.s32.totalorder %s121, %s135
      %p137 = scmp.eq.s32.totalorder %s27, 0
      %p138 = por %p136, %p137
      %s140 = sadd.s32 %s139, 1
      %p143 = scmp.eq.s32.totalorder %s21, 1
      %p144 = scmp.ne.s32.totalorder %s139, %s141
      %p145 = scmp.eq.s32.totalorder %s21, 0
      %p146 = por %p144, %p145
      %p147 = scmp.ne.s32.totalorder %s139, %s141
      %p148 = scmp.eq.s32.totalorder %s26, 1
      %p149 = por %p147, %p148
      %p150 = scmp.ne.s32.totalorder %s141, %s142
      %p151 = scmp.eq.s32.totalorder %s26, 0
      %p152 = por %p150, %p151
      %p153 = scmp.ne.s32.totalorder %s141, %s142
      %p154 = scmp.eq.s32.totalorder %s27, 1
      %p155 = por %p153, %p154
      %p157 = scmp.ne.s32.totalorder %s142, %s156
      %p158 = scmp.eq.s32.totalorder %s27, 0
      %p159 = por %p157, %p158
      %s161 = sadd.s32 %s160, 1
      %p164 = scmp.eq.s32.totalorder %s21, 1
      %p165 = scmp.ne.s32.totalorder %s160, %s162
      %p166 = scmp.eq.s32.totalorder %s21, 0
      %p167 = por %p165, %p166
      %p168 = scmp.ne.s32.totalorder %s160, %s162
      %p169 = scmp.eq.s32.totalorder %s26, 1
      %p170 = por %p168, %p169
      %p171 = scmp.ne.s32.totalorder %s162, %s163
      %p172 = scmp.eq.s32.totalorder %s26, 0
      %p173 = por %p171, %p172
      %p174 = scmp.ne.s32.totalorder %s162, %s163
      %p175 = scmp.eq.s32.totalorder %s27, 1
      %p176 = por %p174, %p175
      %p178 = scmp.ne.s32.totalorder %s163, %s177
      %p179 = scmp.eq.s32.totalorder %s27, 0
      %p180 = por %p178, %p179
      %s182 = sadd.s32 %s181, 1
      %p185 = scmp.eq.s32.totalorder %s21, 1
      %p186 = scmp.ne.s32.totalorder %s181, %s183
      %p187 = scmp.eq.s32.totalorder %s21, 0
      %p188 = por %p186, %p187
      %p189 = scmp.ne.s32.totalorder %s181, %s183
      %p190 = scmp.eq.s32.totalorder %s26, 1
      %p191 = por %p189, %p190
      %p192 = scmp.ne.s32.totalorder %s183, %s184
      %p193 = scmp.eq.s32.totalorder %s26, 0
      %p194 = por %p192, %p193
      %p195 = scmp.ne.s32.totalorder %s183, %s184
      %p196 = scmp.eq.s32.totalorder %s27, 1
      %p197 = por %p195, %p196
      %p199 = scmp.ne.s32.totalorder %s184, %s198
      %p200 = scmp.eq.s32.totalorder %s27, 0
      %p201 = por %p199, %p200
      %s203 = sadd.s32 %s202, 1
      %p206 = scmp.eq.s32.totalorder %s21, 1
      %p207 = scmp.ne.s32.totalorder %s202, %s204
      %p208 = scmp.eq.s32.totalorder %s21, 0
      %p209 = por %p207, %p208
      %p210 = scmp.ne.s32.totalorder %s202, %s204
      %p211 = scmp.eq.s32.totalorder %s26, 1
      %p212 = por %p210, %p211
      %p213 = scmp.ne.s32.totalorder %s204, %s205
      %p214 = scmp.eq.s32.totalorder %s26, 0
      %p215 = por %p213, %p214
      %p216 = scmp.ne.s32.totalorder %s204, %s205
      %p217 = scmp.eq.s32.totalorder %s27, 1
      %p218 = por %p216, %p217
      %p220 = scmp.ne.s32.totalorder %s205, %s219
      %p221 = scmp.eq.s32.totalorder %s27, 0
      %p222 = por %p220, %p221
      %s224 = sadd.s32 %s223, 1
      %p227 = scmp.eq.s32.totalorder %s21, 1
      %p228 = scmp.ne.s32.totalorder %s223, %s225
      %p229 = scmp.eq.s32.totalorder %s21, 0
      %p230 = por %p228, %p229
      %p231 = scmp.ne.s32.totalorder %s223, %s225
      %p232 = scmp.eq.s32.totalorder %s26, 1
      %p233 = por %p231, %p232
      %p234 = scmp.ne.s32.totalorder %s225, %s226
      %p235 = scmp.eq.s32.totalorder %s26, 0
      %p236 = por %p234, %p235
      %p237 = scmp.ne.s32.totalorder %s225, %s226
      %p238 = scmp.eq.s32.totalorder %s27, 1
      %p239 = por %p237, %p238
      %p241 = scmp.ne.s32.totalorder %s226, %s240
      %p242 = scmp.eq.s32.totalorder %s27, 0
      %p243 = por %p241, %p242
      %s244 = ssub.s32 %s21, %s28
      %p245 = scmp.eq.s32.totalorder %s244, 0
      %s247 = sadd.s32 %s246, 1
      %s248 = scalar_select %p245, %s246, %s247
      %p251 = pneg %p245
      %p252 = scmp.eq.s32.totalorder %s21, 1
      %p253 = por %p251, %p252
      %p254 = scmp.ne.s32.totalorder %s246, %s249
      %p255 = scmp.eq.s32.totalorder %s21, 0
      %p256 = por %p254, %p255
      %p257 = scmp.ne.s32.totalorder %s246, %s249
      %p258 = scmp.eq.s32.totalorder %s26, 1
      %p259 = por %p257, %p258
      %p260 = scmp.ne.s32.totalorder %s249, %s250
      %p261 = scmp.eq.s32.totalorder %s26, 0
      %p262 = por %p260, %p261
      %p263 = scmp.ne.s32.totalorder %s249, %s250
      %p264 = scmp.eq.s32.totalorder %s27, 1
      %p265 = por %p263, %p264
      %p267 = scmp.ne.s32.totalorder %s250, %s266
      %p268 = scmp.eq.s32.totalorder %s27, 0
      %p269 = por %p267, %p268
      %s270 = ssub.s32 %s21, %s28
      %p271 = scmp.eq.s32.totalorder %s270, 0
      %s273 = sadd.s32 %s272, 1
      %s274 = scalar_select %p271, %s272, %s273
      %p277 = pneg %p271
      %p278 = scmp.eq.s32.totalorder %s21, 1
      %p279 = por %p277, %p278
      %p280 = scmp.ne.s32.totalorder %s272, %s275
      %p281 = scmp.eq.s32.totalorder %s21, 0
      %p282 = por %p280, %p281
      %p283 = scmp.ne.s32.totalorder %s272, %s275
      %p284 = scmp.eq.s32.totalorder %s26, 1
      %p285 = por %p283, %p284
      %p286 = scmp.ne.s32.totalorder %s275, %s276
      %p287 = scmp.eq.s32.totalorder %s26, 0
      %p288 = por %p286, %p287
      %p289 = scmp.ne.s32.totalorder %s275, %s276
      %p290 = scmp.eq.s32.totalorder %s27, 1
      %p291 = por %p289, %p290
      %p293 = scmp.ne.s32.totalorder %s276, %s292
      %p294 = scmp.eq.s32.totalorder %s27, 0
      %p295 = por %p293, %p294
      %p296 = scmp.le.s32.totalorder 1, %s21
      %p297 = scmp.lt.s32.totalorder %s21, 3
      %p298 = pnand %p296, %p297
      %p299 = pneg %p298
      // Predicated region
      $region9: #{tpu_custom_call.1} parent=5 // pred_check
        _
      $region10: #{tpu_custom_call.1} parent=5 // pred_check_branch
        %301 = sbr.rel (%p298) target = $region12
      $region11: #{tpu_custom_call.1} parent=5 // pred_region
        %s302 = ssub.s32 %s21, 1
        // Predicated region
        $region13: #{tpu_custom_call.1} parent=11 // pred_check
          %p303 = pneg %p68
        $region14: #{tpu_custom_call.1} parent=11 // pred_check_branch
          %305 = sbr.rel (%p303) target = $region16
        $region15: #{tpu_custom_call.1} parent=11 // pred_region
          _
        $region16: #{tpu_custom_call.1} parent=11 // pred_fallthru
          _
        // Predicated region
        $region17: #{tpu_custom_call.1} parent=11 // pred_check
          %p306 = pneg %p89
        $region18: #{tpu_custom_call.1} parent=11 // pred_check_branch
          %308 = sbr.rel (%p306) target = $region20
        $region19: #{tpu_custom_call.1} parent=11 // pred_region
          _
        $region20: #{tpu_custom_call.1} parent=11 // pred_fallthru
          _
        // Predicated region
        $region21: #{tpu_custom_call.1} parent=11 // pred_check
          %p309 = pneg %p110
        $region22: #{tpu_custom_call.1} parent=11 // pred_check_branch
          %311 = sbr.rel (%p309) target = $region24
        $region23: #{tpu_custom_call.1} parent=11 // pred_region
          _
        $region24: #{tpu_custom_call.1} parent=11 // pred_fallthru
          _
        // Predicated region
        $region25: #{tpu_custom_call.1} parent=11 // pred_check
          %p312 = pneg %p131
        $region26: #{tpu_custom_call.1} parent=11 // pred_check_branch
          %314 = sbr.rel (%p312) target = $region28
        $region27: #{tpu_custom_call.1} parent=11 // pred_region
          _
        $region28: #{tpu_custom_call.1} parent=11 // pred_fallthru
          _
        // Predicated region
        $region29: #{tpu_custom_call.1} parent=11 // pred_check
          %p315 = pneg %p152
        $region30: #{tpu_custom_call.1} parent=11 // pred_check_branch
          %317 = sbr.rel (%p315) target = $region32
        $region31: #{tpu_custom_call.1} parent=11 // pred_region
          _
        $region32: #{tpu_custom_call.1} parent=11 // pred_fallthru
          _
        // Predicated region
        $region33: #{tpu_custom_call.1} parent=11 // pred_check
          %p318 = pneg %p173
        $region34: #{tpu_custom_call.1} parent=11 // pred_check_branch
          %320 = sbr.rel (%p318) target = $region36
        $region35: #{tpu_custom_call.1} parent=11 // pred_region
          _
        $region36: #{tpu_custom_call.1} parent=11 // pred_fallthru
          _
        // Predicated region
        $region37: #{tpu_custom_call.1} parent=11 // pred_check
          %p321 = pneg %p194
        $region38: #{tpu_custom_call.1} parent=11 // pred_check_branch
          %323 = sbr.rel (%p321) target = $region40
        $region39: #{tpu_custom_call.1} parent=11 // pred_region
          _
        $region40: #{tpu_custom_call.1} parent=11 // pred_fallthru
          _
        // Predicated region
        $region41: #{tpu_custom_call.1} parent=11 // pred_check
          %p324 = pneg %p215
        $region42: #{tpu_custom_call.1} parent=11 // pred_check_branch
          %326 = sbr.rel (%p324) target = $region44
        $region43: #{tpu_custom_call.1} parent=11 // pred_region
          _
        $region44: #{tpu_custom_call.1} parent=11 // pred_fallthru
          _
        // Predicated region
        $region45: #{tpu_custom_call.1} parent=11 // pred_check
          %p327 = pneg %p236
        $region46: #{tpu_custom_call.1} parent=11 // pred_check_branch
          %329 = sbr.rel (%p327) target = $region48
        $region47: #{tpu_custom_call.1} parent=11 // pred_region
          _
        $region48: #{tpu_custom_call.1} parent=11 // pred_fallthru
          _
      $region12: #{tpu_custom_call.1} parent=5 // pred_fallthru
        _
      %p330 = scmp.lt.s32.totalorder %s21, 2
      // Predicated region
      $region49: #{tpu_custom_call.1} parent=5 // pred_check
        %p331 = pneg %p330
      $region50: #{tpu_custom_call.1} parent=5 // pred_check_branch
        %333 = sbr.rel (%p331) target = $region52
      $region51: #{tpu_custom_call.1} parent=5 // pred_region
        // Predicated region
        $region53: #{tpu_custom_call.1} parent=51 // pred_check
          %p334 = pneg %p41
        $region54: #{tpu_custom_call.1} parent=51 // pred_check_branch
          %336 = sbr.rel (%p334) target = $region56
        $region55: #{tpu_custom_call.1} parent=51 // pred_region
          %p337 = scmp.lt.s32.totalorder %s21, 1
          %s338 = scalar_select %p337, %s21, 1
          %s339 = smul.addr %s338, 8
          %s340 = smul.addr %s339, 8
          %s341 = scalar_lea.vmem %s0, %s340
        $region56: #{tpu_custom_call.1} parent=51 // pred_fallthru
          _
      $region52: #{tpu_custom_call.1} parent=5 // pred_fallthru
        _
      %p342 = scmp.le.s32.totalorder 1, %s21
      %p343 = scmp.lt.s32.totalorder %s21, 3
      %p344 = pnand %p342, %p343
      %p345 = pneg %p344
      // Predicated region
      $region57: #{tpu_custom_call.1} parent=5 // pred_check
        _
      $region58: #{tpu_custom_call.1} parent=5 // pred_check_branch
        %347 = sbr.rel (%p344) target = $region60
      $region59: #{tpu_custom_call.1} parent=5 // pred_region
        %s348 = ssub.s32 %s21, 1
        %p349 = scmp.lt.s32.totalorder %s26, 1
        %s350 = scalar_select %p349, %s26, 1
        %s351 = smul.addr %s350, 8
        %s352 = smul.addr %s351, 8
        %s353 = scalar_lea.vmem %s0, %s352
        %p354 = pneg %p47
        %p355 = pneg %p44
        %p356 = pneg %p68
        %p357 = pneg %p65
        %p358 = pneg %p89
        %p359 = pneg %p86
        %p360 = pneg %p110
        %p361 = pneg %p107
        %p362 = pneg %p131
        %p363 = pneg %p128
        %p364 = pneg %p152
        %p365 = pneg %p149
        %p366 = pneg %p173
        %p367 = pneg %p170
        %p368 = pneg %p194
        %p369 = pneg %p191
        %p370 = pneg %p215
        %p371 = pneg %p212
        %p372 = pneg %p236
        %p373 = pneg %p233
        %p374 = pneg %p262
        %p375 = pneg %p259
        %s376 = sand.u32 %s249, 1
        %s377 = scalar_lea.sflag [#allocation4], %s376
        %s378 = sand.u32 %s249, 1
        %s379 = smul.addr %s378, 160
        %s380 = scalar_lea.vmem [#allocation3], %s379
        %p381 = pneg %p288
        %p382 = pneg %p285
        %p383 = scmp.lt.s32.totalorder %s26, 1
        %s384 = scalar_select %p383, %s26, 1
        %s385 = smul.addr %s384, 18
        %s386 = smul.addr %s385, 8
        %s387 = scalar_lea.vmem %s11, %s386
        %p388 = scmp.lt.s32.totalorder %s26, 1
        %s389 = scalar_select %p388, %s26, 1
        %s390 = smul.addr %s389, 8
        %s391 = smul.addr %s390, 8
        %s392 = scalar_lea.vmem %s0, %s391
        %p393 = scmp.lt.s32.totalorder %s26, 1
        %s394 = scalar_select %p393, %s26, 1
        %s395 = smul.addr %s394, 18
        %s396 = smul.addr %s395, 8
        %s397 = scalar_lea.vmem %s11, %s396
        %v398 = vld [vmem:[%s9] sm:$0x1f]
        %v399 = vld [vmem:[%s9 + $0x8] sm:$0x1f]
        %v400 = vld [vmem:[%s9 + $0x10] sm:$0x1f]
        %v401 = vld [vmem:[%s392] sm:$0xff]
        %v402 = vld [vmem:[%s392 + $0x8] sm:$0xff]
        %v403 = vld [vmem:[%s392 + $0x10] sm:$0xff]
        %v404 = vld [vmem:[%s392 + $0x18] sm:$0xff]
        %v405 = vld [vmem:[%s392 + $0x20] sm:$0xff]
        %v406 = vld [vmem:[%s392 + $0x28] sm:$0xff]
        %v407 = vld [vmem:[%s392 + $0x30] sm:$0xff]
        %v408 = vld [vmem:[%s392 + $0x38] sm:$0xff]
        %409 = vst [vmem:[#allocation2] sm:$0xff] 0.0
        %410 = vst [vmem:[#allocation2 + $0x8] sm:$0xff] 0.0
        %vm411 = vcmask 556032
        %412 = vst.msk [vmem:[#allocation2 + $0x10] sm:$0xff] %vm411, 0.0
        %413 = vst [vmem:[#allocation2 + $0x18] sm:$0xff] 0.0
        %414 = vst [vmem:[#allocation2 + $0x20] sm:$0xff] 0.0
        %415 = vst.msk [vmem:[#allocation2 + $0x28] sm:$0xff] %vm411, 0.0
        %416 = vst [vmem:[#allocation2 + $0x30] sm:$0xff] 0.0
        %417 = vst [vmem:[#allocation2 + $0x38] sm:$0xff] 0.0
        %418 = vst.msk [vmem:[#allocation2 + $0x40] sm:$0xff] %vm411, 0.0
        %419 = vst [vmem:[#allocation2 + $0x48] sm:$0xff] 0.0
        %420 = vst [vmem:[#allocation2 + $0x50] sm:$0xff] 0.0
        %421 = vst.msk [vmem:[#allocation2 + $0x58] sm:$0xff] %vm411, 0.0
        %430 = vrot.lane.b32.xlu0 %v401, 34
        %v431 = vpop.permute.xlu0 %430
        %432 = vrot.lane.b32.xlu0 %v402, 34
        %v433 = vpop.permute.xlu0 %432
        %434 = vrot.lane.b32.xlu0 %v403, 34
        %v435 = vpop.permute.xlu0 %434
        %436 = vrot.lane.b32.xlu0 %v404, 34
        %v437 = vpop.permute.xlu0 %436
        %438 = vrot.lane.b32.xlu0 %v405, 34
        %v439 = vpop.permute.xlu0 %438
        %440 = vrot.lane.b32.xlu0 %v406, 34
        %v441 = vpop.permute.xlu0 %440
        %442 = vrot.lane.b32.xlu0 %v407, 34
        %v443 = vpop.permute.xlu0 %442
        %444 = vrot.lane.b32.xlu0 %v408, 34
        %v445 = vpop.permute.xlu0 %444
        %vm446 = vcmask 277504
        %v447 = vsel %vm446, %v431, %v433
        %v448 = vsel %vm446, %v435, %v437
        %v449 = vsel %vm446, %v439, %v441
        %v450 = vsel %vm446, %v443, %v445
        %vm463 = vcmask 1047824
        %464 = vst.msk [vmem:[#allocation2] sm:$0xff] %vm463, %v431
        %465 = vst [vmem:[#allocation2 + $0x8] sm:$0xff] %v447
        %466 = vst.msk [vmem:[#allocation2 + $0x10] sm:$0xff] %vm446, %v433
        %467 = vst.msk [vmem:[#allocation2 + $0x18] sm:$0xff] %vm463, %v435
        %468 = vst [vmem:[#allocation2 + $0x20] sm:$0xff] %v448
        %469 = vst.msk [vmem:[#allocation2 + $0x28] sm:$0xff] %vm446, %v437
        %470 = vst.msk [vmem:[#allocation2 + $0x30] sm:$0xff] %vm463, %v439
        %471 = vst [vmem:[#allocation2 + $0x38] sm:$0xff] %v449
        %472 = vst.msk [vmem:[#allocation2 + $0x40] sm:$0xff] %vm446, %v441
        %473 = vst.msk [vmem:[#allocation2 + $0x48] sm:$0xff] %vm463, %v443
        %474 = vst [vmem:[#allocation2 + $0x50] sm:$0xff] %v450
        %475 = vst.msk [vmem:[#allocation2 + $0x58] sm:$0xff] %vm446, %v445
        %v476 = vld [vmem:[#allocation2] sm:$0xff]
        %v477 = vld [vmem:[#allocation2 + $0x8] sm:$0xff]
        %v478 = vld [vmem:[#allocation2 + $0x10] sm:$0xff]
        %v479 = vld [vmem:[#allocation2 + $0x18] sm:$0xff]
        %v480 = vld [vmem:[#allocation2 + $0x20] sm:$0xff]
        %v481 = vld [vmem:[#allocation2 + $0x28] sm:$0xff]
        %v482 = vld [vmem:[#allocation2 + $0x30] sm:$0xff]
        %v483 = vld [vmem:[#allocation2 + $0x38] sm:$0xff]
        %v484 = vld [vmem:[#allocation2 + $0x40] sm:$0xff]
        %v485 = vld [vmem:[#allocation2 + $0x48] sm:$0xff]
        %v486 = vld [vmem:[#allocation2 + $0x50] sm:$0xff]
        %v487 = vld [vmem:[#allocation2 + $0x58] sm:$0xff]
        %v488 = vld [vmem:[%s1] sm:$0xff]
        %v489 = vld [vmem:[%s1 + $0x8] sm:$0xff]
        %v490 = vld [vmem:[%s1 + $0x10] sm:$0xff]
        %v491 = vld [vmem:[%s1 + $0x18] sm:$0xff]
        %v492 = vlaneseq
        %v493 = vshrl.u32 %v492, 7
        %v494 = vsub.s32 0, %v493
        %v495 = vrot.slane %v398, %v494
        %v496 = vlaneseq
        %v497 = vshrl.u32 %v496, 7
        %v498 = vsub.s32 0, %v497
        %v499 = vrot.slane %v399, %v498
        %v500 = vlaneseq
        %v501 = vshrl.u32 %v500, 7
        %v502 = vsub.s32 0, %v501
        %v503 = vrot.slane %v400, %v502
        %v504 = vmul.f32 %v476, %v495
        %v505 = vmul.f32 %v477, %v499
        %v506 = vmul.f32 %v478, %v503
        %v507 = vmul.f32 %v479, %v495
        %v508 = vmul.f32 %v480, %v499
        %v509 = vmul.f32 %v481, %v503
        %v510 = vmul.f32 %v482, %v495
        %v511 = vmul.f32 %v483, %v499
        %v512 = vmul.f32 %v484, %v503
        %v513 = vmul.f32 %v485, %v495
        %v514 = vmul.f32 %v486, %v499
        %v515 = vmul.f32 %v487, %v503
        %517 = vset.pattern.permute.xlu0 0
        %518 = vperm.xlu0 %517, %v488
        %v519 = vpop.permute.xlu0 %518
        %522 = vset.pattern.permute.xlu0 0
        %523 = vperm.xlu0 %522, %v489
        %v524 = vpop.permute.xlu0 %523
        %527 = vset.pattern.permute.xlu0 0
        %528 = vperm.xlu0 %527, %v490
        %v529 = vpop.permute.xlu0 %528
        %532 = vset.pattern.permute.xlu0 0
        %533 = vperm.xlu0 %532, %v491
        %v534 = vpop.permute.xlu0 %533
        %v536 = vmul.f32 %v504, %v519
        %v537 = vmul.f32 %v505, %v519
        %v538 = vmul.f32 %v507, %v524
        %v539 = vmul.f32 %v508, %v524
        %v540 = vmul.f32 %v510, %v529
        %v541 = vmul.f32 %v511, %v529
        %v542 = vmul.f32 %v513, %v534
        %v543 = vmul.f32 %v514, %v534
        %v544 = vadd.f32 %v536, 0.0
        %v545 = vadd.f32 %v537, 0.0
        %v546 = vadd.f32 %v538, 0.0
        %v547 = vadd.f32 %v539, 0.0
        %v548 = vadd.f32 %v540, 0.0
        %v549 = vadd.f32 %v541, 0.0
        %v550 = vadd.f32 %v542, 0.0
        %v551 = vadd.f32 %v543, 0.0
        %552 = vset.pattern.permute.xlu0 5
        %553 = vperm.xlu0 %552, %v488
        %v554 = vpop.permute.xlu0 %553
        %556 = vset.pattern.permute.xlu0 5
        %557 = vperm.xlu0 %556, %v489
        %v558 = vpop.permute.xlu0 %557
        %560 = vset.pattern.permute.xlu0 5
        %561 = vperm.xlu0 %560, %v490
        %v562 = vpop.permute.xlu0 %561
        %564 = vset.pattern.permute.xlu0 5
        %565 = vperm.xlu0 %564, %v491
        %v566 = vpop.permute.xlu0 %565
        %v568 = vmul.f32 %v504, %v554
        %v569 = vmul.f32 %v505, %v554
        %v570 = vmul.f32 %v506, %v554
        %v571 = vmul.f32 %v507, %v558
        %v572 = vmul.f32 %v508, %v558
        %v573 = vmul.f32 %v509, %v558
        %v574 = vmul.f32 %v510, %v562
        %v575 = vmul.f32 %v511, %v562
        %v576 = vmul.f32 %v512, %v562
        %v577 = vmul.f32 %v513, %v566
        %v578 = vmul.f32 %v514, %v566
        %v579 = vmul.f32 %v515, %v566
        %592 = vrot.lane.b32.xlu0 %v568, 112
        %v593 = vpop.permute.xlu0 %592
        %594 = vrot.lane.b32.xlu0 %v569, 112
        %v595 = vpop.permute.xlu0 %594
        %596 = vrot.lane.b32.xlu0 %v570, 112
        %v597 = vpop.permute.xlu0 %596
        %598 = vrot.lane.b32.xlu0 %v571, 112
        %v599 = vpop.permute.xlu0 %598
        %600 = vrot.lane.b32.xlu0 %v572, 112
        %v601 = vpop.permute.xlu0 %600
        %602 = vrot.lane.b32.xlu0 %v573, 112
        %v603 = vpop.permute.xlu0 %602
        %604 = vrot.lane.b32.xlu0 %v574, 112
        %v605 = vpop.permute.xlu0 %604
        %606 = vrot.lane.b32.xlu0 %v575, 112
        %v607 = vpop.permute.xlu0 %606
        %608 = vrot.lane.b32.xlu0 %v576, 112
        %v609 = vpop.permute.xlu0 %608
        %610 = vrot.lane.b32.xlu0 %v577, 112
        %v611 = vpop.permute.xlu0 %610
        %612 = vrot.lane.b32.xlu0 %v578, 112
        %v613 = vpop.permute.xlu0 %612
        %614 = vrot.lane.b32.xlu0 %v579, 112
        %v615 = vpop.permute.xlu0 %614
        %vm616 = vcmask 916480
        %v617 = vsel %vm616, %v593, %v595
        %v618 = vsel %vm616, %v595, %v597
        %v619 = vsel %vm616, %v599, %v601
        %v620 = vsel %vm616, %v601, %v603
        %v621 = vsel %vm616, %v605, %v607
        %v622 = vsel %vm616, %v607, %v609
        %v623 = vsel %vm616, %v611, %v613
        %v624 = vsel %vm616, %v613, %v615
        %v633 = vadd.f32 %v544, %v617
        %v634 = vadd.f32 %v545, %v618
        %v635 = vadd.f32 %v546, %v619
        %v636 = vadd.f32 %v547, %v620
        %v637 = vadd.f32 %v548, %v621
        %v638 = vadd.f32 %v549, %v622
        %v639 = vadd.f32 %v550, %v623
        %v640 = vadd.f32 %v551, %v624
        %641 = vset.pattern.permute.xlu0 10
        %642 = vperm.xlu0 %641, %v488
        %v643 = vpop.permute.xlu0 %642
        %645 = vset.pattern.permute.xlu0 10
        %646 = vperm.xlu0 %645, %v489
        %v647 = vpop.permute.xlu0 %646
        %649 = vset.pattern.permute.xlu0 10
        %650 = vperm.xlu0 %649, %v490
        %v651 = vpop.permute.xlu0 %650
        %653 = vset.pattern.permute.xlu0 10
        %654 = vperm.xlu0 %653, %v491
        %v655 = vpop.permute.xlu0 %654
        %v657 = vmul.f32 %v504, %v643
        %v658 = vmul.f32 %v505, %v643
        %v659 = vmul.f32 %v506, %v643
        %v660 = vmul.f32 %v507, %v647
        %v661 = vmul.f32 %v508, %v647
        %v662 = vmul.f32 %v509, %v647
        %v663 = vmul.f32 %v510, %v651
        %v664 = vmul.f32 %v511, %v651
        %v665 = vmul.f32 %v512, %v651
        %v666 = vmul.f32 %v513, %v655
        %v667 = vmul.f32 %v514, %v655
        %v668 = vmul.f32 %v515, %v655
        %681 = vrot.lane.b32.xlu0 %v657, 96
        %v682 = vpop.permute.xlu0 %681
        %683 = vrot.lane.b32.xlu0 %v658, 96
        %v684 = vpop.permute.xlu0 %683
        %685 = vrot.lane.b32.xlu0 %v659, 96
        %v686 = vpop.permute.xlu0 %685
        %687 = vrot.lane.b32.xlu0 %v660, 96
        %v688 = vpop.permute.xlu0 %687
        %689 = vrot.lane.b32.xlu0 %v661, 96
        %v690 = vpop.permute.xlu0 %689
        %691 = vrot.lane.b32.xlu0 %v662, 96
        %v692 = vpop.permute.xlu0 %691
        %693 = vrot.lane.b32.xlu0 %v663, 96
        %v694 = vpop.permute.xlu0 %693
        %695 = vrot.lane.b32.xlu0 %v664, 96
        %v696 = vpop.permute.xlu0 %695
        %697 = vrot.lane.b32.xlu0 %v665, 96
        %v698 = vpop.permute.xlu0 %697
        %699 = vrot.lane.b32.xlu0 %v666, 96
        %v700 = vpop.permute.xlu0 %699
        %701 = vrot.lane.b32.xlu0 %v667, 96
        %v702 = vpop.permute.xlu0 %701
        %703 = vrot.lane.b32.xlu0 %v668, 96
        %v704 = vpop.permute.xlu0 %703
        %vm705 = vcmask 785408
        %v706 = vsel %vm705, %v682, %v684
        %v707 = vsel %vm705, %v684, %v686
        %v708 = vsel %vm705, %v688, %v690
        %v709 = vsel %vm705, %v690, %v692
        %v710 = vsel %vm705, %v694, %v696
        %v711 = vsel %vm705, %v696, %v698
        %v712 = vsel %vm705, %v700, %v702
        %v713 = vsel %vm705, %v702, %v704
        %v722 = vadd.f32 %v633, %v706
        %v723 = vadd.f32 %v634, %v707
        %v724 = vadd.f32 %v635, %v708
        %v725 = vadd.f32 %v636, %v709
        %v726 = vadd.f32 %v637, %v710
        %v727 = vadd.f32 %v638, %v711
        %v728 = vadd.f32 %v639, %v712
        %v729 = vadd.f32 %v640, %v713
        %730 = vset.pattern.permute.xlu0 15
        %731 = vperm.xlu0 %730, %v488
        %v732 = vpop.permute.xlu0 %731
        %734 = vset.pattern.permute.xlu0 15
        %735 = vperm.xlu0 %734, %v489
        %v736 = vpop.permute.xlu0 %735
        %738 = vset.pattern.permute.xlu0 15
        %739 = vperm.xlu0 %738, %v490
        %v740 = vpop.permute.xlu0 %739
        %742 = vset.pattern.permute.xlu0 15
        %743 = vperm.xlu0 %742, %v491
        %v744 = vpop.permute.xlu0 %743
        %v746 = vmul.f32 %v504, %v732
        %v747 = vmul.f32 %v505, %v732
        %v748 = vmul.f32 %v506, %v732
        %v749 = vmul.f32 %v507, %v736
        %v750 = vmul.f32 %v508, %v736
        %v751 = vmul.f32 %v509, %v736
        %v752 = vmul.f32 %v510, %v740
        %v753 = vmul.f32 %v511, %v740
        %v754 = vmul.f32 %v512, %v740
        %v755 = vmul.f32 %v513, %v744
        %v756 = vmul.f32 %v514, %v744
        %v757 = vmul.f32 %v515, %v744
        %770 = vrot.lane.b32.xlu0 %v746, 80
        %v771 = vpop.permute.xlu0 %770
        %772 = vrot.lane.b32.xlu0 %v747, 80
        %v773 = vpop.permute.xlu0 %772
        %774 = vrot.lane.b32.xlu0 %v748, 80
        %v775 = vpop.permute.xlu0 %774
        %776 = vrot.lane.b32.xlu0 %v749, 80
        %v777 = vpop.permute.xlu0 %776
        %778 = vrot.lane.b32.xlu0 %v750, 80
        %v779 = vpop.permute.xlu0 %778
        %780 = vrot.lane.b32.xlu0 %v751, 80
        %v781 = vpop.permute.xlu0 %780
        %782 = vrot.lane.b32.xlu0 %v752, 80
        %v783 = vpop.permute.xlu0 %782
        %784 = vrot.lane.b32.xlu0 %v753, 80
        %v785 = vpop.permute.xlu0 %784
        %786 = vrot.lane.b32.xlu0 %v754, 80
        %v787 = vpop.permute.xlu0 %786
        %788 = vrot.lane.b32.xlu0 %v755, 80
        %v789 = vpop.permute.xlu0 %788
        %790 = vrot.lane.b32.xlu0 %v756, 80
        %v791 = vpop.permute.xlu0 %790
        %792 = vrot.lane.b32.xlu0 %v757, 80
        %v793 = vpop.permute.xlu0 %792
        %vm794 = vcmask 654336
        %v795 = vsel %vm794, %v771, %v773
        %v796 = vsel %vm794, %v773, %v775
        %v797 = vsel %vm794, %v777, %v779
        %v798 = vsel %vm794, %v779, %v781
        %v799 = vsel %vm794, %v783, %v785
        %v800 = vsel %vm794, %v785, %v787
        %v801 = vsel %vm794, %v789, %v791
        %v802 = vsel %vm794, %v791, %v793
        %v811 = vadd.f32 %v722, %v795
        %v812 = vadd.f32 %v723, %v796
        %v813 = vadd.f32 %v724, %v797
        %v814 = vadd.f32 %v725, %v798
        %v815 = vadd.f32 %v726, %v799
        %v816 = vadd.f32 %v727, %v800
        %v817 = vadd.f32 %v728, %v801
        %v818 = vadd.f32 %v729, %v802
        %819 = vset.pattern.permute.xlu0 20
        %820 = vperm.xlu0 %819, %v488
        %v821 = vpop.permute.xlu0 %820
        %823 = vset.pattern.permute.xlu0 20
        %824 = vperm.xlu0 %823, %v489
        %v825 = vpop.permute.xlu0 %824
        %827 = vset.pattern.permute.xlu0 20
        %828 = vperm.xlu0 %827, %v490
        %v829 = vpop.permute.xlu0 %828
        %831 = vset.pattern.permute.xlu0 20
        %832 = vperm.xlu0 %831, %v491
        %v833 = vpop.permute.xlu0 %832
        %v835 = vmul.f32 %v504, %v821
        %v836 = vmul.f32 %v505, %v821
        %v837 = vmul.f32 %v506, %v821
        %v838 = vmul.f32 %v507, %v825
        %v839 = vmul.f32 %v508, %v825
        %v840 = vmul.f32 %v509, %v825
        %v841 = vmul.f32 %v510, %v829
        %v842 = vmul.f32 %v511, %v829
        %v843 = vmul.f32 %v512, %v829
        %v844 = vmul.f32 %v513, %v833
        %v845 = vmul.f32 %v514, %v833
        %v846 = vmul.f32 %v515, %v833
        %859 = vrot.lane.b32.xlu0 %v835, 64
        %v860 = vpop.permute.xlu0 %859
        %861 = vrot.lane.b32.xlu0 %v836, 64
        %v862 = vpop.permute.xlu0 %861
        %863 = vrot.lane.b32.xlu0 %v837, 64
        %v864 = vpop.permute.xlu0 %863
        %865 = vrot.lane.b32.xlu0 %v838, 64
        %v866 = vpop.permute.xlu0 %865
        %867 = vrot.lane.b32.xlu0 %v839, 64
        %v868 = vpop.permute.xlu0 %867
        %869 = vrot.lane.b32.xlu0 %v840, 64
        %v870 = vpop.permute.xlu0 %869
        %871 = vrot.lane.b32.xlu0 %v841, 64
        %v872 = vpop.permute.xlu0 %871
        %873 = vrot.lane.b32.xlu0 %v842, 64
        %v874 = vpop.permute.xlu0 %873
        %875 = vrot.lane.b32.xlu0 %v843, 64
        %v876 = vpop.permute.xlu0 %875
        %877 = vrot.lane.b32.xlu0 %v844, 64
        %v878 = vpop.permute.xlu0 %877
        %879 = vrot.lane.b32.xlu0 %v845, 64
        %v880 = vpop.permute.xlu0 %879
        %881 = vrot.lane.b32.xlu0 %v846, 64
        %v882 = vpop.permute.xlu0 %881
        %vm883 = vcmask 523264
        %v884 = vsel %vm883, %v860, %v862
        %v885 = vsel %vm883, %v862, %v864
        %v886 = vsel %vm883, %v866, %v868
        %v887 = vsel %vm883, %v868, %v870
        %v888 = vsel %vm883, %v872, %v874
        %v889 = vsel %vm883, %v874, %v876
        %v890 = vsel %vm883, %v878, %v880
        %v891 = vsel %vm883, %v880, %v882
        %v900 = vadd.f32 %v811, %v884
        %v901 = vadd.f32 %v812, %v885
        %v902 = vadd.f32 %v813, %v886
        %v903 = vadd.f32 %v814, %v887
        %v904 = vadd.f32 %v815, %v888
        %v905 = vadd.f32 %v816, %v889
        %v906 = vadd.f32 %v817, %v890
        %v907 = vadd.f32 %v818, %v891
        %v908 = vlaneseq
        %v909 = vshrl.u32 %v908, 7
        %v910 = vsub.s32 1, %v909
        %v911 = vrot.slane %v398, %v910
        %v912 = vlaneseq
        %v913 = vshrl.u32 %v912, 7
        %v914 = vsub.s32 1, %v913
        %v915 = vrot.slane %v399, %v914
        %v916 = vlaneseq
        %v917 = vshrl.u32 %v916, 7
        %v918 = vsub.s32 1, %v917
        %v919 = vrot.slane %v400, %v918
        %923 = vrot.lane.b32.xlu0 %v911, 1
        %v924 = vpop.permute.xlu0 %923
        %925 = vrot.lane.b32.xlu0 %v915, 1
        %v926 = vpop.permute.xlu0 %925
        %927 = vrot.lane.b32.xlu0 %v919, 1
        %v928 = vpop.permute.xlu0 %927
        %vm929 = vcmask 7168
        %v930 = vsel %vm929, %v924, %v926
        %v931 = vsel %vm929, %v926, %v928
        %v935 = vmul.f32 %v476, %v924
        %v936 = vmul.f32 %v477, %v930
        %v937 = vmul.f32 %v478, %v931
        %v938 = vmul.f32 %v479, %v924
        %v939 = vmul.f32 %v480, %v930
        %v940 = vmul.f32 %v481, %v931
        %v941 = vmul.f32 %v482, %v924
        %v942 = vmul.f32 %v483, %v930
        %v943 = vmul.f32 %v484, %v931
        %v944 = vmul.f32 %v485, %v924
        %v945 = vmul.f32 %v486, %v930
        %v946 = vmul.f32 %v487, %v931
        %947 = vset.pattern.permute.xlu0 1
        %948 = vperm.xlu0 %947, %v488
        %v949 = vpop.permute.xlu0 %948
        %951 = vset.pattern.permute.xlu0 1
        %952 = vperm.xlu0 %951, %v489
        %v953 = vpop.permute.xlu0 %952
        %955 = vset.pattern.permute.xlu0 1
        %956 = vperm.xlu0 %955, %v490
        %v957 = vpop.permute.xlu0 %956
        %959 = vset.pattern.permute.xlu0 1
        %960 = vperm.xlu0 %959, %v491
        %v961 = vpop.permute.xlu0 %960
        %v963 = vmul.f32 %v935, %v949
        %v964 = vmul.f32 %v936, %v949
        %v965 = vmul.f32 %v937, %v949
        %v966 = vmul.f32 %v938, %v953
        %v967 = vmul.f32 %v939, %v953
        %v968 = vmul.f32 %v940, %v953
        %v969 = vmul.f32 %v941, %v957
        %v970 = vmul.f32 %v942, %v957
        %v971 = vmul.f32 %v943, %v957
        %v972 = vmul.f32 %v944, %v961
        %v973 = vmul.f32 %v945, %v961
        %v974 = vmul.f32 %v946, %v961
        %987 = vrot.lane.b32.xlu0 %v963, 127
        %v988 = vpop.permute.xlu0 %987
        %989 = vrot.lane.b32.xlu0 %v964, 127
        %v990 = vpop.permute.xlu0 %989
        %991 = vrot.lane.b32.xlu0 %v965, 127
        %v992 = vpop.permute.xlu0 %991
        %993 = vrot.lane.b32.xlu0 %v966, 127
        %v994 = vpop.permute.xlu0 %993
        %995 = vrot.lane.b32.xlu0 %v967, 127
        %v996 = vpop.permute.xlu0 %995
        %997 = vrot.lane.b32.xlu0 %v968, 127
        %v998 = vpop.permute.xlu0 %997
        %999 = vrot.lane.b32.xlu0 %v969, 127
        %v1000 = vpop.permute.xlu0 %999
        %1001 = vrot.lane.b32.xlu0 %v970, 127
        %v1002 = vpop.permute.xlu0 %1001
        %1003 = vrot.lane.b32.xlu0 %v971, 127
        %v1004 = vpop.permute.xlu0 %1003
        %1005 = vrot.lane.b32.xlu0 %v972, 127
        %v1006 = vpop.permute.xlu0 %1005
        %1007 = vrot.lane.b32.xlu0 %v973, 127
        %v1008 = vpop.permute.xlu0 %1007
        %1009 = vrot.lane.b32.xlu0 %v974, 127
        %v1010 = vpop.permute.xlu0 %1009
        %vm1011 = vcmask 1039360
        %v1012 = vsel %vm1011, %v988, %v990
        %v1013 = vsel %vm1011, %v990, %v992
        %v1014 = vsel %vm1011, %v994, %v996
        %v1015 = vsel %vm1011, %v996, %v998
        %v1016 = vsel %vm1011, %v1000, %v1002
        %v1017 = vsel %vm1011, %v1002, %v1004
        %v1018 = vsel %vm1011, %v1006, %v1008
        %v1019 = vsel %vm1011, %v1008, %v1010
        %v1028 = vadd.f32 %v900, %v1012
        %v1029 = vadd.f32 %v901, %v1013
        %v1030 = vadd.f32 %v902, %v1014
        %v1031 = vadd.f32 %v903, %v1015
        %v1032 = vadd.f32 %v904, %v1016
        %v1033 = vadd.f32 %v905, %v1017
        %v1034 = vadd.f32 %v906, %v1018
        %v1035 = vadd.f32 %v907, %v1019
        %1036 = vset.pattern.permute.xlu0 6
        %1037 = vperm.xlu0 %1036, %v488
        %v1038 = vpop.permute.xlu0 %1037
        %1040 = vset.pattern.permute.xlu0 6
        %1041 = vperm.xlu0 %1040, %v489
        %v1042 = vpop.permute.xlu0 %1041
        %1044 = vset.pattern.permute.xlu0 6
        %1045 = vperm.xlu0 %1044, %v490
        %v1046 = vpop.permute.xlu0 %1045
        %1048 = vset.pattern.permute.xlu0 6
        %1049 = vperm.xlu0 %1048, %v491
        %v1050 = vpop.permute.xlu0 %1049
        %v1052 = vmul.f32 %v935, %v1038
        %v1053 = vmul.f32 %v936, %v1038
        %v1054 = vmul.f32 %v937, %v1038
        %v1055 = vmul.f32 %v938, %v1042
        %v1056 = vmul.f32 %v939, %v1042
        %v1057 = vmul.f32 %v940, %v1042
        %v1058 = vmul.f32 %v941, %v1046
        %v1059 = vmul.f32 %v942, %v1046
        %v1060 = vmul.f32 %v943, %v1046
        %v1061 = vmul.f32 %v944, %v1050
        %v1062 = vmul.f32 %v945, %v1050
        %v1063 = vmul.f32 %v946, %v1050
        %1076 = vrot.lane.b32.xlu0 %v1052, 111
        %v1077 = vpop.permute.xlu0 %1076
        %1078 = vrot.lane.b32.xlu0 %v1053, 111
        %v1079 = vpop.permute.xlu0 %1078
        %1080 = vrot.lane.b32.xlu0 %v1054, 111
        %v1081 = vpop.permute.xlu0 %1080
        %1082 = vrot.lane.b32.xlu0 %v1055, 111
        %v1083 = vpop.permute.xlu0 %1082
        %1084 = vrot.lane.b32.xlu0 %v1056, 111
        %v1085 = vpop.permute.xlu0 %1084
        %1086 = vrot.lane.b32.xlu0 %v1057, 111
        %v1087 = vpop.permute.xlu0 %1086
        %1088 = vrot.lane.b32.xlu0 %v1058, 111
        %v1089 = vpop.permute.xlu0 %1088
        %1090 = vrot.lane.b32.xlu0 %v1059, 111
        %v1091 = vpop.permute.xlu0 %1090
        %1092 = vrot.lane.b32.xlu0 %v1060, 111
        %v1093 = vpop.permute.xlu0 %1092
        %1094 = vrot.lane.b32.xlu0 %v1061, 111
        %v1095 = vpop.permute.xlu0 %1094
        %1096 = vrot.lane.b32.xlu0 %v1062, 111
        %v1097 = vpop.permute.xlu0 %1096
        %1098 = vrot.lane.b32.xlu0 %v1063, 111
        %v1099 = vpop.permute.xlu0 %1098
        %vm1100 = vcmask 908288
        %v1101 = vsel %vm1100, %v1077, %v1079
        %v1102 = vsel %vm1100, %v1079, %v1081
        %v1103 = vsel %vm1100, %v1083, %v1085
        %v1104 = vsel %vm1100, %v1085, %v1087
        %v1105 = vsel %vm1100, %v1089, %v1091
        %v1106 = vsel %vm1100, %v1091, %v1093
        %v1107 = vsel %vm1100, %v1095, %v1097
        %v1108 = vsel %vm1100, %v1097, %v1099
        %v1117 = vadd.f32 %v1028, %v1101
        %v1118 = vadd.f32 %v1029, %v1102
        %v1119 = vadd.f32 %v1030, %v1103
        %v1120 = vadd.f32 %v1031, %v1104
        %v1121 = vadd.f32 %v1032, %v1105
        %v1122 = vadd.f32 %v1033, %v1106
        %v1123 = vadd.f32 %v1034, %v1107
        %v1124 = vadd.f32 %v1035, %v1108
        %1125 = vset.pattern.permute.xlu0 11
        %1126 = vperm.xlu0 %1125, %v488
        %v1127 = vpop.permute.xlu0 %1126
        %1129 = vset.pattern.permute.xlu0 11
        %1130 = vperm.xlu0 %1129, %v489
        %v1131 = vpop.permute.xlu0 %1130
        %1133 = vset.pattern.permute.xlu0 11
        %1134 = vperm.xlu0 %1133, %v490
        %v1135 = vpop.permute.xlu0 %1134
        %1137 = vset.pattern.permute.xlu0 11
        %1138 = vperm.xlu0 %1137, %v491
        %v1139 = vpop.permute.xlu0 %1138
        %v1141 = vmul.f32 %v935, %v1127
        %v1142 = vmul.f32 %v936, %v1127
        %v1143 = vmul.f32 %v937, %v1127
        %v1144 = vmul.f32 %v938, %v1131
        %v1145 = vmul.f32 %v939, %v1131
        %v1146 = vmul.f32 %v940, %v1131
        %v1147 = vmul.f32 %v941, %v1135
        %v1148 = vmul.f32 %v942, %v1135
        %v1149 = vmul.f32 %v943, %v1135
        %v1150 = vmul.f32 %v944, %v1139
        %v1151 = vmul.f32 %v945, %v1139
        %v1152 = vmul.f32 %v946, %v1139
        %1165 = vrot.lane.b32.xlu0 %v1141, 95
        %v1166 = vpop.permute.xlu0 %1165
        %1167 = vrot.lane.b32.xlu0 %v1142, 95
        %v1168 = vpop.permute.xlu0 %1167
        %1169 = vrot.lane.b32.xlu0 %v1143, 95
        %v1170 = vpop.permute.xlu0 %1169
        %1171 = vrot.lane.b32.xlu0 %v1144, 95
        %v1172 = vpop.permute.xlu0 %1171
        %1173 = vrot.lane.b32.xlu0 %v1145, 95
        %v1174 = vpop.permute.xlu0 %1173
        %1175 = vrot.lane.b32.xlu0 %v1146, 95
        %v1176 = vpop.permute.xlu0 %1175
        %1177 = vrot.lane.b32.xlu0 %v1147, 95
        %v1178 = vpop.permute.xlu0 %1177
        %1179 = vrot.lane.b32.xlu0 %v1148, 95
        %v1180 = vpop.permute.xlu0 %1179
        %1181 = vrot.lane.b32.xlu0 %v1149, 95
        %v1182 = vpop.permute.xlu0 %1181
        %1183 = vrot.lane.b32.xlu0 %v1150, 95
        %v1184 = vpop.permute.xlu0 %1183
        %1185 = vrot.lane.b32.xlu0 %v1151, 95
        %v1186 = vpop.permute.xlu0 %1185
        %1187 = vrot.lane.b32.xlu0 %v1152, 95
        %v1188 = vpop.permute.xlu0 %1187
        %vm1189 = vcmask 777216
        %v1190 = vsel %vm1189, %v1166, %v1168
        %v1191 = vsel %vm1189, %v1168, %v1170
        %v1192 = vsel %vm1189, %v1172, %v1174
        %v1193 = vsel %vm1189, %v1174, %v1176
        %v1194 = vsel %vm1189, %v1178, %v1180
        %v1195 = vsel %vm1189, %v1180, %v1182
        %v1196 = vsel %vm1189, %v1184, %v1186
        %v1197 = vsel %vm1189, %v1186, %v1188
        %v1206 = vadd.f32 %v1117, %v1190
        %v1207 = vadd.f32 %v1118, %v1191
        %v1208 = vadd.f32 %v1119, %v1192
        %v1209 = vadd.f32 %v1120, %v1193
        %v1210 = vadd.f32 %v1121, %v1194
        %v1211 = vadd.f32 %v1122, %v1195
        %v1212 = vadd.f32 %v1123, %v1196
        %v1213 = vadd.f32 %v1124, %v1197
        %1214 = vset.pattern.permute.xlu0 16
        %1215 = vperm.xlu0 %1214, %v488
        %v1216 = vpop.permute.xlu0 %1215
        %1218 = vset.pattern.permute.xlu0 16
        %1219 = vperm.xlu0 %1218, %v489
        %v1220 = vpop.permute.xlu0 %1219
        %1222 = vset.pattern.permute.xlu0 16
        %1223 = vperm.xlu0 %1222, %v490
        %v1224 = vpop.permute.xlu0 %1223
        %1226 = vset.pattern.permute.xlu0 16
        %1227 = vperm.xlu0 %1226, %v491
        %v1228 = vpop.permute.xlu0 %1227
        %v1230 = vmul.f32 %v935, %v1216
        %v1231 = vmul.f32 %v936, %v1216
        %v1232 = vmul.f32 %v937, %v1216
        %v1233 = vmul.f32 %v938, %v1220
        %v1234 = vmul.f32 %v939, %v1220
        %v1235 = vmul.f32 %v940, %v1220
        %v1236 = vmul.f32 %v941, %v1224
        %v1237 = vmul.f32 %v942, %v1224
        %v1238 = vmul.f32 %v943, %v1224
        %v1239 = vmul.f32 %v944, %v1228
        %v1240 = vmul.f32 %v945, %v1228
        %v1241 = vmul.f32 %v946, %v1228
        %1254 = vrot.lane.b32.xlu0 %v1230, 79
        %v1255 = vpop.permute.xlu0 %1254
        %1256 = vrot.lane.b32.xlu0 %v1231, 79
        %v1257 = vpop.permute.xlu0 %1256
        %1258 = vrot.lane.b32.xlu0 %v1232, 79
        %v1259 = vpop.permute.xlu0 %1258
        %1260 = vrot.lane.b32.xlu0 %v1233, 79
        %v1261 = vpop.permute.xlu0 %1260
        %1262 = vrot.lane.b32.xlu0 %v1234, 79
        %v1263 = vpop.permute.xlu0 %1262
        %1264 = vrot.lane.b32.xlu0 %v1235, 79
        %v1265 = vpop.permute.xlu0 %1264
        %1266 = vrot.lane.b32.xlu0 %v1236, 79
        %v1267 = vpop.permute.xlu0 %1266
        %1268 = vrot.lane.b32.xlu0 %v1237, 79
        %v1269 = vpop.permute.xlu0 %1268
        %1270 = vrot.lane.b32.xlu0 %v1238, 79
        %v1271 = vpop.permute.xlu0 %1270
        %1272 = vrot.lane.b32.xlu0 %v1239, 79
        %v1273 = vpop.permute.xlu0 %1272
        %1274 = vrot.lane.b32.xlu0 %v1240, 79
        %v1275 = vpop.permute.xlu0 %1274
        %1276 = vrot.lane.b32.xlu0 %v1241, 79
        %v1277 = vpop.permute.xlu0 %1276
        %vm1278 = vcmask 646144
        %v1279 = vsel %vm1278, %v1255, %v1257
        %v1280 = vsel %vm1278, %v1257, %v1259
        %v1281 = vsel %vm1278, %v1261, %v1263
        %v1282 = vsel %vm1278, %v1263, %v1265
        %v1283 = vsel %vm1278, %v1267, %v1269
        %v1284 = vsel %vm1278, %v1269, %v1271
        %v1285 = vsel %vm1278, %v1273, %v1275
        %v1286 = vsel %vm1278, %v1275, %v1277
        %v1295 = vadd.f32 %v1206, %v1279
        %v1296 = vadd.f32 %v1207, %v1280
        %v1297 = vadd.f32 %v1208, %v1281
        %v1298 = vadd.f32 %v1209, %v1282
        %v1299 = vadd.f32 %v1210, %v1283
        %v1300 = vadd.f32 %v1211, %v1284
        %v1301 = vadd.f32 %v1212, %v1285
        %v1302 = vadd.f32 %v1213, %v1286
        %1303 = vset.pattern.permute.xlu0 21
        %1304 = vperm.xlu0 %1303, %v488
        %v1305 = vpop.permute.xlu0 %1304
        %1307 = vset.pattern.permute.xlu0 21
        %1308 = vperm.xlu0 %1307, %v489
        %v1309 = vpop.permute.xlu0 %1308
        %1311 = vset.pattern.permute.xlu0 21
        %1312 = vperm.xlu0 %1311, %v490
        %v1313 = vpop.permute.xlu0 %1312
        %1315 = vset.pattern.permute.xlu0 21
        %1316 = vperm.xlu0 %1315, %v491
        %v1317 = vpop.permute.xlu0 %1316
        %v1319 = vmul.f32 %v935, %v1305
        %v1320 = vmul.f32 %v936, %v1305
        %v1321 = vmul.f32 %v937, %v1305
        %v1322 = vmul.f32 %v938, %v1309
        %v1323 = vmul.f32 %v939, %v1309
        %v1324 = vmul.f32 %v940, %v1309
        %v1325 = vmul.f32 %v941, %v1313
        %v1326 = vmul.f32 %v942, %v1313
        %v1327 = vmul.f32 %v943, %v1313
        %v1328 = vmul.f32 %v944, %v1317
        %v1329 = vmul.f32 %v945, %v1317
        %v1330 = vmul.f32 %v946, %v1317
        %1343 = vrot.lane.b32.xlu0 %v1319, 63
        %v1344 = vpop.permute.xlu0 %1343
        %1345 = vrot.lane.b32.xlu0 %v1320, 63
        %v1346 = vpop.permute.xlu0 %1345
        %1347 = vrot.lane.b32.xlu0 %v1321, 63
        %v1348 = vpop.permute.xlu0 %1347
        %1349 = vrot.lane.b32.xlu0 %v1322, 63
        %v1350 = vpop.permute.xlu0 %1349
        %1351 = vrot.lane.b32.xlu0 %v1323, 63
        %v1352 = vpop.permute.xlu0 %1351
        %1353 = vrot.lane.b32.xlu0 %v1324, 63
        %v1354 = vpop.permute.xlu0 %1353
        %1355 = vrot.lane.b32.xlu0 %v1325, 63
        %v1356 = vpop.permute.xlu0 %1355
        %1357 = vrot.lane.b32.xlu0 %v1326, 63
        %v1358 = vpop.permute.xlu0 %1357
        %1359 = vrot.lane.b32.xlu0 %v1327, 63
        %v1360 = vpop.permute.xlu0 %1359
        %1361 = vrot.lane.b32.xlu0 %v1328, 63
        %v1362 = vpop.permute.xlu0 %1361
        %1363 = vrot.lane.b32.xlu0 %v1329, 63
        %v1364 = vpop.permute.xlu0 %1363
        %1365 = vrot.lane.b32.xlu0 %v1330, 63
        %v1366 = vpop.permute.xlu0 %1365
        %vm1367 = vcmask 515072
        %v1368 = vsel %vm1367, %v1344, %v1346
        %v1369 = vsel %vm1367, %v1346, %v1348
        %v1370 = vsel %vm1367, %v1350, %v1352
        %v1371 = vsel %vm1367, %v1352, %v1354
        %v1372 = vsel %vm1367, %v1356, %v1358
        %v1373 = vsel %vm1367, %v1358, %v1360
        %v1374 = vsel %vm1367, %v1362, %v1364
        %v1375 = vsel %vm1367, %v1364, %v1366
        %v1384 = vadd.f32 %v1295, %v1368
        %v1385 = vadd.f32 %v1296, %v1369
        %v1386 = vadd.f32 %v1297, %v1370
        %v1387 = vadd.f32 %v1298, %v1371
        %v1388 = vadd.f32 %v1299, %v1372
        %v1389 = vadd.f32 %v1300, %v1373
        %v1390 = vadd.f32 %v1301, %v1374
        %v1391 = vadd.f32 %v1302, %v1375
        %v1392 = vlaneseq
        %v1393 = vshrl.u32 %v1392, 7
        %v1394 = vsub.s32 2, %v1393
        %v1395 = vrot.slane %v398, %v1394
        %v1396 = vlaneseq
        %v1397 = vshrl.u32 %v1396, 7
        %v1398 = vsub.s32 2, %v1397
        %v1399 = vrot.slane %v399, %v1398
        %v1400 = vlaneseq
        %v1401 = vshrl.u32 %v1400, 7
        %v1402 = vsub.s32 2, %v1401
        %v1403 = vrot.slane %v400, %v1402
        %1407 = vrot.lane.b32.xlu0 %v1395, 2
        %v1408 = vpop.permute.xlu0 %1407
        %1409 = vrot.lane.b32.xlu0 %v1399, 2
        %v1410 = vpop.permute.xlu0 %1409
        %1411 = vrot.lane.b32.xlu0 %v1403, 2
        %v1412 = vpop.permute.xlu0 %1411
        %vm1413 = vcmask 15360
        %v1414 = vsel %vm1413, %v1408, %v1410
        %v1415 = vsel %vm1413, %v1410, %v1412
        %v1419 = vmul.f32 %v476, %v1408
        %v1420 = vmul.f32 %v477, %v1414
        %v1421 = vmul.f32 %v478, %v1415
        %v1422 = vmul.f32 %v479, %v1408
        %v1423 = vmul.f32 %v480, %v1414
        %v1424 = vmul.f32 %v481, %v1415
        %v1425 = vmul.f32 %v482, %v1408
        %v1426 = vmul.f32 %v483, %v1414
        %v1427 = vmul.f32 %v484, %v1415
        %v1428 = vmul.f32 %v485, %v1408
        %v1429 = vmul.f32 %v486, %v1414
        %v1430 = vmul.f32 %v487, %v1415
        %1431 = vset.pattern.permute.xlu0 2
        %1432 = vperm.xlu0 %1431, %v488
        %v1433 = vpop.permute.xlu0 %1432
        %1435 = vset.pattern.permute.xlu0 2
        %1436 = vperm.xlu0 %1435, %v489
        %v1437 = vpop.permute.xlu0 %1436
        %1439 = vset.pattern.permute.xlu0 2
        %1440 = vperm.xlu0 %1439, %v490
        %v1441 = vpop.permute.xlu0 %1440
        %1443 = vset.pattern.permute.xlu0 2
        %1444 = vperm.xlu0 %1443, %v491
        %v1445 = vpop.permute.xlu0 %1444
        %v1447 = vmul.f32 %v1419, %v1433
        %v1448 = vmul.f32 %v1420, %v1433
        %v1449 = vmul.f32 %v1421, %v1433
        %v1450 = vmul.f32 %v1422, %v1437
        %v1451 = vmul.f32 %v1423, %v1437
        %v1452 = vmul.f32 %v1424, %v1437
        %v1453 = vmul.f32 %v1425, %v1441
        %v1454 = vmul.f32 %v1426, %v1441
        %v1455 = vmul.f32 %v1427, %v1441
        %v1456 = vmul.f32 %v1428, %v1445
        %v1457 = vmul.f32 %v1429, %v1445
        %v1458 = vmul.f32 %v1430, %v1445
        %1471 = vrot.lane.b32.xlu0 %v1447, 126
        %v1472 = vpop.permute.xlu0 %1471
        %1473 = vrot.lane.b32.xlu0 %v1448, 126
        %v1474 = vpop.permute.xlu0 %1473
        %1475 = vrot.lane.b32.xlu0 %v1449, 126
        %v1476 = vpop.permute.xlu0 %1475
        %1477 = vrot.lane.b32.xlu0 %v1450, 126
        %v1478 = vpop.permute.xlu0 %1477
        %1479 = vrot.lane.b32.xlu0 %v1451, 126
        %v1480 = vpop.permute.xlu0 %1479
        %1481 = vrot.lane.b32.xlu0 %v1452, 126
        %v1482 = vpop.permute.xlu0 %1481
        %1483 = vrot.lane.b32.xlu0 %v1453, 126
        %v1484 = vpop.permute.xlu0 %1483
        %1485 = vrot.lane.b32.xlu0 %v1454, 126
        %v1486 = vpop.permute.xlu0 %1485
        %1487 = vrot.lane.b32.xlu0 %v1455, 126
        %v1488 = vpop.permute.xlu0 %1487
        %1489 = vrot.lane.b32.xlu0 %v1456, 126
        %v1490 = vpop.permute.xlu0 %1489
        %1491 = vrot.lane.b32.xlu0 %v1457, 126
        %v1492 = vpop.permute.xlu0 %1491
        %1493 = vrot.lane.b32.xlu0 %v1458, 126
        %v1494 = vpop.permute.xlu0 %1493
        %vm1495 = vcmask 1031168
        %v1496 = vsel %vm1495, %v1472, %v1474
        %v1497 = vsel %vm1495, %v1474, %v1476
        %v1498 = vsel %vm1495, %v1478, %v1480
        %v1499 = vsel %vm1495, %v1480, %v1482
        %v1500 = vsel %vm1495, %v1484, %v1486
        %v1501 = vsel %vm1495, %v1486, %v1488
        %v1502 = vsel %vm1495, %v1490, %v1492
        %v1503 = vsel %vm1495, %v1492, %v1494
        %v1512 = vadd.f32 %v1384, %v1496
        %v1513 = vadd.f32 %v1385, %v1497
        %v1514 = vadd.f32 %v1386, %v1498
        %v1515 = vadd.f32 %v1387, %v1499
        %v1516 = vadd.f32 %v1388, %v1500
        %v1517 = vadd.f32 %v1389, %v1501
        %v1518 = vadd.f32 %v1390, %v1502
        %v1519 = vadd.f32 %v1391, %v1503
        %1520 = vset.pattern.permute.xlu0 7
        %1521 = vperm.xlu0 %1520, %v488
        %v1522 = vpop.permute.xlu0 %1521
        %1524 = vset.pattern.permute.xlu0 7
        %1525 = vperm.xlu0 %1524, %v489
        %v1526 = vpop.permute.xlu0 %1525
        %1528 = vset.pattern.permute.xlu0 7
        %1529 = vperm.xlu0 %1528, %v490
        %v1530 = vpop.permute.xlu0 %1529
        %1532 = vset.pattern.permute.xlu0 7
        %1533 = vperm.xlu0 %1532, %v491
        %v1534 = vpop.permute.xlu0 %1533
        %v1536 = vmul.f32 %v1419, %v1522
        %v1537 = vmul.f32 %v1420, %v1522
        %v1538 = vmul.f32 %v1421, %v1522
        %v1539 = vmul.f32 %v1422, %v1526
        %v1540 = vmul.f32 %v1423, %v1526
        %v1541 = vmul.f32 %v1424, %v1526
        %v1542 = vmul.f32 %v1425, %v1530
        %v1543 = vmul.f32 %v1426, %v1530
        %v1544 = vmul.f32 %v1427, %v1530
        %v1545 = vmul.f32 %v1428, %v1534
        %v1546 = vmul.f32 %v1429, %v1534
        %v1547 = vmul.f32 %v1430, %v1534
        %1560 = vrot.lane.b32.xlu0 %v1536, 110
        %v1561 = vpop.permute.xlu0 %1560
        %1562 = vrot.lane.b32.xlu0 %v1537, 110
        %v1563 = vpop.permute.xlu0 %1562
        %1564 = vrot.lane.b32.xlu0 %v1538, 110
        %v1565 = vpop.permute.xlu0 %1564
        %1566 = vrot.lane.b32.xlu0 %v1539, 110
        %v1567 = vpop.permute.xlu0 %1566
        %1568 = vrot.lane.b32.xlu0 %v1540, 110
        %v1569 = vpop.permute.xlu0 %1568
        %1570 = vrot.lane.b32.xlu0 %v1541, 110
        %v1571 = vpop.permute.xlu0 %1570
        %1572 = vrot.lane.b32.xlu0 %v1542, 110
        %v1573 = vpop.permute.xlu0 %1572
        %1574 = vrot.lane.b32.xlu0 %v1543, 110
        %v1575 = vpop.permute.xlu0 %1574
        %1576 = vrot.lane.b32.xlu0 %v1544, 110
        %v1577 = vpop.permute.xlu0 %1576
        %1578 = vrot.lane.b32.xlu0 %v1545, 110
        %v1579 = vpop.permute.xlu0 %1578
        %1580 = vrot.lane.b32.xlu0 %v1546, 110
        %v1581 = vpop.permute.xlu0 %1580
        %1582 = vrot.lane.b32.xlu0 %v1547, 110
        %v1583 = vpop.permute.xlu0 %1582
        %vm1584 = vcmask 900096
        %v1585 = vsel %vm1584, %v1561, %v1563
        %v1586 = vsel %vm1584, %v1563, %v1565
        %v1587 = vsel %vm1584, %v1567, %v1569
        %v1588 = vsel %vm1584, %v1569, %v1571
        %v1589 = vsel %vm1584, %v1573, %v1575
        %v1590 = vsel %vm1584, %v1575, %v1577
        %v1591 = vsel %vm1584, %v1579, %v1581
        %v1592 = vsel %vm1584, %v1581, %v1583
        %v1601 = vadd.f32 %v1512, %v1585
        %v1602 = vadd.f32 %v1513, %v1586
        %v1603 = vadd.f32 %v1514, %v1587
        %v1604 = vadd.f32 %v1515, %v1588
        %v1605 = vadd.f32 %v1516, %v1589
        %v1606 = vadd.f32 %v1517, %v1590
        %v1607 = vadd.f32 %v1518, %v1591
        %v1608 = vadd.f32 %v1519, %v1592
        %1609 = vset.pattern.permute.xlu0 12
        %1610 = vperm.xlu0 %1609, %v488
        %v1611 = vpop.permute.xlu0 %1610
        %1613 = vset.pattern.permute.xlu0 12
        %1614 = vperm.xlu0 %1613, %v489
        %v1615 = vpop.permute.xlu0 %1614
        %1617 = vset.pattern.permute.xlu0 12
        %1618 = vperm.xlu0 %1617, %v490
        %v1619 = vpop.permute.xlu0 %1618
        %1621 = vset.pattern.permute.xlu0 12
        %1622 = vperm.xlu0 %1621, %v491
        %v1623 = vpop.permute.xlu0 %1622
        %v1625 = vmul.f32 %v1419, %v1611
        %v1626 = vmul.f32 %v1420, %v1611
        %v1627 = vmul.f32 %v1421, %v1611
        %v1628 = vmul.f32 %v1422, %v1615
        %v1629 = vmul.f32 %v1423, %v1615
        %v1630 = vmul.f32 %v1424, %v1615
        %v1631 = vmul.f32 %v1425, %v1619
        %v1632 = vmul.f32 %v1426, %v1619
        %v1633 = vmul.f32 %v1427, %v1619
        %v1634 = vmul.f32 %v1428, %v1623
        %v1635 = vmul.f32 %v1429, %v1623
        %v1636 = vmul.f32 %v1430, %v1623
        %1649 = vrot.lane.b32.xlu0 %v1625, 94
        %v1650 = vpop.permute.xlu0 %1649
        %1651 = vrot.lane.b32.xlu0 %v1626, 94
        %v1652 = vpop.permute.xlu0 %1651
        %1653 = vrot.lane.b32.xlu0 %v1627, 94
        %v1654 = vpop.permute.xlu0 %1653
        %1655 = vrot.lane.b32.xlu0 %v1628, 94
        %v1656 = vpop.permute.xlu0 %1655
        %1657 = vrot.lane.b32.xlu0 %v1629, 94
        %v1658 = vpop.permute.xlu0 %1657
        %1659 = vrot.lane.b32.xlu0 %v1630, 94
        %v1660 = vpop.permute.xlu0 %1659
        %1661 = vrot.lane.b32.xlu0 %v1631, 94
        %v1662 = vpop.permute.xlu0 %1661
        %1663 = vrot.lane.b32.xlu0 %v1632, 94
        %v1664 = vpop.permute.xlu0 %1663
        %1665 = vrot.lane.b32.xlu0 %v1633, 94
        %v1666 = vpop.permute.xlu0 %1665
        %1667 = vrot.lane.b32.xlu0 %v1634, 94
        %v1668 = vpop.permute.xlu0 %1667
        %1669 = vrot.lane.b32.xlu0 %v1635, 94
        %v1670 = vpop.permute.xlu0 %1669
        %1671 = vrot.lane.b32.xlu0 %v1636, 94
        %v1672 = vpop.permute.xlu0 %1671
        %vm1673 = vcmask 769024
        %v1674 = vsel %vm1673, %v1650, %v1652
        %v1675 = vsel %vm1673, %v1652, %v1654
        %v1676 = vsel %vm1673, %v1656, %v1658
        %v1677 = vsel %vm1673, %v1658, %v1660
        %v1678 = vsel %vm1673, %v1662, %v1664
        %v1679 = vsel %vm1673, %v1664, %v1666
        %v1680 = vsel %vm1673, %v1668, %v1670
        %v1681 = vsel %vm1673, %v1670, %v1672
        %v1690 = vadd.f32 %v1601, %v1674
        %v1691 = vadd.f32 %v1602, %v1675
        %v1692 = vadd.f32 %v1603, %v1676
        %v1693 = vadd.f32 %v1604, %v1677
        %v1694 = vadd.f32 %v1605, %v1678
        %v1695 = vadd.f32 %v1606, %v1679
        %v1696 = vadd.f32 %v1607, %v1680
        %v1697 = vadd.f32 %v1608, %v1681
        %1698 = vset.pattern.permute.xlu0 17
        %1699 = vperm.xlu0 %1698, %v488
        %v1700 = vpop.permute.xlu0 %1699
        %1702 = vset.pattern.permute.xlu0 17
        %1703 = vperm.xlu0 %1702, %v489
        %v1704 = vpop.permute.xlu0 %1703
        %1706 = vset.pattern.permute.xlu0 17
        %1707 = vperm.xlu0 %1706, %v490
        %v1708 = vpop.permute.xlu0 %1707
        %1710 = vset.pattern.permute.xlu0 17
        %1711 = vperm.xlu0 %1710, %v491
        %v1712 = vpop.permute.xlu0 %1711
        %v1714 = vmul.f32 %v1419, %v1700
        %v1715 = vmul.f32 %v1420, %v1700
        %v1716 = vmul.f32 %v1421, %v1700
        %v1717 = vmul.f32 %v1422, %v1704
        %v1718 = vmul.f32 %v1423, %v1704
        %v1719 = vmul.f32 %v1424, %v1704
        %v1720 = vmul.f32 %v1425, %v1708
        %v1721 = vmul.f32 %v1426, %v1708
        %v1722 = vmul.f32 %v1427, %v1708
        %v1723 = vmul.f32 %v1428, %v1712
        %v1724 = vmul.f32 %v1429, %v1712
        %v1725 = vmul.f32 %v1430, %v1712
        %1738 = vrot.lane.b32.xlu0 %v1714, 78
        %v1739 = vpop.permute.xlu0 %1738
        %1740 = vrot.lane.b32.xlu0 %v1715, 78
        %v1741 = vpop.permute.xlu0 %1740
        %1742 = vrot.lane.b32.xlu0 %v1716, 78
        %v1743 = vpop.permute.xlu0 %1742
        %1744 = vrot.lane.b32.xlu0 %v1717, 78
        %v1745 = vpop.permute.xlu0 %1744
        %1746 = vrot.lane.b32.xlu0 %v1718, 78
        %v1747 = vpop.permute.xlu0 %1746
        %1748 = vrot.lane.b32.xlu0 %v1719, 78
        %v1749 = vpop.permute.xlu0 %1748
        %1750 = vrot.lane.b32.xlu0 %v1720, 78
        %v1751 = vpop.permute.xlu0 %1750
        %1752 = vrot.lane.b32.xlu0 %v1721, 78
        %v1753 = vpop.permute.xlu0 %1752
        %1754 = vrot.lane.b32.xlu0 %v1722, 78
        %v1755 = vpop.permute.xlu0 %1754
        %1756 = vrot.lane.b32.xlu0 %v1723, 78
        %v1757 = vpop.permute.xlu0 %1756
        %1758 = vrot.lane.b32.xlu0 %v1724, 78
        %v1759 = vpop.permute.xlu0 %1758
        %1760 = vrot.lane.b32.xlu0 %v1725, 78
        %v1761 = vpop.permute.xlu0 %1760
        %vm1762 = vcmask 637952
        %v1763 = vsel %vm1762, %v1739, %v1741
        %v1764 = vsel %vm1762, %v1741, %v1743
        %v1765 = vsel %vm1762, %v1745, %v1747
        %v1766 = vsel %vm1762, %v1747, %v1749
        %v1767 = vsel %vm1762, %v1751, %v1753
        %v1768 = vsel %vm1762, %v1753, %v1755
        %v1769 = vsel %vm1762, %v1757, %v1759
        %v1770 = vsel %vm1762, %v1759, %v1761
        %v1779 = vadd.f32 %v1690, %v1763
        %v1780 = vadd.f32 %v1691, %v1764
        %v1781 = vadd.f32 %v1692, %v1765
        %v1782 = vadd.f32 %v1693, %v1766
        %v1783 = vadd.f32 %v1694, %v1767
        %v1784 = vadd.f32 %v1695, %v1768
        %v1785 = vadd.f32 %v1696, %v1769
        %v1786 = vadd.f32 %v1697, %v1770
        %1787 = vset.pattern.permute.xlu0 22
        %1788 = vperm.xlu0 %1787, %v488
        %v1789 = vpop.permute.xlu0 %1788
        %1791 = vset.pattern.permute.xlu0 22
        %1792 = vperm.xlu0 %1791, %v489
        %v1793 = vpop.permute.xlu0 %1792
        %1795 = vset.pattern.permute.xlu0 22
        %1796 = vperm.xlu0 %1795, %v490
        %v1797 = vpop.permute.xlu0 %1796
        %1799 = vset.pattern.permute.xlu0 22
        %1800 = vperm.xlu0 %1799, %v491
        %v1801 = vpop.permute.xlu0 %1800
        %v1803 = vmul.f32 %v1419, %v1789
        %v1804 = vmul.f32 %v1420, %v1789
        %v1805 = vmul.f32 %v1421, %v1789
        %v1806 = vmul.f32 %v1422, %v1793
        %v1807 = vmul.f32 %v1423, %v1793
        %v1808 = vmul.f32 %v1424, %v1793
        %v1809 = vmul.f32 %v1425, %v1797
        %v1810 = vmul.f32 %v1426, %v1797
        %v1811 = vmul.f32 %v1427, %v1797
        %v1812 = vmul.f32 %v1428, %v1801
        %v1813 = vmul.f32 %v1429, %v1801
        %v1814 = vmul.f32 %v1430, %v1801
        %1827 = vrot.lane.b32.xlu0 %v1803, 62
        %v1828 = vpop.permute.xlu0 %1827
        %1829 = vrot.lane.b32.xlu0 %v1804, 62
        %v1830 = vpop.permute.xlu0 %1829
        %1831 = vrot.lane.b32.xlu0 %v1805, 62
        %v1832 = vpop.permute.xlu0 %1831
        %1833 = vrot.lane.b32.xlu0 %v1806, 62
        %v1834 = vpop.permute.xlu0 %1833
        %1835 = vrot.lane.b32.xlu0 %v1807, 62
        %v1836 = vpop.permute.xlu0 %1835
        %1837 = vrot.lane.b32.xlu0 %v1808, 62
        %v1838 = vpop.permute.xlu0 %1837
        %1839 = vrot.lane.b32.xlu0 %v1809, 62
        %v1840 = vpop.permute.xlu0 %1839
        %1841 = vrot.lane.b32.xlu0 %v1810, 62
        %v1842 = vpop.permute.xlu0 %1841
        %1843 = vrot.lane.b32.xlu0 %v1811, 62
        %v1844 = vpop.permute.xlu0 %1843
        %1845 = vrot.lane.b32.xlu0 %v1812, 62
        %v1846 = vpop.permute.xlu0 %1845
        %1847 = vrot.lane.b32.xlu0 %v1813, 62
        %v1848 = vpop.permute.xlu0 %1847
        %1849 = vrot.lane.b32.xlu0 %v1814, 62
        %v1850 = vpop.permute.xlu0 %1849
        %vm1851 = vcmask 506880
        %v1852 = vsel %vm1851, %v1828, %v1830
        %v1853 = vsel %vm1851, %v1830, %v1832
        %v1854 = vsel %vm1851, %v1834, %v1836
        %v1855 = vsel %vm1851, %v1836, %v1838
        %v1856 = vsel %vm1851, %v1840, %v1842
        %v1857 = vsel %vm1851, %v1842, %v1844
        %v1858 = vsel %vm1851, %v1846, %v1848
        %v1859 = vsel %vm1851, %v1848, %v1850
        %v1868 = vadd.f32 %v1779, %v1852
        %v1869 = vadd.f32 %v1780, %v1853
        %v1870 = vadd.f32 %v1781, %v1854
        %v1871 = vadd.f32 %v1782, %v1855
        %v1872 = vadd.f32 %v1783, %v1856
        %v1873 = vadd.f32 %v1784, %v1857
        %v1874 = vadd.f32 %v1785, %v1858
        %v1875 = vadd.f32 %v1786, %v1859
        %v1876 = vlaneseq
        %v1877 = vshrl.u32 %v1876, 7
        %v1878 = vsub.s32 3, %v1877
        %v1879 = vrot.slane %v398, %v1878
        %v1880 = vlaneseq
        %v1881 = vshrl.u32 %v1880, 7
        %v1882 = vsub.s32 3, %v1881
        %v1883 = vrot.slane %v399, %v1882
        %v1884 = vlaneseq
        %v1885 = vshrl.u32 %v1884, 7
        %v1886 = vsub.s32 3, %v1885
        %v1887 = vrot.slane %v400, %v1886
        %1891 = vrot.lane.b32.xlu0 %v1879, 3
        %v1892 = vpop.permute.xlu0 %1891
        %1893 = vrot.lane.b32.xlu0 %v1883, 3
        %v1894 = vpop.permute.xlu0 %1893
        %1895 = vrot.lane.b32.xlu0 %v1887, 3
        %v1896 = vpop.permute.xlu0 %1895
        %vm1897 = vcmask 23552
        %v1898 = vsel %vm1897, %v1892, %v1894
        %v1899 = vsel %vm1897, %v1894, %v1896
        %v1903 = vmul.f32 %v476, %v1892
        %v1904 = vmul.f32 %v477, %v1898
        %v1905 = vmul.f32 %v478, %v1899
        %v1906 = vmul.f32 %v479, %v1892
        %v1907 = vmul.f32 %v480, %v1898
        %v1908 = vmul.f32 %v481, %v1899
        %v1909 = vmul.f32 %v482, %v1892
        %v1910 = vmul.f32 %v483, %v1898
        %v1911 = vmul.f32 %v484, %v1899
        %v1912 = vmul.f32 %v485, %v1892
        %v1913 = vmul.f32 %v486, %v1898
        %v1914 = vmul.f32 %v487, %v1899
        %1915 = vset.pattern.permute.xlu0 3
        %1916 = vperm.xlu0 %1915, %v488
        %v1917 = vpop.permute.xlu0 %1916
        %1919 = vset.pattern.permute.xlu0 3
        %1920 = vperm.xlu0 %1919, %v489
        %v1921 = vpop.permute.xlu0 %1920
        %1923 = vset.pattern.permute.xlu0 3
        %1924 = vperm.xlu0 %1923, %v490
        %v1925 = vpop.permute.xlu0 %1924
        %1927 = vset.pattern.permute.xlu0 3
        %1928 = vperm.xlu0 %1927, %v491
        %v1929 = vpop.permute.xlu0 %1928
        %v1931 = vmul.f32 %v1903, %v1917
        %v1932 = vmul.f32 %v1904, %v1917
        %v1933 = vmul.f32 %v1905, %v1917
        %v1934 = vmul.f32 %v1906, %v1921
        %v1935 = vmul.f32 %v1907, %v1921
        %v1936 = vmul.f32 %v1908, %v1921
        %v1937 = vmul.f32 %v1909, %v1925
        %v1938 = vmul.f32 %v1910, %v1925
        %v1939 = vmul.f32 %v1911, %v1925
        %v1940 = vmul.f32 %v1912, %v1929
        %v1941 = vmul.f32 %v1913, %v1929
        %v1942 = vmul.f32 %v1914, %v1929
        %1955 = vrot.lane.b32.xlu0 %v1931, 125
        %v1956 = vpop.permute.xlu0 %1955
        %1957 = vrot.lane.b32.xlu0 %v1932, 125
        %v1958 = vpop.permute.xlu0 %1957
        %1959 = vrot.lane.b32.xlu0 %v1933, 125
        %v1960 = vpop.permute.xlu0 %1959
        %1961 = vrot.lane.b32.xlu0 %v1934, 125
        %v1962 = vpop.permute.xlu0 %1961
        %1963 = vrot.lane.b32.xlu0 %v1935, 125
        %v1964 = vpop.permute.xlu0 %1963
        %1965 = vrot.lane.b32.xlu0 %v1936, 125
        %v1966 = vpop.permute.xlu0 %1965
        %1967 = vrot.lane.b32.xlu0 %v1937, 125
        %v1968 = vpop.permute.xlu0 %1967
        %1969 = vrot.lane.b32.xlu0 %v1938, 125
        %v1970 = vpop.permute.xlu0 %1969
        %1971 = vrot.lane.b32.xlu0 %v1939, 125
        %v1972 = vpop.permute.xlu0 %1971
        %1973 = vrot.lane.b32.xlu0 %v1940, 125
        %v1974 = vpop.permute.xlu0 %1973
        %1975 = vrot.lane.b32.xlu0 %v1941, 125
        %v1976 = vpop.permute.xlu0 %1975
        %1977 = vrot.lane.b32.xlu0 %v1942, 125
        %v1978 = vpop.permute.xlu0 %1977
        %vm1979 = vcmask 1022976
        %v1980 = vsel %vm1979, %v1956, %v1958
        %v1981 = vsel %vm1979, %v1958, %v1960
        %v1982 = vsel %vm1979, %v1962, %v1964
        %v1983 = vsel %vm1979, %v1964, %v1966
        %v1984 = vsel %vm1979, %v1968, %v1970
        %v1985 = vsel %vm1979, %v1970, %v1972
        %v1986 = vsel %vm1979, %v1974, %v1976
        %v1987 = vsel %vm1979, %v1976, %v1978
        %v1996 = vadd.f32 %v1868, %v1980
        %v1997 = vadd.f32 %v1869, %v1981
        %v1998 = vadd.f32 %v1870, %v1982
        %v1999 = vadd.f32 %v1871, %v1983
        %v2000 = vadd.f32 %v1872, %v1984
        %v2001 = vadd.f32 %v1873, %v1985
        %v2002 = vadd.f32 %v1874, %v1986
        %v2003 = vadd.f32 %v1875, %v1987
        %2004 = vset.pattern.permute.xlu0 8
        %2005 = vperm.xlu0 %2004, %v488
        %v2006 = vpop.permute.xlu0 %2005
        %2008 = vset.pattern.permute.xlu0 8
        %2009 = vperm.xlu0 %2008, %v489
        %v2010 = vpop.permute.xlu0 %2009
        %2012 = vset.pattern.permute.xlu0 8
        %2013 = vperm.xlu0 %2012, %v490
        %v2014 = vpop.permute.xlu0 %2013
        %2016 = vset.pattern.permute.xlu0 8
        %2017 = vperm.xlu0 %2016, %v491
        %v2018 = vpop.permute.xlu0 %2017
        %v2020 = vmul.f32 %v1903, %v2006
        %v2021 = vmul.f32 %v1904, %v2006
        %v2022 = vmul.f32 %v1905, %v2006
        %v2023 = vmul.f32 %v1906, %v2010
        %v2024 = vmul.f32 %v1907, %v2010
        %v2025 = vmul.f32 %v1908, %v2010
        %v2026 = vmul.f32 %v1909, %v2014
        %v2027 = vmul.f32 %v1910, %v2014
        %v2028 = vmul.f32 %v1911, %v2014
        %v2029 = vmul.f32 %v1912, %v2018
        %v2030 = vmul.f32 %v1913, %v2018
        %v2031 = vmul.f32 %v1914, %v2018
        %2044 = vrot.lane.b32.xlu0 %v2020, 109
        %v2045 = vpop.permute.xlu0 %2044
        %2046 = vrot.lane.b32.xlu0 %v2021, 109
        %v2047 = vpop.permute.xlu0 %2046
        %2048 = vrot.lane.b32.xlu0 %v2022, 109
        %v2049 = vpop.permute.xlu0 %2048
        %2050 = vrot.lane.b32.xlu0 %v2023, 109
        %v2051 = vpop.permute.xlu0 %2050
        %2052 = vrot.lane.b32.xlu0 %v2024, 109
        %v2053 = vpop.permute.xlu0 %2052
        %2054 = vrot.lane.b32.xlu0 %v2025, 109
        %v2055 = vpop.permute.xlu0 %2054
        %2056 = vrot.lane.b32.xlu0 %v2026, 109
        %v2057 = vpop.permute.xlu0 %2056
        %2058 = vrot.lane.b32.xlu0 %v2027, 109
        %v2059 = vpop.permute.xlu0 %2058
        %2060 = vrot.lane.b32.xlu0 %v2028, 109
        %v2061 = vpop.permute.xlu0 %2060
        %2062 = vrot.lane.b32.xlu0 %v2029, 109
        %v2063 = vpop.permute.xlu0 %2062
        %2064 = vrot.lane.b32.xlu0 %v2030, 109
        %v2065 = vpop.permute.xlu0 %2064
        %2066 = vrot.lane.b32.xlu0 %v2031, 109
        %v2067 = vpop.permute.xlu0 %2066
        %vm2068 = vcmask 891904
        %v2069 = vsel %vm2068, %v2045, %v2047
        %v2070 = vsel %vm2068, %v2047, %v2049
        %v2071 = vsel %vm2068, %v2051, %v2053
        %v2072 = vsel %vm2068, %v2053, %v2055
        %v2073 = vsel %vm2068, %v2057, %v2059
        %v2074 = vsel %vm2068, %v2059, %v2061
        %v2075 = vsel %vm2068, %v2063, %v2065
        %v2076 = vsel %vm2068, %v2065, %v2067
        %v2085 = vadd.f32 %v1996, %v2069
        %v2086 = vadd.f32 %v1997, %v2070
        %v2087 = vadd.f32 %v1998, %v2071
        %v2088 = vadd.f32 %v1999, %v2072
        %v2089 = vadd.f32 %v2000, %v2073
        %v2090 = vadd.f32 %v2001, %v2074
        %v2091 = vadd.f32 %v2002, %v2075
        %v2092 = vadd.f32 %v2003, %v2076
        %2093 = vset.pattern.permute.xlu0 13
        %2094 = vperm.xlu0 %2093, %v488
        %v2095 = vpop.permute.xlu0 %2094
        %2097 = vset.pattern.permute.xlu0 13
        %2098 = vperm.xlu0 %2097, %v489
        %v2099 = vpop.permute.xlu0 %2098
        %2101 = vset.pattern.permute.xlu0 13
        %2102 = vperm.xlu0 %2101, %v490
        %v2103 = vpop.permute.xlu0 %2102
        %2105 = vset.pattern.permute.xlu0 13
        %2106 = vperm.xlu0 %2105, %v491
        %v2107 = vpop.permute.xlu0 %2106
        %v2109 = vmul.f32 %v1903, %v2095
        %v2110 = vmul.f32 %v1904, %v2095
        %v2111 = vmul.f32 %v1905, %v2095
        %v2112 = vmul.f32 %v1906, %v2099
        %v2113 = vmul.f32 %v1907, %v2099
        %v2114 = vmul.f32 %v1908, %v2099
        %v2115 = vmul.f32 %v1909, %v2103
        %v2116 = vmul.f32 %v1910, %v2103
        %v2117 = vmul.f32 %v1911, %v2103
        %v2118 = vmul.f32 %v1912, %v2107
        %v2119 = vmul.f32 %v1913, %v2107
        %v2120 = vmul.f32 %v1914, %v2107
        %2133 = vrot.lane.b32.xlu0 %v2109, 93
        %v2134 = vpop.permute.xlu0 %2133
        %2135 = vrot.lane.b32.xlu0 %v2110, 93
        %v2136 = vpop.permute.xlu0 %2135
        %2137 = vrot.lane.b32.xlu0 %v2111, 93
        %v2138 = vpop.permute.xlu0 %2137
        %2139 = vrot.lane.b32.xlu0 %v2112, 93
        %v2140 = vpop.permute.xlu0 %2139
        %2141 = vrot.lane.b32.xlu0 %v2113, 93
        %v2142 = vpop.permute.xlu0 %2141
        %2143 = vrot.lane.b32.xlu0 %v2114, 93
        %v2144 = vpop.permute.xlu0 %2143
        %2145 = vrot.lane.b32.xlu0 %v2115, 93
        %v2146 = vpop.permute.xlu0 %2145
        %2147 = vrot.lane.b32.xlu0 %v2116, 93
        %v2148 = vpop.permute.xlu0 %2147
        %2149 = vrot.lane.b32.xlu0 %v2117, 93
        %v2150 = vpop.permute.xlu0 %2149
        %2151 = vrot.lane.b32.xlu0 %v2118, 93
        %v2152 = vpop.permute.xlu0 %2151
        %2153 = vrot.lane.b32.xlu0 %v2119, 93
        %v2154 = vpop.permute.xlu0 %2153
        %2155 = vrot.lane.b32.xlu0 %v2120, 93
        %v2156 = vpop.permute.xlu0 %2155
        %vm2157 = vcmask 760832
        %v2158 = vsel %vm2157, %v2134, %v2136
        %v2159 = vsel %vm2157, %v2136, %v2138
        %v2160 = vsel %vm2157, %v2140, %v2142
        %v2161 = vsel %vm2157, %v2142, %v2144
        %v2162 = vsel %vm2157, %v2146, %v2148
        %v2163 = vsel %vm2157, %v2148, %v2150
        %v2164 = vsel %vm2157, %v2152, %v2154
        %v2165 = vsel %vm2157, %v2154, %v2156
        %v2174 = vadd.f32 %v2085, %v2158
        %v2175 = vadd.f32 %v2086, %v2159
        %v2176 = vadd.f32 %v2087, %v2160
        %v2177 = vadd.f32 %v2088, %v2161
        %v2178 = vadd.f32 %v2089, %v2162
        %v2179 = vadd.f32 %v2090, %v2163
        %v2180 = vadd.f32 %v2091, %v2164
        %v2181 = vadd.f32 %v2092, %v2165
        %2182 = vset.pattern.permute.xlu0 18
        %2183 = vperm.xlu0 %2182, %v488
        %v2184 = vpop.permute.xlu0 %2183
        %2186 = vset.pattern.permute.xlu0 18
        %2187 = vperm.xlu0 %2186, %v489
        %v2188 = vpop.permute.xlu0 %2187
        %2190 = vset.pattern.permute.xlu0 18
        %2191 = vperm.xlu0 %2190, %v490
        %v2192 = vpop.permute.xlu0 %2191
        %2194 = vset.pattern.permute.xlu0 18
        %2195 = vperm.xlu0 %2194, %v491
        %v2196 = vpop.permute.xlu0 %2195
        %v2198 = vmul.f32 %v1903, %v2184
        %v2199 = vmul.f32 %v1904, %v2184
        %v2200 = vmul.f32 %v1905, %v2184
        %v2201 = vmul.f32 %v1906, %v2188
        %v2202 = vmul.f32 %v1907, %v2188
        %v2203 = vmul.f32 %v1908, %v2188
        %v2204 = vmul.f32 %v1909, %v2192
        %v2205 = vmul.f32 %v1910, %v2192
        %v2206 = vmul.f32 %v1911, %v2192
        %v2207 = vmul.f32 %v1912, %v2196
        %v2208 = vmul.f32 %v1913, %v2196
        %v2209 = vmul.f32 %v1914, %v2196
        %2222 = vrot.lane.b32.xlu0 %v2198, 77
        %v2223 = vpop.permute.xlu0 %2222
        %2224 = vrot.lane.b32.xlu0 %v2199, 77
        %v2225 = vpop.permute.xlu0 %2224
        %2226 = vrot.lane.b32.xlu0 %v2200, 77
        %v2227 = vpop.permute.xlu0 %2226
        %2228 = vrot.lane.b32.xlu0 %v2201, 77
        %v2229 = vpop.permute.xlu0 %2228
        %2230 = vrot.lane.b32.xlu0 %v2202, 77
        %v2231 = vpop.permute.xlu0 %2230
        %2232 = vrot.lane.b32.xlu0 %v2203, 77
        %v2233 = vpop.permute.xlu0 %2232
        %2234 = vrot.lane.b32.xlu0 %v2204, 77
        %v2235 = vpop.permute.xlu0 %2234
        %2236 = vrot.lane.b32.xlu0 %v2205, 77
        %v2237 = vpop.permute.xlu0 %2236
        %2238 = vrot.lane.b32.xlu0 %v2206, 77
        %v2239 = vpop.permute.xlu0 %2238
        %2240 = vrot.lane.b32.xlu0 %v2207, 77
        %v2241 = vpop.permute.xlu0 %2240
        %2242 = vrot.lane.b32.xlu0 %v2208, 77
        %v2243 = vpop.permute.xlu0 %2242
        %2244 = vrot.lane.b32.xlu0 %v2209, 77
        %v2245 = vpop.permute.xlu0 %2244
        %vm2246 = vcmask 629760
        %v2247 = vsel %vm2246, %v2223, %v2225
        %v2248 = vsel %vm2246, %v2225, %v2227
        %v2249 = vsel %vm2246, %v2229, %v2231
        %v2250 = vsel %vm2246, %v2231, %v2233
        %v2251 = vsel %vm2246, %v2235, %v2237
        %v2252 = vsel %vm2246, %v2237, %v2239
        %v2253 = vsel %vm2246, %v2241, %v2243
        %v2254 = vsel %vm2246, %v2243, %v2245
        %v2263 = vadd.f32 %v2174, %v2247
        %v2264 = vadd.f32 %v2175, %v2248
        %v2265 = vadd.f32 %v2176, %v2249
        %v2266 = vadd.f32 %v2177, %v2250
        %v2267 = vadd.f32 %v2178, %v2251
        %v2268 = vadd.f32 %v2179, %v2252
        %v2269 = vadd.f32 %v2180, %v2253
        %v2270 = vadd.f32 %v2181, %v2254
        %2271 = vset.pattern.permute.xlu0 23
        %2272 = vperm.xlu0 %2271, %v488
        %v2273 = vpop.permute.xlu0 %2272
        %2275 = vset.pattern.permute.xlu0 23
        %2276 = vperm.xlu0 %2275, %v489
        %v2277 = vpop.permute.xlu0 %2276
        %2279 = vset.pattern.permute.xlu0 23
        %2280 = vperm.xlu0 %2279, %v490
        %v2281 = vpop.permute.xlu0 %2280
        %2283 = vset.pattern.permute.xlu0 23
        %2284 = vperm.xlu0 %2283, %v491
        %v2285 = vpop.permute.xlu0 %2284
        %v2287 = vmul.f32 %v1903, %v2273
        %v2288 = vmul.f32 %v1904, %v2273
        %v2289 = vmul.f32 %v1905, %v2273
        %v2290 = vmul.f32 %v1906, %v2277
        %v2291 = vmul.f32 %v1907, %v2277
        %v2292 = vmul.f32 %v1908, %v2277
        %v2293 = vmul.f32 %v1909, %v2281
        %v2294 = vmul.f32 %v1910, %v2281
        %v2295 = vmul.f32 %v1911, %v2281
        %v2296 = vmul.f32 %v1912, %v2285
        %v2297 = vmul.f32 %v1913, %v2285
        %v2298 = vmul.f32 %v1914, %v2285
        %2311 = vrot.lane.b32.xlu0 %v2287, 61
        %v2312 = vpop.permute.xlu0 %2311
        %2313 = vrot.lane.b32.xlu0 %v2288, 61
        %v2314 = vpop.permute.xlu0 %2313
        %2315 = vrot.lane.b32.xlu0 %v2289, 61
        %v2316 = vpop.permute.xlu0 %2315
        %2317 = vrot.lane.b32.xlu0 %v2290, 61
        %v2318 = vpop.permute.xlu0 %2317
        %2319 = vrot.lane.b32.xlu0 %v2291, 61
        %v2320 = vpop.permute.xlu0 %2319
        %2321 = vrot.lane.b32.xlu0 %v2292, 61
        %v2322 = vpop.permute.xlu0 %2321
        %2323 = vrot.lane.b32.xlu0 %v2293, 61
        %v2324 = vpop.permute.xlu0 %2323
        %2325 = vrot.lane.b32.xlu0 %v2294, 61
        %v2326 = vpop.permute.xlu0 %2325
        %2327 = vrot.lane.b32.xlu0 %v2295, 61
        %v2328 = vpop.permute.xlu0 %2327
        %2329 = vrot.lane.b32.xlu0 %v2296, 61
        %v2330 = vpop.permute.xlu0 %2329
        %2331 = vrot.lane.b32.xlu0 %v2297, 61
        %v2332 = vpop.permute.xlu0 %2331
        %2333 = vrot.lane.b32.xlu0 %v2298, 61
        %v2334 = vpop.permute.xlu0 %2333
        %vm2335 = vcmask 498688
        %v2336 = vsel %vm2335, %v2312, %v2314
        %v2337 = vsel %vm2335, %v2314, %v2316
        %v2338 = vsel %vm2335, %v2318, %v2320
        %v2339 = vsel %vm2335, %v2320, %v2322
        %v2340 = vsel %vm2335, %v2324, %v2326
        %v2341 = vsel %vm2335, %v2326, %v2328
        %v2342 = vsel %vm2335, %v2330, %v2332
        %v2343 = vsel %vm2335, %v2332, %v2334
        %v2352 = vadd.f32 %v2263, %v2336
        %v2353 = vadd.f32 %v2264, %v2337
        %v2354 = vadd.f32 %v2265, %v2338
        %v2355 = vadd.f32 %v2266, %v2339
        %v2356 = vadd.f32 %v2267, %v2340
        %v2357 = vadd.f32 %v2268, %v2341
        %v2358 = vadd.f32 %v2269, %v2342
        %v2359 = vadd.f32 %v2270, %v2343
        %v2360 = vlaneseq
        %v2361 = vshrl.u32 %v2360, 7
        %v2362 = vsub.s32 4, %v2361
        %v2363 = vrot.slane %v398, %v2362
        %v2364 = vlaneseq
        %v2365 = vshrl.u32 %v2364, 7
        %v2366 = vsub.s32 4, %v2365
        %v2367 = vrot.slane %v399, %v2366
        %v2368 = vlaneseq
        %v2369 = vshrl.u32 %v2368, 7
        %v2370 = vsub.s32 4, %v2369
        %v2371 = vrot.slane %v400, %v2370
        %2375 = vrot.lane.b32.xlu0 %v2363, 4
        %v2376 = vpop.permute.xlu0 %2375
        %2377 = vrot.lane.b32.xlu0 %v2367, 4
        %v2378 = vpop.permute.xlu0 %2377
        %2379 = vrot.lane.b32.xlu0 %v2371, 4
        %v2380 = vpop.permute.xlu0 %2379
        %vm2381 = vcmask 31744
        %v2382 = vsel %vm2381, %v2376, %v2378
        %v2383 = vsel %vm2381, %v2378, %v2380
        %v2387 = vmul.f32 %v476, %v2376
        %v2388 = vmul.f32 %v477, %v2382
        %v2389 = vmul.f32 %v478, %v2383
        %v2390 = vmul.f32 %v479, %v2376
        %v2391 = vmul.f32 %v480, %v2382
        %v2392 = vmul.f32 %v481, %v2383
        %v2393 = vmul.f32 %v482, %v2376
        %v2394 = vmul.f32 %v483, %v2382
        %v2395 = vmul.f32 %v484, %v2383
        %v2396 = vmul.f32 %v485, %v2376
        %v2397 = vmul.f32 %v486, %v2382
        %v2398 = vmul.f32 %v487, %v2383
        %2399 = vset.pattern.permute.xlu0 4
        %2400 = vperm.xlu0 %2399, %v488
        %v2401 = vpop.permute.xlu0 %2400
        %2403 = vset.pattern.permute.xlu0 4
        %2404 = vperm.xlu0 %2403, %v489
        %v2405 = vpop.permute.xlu0 %2404
        %2407 = vset.pattern.permute.xlu0 4
        %2408 = vperm.xlu0 %2407, %v490
        %v2409 = vpop.permute.xlu0 %2408
        %2411 = vset.pattern.permute.xlu0 4
        %2412 = vperm.xlu0 %2411, %v491
        %v2413 = vpop.permute.xlu0 %2412
        %v2415 = vmul.f32 %v2387, %v2401
        %v2416 = vmul.f32 %v2388, %v2401
        %v2417 = vmul.f32 %v2389, %v2401
        %v2418 = vmul.f32 %v2390, %v2405
        %v2419 = vmul.f32 %v2391, %v2405
        %v2420 = vmul.f32 %v2392, %v2405
        %v2421 = vmul.f32 %v2393, %v2409
        %v2422 = vmul.f32 %v2394, %v2409
        %v2423 = vmul.f32 %v2395, %v2409
        %v2424 = vmul.f32 %v2396, %v2413
        %v2425 = vmul.f32 %v2397, %v2413
        %v2426 = vmul.f32 %v2398, %v2413
        %2439 = vrot.lane.b32.xlu0 %v2415, 124
        %v2440 = vpop.permute.xlu0 %2439
        %2441 = vrot.lane.b32.xlu0 %v2416, 124
        %v2442 = vpop.permute.xlu0 %2441
        %2443 = vrot.lane.b32.xlu0 %v2417, 124
        %v2444 = vpop.permute.xlu0 %2443
        %2445 = vrot.lane.b32.xlu0 %v2418, 124
        %v2446 = vpop.permute.xlu0 %2445
        %2447 = vrot.lane.b32.xlu0 %v2419, 124
        %v2448 = vpop.permute.xlu0 %2447
        %2449 = vrot.lane.b32.xlu0 %v2420, 124
        %v2450 = vpop.permute.xlu0 %2449
        %2451 = vrot.lane.b32.xlu0 %v2421, 124
        %v2452 = vpop.permute.xlu0 %2451
        %2453 = vrot.lane.b32.xlu0 %v2422, 124
        %v2454 = vpop.permute.xlu0 %2453
        %2455 = vrot.lane.b32.xlu0 %v2423, 124
        %v2456 = vpop.permute.xlu0 %2455
        %2457 = vrot.lane.b32.xlu0 %v2424, 124
        %v2458 = vpop.permute.xlu0 %2457
        %2459 = vrot.lane.b32.xlu0 %v2425, 124
        %v2460 = vpop.permute.xlu0 %2459
        %2461 = vrot.lane.b32.xlu0 %v2426, 124
        %v2462 = vpop.permute.xlu0 %2461
        %vm2463 = vcmask 1014784
        %v2464 = vsel %vm2463, %v2440, %v2442
        %v2465 = vsel %vm2463, %v2442, %v2444
        %v2466 = vsel %vm2463, %v2446, %v2448
        %v2467 = vsel %vm2463, %v2448, %v2450
        %v2468 = vsel %vm2463, %v2452, %v2454
        %v2469 = vsel %vm2463, %v2454, %v2456
        %v2470 = vsel %vm2463, %v2458, %v2460
        %v2471 = vsel %vm2463, %v2460, %v2462
        %v2480 = vadd.f32 %v2352, %v2464
        %v2481 = vadd.f32 %v2353, %v2465
        %v2482 = vadd.f32 %v2354, %v2466
        %v2483 = vadd.f32 %v2355, %v2467
        %v2484 = vadd.f32 %v2356, %v2468
        %v2485 = vadd.f32 %v2357, %v2469
        %v2486 = vadd.f32 %v2358, %v2470
        %v2487 = vadd.f32 %v2359, %v2471
        %2488 = vset.pattern.permute.xlu0 9
        %2489 = vperm.xlu0 %2488, %v488
        %v2490 = vpop.permute.xlu0 %2489
        %2492 = vset.pattern.permute.xlu0 9
        %2493 = vperm.xlu0 %2492, %v489
        %v2494 = vpop.permute.xlu0 %2493
        %2496 = vset.pattern.permute.xlu0 9
        %2497 = vperm.xlu0 %2496, %v490
        %v2498 = vpop.permute.xlu0 %2497
        %2500 = vset.pattern.permute.xlu0 9
        %2501 = vperm.xlu0 %2500, %v491
        %v2502 = vpop.permute.xlu0 %2501
        %v2504 = vmul.f32 %v2387, %v2490
        %v2505 = vmul.f32 %v2388, %v2490
        %v2506 = vmul.f32 %v2389, %v2490
        %v2507 = vmul.f32 %v2390, %v2494
        %v2508 = vmul.f32 %v2391, %v2494
        %v2509 = vmul.f32 %v2392, %v2494
        %v2510 = vmul.f32 %v2393, %v2498
        %v2511 = vmul.f32 %v2394, %v2498
        %v2512 = vmul.f32 %v2395, %v2498
        %v2513 = vmul.f32 %v2396, %v2502
        %v2514 = vmul.f32 %v2397, %v2502
        %v2515 = vmul.f32 %v2398, %v2502
        %2528 = vrot.lane.b32.xlu0 %v2504, 108
        %v2529 = vpop.permute.xlu0 %2528
        %2530 = vrot.lane.b32.xlu0 %v2505, 108
        %v2531 = vpop.permute.xlu0 %2530
        %2532 = vrot.lane.b32.xlu0 %v2506, 108
        %v2533 = vpop.permute.xlu0 %2532
        %2534 = vrot.lane.b32.xlu0 %v2507, 108
        %v2535 = vpop.permute.xlu0 %2534
        %2536 = vrot.lane.b32.xlu0 %v2508, 108
        %v2537 = vpop.permute.xlu0 %2536
        %2538 = vrot.lane.b32.xlu0 %v2509, 108
        %v2539 = vpop.permute.xlu0 %2538
        %2540 = vrot.lane.b32.xlu0 %v2510, 108
        %v2541 = vpop.permute.xlu0 %2540
        %2542 = vrot.lane.b32.xlu0 %v2511, 108
        %v2543 = vpop.permute.xlu0 %2542
        %2544 = vrot.lane.b32.xlu0 %v2512, 108
        %v2545 = vpop.permute.xlu0 %2544
        %2546 = vrot.lane.b32.xlu0 %v2513, 108
        %v2547 = vpop.permute.xlu0 %2546
        %2548 = vrot.lane.b32.xlu0 %v2514, 108
        %v2549 = vpop.permute.xlu0 %2548
        %2550 = vrot.lane.b32.xlu0 %v2515, 108
        %v2551 = vpop.permute.xlu0 %2550
        %vm2552 = vcmask 883712
        %v2553 = vsel %vm2552, %v2529, %v2531
        %v2554 = vsel %vm2552, %v2531, %v2533
        %v2555 = vsel %vm2552, %v2535, %v2537
        %v2556 = vsel %vm2552, %v2537, %v2539
        %v2557 = vsel %vm2552, %v2541, %v2543
        %v2558 = vsel %vm2552, %v2543, %v2545
        %v2559 = vsel %vm2552, %v2547, %v2549
        %v2560 = vsel %vm2552, %v2549, %v2551
        %v2569 = vadd.f32 %v2480, %v2553
        %v2570 = vadd.f32 %v2481, %v2554
        %v2571 = vadd.f32 %v2482, %v2555
        %v2572 = vadd.f32 %v2483, %v2556
        %v2573 = vadd.f32 %v2484, %v2557
        %v2574 = vadd.f32 %v2485, %v2558
        %v2575 = vadd.f32 %v2486, %v2559
        %v2576 = vadd.f32 %v2487, %v2560
        %2577 = vset.pattern.permute.xlu0 14
        %2578 = vperm.xlu0 %2577, %v488
        %v2579 = vpop.permute.xlu0 %2578
        %2581 = vset.pattern.permute.xlu0 14
        %2582 = vperm.xlu0 %2581, %v489
        %v2583 = vpop.permute.xlu0 %2582
        %2585 = vset.pattern.permute.xlu0 14
        %2586 = vperm.xlu0 %2585, %v490
        %v2587 = vpop.permute.xlu0 %2586
        %2589 = vset.pattern.permute.xlu0 14
        %2590 = vperm.xlu0 %2589, %v491
        %v2591 = vpop.permute.xlu0 %2590
        %v2593 = vmul.f32 %v2387, %v2579
        %v2594 = vmul.f32 %v2388, %v2579
        %v2595 = vmul.f32 %v2389, %v2579
        %v2596 = vmul.f32 %v2390, %v2583
        %v2597 = vmul.f32 %v2391, %v2583
        %v2598 = vmul.f32 %v2392, %v2583
        %v2599 = vmul.f32 %v2393, %v2587
        %v2600 = vmul.f32 %v2394, %v2587
        %v2601 = vmul.f32 %v2395, %v2587
        %v2602 = vmul.f32 %v2396, %v2591
        %v2603 = vmul.f32 %v2397, %v2591
        %v2604 = vmul.f32 %v2398, %v2591
        %2617 = vrot.lane.b32.xlu0 %v2593, 92
        %v2618 = vpop.permute.xlu0 %2617
        %2619 = vrot.lane.b32.xlu0 %v2594, 92
        %v2620 = vpop.permute.xlu0 %2619
        %2621 = vrot.lane.b32.xlu0 %v2595, 92
        %v2622 = vpop.permute.xlu0 %2621
        %2623 = vrot.lane.b32.xlu0 %v2596, 92
        %v2624 = vpop.permute.xlu0 %2623
        %2625 = vrot.lane.b32.xlu0 %v2597, 92
        %v2626 = vpop.permute.xlu0 %2625
        %2627 = vrot.lane.b32.xlu0 %v2598, 92
        %v2628 = vpop.permute.xlu0 %2627
        %2629 = vrot.lane.b32.xlu0 %v2599, 92
        %v2630 = vpop.permute.xlu0 %2629
        %2631 = vrot.lane.b32.xlu0 %v2600, 92
        %v2632 = vpop.permute.xlu0 %2631
        %2633 = vrot.lane.b32.xlu0 %v2601, 92
        %v2634 = vpop.permute.xlu0 %2633
        %2635 = vrot.lane.b32.xlu0 %v2602, 92
        %v2636 = vpop.permute.xlu0 %2635
        %2637 = vrot.lane.b32.xlu0 %v2603, 92
        %v2638 = vpop.permute.xlu0 %2637
        %2639 = vrot.lane.b32.xlu0 %v2604, 92
        %v2640 = vpop.permute.xlu0 %2639
        %vm2641 = vcmask 752640
        %v2642 = vsel %vm2641, %v2618, %v2620
        %v2643 = vsel %vm2641, %v2620, %v2622
        %v2644 = vsel %vm2641, %v2624, %v2626
        %v2645 = vsel %vm2641, %v2626, %v2628
        %v2646 = vsel %vm2641, %v2630, %v2632
        %v2647 = vsel %vm2641, %v2632, %v2634
        %v2648 = vsel %vm2641, %v2636, %v2638
        %v2649 = vsel %vm2641, %v2638, %v2640
        %v2658 = vadd.f32 %v2569, %v2642
        %v2659 = vadd.f32 %v2570, %v2643
        %v2660 = vadd.f32 %v2571, %v2644
        %v2661 = vadd.f32 %v2572, %v2645
        %v2662 = vadd.f32 %v2573, %v2646
        %v2663 = vadd.f32 %v2574, %v2647
        %v2664 = vadd.f32 %v2575, %v2648
        %v2665 = vadd.f32 %v2576, %v2649
        %2666 = vset.pattern.permute.xlu0 19
        %2667 = vperm.xlu0 %2666, %v488
        %v2668 = vpop.permute.xlu0 %2667
        %2670 = vset.pattern.permute.xlu0 19
        %2671 = vperm.xlu0 %2670, %v489
        %v2672 = vpop.permute.xlu0 %2671
        %2674 = vset.pattern.permute.xlu0 19
        %2675 = vperm.xlu0 %2674, %v490
        %v2676 = vpop.permute.xlu0 %2675
        %2678 = vset.pattern.permute.xlu0 19
        %2679 = vperm.xlu0 %2678, %v491
        %v2680 = vpop.permute.xlu0 %2679
        %v2682 = vmul.f32 %v2387, %v2668
        %v2683 = vmul.f32 %v2388, %v2668
        %v2684 = vmul.f32 %v2389, %v2668
        %v2685 = vmul.f32 %v2390, %v2672
        %v2686 = vmul.f32 %v2391, %v2672
        %v2687 = vmul.f32 %v2392, %v2672
        %v2688 = vmul.f32 %v2393, %v2676
        %v2689 = vmul.f32 %v2394, %v2676
        %v2690 = vmul.f32 %v2395, %v2676
        %v2691 = vmul.f32 %v2396, %v2680
        %v2692 = vmul.f32 %v2397, %v2680
        %v2693 = vmul.f32 %v2398, %v2680
        %2706 = vrot.lane.b32.xlu0 %v2682, 76
        %v2707 = vpop.permute.xlu0 %2706
        %2708 = vrot.lane.b32.xlu0 %v2683, 76
        %v2709 = vpop.permute.xlu0 %2708
        %2710 = vrot.lane.b32.xlu0 %v2684, 76
        %v2711 = vpop.permute.xlu0 %2710
        %2712 = vrot.lane.b32.xlu0 %v2685, 76
        %v2713 = vpop.permute.xlu0 %2712
        %2714 = vrot.lane.b32.xlu0 %v2686, 76
        %v2715 = vpop.permute.xlu0 %2714
        %2716 = vrot.lane.b32.xlu0 %v2687, 76
        %v2717 = vpop.permute.xlu0 %2716
        %2718 = vrot.lane.b32.xlu0 %v2688, 76
        %v2719 = vpop.permute.xlu0 %2718
        %2720 = vrot.lane.b32.xlu0 %v2689, 76
        %v2721 = vpop.permute.xlu0 %2720
        %2722 = vrot.lane.b32.xlu0 %v2690, 76
        %v2723 = vpop.permute.xlu0 %2722
        %2724 = vrot.lane.b32.xlu0 %v2691, 76
        %v2725 = vpop.permute.xlu0 %2724
        %2726 = vrot.lane.b32.xlu0 %v2692, 76
        %v2727 = vpop.permute.xlu0 %2726
        %2728 = vrot.lane.b32.xlu0 %v2693, 76
        %v2729 = vpop.permute.xlu0 %2728
        %vm2730 = vcmask 621568
        %v2731 = vsel %vm2730, %v2707, %v2709
        %v2732 = vsel %vm2730, %v2709, %v2711
        %v2733 = vsel %vm2730, %v2713, %v2715
        %v2734 = vsel %vm2730, %v2715, %v2717
        %v2735 = vsel %vm2730, %v2719, %v2721
        %v2736 = vsel %vm2730, %v2721, %v2723
        %v2737 = vsel %vm2730, %v2725, %v2727
        %v2738 = vsel %vm2730, %v2727, %v2729
        %v2747 = vadd.f32 %v2658, %v2731
        %v2748 = vadd.f32 %v2659, %v2732
        %v2749 = vadd.f32 %v2660, %v2733
        %v2750 = vadd.f32 %v2661, %v2734
        %v2751 = vadd.f32 %v2662, %v2735
        %v2752 = vadd.f32 %v2663, %v2736
        %v2753 = vadd.f32 %v2664, %v2737
        %v2754 = vadd.f32 %v2665, %v2738
        %2755 = vset.pattern.permute.xlu0 24
        %2756 = vperm.xlu0 %2755, %v488
        %v2757 = vpop.permute.xlu0 %2756
        %2759 = vset.pattern.permute.xlu0 24
        %2760 = vperm.xlu0 %2759, %v489
        %v2761 = vpop.permute.xlu0 %2760
        %2763 = vset.pattern.permute.xlu0 24
        %2764 = vperm.xlu0 %2763, %v490
        %v2765 = vpop.permute.xlu0 %2764
        %2767 = vset.pattern.permute.xlu0 24
        %2768 = vperm.xlu0 %2767, %v491
        %v2769 = vpop.permute.xlu0 %2768
        %v2771 = vmul.f32 %v2387, %v2757
        %v2772 = vmul.f32 %v2388, %v2757
        %v2773 = vmul.f32 %v2389, %v2757
        %v2774 = vmul.f32 %v2390, %v2761
        %v2775 = vmul.f32 %v2391, %v2761
        %v2776 = vmul.f32 %v2392, %v2761
        %v2777 = vmul.f32 %v2393, %v2765
        %v2778 = vmul.f32 %v2394, %v2765
        %v2779 = vmul.f32 %v2395, %v2765
        %v2780 = vmul.f32 %v2396, %v2769
        %v2781 = vmul.f32 %v2397, %v2769
        %v2782 = vmul.f32 %v2398, %v2769
        %2795 = vrot.lane.b32.xlu0 %v2771, 60
        %v2796 = vpop.permute.xlu0 %2795
        %2797 = vrot.lane.b32.xlu0 %v2772, 60
        %v2798 = vpop.permute.xlu0 %2797
        %2799 = vrot.lane.b32.xlu0 %v2773, 60
        %v2800 = vpop.permute.xlu0 %2799
        %2801 = vrot.lane.b32.xlu0 %v2774, 60
        %v2802 = vpop.permute.xlu0 %2801
        %2803 = vrot.lane.b32.xlu0 %v2775, 60
        %v2804 = vpop.permute.xlu0 %2803
        %2805 = vrot.lane.b32.xlu0 %v2776, 60
        %v2806 = vpop.permute.xlu0 %2805
        %2807 = vrot.lane.b32.xlu0 %v2777, 60
        %v2808 = vpop.permute.xlu0 %2807
        %2809 = vrot.lane.b32.xlu0 %v2778, 60
        %v2810 = vpop.permute.xlu0 %2809
        %2811 = vrot.lane.b32.xlu0 %v2779, 60
        %v2812 = vpop.permute.xlu0 %2811
        %2813 = vrot.lane.b32.xlu0 %v2780, 60
        %v2814 = vpop.permute.xlu0 %2813
        %2815 = vrot.lane.b32.xlu0 %v2781, 60
        %v2816 = vpop.permute.xlu0 %2815
        %2817 = vrot.lane.b32.xlu0 %v2782, 60
        %v2818 = vpop.permute.xlu0 %2817
        %vm2819 = vcmask 490496
        %v2820 = vsel %vm2819, %v2796, %v2798
        %v2821 = vsel %vm2819, %v2798, %v2800
        %v2822 = vsel %vm2819, %v2802, %v2804
        %v2823 = vsel %vm2819, %v2804, %v2806
        %v2824 = vsel %vm2819, %v2808, %v2810
        %v2825 = vsel %vm2819, %v2810, %v2812
        %v2826 = vsel %vm2819, %v2814, %v2816
        %v2827 = vsel %vm2819, %v2816, %v2818
        %v2836 = vadd.f32 %v2747, %v2820
        %v2837 = vadd.f32 %v2748, %v2821
        %v2838 = vadd.f32 %v2749, %v2822
        %v2839 = vadd.f32 %v2750, %v2823
        %v2840 = vadd.f32 %v2751, %v2824
        %v2841 = vadd.f32 %v2752, %v2825
        %v2842 = vadd.f32 %v2753, %v2826
        %v2843 = vadd.f32 %v2754, %v2827
        %v2844 = vld [vmem:[%s2] sm:$0xff]
        %v2845 = vld [vmem:[%s2 + $0x8] sm:$0xff]
        %v2846 = vld [vmem:[%s2 + $0x10] sm:$0xff]
        %v2847 = vld [vmem:[%s2 + $0x18] sm:$0xff]
        %2849 = vset.pattern.permute.xlu0 0
        %2850 = vperm.xlu0 %2849, %v2844
        %v2851 = vpop.permute.xlu0 %2850
        %2854 = vset.pattern.permute.xlu0 0
        %2855 = vperm.xlu0 %2854, %v2845
        %v2856 = vpop.permute.xlu0 %2855
        %2859 = vset.pattern.permute.xlu0 0
        %2860 = vperm.xlu0 %2859, %v2846
        %v2861 = vpop.permute.xlu0 %2860
        %2864 = vset.pattern.permute.xlu0 0
        %2865 = vperm.xlu0 %2864, %v2847
        %v2866 = vpop.permute.xlu0 %2865
        %v2868 = vadd.f32 %v2836, %v2851
        %v2869 = vadd.f32 %v2837, %v2851
        %v2870 = vadd.f32 %v2838, %v2856
        %v2871 = vadd.f32 %v2839, %v2856
        %v2872 = vadd.f32 %v2840, %v2861
        %v2873 = vadd.f32 %v2841, %v2861
        %v2874 = vadd.f32 %v2842, %v2866
        %v2875 = vadd.f32 %v2843, %v2866
        %v2876 = vadd.f32 %v2868, 3.0
        %v2877 = vadd.f32 %v2869, 3.0
        %v2878 = vadd.f32 %v2870, 3.0
        %v2879 = vadd.f32 %v2871, 3.0
        %v2880 = vadd.f32 %v2872, 3.0
        %v2881 = vadd.f32 %v2873, 3.0
        %v2882 = vadd.f32 %v2874, 3.0
        %v2883 = vadd.f32 %v2875, 3.0
        %v2884 = vmax.f32 %v2876, 0.0
        %v2885 = vmax.f32 %v2877, 0.0
        %v2886 = vmax.f32 %v2878, 0.0
        %v2887 = vmax.f32 %v2879, 0.0
        %v2888 = vmax.f32 %v2880, 0.0
        %v2889 = vmax.f32 %v2881, 0.0
        %v2890 = vmax.f32 %v2882, 0.0
        %v2891 = vmax.f32 %v2883, 0.0
        %v2892 = vmin.f32 %v2884, 6.0
        %v2893 = vmin.f32 %v2885, 6.0
        %v2894 = vmin.f32 %v2886, 6.0
        %v2895 = vmin.f32 %v2887, 6.0
        %v2896 = vmin.f32 %v2888, 6.0
        %v2897 = vmin.f32 %v2889, 6.0
        %v2898 = vmin.f32 %v2890, 6.0
        %v2899 = vmin.f32 %v2891, 6.0
        %v2900 = vmul.f32 %v2868, %v2892
        %v2901 = vmul.f32 %v2869, %v2893
        %v2902 = vmul.f32 %v2870, %v2894
        %v2903 = vmul.f32 %v2871, %v2895
        %v2904 = vmul.f32 %v2872, %v2896
        %v2905 = vmul.f32 %v2873, %v2897
        %v2906 = vmul.f32 %v2874, %v2898
        %v2907 = vmul.f32 %v2875, %v2899
        %v2908 = vmul.f32 %v2900, 0.16666667
        %v2909 = vmul.f32 %v2901, 0.16666667
        %v2910 = vmul.f32 %v2902, 0.16666667
        %v2911 = vmul.f32 %v2903, 0.16666667
        %v2912 = vmul.f32 %v2904, 0.16666667
        %v2913 = vmul.f32 %v2905, 0.16666667
        %v2914 = vmul.f32 %v2906, 0.16666667
        %v2915 = vmul.f32 %v2907, 0.16666667
        %v2916 = vld [vmem:[%s3] sm:$0xff]
        %v2917 = vld [vmem:[%s3 + $0x8] sm:$0xff]
        %v2918 = vld [vmem:[%s3 + $0x10] sm:$0xff]
        %v2919 = vld [vmem:[%s3 + $0x18] sm:$0xff]
        %v2920 = vld [vmem:[%s4] sm:$0xff]
        %v2921 = vld [vmem:[%s4 + $0x8] sm:$0xff]
        %v2922 = vld [vmem:[%s4 + $0x10] sm:$0xff]
        %v2923 = vld [vmem:[%s4 + $0x18] sm:$0xff]
        %2925 = vset.pattern.permute.xlu0 0
        %2926 = vperm.xlu0 %2925, %v2920
        %v2927 = vpop.permute.xlu0 %2926
        %2930 = vset.pattern.permute.xlu0 0
        %2931 = vperm.xlu0 %2930, %v2921
        %v2932 = vpop.permute.xlu0 %2931
        %2935 = vset.pattern.permute.xlu0 0
        %2936 = vperm.xlu0 %2935, %v2922
        %v2937 = vpop.permute.xlu0 %2936
        %2940 = vset.pattern.permute.xlu0 0
        %2941 = vperm.xlu0 %2940, %v2923
        %v2942 = vpop.permute.xlu0 %2941
        %vm2944 = vcmask 261120
        %v2946 = vsel %vm2944, %v2916, 0
        %v2949 = vsel %vm2944, %v2917, 0
        %v2952 = vsel %vm2944, %v2918, 0
        %v2955 = vsel %vm2944, %v2919, 0
        %2957 = vmatprep.subr.mxu0 %v2909
        %2958 = vmatpush1.msra.mxu0 %v2908
        %2959 = vmatprep.subr.mxu0 %v2911
        %2960 = vmatpush1.msra.mxu0 %v2910
        %2961 = vmatprep.subr.mxu0 %v2913
        %2962 = vmatpush1.msra.mxu0 %v2912
        %2963 = vmatprep.subr.mxu0 %v2915
        %2964 = vmatpush1.msra.mxu0 %v2914
        %2965 = vmatprep.subr.mxu0 0.0
        %2966 = vmatpush1.msra.mxu0 0.0
        %2967 = vmatprep.subr.mxu0 0.0
        %2968 = vmatpush1.msra.mxu0 0.0
        %2969 = vmatprep.subr.mxu0 0.0
        %2970 = vmatpush1.msra.mxu0 0.0
        %2971 = vmatprep.subr.mxu0 0.0
        %2972 = vmatpush1.msra.mxu0 0.0
        %2973 = vmatprep.subr.mxu0 0.0
        %2974 = vmatpush1.msra.mxu0 0.0
        %2975 = vmatprep.subr.mxu0 0.0
        %2976 = vmatpush1.msra.mxu0 0.0
        %2977 = vmatprep.subr.mxu0 0.0
        %2978 = vmatpush1.msra.mxu0 0.0
        %2979 = vmatprep.subr.mxu0 0.0
        %2980 = vmatpush1.msra.mxu0 0.0
        %2981 = vmatprep.subr.mxu0 0.0
        %2982 = vmatpush1.msra.mxu0 0.0
        %2983 = vmatprep.subr.mxu0 0.0
        %2984 = vmatpush1.msra.mxu0 0.0
        %2985 = vmatprep.subr.mxu0 0.0
        %2986 = vmatpush1.msra.mxu0 0.0
        %2987 = vmatprep.subr.mxu0 0.0
        %2988 = vmatpush1.msra.mxu0 0.0
        %2989 = vmatprep.subr.mxu0 0.0
        %2990 = vmatpush1.msra.mxu0 0.0
        %2991 = vmatprep.subr.mxu0 0.0
        %2992 = vmatpush1.msra.mxu0 0.0
        %2993 = vmatprep.subr.mxu0 0.0
        %2994 = vmatpush1.msra.mxu0 0.0
        %2995 = vmatprep.subr.mxu0 0.0
        %2996 = vmatpush1.msra.mxu0 0.0
        %2997 = vmatprep.subr.mxu0 0.0
        %2998 = vmatpush1.msra.mxu0 0.0
        %2999 = vmatprep.subr.mxu0 0.0
        %3000 = vmatpush1.msra.mxu0 0.0
        %3001 = vmatprep.subr.mxu0 0.0
        %3002 = vmatpush1.msra.mxu0 0.0
        %3003 = vmatprep.subr.mxu0 0.0
        %3004 = vmatpush1.msra.mxu0 0.0
        %3005 = vmatprep.subr.mxu0 0.0
        %3006 = vmatpush1.msra.mxu0 0.0
        %3007 = vmatprep.subr.mxu0 0.0
        %3008 = vmatpush1.msra.mxu0 0.0
        %3009 = vmatprep.subr.mxu0 0.0
        %3010 = vmatpush1.msra.mxu0 0.0
        %3011 = vmatprep.subr.mxu0 0.0
        %3012 = vmatpush1.msra.mxu0 0.0
        %3013 = vmatprep.subr.mxu0 0.0
        %3014 = vmatpush1.msra.mxu0 0.0
        %3015 = vmatprep.subr.mxu0 0.0
        %3016 = vmatpush1.msra.mxu0 0.0
        %3017 = vmatprep.subr.mxu0 0.0
        %3018 = vmatpush1.msra.mxu0 0.0
        %3019 = vmatprep.subr.mxu0 0.0
        %3020 = vmatpush1.msra.mxu0 0.0
        %3021 = vmatprep.mubr.f32.mxu0 0.0
        %3022 = vmatmul.mubr.f32.gmra.mrb[0].mxu0 %v2946
        %v3023 = vpop.f32.mrb[0].mxu0
        %v3024 = vadd.f32 %v2927, %v3023
        %v3025 = vpop.f32.mrb[0].mxu0
        %v3026 = vadd.f32 %v2927, %v3025
        %3027 = vmatprep.mubr.f32.mxu0 0.0
        %3028 = vmatmul.mubr.f32.gmra.mrb[0].mxu0 %v2949
        %v3029 = vpop.f32.mrb[0].mxu0
        %v3030 = vadd.f32 %v2932, %v3029
        %v3031 = vpop.f32.mrb[0].mxu0
        %v3032 = vadd.f32 %v2932, %v3031
        %3033 = vmatprep.mubr.f32.mxu0 0.0
        %3034 = vmatmul.mubr.f32.gmra.mrb[0].mxu0 %v2952
        %v3035 = vpop.f32.mrb[0].mxu0
        %v3036 = vadd.f32 %v2937, %v3035
        %v3037 = vpop.f32.mrb[0].mxu0
        %v3038 = vadd.f32 %v2937, %v3037
        %3039 = vmatprep.mubr.f32.mxu0 0.0
        %3040 = vmatmul.mubr.f32.gmra.mrb[0].mxu0 %v2955
        %v3041 = vpop.f32.mrb[0].mxu0
        %v3042 = vadd.f32 %v2942, %v3041
        %v3043 = vpop.f32.mrb[0].mxu0
        %v3044 = vadd.f32 %v2942, %v3043
        %3045 = vdwg.mxu0
        %v3046 = vadd.f32 %v3024, 3.0
        %v3047 = vadd.f32 %v3026, 3.0
        %v3048 = vadd.f32 %v3030, 3.0
        %v3049 = vadd.f32 %v3032, 3.0
        %v3050 = vadd.f32 %v3036, 3.0
        %v3051 = vadd.f32 %v3038, 3.0
        %v3052 = vadd.f32 %v3042, 3.0
        %v3053 = vadd.f32 %v3044, 3.0
        %v3054 = vmax.f32 %v3046, 0.0
        %v3055 = vmax.f32 %v3047, 0.0
        %v3056 = vmax.f32 %v3048, 0.0
        %v3057 = vmax.f32 %v3049, 0.0
        %v3058 = vmax.f32 %v3050, 0.0
        %v3059 = vmax.f32 %v3051, 0.0
        %v3060 = vmax.f32 %v3052, 0.0
        %v3061 = vmax.f32 %v3053, 0.0
        %v3062 = vmin.f32 %v3054, 6.0
        %v3063 = vmin.f32 %v3055, 6.0
        %v3064 = vmin.f32 %v3056, 6.0
        %v3065 = vmin.f32 %v3057, 6.0
        %v3066 = vmin.f32 %v3058, 6.0
        %v3067 = vmin.f32 %v3059, 6.0
        %v3068 = vmin.f32 %v3060, 6.0
        %v3069 = vmin.f32 %v3061, 6.0
        %v3070 = vmul.f32 %v3024, %v3062
        %v3071 = vmul.f32 %v3026, %v3063
        %v3072 = vmul.f32 %v3030, %v3064
        %v3073 = vmul.f32 %v3032, %v3065
        %v3074 = vmul.f32 %v3036, %v3066
        %v3075 = vmul.f32 %v3038, %v3067
        %v3076 = vmul.f32 %v3042, %v3068
        %v3077 = vmul.f32 %v3044, %v3069
        %v3078 = vmul.f32 %v3070, 0.16666667
        %v3079 = vmul.f32 %v3071, 0.16666667
        %v3080 = vmul.f32 %v3072, 0.16666667
        %v3081 = vmul.f32 %v3073, 0.16666667
        %v3082 = vmul.f32 %v3074, 0.16666667
        %v3083 = vmul.f32 %v3075, 0.16666667
        %v3084 = vmul.f32 %v3076, 0.16666667
        %v3085 = vmul.f32 %v3077, 0.16666667
        %3086 = vst [vmem:[#allocation2] sm:$0xff] 0.0
        %3087 = vst [vmem:[#allocation2 + $0x8] sm:$0xff] 0.0
        %3088 = vst.msk [vmem:[#allocation2 + $0x10] sm:$0xff] %vm411, 0.0
        %3089 = vst [vmem:[#allocation2 + $0x18] sm:$0xff] 0.0
        %3090 = vst [vmem:[#allocation2 + $0x20] sm:$0xff] 0.0
        %3091 = vst.msk [vmem:[#allocation2 + $0x28] sm:$0xff] %vm411, 0.0
        %3092 = vst [vmem:[#allocation2 + $0x30] sm:$0xff] 0.0
        %3093 = vst [vmem:[#allocation2 + $0x38] sm:$0xff] 0.0
        %3094 = vst.msk [vmem:[#allocation2 + $0x40] sm:$0xff] %vm411, 0.0
        %3095 = vst [vmem:[#allocation2 + $0x48] sm:$0xff] 0.0
        %3096 = vst [vmem:[#allocation2 + $0x50] sm:$0xff] 0.0
        %3097 = vst.msk [vmem:[#allocation2 + $0x58] sm:$0xff] %vm411, 0.0
        %3106 = vrot.lane.b32.xlu0 %v3078, 34
        %v3107 = vpop.permute.xlu0 %3106
        %3108 = vrot.lane.b32.xlu0 %v3079, 34
        %v3109 = vpop.permute.xlu0 %3108
        %3110 = vrot.lane.b32.xlu0 %v3080, 34
        %v3111 = vpop.permute.xlu0 %3110
        %3112 = vrot.lane.b32.xlu0 %v3081, 34
        %v3113 = vpop.permute.xlu0 %3112
        %3114 = vrot.lane.b32.xlu0 %v3082, 34
        %v3115 = vpop.permute.xlu0 %3114
        %3116 = vrot.lane.b32.xlu0 %v3083, 34
        %v3117 = vpop.permute.xlu0 %3116
        %3118 = vrot.lane.b32.xlu0 %v3084, 34
        %v3119 = vpop.permute.xlu0 %3118
        %3120 = vrot.lane.b32.xlu0 %v3085, 34
        %v3121 = vpop.permute.xlu0 %3120
        %v3122 = vsel %vm446, %v3107, %v3109
        %v3123 = vsel %vm446, %v3111, %v3113
        %v3124 = vsel %vm446, %v3115, %v3117
        %v3125 = vsel %vm446, %v3119, %v3121
        %3138 = vst.msk [vmem:[#allocation2] sm:$0xff] %vm463, %v3107
        %3139 = vst [vmem:[#allocation2 + $0x8] sm:$0xff] %v3122
        %3140 = vst.msk [vmem:[#allocation2 + $0x10] sm:$0xff] %vm446, %v3109
        %3141 = vst.msk [vmem:[#allocation2 + $0x18] sm:$0xff] %vm463, %v3111
        %3142 = vst [vmem:[#allocation2 + $0x20] sm:$0xff] %v3123
        %3143 = vst.msk [vmem:[#allocation2 + $0x28] sm:$0xff] %vm446, %v3113
        %3144 = vst.msk [vmem:[#allocation2 + $0x30] sm:$0xff] %vm463, %v3115
        %3145 = vst [vmem:[#allocation2 + $0x38] sm:$0xff] %v3124
        %3146 = vst.msk [vmem:[#allocation2 + $0x40] sm:$0xff] %vm446, %v3117
        %3147 = vst.msk [vmem:[#allocation2 + $0x48] sm:$0xff] %vm463, %v3119
        %3148 = vst [vmem:[#allocation2 + $0x50] sm:$0xff] %v3125
        %3149 = vst.msk [vmem:[#allocation2 + $0x58] sm:$0xff] %vm446, %v3121
        %v3150 = vld [vmem:[#allocation2] sm:$0xff]
        %v3151 = vld [vmem:[#allocation2 + $0x8] sm:$0xff]
        %v3152 = vld [vmem:[#allocation2 + $0x10] sm:$0xff]
        %v3153 = vld [vmem:[#allocation2 + $0x18] sm:$0xff]
        %v3154 = vld [vmem:[#allocation2 + $0x20] sm:$0xff]
        %v3155 = vld [vmem:[#allocation2 + $0x28] sm:$0xff]
        %v3156 = vld [vmem:[#allocation2 + $0x30] sm:$0xff]
        %v3157 = vld [vmem:[#allocation2 + $0x38] sm:$0xff]
        %v3158 = vld [vmem:[#allocation2 + $0x40] sm:$0xff]
        %v3159 = vld [vmem:[#allocation2 + $0x48] sm:$0xff]
        %v3160 = vld [vmem:[#allocation2 + $0x50] sm:$0xff]
        %v3161 = vld [vmem:[#allocation2 + $0x58] sm:$0xff]
        %s3162 = scalar_lea.vmem %s1, 32
        %v3163 = vld [vmem:[%s3162] sm:$0xff]
        %v3164 = vld [vmem:[%s3162 + $0x8] sm:$0xff]
        %v3165 = vld [vmem:[%s3162 + $0x10] sm:$0xff]
        %v3166 = vld [vmem:[%s3162 + $0x18] sm:$0xff]
        %v3167 = vmul.f32 %v3150, %v495
        %v3168 = vmul.f32 %v3151, %v499
        %v3169 = vmul.f32 %v3152, %v503
        %v3170 = vmul.f32 %v3153, %v495
        %v3171 = vmul.f32 %v3154, %v499
        %v3172 = vmul.f32 %v3155, %v503
        %v3173 = vmul.f32 %v3156, %v495
        %v3174 = vmul.f32 %v3157, %v499
        %v3175 = vmul.f32 %v3158, %v503
        %v3176 = vmul.f32 %v3159, %v495
        %v3177 = vmul.f32 %v3160, %v499
        %v3178 = vmul.f32 %v3161, %v503
        %3180 = vset.pattern.permute.xlu0 0
        %3181 = vperm.xlu0 %3180, %v3163
        %v3182 = vpop.permute.xlu0 %3181
        %3185 = vset.pattern.permute.xlu0 0
        %3186 = vperm.xlu0 %3185, %v3164
        %v3187 = vpop.permute.xlu0 %3186
        %3190 = vset.pattern.permute.xlu0 0
        %3191 = vperm.xlu0 %3190, %v3165
        %v3192 = vpop.permute.xlu0 %3191
        %3195 = vset.pattern.permute.xlu0 0
        %3196 = vperm.xlu0 %3195, %v3166
        %v3197 = vpop.permute.xlu0 %3196
        %v3199 = vmul.f32 %v3167, %v3182
        %v3200 = vmul.f32 %v3168, %v3182
        %v3201 = vmul.f32 %v3170, %v3187
        %v3202 = vmul.f32 %v3171, %v3187
        %v3203 = vmul.f32 %v3173, %v3192
        %v3204 = vmul.f32 %v3174, %v3192
        %v3205 = vmul.f32 %v3176, %v3197
        %v3206 = vmul.f32 %v3177, %v3197
        %v3207 = vadd.f32 %v3199, 0.0
        %v3208 = vadd.f32 %v3200, 0.0
        %v3209 = vadd.f32 %v3201, 0.0
        %v3210 = vadd.f32 %v3202, 0.0
        %v3211 = vadd.f32 %v3203, 0.0
        %v3212 = vadd.f32 %v3204, 0.0
        %v3213 = vadd.f32 %v3205, 0.0
        %v3214 = vadd.f32 %v3206, 0.0
        %3215 = vset.pattern.permute.xlu0 5
        %3216 = vperm.xlu0 %3215, %v3163
        %v3217 = vpop.permute.xlu0 %3216
        %3219 = vset.pattern.permute.xlu0 5
        %3220 = vperm.xlu0 %3219, %v3164
        %v3221 = vpop.permute.xlu0 %3220
        %3223 = vset.pattern.permute.xlu0 5
        %3224 = vperm.xlu0 %3223, %v3165
        %v3225 = vpop.permute.xlu0 %3224
        %3227 = vset.pattern.permute.xlu0 5
        %3228 = vperm.xlu0 %3227, %v3166
        %v3229 = vpop.permute.xlu0 %3228
        %v3231 = vmul.f32 %v3167, %v3217
        %v3232 = vmul.f32 %v3168, %v3217
        %v3233 = vmul.f32 %v3169, %v3217
        %v3234 = vmul.f32 %v3170, %v3221
        %v3235 = vmul.f32 %v3171, %v3221
        %v3236 = vmul.f32 %v3172, %v3221
        %v3237 = vmul.f32 %v3173, %v3225
        %v3238 = vmul.f32 %v3174, %v3225
        %v3239 = vmul.f32 %v3175, %v3225
        %v3240 = vmul.f32 %v3176, %v3229
        %v3241 = vmul.f32 %v3177, %v3229
        %v3242 = vmul.f32 %v3178, %v3229
        %3255 = vrot.lane.b32.xlu0 %v3231, 112
        %v3256 = vpop.permute.xlu0 %3255
        %3257 = vrot.lane.b32.xlu0 %v3232, 112
        %v3258 = vpop.permute.xlu0 %3257
        %3259 = vrot.lane.b32.xlu0 %v3233, 112
        %v3260 = vpop.permute.xlu0 %3259
        %3261 = vrot.lane.b32.xlu0 %v3234, 112
        %v3262 = vpop.permute.xlu0 %3261
        %3263 = vrot.lane.b32.xlu0 %v3235, 112
        %v3264 = vpop.permute.xlu0 %3263
        %3265 = vrot.lane.b32.xlu0 %v3236, 112
        %v3266 = vpop.permute.xlu0 %3265
        %3267 = vrot.lane.b32.xlu0 %v3237, 112
        %v3268 = vpop.permute.xlu0 %3267
        %3269 = vrot.lane.b32.xlu0 %v3238, 112
        %v3270 = vpop.permute.xlu0 %3269
        %3271 = vrot.lane.b32.xlu0 %v3239, 112
        %v3272 = vpop.permute.xlu0 %3271
        %3273 = vrot.lane.b32.xlu0 %v3240, 112
        %v3274 = vpop.permute.xlu0 %3273
        %3275 = vrot.lane.b32.xlu0 %v3241, 112
        %v3276 = vpop.permute.xlu0 %3275
        %3277 = vrot.lane.b32.xlu0 %v3242, 112
        %v3278 = vpop.permute.xlu0 %3277
        %v3279 = vsel %vm616, %v3256, %v3258
        %v3280 = vsel %vm616, %v3258, %v3260
        %v3281 = vsel %vm616, %v3262, %v3264
        %v3282 = vsel %vm616, %v3264, %v3266
        %v3283 = vsel %vm616, %v3268, %v3270
        %v3284 = vsel %vm616, %v3270, %v3272
        %v3285 = vsel %vm616, %v3274, %v3276
        %v3286 = vsel %vm616, %v3276, %v3278
        %v3295 = vadd.f32 %v3207, %v3279
        %v3296 = vadd.f32 %v3208, %v3280
        %v3297 = vadd.f32 %v3209, %v3281
        %v3298 = vadd.f32 %v3210, %v3282
        %v3299 = vadd.f32 %v3211, %v3283
        %v3300 = vadd.f32 %v3212, %v3284
        %v3301 = vadd.f32 %v3213, %v3285
        %v3302 = vadd.f32 %v3214, %v3286
        %3303 = vset.pattern.permute.xlu0 10
        %3304 = vperm.xlu0 %3303, %v3163
        %v3305 = vpop.permute.xlu0 %3304
        %3307 = vset.pattern.permute.xlu0 10
        %3308 = vperm.xlu0 %3307, %v3164
        %v3309 = vpop.permute.xlu0 %3308
        %3311 = vset.pattern.permute.xlu0 10
        %3312 = vperm.xlu0 %3311, %v3165
        %v3313 = vpop.permute.xlu0 %3312
        %3315 = vset.pattern.permute.xlu0 10
        %3316 = vperm.xlu0 %3315, %v3166
        %v3317 = vpop.permute.xlu0 %3316
        %v3319 = vmul.f32 %v3167, %v3305
        %v3320 = vmul.f32 %v3168, %v3305
        %v3321 = vmul.f32 %v3169, %v3305
        %v3322 = vmul.f32 %v3170, %v3309
        %v3323 = vmul.f32 %v3171, %v3309
        %v3324 = vmul.f32 %v3172, %v3309
        %v3325 = vmul.f32 %v3173, %v3313
        %v3326 = vmul.f32 %v3174, %v3313
        %v3327 = vmul.f32 %v3175, %v3313
        %v3328 = vmul.f32 %v3176, %v3317
        %v3329 = vmul.f32 %v3177, %v3317
        %v3330 = vmul.f32 %v3178, %v3317
        %3343 = vrot.lane.b32.xlu0 %v3319, 96
        %v3344 = vpop.permute.xlu0 %3343
        %3345 = vrot.lane.b32.xlu0 %v3320, 96
        %v3346 = vpop.permute.xlu0 %3345
        %3347 = vrot.lane.b32.xlu0 %v3321, 96
        %v3348 = vpop.permute.xlu0 %3347
        %3349 = vrot.lane.b32.xlu0 %v3322, 96
        %v3350 = vpop.permute.xlu0 %3349
        %3351 = vrot.lane.b32.xlu0 %v3323, 96
        %v3352 = vpop.permute.xlu0 %3351
        %3353 = vrot.lane.b32.xlu0 %v3324, 96
        %v3354 = vpop.permute.xlu0 %3353
        %3355 = vrot.lane.b32.xlu0 %v3325, 96
        %v3356 = vpop.permute.xlu0 %3355
        %3357 = vrot.lane.b32.xlu0 %v3326, 96
        %v3358 = vpop.permute.xlu0 %3357
        %3359 = vrot.lane.b32.xlu0 %v3327, 96
        %v3360 = vpop.permute.xlu0 %3359
        %3361 = vrot.lane.b32.xlu0 %v3328, 96
        %v3362 = vpop.permute.xlu0 %3361
        %3363 = vrot.lane.b32.xlu0 %v3329, 96
        %v3364 = vpop.permute.xlu0 %3363
        %3365 = vrot.lane.b32.xlu0 %v3330, 96
        %v3366 = vpop.permute.xlu0 %3365
        %v3367 = vsel %vm705, %v3344, %v3346
        %v3368 = vsel %vm705, %v3346, %v3348
        %v3369 = vsel %vm705, %v3350, %v3352
        %v3370 = vsel %vm705, %v3352, %v3354
        %v3371 = vsel %vm705, %v3356, %v3358
        %v3372 = vsel %vm705, %v3358, %v3360
        %v3373 = vsel %vm705, %v3362, %v3364
        %v3374 = vsel %vm705, %v3364, %v3366
        %v3383 = vadd.f32 %v3295, %v3367
        %v3384 = vadd.f32 %v3296, %v3368
        %v3385 = vadd.f32 %v3297, %v3369
        %v3386 = vadd.f32 %v3298, %v3370
        %v3387 = vadd.f32 %v3299, %v3371
        %v3388 = vadd.f32 %v3300, %v3372
        %v3389 = vadd.f32 %v3301, %v3373
        %v3390 = vadd.f32 %v3302, %v3374
        %3391 = vset.pattern.permute.xlu0 15
        %3392 = vperm.xlu0 %3391, %v3163
        %v3393 = vpop.permute.xlu0 %3392
        %3395 = vset.pattern.permute.xlu0 15
        %3396 = vperm.xlu0 %3395, %v3164
        %v3397 = vpop.permute.xlu0 %3396
        %3399 = vset.pattern.permute.xlu0 15
        %3400 = vperm.xlu0 %3399, %v3165
        %v3401 = vpop.permute.xlu0 %3400
        %3403 = vset.pattern.permute.xlu0 15
        %3404 = vperm.xlu0 %3403, %v3166
        %v3405 = vpop.permute.xlu0 %3404
        %v3407 = vmul.f32 %v3167, %v3393
        %v3408 = vmul.f32 %v3168, %v3393
        %v3409 = vmul.f32 %v3169, %v3393
        %v3410 = vmul.f32 %v3170, %v3397
        %v3411 = vmul.f32 %v3171, %v3397
        %v3412 = vmul.f32 %v3172, %v3397
        %v3413 = vmul.f32 %v3173, %v3401
        %v3414 = vmul.f32 %v3174, %v3401
        %v3415 = vmul.f32 %v3175, %v3401
        %v3416 = vmul.f32 %v3176, %v3405
        %v3417 = vmul.f32 %v3177, %v3405
        %v3418 = vmul.f32 %v3178, %v3405
        %3431 = vrot.lane.b32.xlu0 %v3407, 80
        %v3432 = vpop.permute.xlu0 %3431
        %3433 = vrot.lane.b32.xlu0 %v3408, 80
        %v3434 = vpop.permute.xlu0 %3433
        %3435 = vrot.lane.b32.xlu0 %v3409, 80
        %v3436 = vpop.permute.xlu0 %3435
        %3437 = vrot.lane.b32.xlu0 %v3410, 80
        %v3438 = vpop.permute.xlu0 %3437
        %3439 = vrot.lane.b32.xlu0 %v3411, 80
        %v3440 = vpop.permute.xlu0 %3439
        %3441 = vrot.lane.b32.xlu0 %v3412, 80
        %v3442 = vpop.permute.xlu0 %3441
        %3443 = vrot.lane.b32.xlu0 %v3413, 80
        %v3444 = vpop.permute.xlu0 %3443
        %3445 = vrot.lane.b32.xlu0 %v3414, 80
        %v3446 = vpop.permute.xlu0 %3445
        %3447 = vrot.lane.b32.xlu0 %v3415, 80
        %v3448 = vpop.permute.xlu0 %3447
        %3449 = vrot.lane.b32.xlu0 %v3416, 80
        %v3450 = vpop.permute.xlu0 %3449
        %3451 = vrot.lane.b32.xlu0 %v3417, 80
        %v3452 = vpop.permute.xlu0 %3451
        %3453 = vrot.lane.b32.xlu0 %v3418, 80
        %v3454 = vpop.permute.xlu0 %3453
        %v3455 = vsel %vm794, %v3432, %v3434
        %v3456 = vsel %vm794, %v3434, %v3436
        %v3457 = vsel %vm794, %v3438, %v3440
        %v3458 = vsel %vm794, %v3440, %v3442
        %v3459 = vsel %vm794, %v3444, %v3446
        %v3460 = vsel %vm794, %v3446, %v3448
        %v3461 = vsel %vm794, %v3450, %v3452
        %v3462 = vsel %vm794, %v3452, %v3454
        %v3471 = vadd.f32 %v3383, %v3455
        %v3472 = vadd.f32 %v3384, %v3456
        %v3473 = vadd.f32 %v3385, %v3457
        %v3474 = vadd.f32 %v3386, %v3458
        %v3475 = vadd.f32 %v3387, %v3459
        %v3476 = vadd.f32 %v3388, %v3460
        %v3477 = vadd.f32 %v3389, %v3461
        %v3478 = vadd.f32 %v3390, %v3462
        %3479 = vset.pattern.permute.xlu0 20
        %3480 = vperm.xlu0 %3479, %v3163
        %v3481 = vpop.permute.xlu0 %3480
        %3483 = vset.pattern.permute.xlu0 20
        %3484 = vperm.xlu0 %3483, %v3164
        %v3485 = vpop.permute.xlu0 %3484
        %3487 = vset.pattern.permute.xlu0 20
        %3488 = vperm.xlu0 %3487, %v3165
        %v3489 = vpop.permute.xlu0 %3488
        %3491 = vset.pattern.permute.xlu0 20
        %3492 = vperm.xlu0 %3491, %v3166
        %v3493 = vpop.permute.xlu0 %3492
        %v3495 = vmul.f32 %v3167, %v3481
        %v3496 = vmul.f32 %v3168, %v3481
        %v3497 = vmul.f32 %v3169, %v3481
        %v3498 = vmul.f32 %v3170, %v3485
        %v3499 = vmul.f32 %v3171, %v3485
        %v3500 = vmul.f32 %v3172, %v3485
        %v3501 = vmul.f32 %v3173, %v3489
        %v3502 = vmul.f32 %v3174, %v3489
        %v3503 = vmul.f32 %v3175, %v3489
        %v3504 = vmul.f32 %v3176, %v3493
        %v3505 = vmul.f32 %v3177, %v3493
        %v3506 = vmul.f32 %v3178, %v3493
        %3519 = vrot.lane.b32.xlu0 %v3495, 64
        %v3520 = vpop.permute.xlu0 %3519
        %3521 = vrot.lane.b32.xlu0 %v3496, 64
        %v3522 = vpop.permute.xlu0 %3521
        %3523 = vrot.lane.b32.xlu0 %v3497, 64
        %v3524 = vpop.permute.xlu0 %3523
        %3525 = vrot.lane.b32.xlu0 %v3498, 64
        %v3526 = vpop.permute.xlu0 %3525
        %3527 = vrot.lane.b32.xlu0 %v3499, 64
        %v3528 = vpop.permute.xlu0 %3527
        %3529 = vrot.lane.b32.xlu0 %v3500, 64
        %v3530 = vpop.permute.xlu0 %3529
        %3531 = vrot.lane.b32.xlu0 %v3501, 64
        %v3532 = vpop.permute.xlu0 %3531
        %3533 = vrot.lane.b32.xlu0 %v3502, 64
        %v3534 = vpop.permute.xlu0 %3533
        %3535 = vrot.lane.b32.xlu0 %v3503, 64
        %v3536 = vpop.permute.xlu0 %3535
        %3537 = vrot.lane.b32.xlu0 %v3504, 64
        %v3538 = vpop.permute.xlu0 %3537
        %3539 = vrot.lane.b32.xlu0 %v3505, 64
        %v3540 = vpop.permute.xlu0 %3539
        %3541 = vrot.lane.b32.xlu0 %v3506, 64
        %v3542 = vpop.permute.xlu0 %3541
        %v3543 = vsel %vm883, %v3520, %v3522
        %v3544 = vsel %vm883, %v3522, %v3524
        %v3545 = vsel %vm883, %v3526, %v3528
        %v3546 = vsel %vm883, %v3528, %v3530
        %v3547 = vsel %vm883, %v3532, %v3534
        %v3548 = vsel %vm883, %v3534, %v3536
        %v3549 = vsel %vm883, %v3538, %v3540
        %v3550 = vsel %vm883, %v3540, %v3542
        %v3559 = vadd.f32 %v3471, %v3543
        %v3560 = vadd.f32 %v3472, %v3544
        %v3561 = vadd.f32 %v3473, %v3545
        %v3562 = vadd.f32 %v3474, %v3546
        %v3563 = vadd.f32 %v3475, %v3547
        %v3564 = vadd.f32 %v3476, %v3548
        %v3565 = vadd.f32 %v3477, %v3549
        %v3566 = vadd.f32 %v3478, %v3550
        %v3567 = vmul.f32 %v3150, %v924
        %v3568 = vmul.f32 %v3151, %v930
        %v3569 = vmul.f32 %v3152, %v931
        %v3570 = vmul.f32 %v3153, %v924
        %v3571 = vmul.f32 %v3154, %v930
        %v3572 = vmul.f32 %v3155, %v931
        %v3573 = vmul.f32 %v3156, %v924
        %v3574 = vmul.f32 %v3157, %v930
        %v3575 = vmul.f32 %v3158, %v931
        %v3576 = vmul.f32 %v3159, %v924
        %v3577 = vmul.f32 %v3160, %v930
        %v3578 = vmul.f32 %v3161, %v931
        %3579 = vset.pattern.permute.xlu0 1
        %3580 = vperm.xlu0 %3579, %v3163
        %v3581 = vpop.permute.xlu0 %3580
        %3583 = vset.pattern.permute.xlu0 1
        %3584 = vperm.xlu0 %3583, %v3164
        %v3585 = vpop.permute.xlu0 %3584
        %3587 = vset.pattern.permute.xlu0 1
        %3588 = vperm.xlu0 %3587, %v3165
        %v3589 = vpop.permute.xlu0 %3588
        %3591 = vset.pattern.permute.xlu0 1
        %3592 = vperm.xlu0 %3591, %v3166
        %v3593 = vpop.permute.xlu0 %3592
        %v3595 = vmul.f32 %v3567, %v3581
        %v3596 = vmul.f32 %v3568, %v3581
        %v3597 = vmul.f32 %v3569, %v3581
        %v3598 = vmul.f32 %v3570, %v3585
        %v3599 = vmul.f32 %v3571, %v3585
        %v3600 = vmul.f32 %v3572, %v3585
        %v3601 = vmul.f32 %v3573, %v3589
        %v3602 = vmul.f32 %v3574, %v3589
        %v3603 = vmul.f32 %v3575, %v3589
        %v3604 = vmul.f32 %v3576, %v3593
        %v3605 = vmul.f32 %v3577, %v3593
        %v3606 = vmul.f32 %v3578, %v3593
        %3619 = vrot.lane.b32.xlu0 %v3595, 127
        %v3620 = vpop.permute.xlu0 %3619
        %3621 = vrot.lane.b32.xlu0 %v3596, 127
        %v3622 = vpop.permute.xlu0 %3621
        %3623 = vrot.lane.b32.xlu0 %v3597, 127
        %v3624 = vpop.permute.xlu0 %3623
        %3625 = vrot.lane.b32.xlu0 %v3598, 127
        %v3626 = vpop.permute.xlu0 %3625
        %3627 = vrot.lane.b32.xlu0 %v3599, 127
        %v3628 = vpop.permute.xlu0 %3627
        %3629 = vrot.lane.b32.xlu0 %v3600, 127
        %v3630 = vpop.permute.xlu0 %3629
        %3631 = vrot.lane.b32.xlu0 %v3601, 127
        %v3632 = vpop.permute.xlu0 %3631
        %3633 = vrot.lane.b32.xlu0 %v3602, 127
        %v3634 = vpop.permute.xlu0 %3633
        %3635 = vrot.lane.b32.xlu0 %v3603, 127
        %v3636 = vpop.permute.xlu0 %3635
        %3637 = vrot.lane.b32.xlu0 %v3604, 127
        %v3638 = vpop.permute.xlu0 %3637
        %3639 = vrot.lane.b32.xlu0 %v3605, 127
        %v3640 = vpop.permute.xlu0 %3639
        %3641 = vrot.lane.b32.xlu0 %v3606, 127
        %v3642 = vpop.permute.xlu0 %3641
        %v3643 = vsel %vm1011, %v3620, %v3622
        %v3644 = vsel %vm1011, %v3622, %v3624
        %v3645 = vsel %vm1011, %v3626, %v3628
        %v3646 = vsel %vm1011, %v3628, %v3630
        %v3647 = vsel %vm1011, %v3632, %v3634
        %v3648 = vsel %vm1011, %v3634, %v3636
        %v3649 = vsel %vm1011, %v3638, %v3640
        %v3650 = vsel %vm1011, %v3640, %v3642
        %v3659 = vadd.f32 %v3559, %v3643
        %v3660 = vadd.f32 %v3560, %v3644
        %v3661 = vadd.f32 %v3561, %v3645
        %v3662 = vadd.f32 %v3562, %v3646
        %v3663 = vadd.f32 %v3563, %v3647
        %v3664 = vadd.f32 %v3564, %v3648
        %v3665 = vadd.f32 %v3565, %v3649
        %v3666 = vadd.f32 %v3566, %v3650
        %3667 = vset.pattern.permute.xlu0 6
        %3668 = vperm.xlu0 %3667, %v3163
        %v3669 = vpop.permute.xlu0 %3668
        %3671 = vset.pattern.permute.xlu0 6
        %3672 = vperm.xlu0 %3671, %v3164
        %v3673 = vpop.permute.xlu0 %3672
        %3675 = vset.pattern.permute.xlu0 6
        %3676 = vperm.xlu0 %3675, %v3165
        %v3677 = vpop.permute.xlu0 %3676
        %3679 = vset.pattern.permute.xlu0 6
        %3680 = vperm.xlu0 %3679, %v3166
        %v3681 = vpop.permute.xlu0 %3680
        %v3683 = vmul.f32 %v3567, %v3669
        %v3684 = vmul.f32 %v3568, %v3669
        %v3685 = vmul.f32 %v3569, %v3669
        %v3686 = vmul.f32 %v3570, %v3673
        %v3687 = vmul.f32 %v3571, %v3673
        %v3688 = vmul.f32 %v3572, %v3673
        %v3689 = vmul.f32 %v3573, %v3677
        %v3690 = vmul.f32 %v3574, %v3677
        %v3691 = vmul.f32 %v3575, %v3677
        %v3692 = vmul.f32 %v3576, %v3681
        %v3693 = vmul.f32 %v3577, %v3681
        %v3694 = vmul.f32 %v3578, %v3681
        %3707 = vrot.lane.b32.xlu0 %v3683, 111
        %v3708 = vpop.permute.xlu0 %3707
        %3709 = vrot.lane.b32.xlu0 %v3684, 111
        %v3710 = vpop.permute.xlu0 %3709
        %3711 = vrot.lane.b32.xlu0 %v3685, 111
        %v3712 = vpop.permute.xlu0 %3711
        %3713 = vrot.lane.b32.xlu0 %v3686, 111
        %v3714 = vpop.permute.xlu0 %3713
        %3715 = vrot.lane.b32.xlu0 %v3687, 111
        %v3716 = vpop.permute.xlu0 %3715
        %3717 = vrot.lane.b32.xlu0 %v3688, 111
        %v3718 = vpop.permute.xlu0 %3717
        %3719 = vrot.lane.b32.xlu0 %v3689, 111
        %v3720 = vpop.permute.xlu0 %3719
        %3721 = vrot.lane.b32.xlu0 %v3690, 111
        %v3722 = vpop.permute.xlu0 %3721
        %3723 = vrot.lane.b32.xlu0 %v3691, 111
        %v3724 = vpop.permute.xlu0 %3723
        %3725 = vrot.lane.b32.xlu0 %v3692, 111
        %v3726 = vpop.permute.xlu0 %3725
        %3727 = vrot.lane.b32.xlu0 %v3693, 111
        %v3728 = vpop.permute.xlu0 %3727
        %3729 = vrot.lane.b32.xlu0 %v3694, 111
        %v3730 = vpop.permute.xlu0 %3729
        %v3731 = vsel %vm1100, %v3708, %v3710
        %v3732 = vsel %vm1100, %v3710, %v3712
        %v3733 = vsel %vm1100, %v3714, %v3716
        %v3734 = vsel %vm1100, %v3716, %v3718
        %v3735 = vsel %vm1100, %v3720, %v3722
        %v3736 = vsel %vm1100, %v3722, %v3724
        %v3737 = vsel %vm1100, %v3726, %v3728
        %v3738 = vsel %vm1100, %v3728, %v3730
        %v3747 = vadd.f32 %v3659, %v3731
        %v3748 = vadd.f32 %v3660, %v3732
        %v3749 = vadd.f32 %v3661, %v3733
        %v3750 = vadd.f32 %v3662, %v3734
        %v3751 = vadd.f32 %v3663, %v3735
        %v3752 = vadd.f32 %v3664, %v3736
        %v3753 = vadd.f32 %v3665, %v3737
        %v3754 = vadd.f32 %v3666, %v3738
        %3755 = vset.pattern.permute.xlu0 11
        %3756 = vperm.xlu0 %3755, %v3163
        %v3757 = vpop.permute.xlu0 %3756
        %3759 = vset.pattern.permute.xlu0 11
        %3760 = vperm.xlu0 %3759, %v3164
        %v3761 = vpop.permute.xlu0 %3760
        %3763 = vset.pattern.permute.xlu0 11
        %3764 = vperm.xlu0 %3763, %v3165
        %v3765 = vpop.permute.xlu0 %3764
        %3767 = vset.pattern.permute.xlu0 11
        %3768 = vperm.xlu0 %3767, %v3166
        %v3769 = vpop.permute.xlu0 %3768
        %v3771 = vmul.f32 %v3567, %v3757
        %v3772 = vmul.f32 %v3568, %v3757
        %v3773 = vmul.f32 %v3569, %v3757
        %v3774 = vmul.f32 %v3570, %v3761
        %v3775 = vmul.f32 %v3571, %v3761
        %v3776 = vmul.f32 %v3572, %v3761
        %v3777 = vmul.f32 %v3573, %v3765
        %v3778 = vmul.f32 %v3574, %v3765
        %v3779 = vmul.f32 %v3575, %v3765
        %v3780 = vmul.f32 %v3576, %v3769
        %v3781 = vmul.f32 %v3577, %v3769
        %v3782 = vmul.f32 %v3578, %v3769
        %3795 = vrot.lane.b32.xlu0 %v3771, 95
        %v3796 = vpop.permute.xlu0 %3795
        %3797 = vrot.lane.b32.xlu0 %v3772, 95
        %v3798 = vpop.permute.xlu0 %3797
        %3799 = vrot.lane.b32.xlu0 %v3773, 95
        %v3800 = vpop.permute.xlu0 %3799
        %3801 = vrot.lane.b32.xlu0 %v3774, 95
        %v3802 = vpop.permute.xlu0 %3801
        %3803 = vrot.lane.b32.xlu0 %v3775, 95
        %v3804 = vpop.permute.xlu0 %3803
        %3805 = vrot.lane.b32.xlu0 %v3776, 95
        %v3806 = vpop.permute.xlu0 %3805
        %3807 = vrot.lane.b32.xlu0 %v3777, 95
        %v3808 = vpop.permute.xlu0 %3807
        %3809 = vrot.lane.b32.xlu0 %v3778, 95
        %v3810 = vpop.permute.xlu0 %3809
        %3811 = vrot.lane.b32.xlu0 %v3779, 95
        %v3812 = vpop.permute.xlu0 %3811
        %3813 = vrot.lane.b32.xlu0 %v3780, 95
        %v3814 = vpop.permute.xlu0 %3813
        %3815 = vrot.lane.b32.xlu0 %v3781, 95
        %v3816 = vpop.permute.xlu0 %3815
        %3817 = vrot.lane.b32.xlu0 %v3782, 95
        %v3818 = vpop.permute.xlu0 %3817
        %v3819 = vsel %vm1189, %v3796, %v3798
        %v3820 = vsel %vm1189, %v3798, %v3800
        %v3821 = vsel %vm1189, %v3802, %v3804
        %v3822 = vsel %vm1189, %v3804, %v3806
        %v3823 = vsel %vm1189, %v3808, %v3810
        %v3824 = vsel %vm1189, %v3810, %v3812
        %v3825 = vsel %vm1189, %v3814, %v3816
        %v3826 = vsel %vm1189, %v3816, %v3818
        %v3835 = vadd.f32 %v3747, %v3819
        %v3836 = vadd.f32 %v3748, %v3820
        %v3837 = vadd.f32 %v3749, %v3821
        %v3838 = vadd.f32 %v3750, %v3822
        %v3839 = vadd.f32 %v3751, %v3823
        %v3840 = vadd.f32 %v3752, %v3824
        %v3841 = vadd.f32 %v3753, %v3825
        %v3842 = vadd.f32 %v3754, %v3826
        %3843 = vset.pattern.permute.xlu0 16
        %3844 = vperm.xlu0 %3843, %v3163
        %v3845 = vpop.permute.xlu0 %3844
        %3847 = vset.pattern.permute.xlu0 16
        %3848 = vperm.xlu0 %3847, %v3164
        %v3849 = vpop.permute.xlu0 %3848
        %3851 = vset.pattern.permute.xlu0 16
        %3852 = vperm.xlu0 %3851, %v3165
        %v3853 = vpop.permute.xlu0 %3852
        %3855 = vset.pattern.permute.xlu0 16
        %3856 = vperm.xlu0 %3855, %v3166
        %v3857 = vpop.permute.xlu0 %3856
        %v3859 = vmul.f32 %v3567, %v3845
        %v3860 = vmul.f32 %v3568, %v3845
        %v3861 = vmul.f32 %v3569, %v3845
        %v3862 = vmul.f32 %v3570, %v3849
        %v3863 = vmul.f32 %v3571, %v3849
        %v3864 = vmul.f32 %v3572, %v3849
        %v3865 = vmul.f32 %v3573, %v3853
        %v3866 = vmul.f32 %v3574, %v3853
        %v3867 = vmul.f32 %v3575, %v3853
        %v3868 = vmul.f32 %v3576, %v3857
        %v3869 = vmul.f32 %v3577, %v3857
        %v3870 = vmul.f32 %v3578, %v3857
        %3883 = vrot.lane.b32.xlu0 %v3859, 79
        %v3884 = vpop.permute.xlu0 %3883
        %3885 = vrot.lane.b32.xlu0 %v3860, 79
        %v3886 = vpop.permute.xlu0 %3885
        %3887 = vrot.lane.b32.xlu0 %v3861, 79
        %v3888 = vpop.permute.xlu0 %3887
        %3889 = vrot.lane.b32.xlu0 %v3862, 79
        %v3890 = vpop.permute.xlu0 %3889
        %3891 = vrot.lane.b32.xlu0 %v3863, 79
        %v3892 = vpop.permute.xlu0 %3891
        %3893 = vrot.lane.b32.xlu0 %v3864, 79
        %v3894 = vpop.permute.xlu0 %3893
        %3895 = vrot.lane.b32.xlu0 %v3865, 79
        %v3896 = vpop.permute.xlu0 %3895
        %3897 = vrot.lane.b32.xlu0 %v3866, 79
        %v3898 = vpop.permute.xlu0 %3897
        %3899 = vrot.lane.b32.xlu0 %v3867, 79
        %v3900 = vpop.permute.xlu0 %3899
        %3901 = vrot.lane.b32.xlu0 %v3868, 79
        %v3902 = vpop.permute.xlu0 %3901
        %3903 = vrot.lane.b32.xlu0 %v3869, 79
        %v3904 = vpop.permute.xlu0 %3903
        %3905 = vrot.lane.b32.xlu0 %v3870, 79
        %v3906 = vpop.permute.xlu0 %3905
        %v3907 = vsel %vm1278, %v3884, %v3886
        %v3908 = vsel %vm1278, %v3886, %v3888
        %v3909 = vsel %vm1278, %v3890, %v3892
        %v3910 = vsel %vm1278, %v3892, %v3894
        %v3911 = vsel %vm1278, %v3896, %v3898
        %v3912 = vsel %vm1278, %v3898, %v3900
        %v3913 = vsel %vm1278, %v3902, %v3904
        %v3914 = vsel %vm1278, %v3904, %v3906
        %v3923 = vadd.f32 %v3835, %v3907
        %v3924 = vadd.f32 %v3836, %v3908
        %v3925 = vadd.f32 %v3837, %v3909
        %v3926 = vadd.f32 %v3838, %v3910
        %v3927 = vadd.f32 %v3839, %v3911
        %v3928 = vadd.f32 %v3840, %v3912
        %v3929 = vadd.f32 %v3841, %v3913
        %v3930 = vadd.f32 %v3842, %v3914
        %3931 = vset.pattern.permute.xlu0 21
        %3932 = vperm.xlu0 %3931, %v3163
        %v3933 = vpop.permute.xlu0 %3932
        %3935 = vset.pattern.permute.xlu0 21
        %3936 = vperm.xlu0 %3935, %v3164
        %v3937 = vpop.permute.xlu0 %3936
        %3939 = vset.pattern.permute.xlu0 21
        %3940 = vperm.xlu0 %3939, %v3165
        %v3941 = vpop.permute.xlu0 %3940
        %3943 = vset.pattern.permute.xlu0 21
        %3944 = vperm.xlu0 %3943, %v3166
        %v3945 = vpop.permute.xlu0 %3944
        %v3947 = vmul.f32 %v3567, %v3933
        %v3948 = vmul.f32 %v3568, %v3933
        %v3949 = vmul.f32 %v3569, %v3933
        %v3950 = vmul.f32 %v3570, %v3937
        %v3951 = vmul.f32 %v3571, %v3937
        %v3952 = vmul.f32 %v3572, %v3937
        %v3953 = vmul.f32 %v3573, %v3941
        %v3954 = vmul.f32 %v3574, %v3941
        %v3955 = vmul.f32 %v3575, %v3941
        %v3956 = vmul.f32 %v3576, %v3945
        %v3957 = vmul.f32 %v3577, %v3945
        %v3958 = vmul.f32 %v3578, %v3945
        %3971 = vrot.lane.b32.xlu0 %v3947, 63
        %v3972 = vpop.permute.xlu0 %3971
        %3973 = vrot.lane.b32.xlu0 %v3948, 63
        %v3974 = vpop.permute.xlu0 %3973
        %3975 = vrot.lane.b32.xlu0 %v3949, 63
        %v3976 = vpop.permute.xlu0 %3975
        %3977 = vrot.lane.b32.xlu0 %v3950, 63
        %v3978 = vpop.permute.xlu0 %3977
        %3979 = vrot.lane.b32.xlu0 %v3951, 63
        %v3980 = vpop.permute.xlu0 %3979
        %3981 = vrot.lane.b32.xlu0 %v3952, 63
        %v3982 = vpop.permute.xlu0 %3981
        %3983 = vrot.lane.b32.xlu0 %v3953, 63
        %v3984 = vpop.permute.xlu0 %3983
        %3985 = vrot.lane.b32.xlu0 %v3954, 63
        %v3986 = vpop.permute.xlu0 %3985
        %3987 = vrot.lane.b32.xlu0 %v3955, 63
        %v3988 = vpop.permute.xlu0 %3987
        %3989 = vrot.lane.b32.xlu0 %v3956, 63
        %v3990 = vpop.permute.xlu0 %3989
        %3991 = vrot.lane.b32.xlu0 %v3957, 63
        %v3992 = vpop.permute.xlu0 %3991
        %3993 = vrot.lane.b32.xlu0 %v3958, 63
        %v3994 = vpop.permute.xlu0 %3993
        %v3995 = vsel %vm1367, %v3972, %v3974
        %v3996 = vsel %vm1367, %v3974, %v3976
        %v3997 = vsel %vm1367, %v3978, %v3980
        %v3998 = vsel %vm1367, %v3980, %v3982
        %v3999 = vsel %vm1367, %v3984, %v3986
        %v4000 = vsel %vm1367, %v3986, %v3988
        %v4001 = vsel %vm1367, %v3990, %v3992
        %v4002 = vsel %vm1367, %v3992, %v3994
        %v4011 = vadd.f32 %v3923, %v3995
        %v4012 = vadd.f32 %v3924, %v3996
        %v4013 = vadd.f32 %v3925, %v3997
        %v4014 = vadd.f32 %v3926, %v3998
        %v4015 = vadd.f32 %v3927, %v3999
        %v4016 = vadd.f32 %v3928, %v4000
        %v4017 = vadd.f32 %v3929, %v4001
        %v4018 = vadd.f32 %v3930, %v4002
        %v4019 = vmul.f32 %v3150, %v1408
        %v4020 = vmul.f32 %v3151, %v1414
        %v4021 = vmul.f32 %v3152, %v1415
        %v4022 = vmul.f32 %v3153, %v1408
        %v4023 = vmul.f32 %v3154, %v1414
        %v4024 = vmul.f32 %v3155, %v1415
        %v4025 = vmul.f32 %v3156, %v1408
        %v4026 = vmul.f32 %v3157, %v1414
        %v4027 = vmul.f32 %v3158, %v1415
        %v4028 = vmul.f32 %v3159, %v1408
        %v4029 = vmul.f32 %v3160, %v1414
        %v4030 = vmul.f32 %v3161, %v1415
        %4031 = vset.pattern.permute.xlu0 2
        %4032 = vperm.xlu0 %4031, %v3163
        %v4033 = vpop.permute.xlu0 %4032
        %4035 = vset.pattern.permute.xlu0 2
        %4036 = vperm.xlu0 %4035, %v3164
        %v4037 = vpop.permute.xlu0 %4036
        %4039 = vset.pattern.permute.xlu0 2
        %4040 = vperm.xlu0 %4039, %v3165
        %v4041 = vpop.permute.xlu0 %4040
        %4043 = vset.pattern.permute.xlu0 2
        %4044 = vperm.xlu0 %4043, %v3166
        %v4045 = vpop.permute.xlu0 %4044
        %v4047 = vmul.f32 %v4019, %v4033
        %v4048 = vmul.f32 %v4020, %v4033
        %v4049 = vmul.f32 %v4021, %v4033
        %v4050 = vmul.f32 %v4022, %v4037
        %v4051 = vmul.f32 %v4023, %v4037
        %v4052 = vmul.f32 %v4024, %v4037
        %v4053 = vmul.f32 %v4025, %v4041
        %v4054 = vmul.f32 %v4026, %v4041
        %v4055 = vmul.f32 %v4027, %v4041
        %v4056 = vmul.f32 %v4028, %v4045
        %v4057 = vmul.f32 %v4029, %v4045
        %v4058 = vmul.f32 %v4030, %v4045
        %4071 = vrot.lane.b32.xlu0 %v4047, 126
        %v4072 = vpop.permute.xlu0 %4071
        %4073 = vrot.lane.b32.xlu0 %v4048, 126
        %v4074 = vpop.permute.xlu0 %4073
        %4075 = vrot.lane.b32.xlu0 %v4049, 126
        %v4076 = vpop.permute.xlu0 %4075
        %4077 = vrot.lane.b32.xlu0 %v4050, 126
        %v4078 = vpop.permute.xlu0 %4077
        %4079 = vrot.lane.b32.xlu0 %v4051, 126
        %v4080 = vpop.permute.xlu0 %4079
        %4081 = vrot.lane.b32.xlu0 %v4052, 126
        %v4082 = vpop.permute.xlu0 %4081
        %4083 = vrot.lane.b32.xlu0 %v4053, 126
        %v4084 = vpop.permute.xlu0 %4083
        %4085 = vrot.lane.b32.xlu0 %v4054, 126
        %v4086 = vpop.permute.xlu0 %4085
        %4087 = vrot.lane.b32.xlu0 %v4055, 126
        %v4088 = vpop.permute.xlu0 %4087
        %4089 = vrot.lane.b32.xlu0 %v4056, 126
        %v4090 = vpop.permute.xlu0 %4089
        %4091 = vrot.lane.b32.xlu0 %v4057, 126
        %v4092 = vpop.permute.xlu0 %4091
        %4093 = vrot.lane.b32.xlu0 %v4058, 126
        %v4094 = vpop.permute.xlu0 %4093
        %v4095 = vsel %vm1495, %v4072, %v4074
        %v4096 = vsel %vm1495, %v4074, %v4076
        %v4097 = vsel %vm1495, %v4078, %v4080
        %v4098 = vsel %vm1495, %v4080, %v4082
        %v4099 = vsel %vm1495, %v4084, %v4086
        %v4100 = vsel %vm1495, %v4086, %v4088
        %v4101 = vsel %vm1495, %v4090, %v4092
        %v4102 = vsel %vm1495, %v4092, %v4094
        %v4111 = vadd.f32 %v4011, %v4095
        %v4112 = vadd.f32 %v4012, %v4096
        %v4113 = vadd.f32 %v4013, %v4097
        %v4114 = vadd.f32 %v4014, %v4098
        %v4115 = vadd.f32 %v4015, %v4099
        %v4116 = vadd.f32 %v4016, %v4100
        %v4117 = vadd.f32 %v4017, %v4101
        %v4118 = vadd.f32 %v4018, %v4102
        %4119 = vset.pattern.permute.xlu0 7
        %4120 = vperm.xlu0 %4119, %v3163
        %v4121 = vpop.permute.xlu0 %4120
        %4123 = vset.pattern.permute.xlu0 7
        %4124 = vperm.xlu0 %4123, %v3164
        %v4125 = vpop.permute.xlu0 %4124
        %4127 = vset.pattern.permute.xlu0 7
        %4128 = vperm.xlu0 %4127, %v3165
        %v4129 = vpop.permute.xlu0 %4128
        %4131 = vset.pattern.permute.xlu0 7
        %4132 = vperm.xlu0 %4131, %v3166
        %v4133 = vpop.permute.xlu0 %4132
        %v4135 = vmul.f32 %v4019, %v4121
        %v4136 = vmul.f32 %v4020, %v4121
        %v4137 = vmul.f32 %v4021, %v4121
        %v4138 = vmul.f32 %v4022, %v4125
        %v4139 = vmul.f32 %v4023, %v4125
        %v4140 = vmul.f32 %v4024, %v4125
        %v4141 = vmul.f32 %v4025, %v4129
        %v4142 = vmul.f32 %v4026, %v4129
        %v4143 = vmul.f32 %v4027, %v4129
        %v4144 = vmul.f32 %v4028, %v4133
        %v4145 = vmul.f32 %v4029, %v4133
        %v4146 = vmul.f32 %v4030, %v4133
        %4159 = vrot.lane.b32.xlu0 %v4135, 110
        %v4160 = vpop.permute.xlu0 %4159
        %4161 = vrot.lane.b32.xlu0 %v4136, 110
        %v4162 = vpop.permute.xlu0 %4161
        %4163 = vrot.lane.b32.xlu0 %v4137, 110
        %v4164 = vpop.permute.xlu0 %4163
        %4165 = vrot.lane.b32.xlu0 %v4138, 110
        %v4166 = vpop.permute.xlu0 %4165
        %4167 = vrot.lane.b32.xlu0 %v4139, 110
        %v4168 = vpop.permute.xlu0 %4167
        %4169 = vrot.lane.b32.xlu0 %v4140, 110
        %v4170 = vpop.permute.xlu0 %4169
        %4171 = vrot.lane.b32.xlu0 %v4141, 110
        %v4172 = vpop.permute.xlu0 %4171
        %4173 = vrot.lane.b32.xlu0 %v4142, 110
        %v4174 = vpop.permute.xlu0 %4173
        %4175 = vrot.lane.b32.xlu0 %v4143, 110
        %v4176 = vpop.permute.xlu0 %4175
        %4177 = vrot.lane.b32.xlu0 %v4144, 110
        %v4178 = vpop.permute.xlu0 %4177
        %4179 = vrot.lane.b32.xlu0 %v4145, 110
        %v4180 = vpop.permute.xlu0 %4179
        %4181 = vrot.lane.b32.xlu0 %v4146, 110
        %v4182 = vpop.permute.xlu0 %4181
        %v4183 = vsel %vm1584, %v4160, %v4162
        %v4184 = vsel %vm1584, %v4162, %v4164
        %v4185 = vsel %vm1584, %v4166, %v4168
        %v4186 = vsel %vm1584, %v4168, %v4170
        %v4187 = vsel %vm1584, %v4172, %v4174
        %v4188 = vsel %vm1584, %v4174, %v4176
        %v4189 = vsel %vm1584, %v4178, %v4180
        %v4190 = vsel %vm1584, %v4180, %v4182
        %v4199 = vadd.f32 %v4111, %v4183
        %v4200 = vadd.f32 %v4112, %v4184
        %v4201 = vadd.f32 %v4113, %v4185
        %v4202 = vadd.f32 %v4114, %v4186
        %v4203 = vadd.f32 %v4115, %v4187
        %v4204 = vadd.f32 %v4116, %v4188
        %v4205 = vadd.f32 %v4117, %v4189
        %v4206 = vadd.f32 %v4118, %v4190
        %4207 = vset.pattern.permute.xlu0 12
        %4208 = vperm.xlu0 %4207, %v3163
        %v4209 = vpop.permute.xlu0 %4208
        %4211 = vset.pattern.permute.xlu0 12
        %4212 = vperm.xlu0 %4211, %v3164
        %v4213 = vpop.permute.xlu0 %4212
        %4215 = vset.pattern.permute.xlu0 12
        %4216 = vperm.xlu0 %4215, %v3165
        %v4217 = vpop.permute.xlu0 %4216
        %4219 = vset.pattern.permute.xlu0 12
        %4220 = vperm.xlu0 %4219, %v3166
        %v4221 = vpop.permute.xlu0 %4220
        %v4223 = vmul.f32 %v4019, %v4209
        %v4224 = vmul.f32 %v4020, %v4209
        %v4225 = vmul.f32 %v4021, %v4209
        %v4226 = vmul.f32 %v4022, %v4213
        %v4227 = vmul.f32 %v4023, %v4213
        %v4228 = vmul.f32 %v4024, %v4213
        %v4229 = vmul.f32 %v4025, %v4217
        %v4230 = vmul.f32 %v4026, %v4217
        %v4231 = vmul.f32 %v4027, %v4217
        %v4232 = vmul.f32 %v4028, %v4221
        %v4233 = vmul.f32 %v4029, %v4221
        %v4234 = vmul.f32 %v4030, %v4221
        %4247 = vrot.lane.b32.xlu0 %v4223, 94
        %v4248 = vpop.permute.xlu0 %4247
        %4249 = vrot.lane.b32.xlu0 %v4224, 94
        %v4250 = vpop.permute.xlu0 %4249
        %4251 = vrot.lane.b32.xlu0 %v4225, 94
        %v4252 = vpop.permute.xlu0 %4251
        %4253 = vrot.lane.b32.xlu0 %v4226, 94
        %v4254 = vpop.permute.xlu0 %4253
        %4255 = vrot.lane.b32.xlu0 %v4227, 94
        %v4256 = vpop.permute.xlu0 %4255
        %4257 = vrot.lane.b32.xlu0 %v4228, 94
        %v4258 = vpop.permute.xlu0 %4257
        %4259 = vrot.lane.b32.xlu0 %v4229, 94
        %v4260 = vpop.permute.xlu0 %4259
        %4261 = vrot.lane.b32.xlu0 %v4230, 94
        %v4262 = vpop.permute.xlu0 %4261
        %4263 = vrot.lane.b32.xlu0 %v4231, 94
        %v4264 = vpop.permute.xlu0 %4263
        %4265 = vrot.lane.b32.xlu0 %v4232, 94
        %v4266 = vpop.permute.xlu0 %4265
        %4267 = vrot.lane.b32.xlu0 %v4233, 94
        %v4268 = vpop.permute.xlu0 %4267
        %4269 = vrot.lane.b32.xlu0 %v4234, 94
        %v4270 = vpop.permute.xlu0 %4269
        %v4271 = vsel %vm1673, %v4248, %v4250
        %v4272 = vsel %vm1673, %v4250, %v4252
        %v4273 = vsel %vm1673, %v4254, %v4256
        %v4274 = vsel %vm1673, %v4256, %v4258
        %v4275 = vsel %vm1673, %v4260, %v4262
        %v4276 = vsel %vm1673, %v4262, %v4264
        %v4277 = vsel %vm1673, %v4266, %v4268
        %v4278 = vsel %vm1673, %v4268, %v4270
        %v4287 = vadd.f32 %v4199, %v4271
        %v4288 = vadd.f32 %v4200, %v4272
        %v4289 = vadd.f32 %v4201, %v4273
        %v4290 = vadd.f32 %v4202, %v4274
        %v4291 = vadd.f32 %v4203, %v4275
        %v4292 = vadd.f32 %v4204, %v4276
        %v4293 = vadd.f32 %v4205, %v4277
        %v4294 = vadd.f32 %v4206, %v4278
        %4295 = vset.pattern.permute.xlu0 17
        %4296 = vperm.xlu0 %4295, %v3163
        %v4297 = vpop.permute.xlu0 %4296
        %4299 = vset.pattern.permute.xlu0 17
        %4300 = vperm.xlu0 %4299, %v3164
        %v4301 = vpop.permute.xlu0 %4300
        %4303 = vset.pattern.permute.xlu0 17
        %4304 = vperm.xlu0 %4303, %v3165
        %v4305 = vpop.permute.xlu0 %4304
        %4307 = vset.pattern.permute.xlu0 17
        %4308 = vperm.xlu0 %4307, %v3166
        %v4309 = vpop.permute.xlu0 %4308
        %v4311 = vmul.f32 %v4019, %v4297
        %v4312 = vmul.f32 %v4020, %v4297
        %v4313 = vmul.f32 %v4021, %v4297
        %v4314 = vmul.f32 %v4022, %v4301
        %v4315 = vmul.f32 %v4023, %v4301
        %v4316 = vmul.f32 %v4024, %v4301
        %v4317 = vmul.f32 %v4025, %v4305
        %v4318 = vmul.f32 %v4026, %v4305
        %v4319 = vmul.f32 %v4027, %v4305
        %v4320 = vmul.f32 %v4028, %v4309
        %v4321 = vmul.f32 %v4029, %v4309
        %v4322 = vmul.f32 %v4030, %v4309
        %4335 = vrot.lane.b32.xlu0 %v4311, 78
        %v4336 = vpop.permute.xlu0 %4335
        %4337 = vrot.lane.b32.xlu0 %v4312, 78
        %v4338 = vpop.permute.xlu0 %4337
        %4339 = vrot.lane.b32.xlu0 %v4313, 78
        %v4340 = vpop.permute.xlu0 %4339
        %4341 = vrot.lane.b32.xlu0 %v4314, 78
        %v4342 = vpop.permute.xlu0 %4341
        %4343 = vrot.lane.b32.xlu0 %v4315, 78
        %v4344 = vpop.permute.xlu0 %4343
        %4345 = vrot.lane.b32.xlu0 %v4316, 78
        %v4346 = vpop.permute.xlu0 %4345
        %4347 = vrot.lane.b32.xlu0 %v4317, 78
        %v4348 = vpop.permute.xlu0 %4347
        %4349 = vrot.lane.b32.xlu0 %v4318, 78
        %v4350 = vpop.permute.xlu0 %4349
        %4351 = vrot.lane.b32.xlu0 %v4319, 78
        %v4352 = vpop.permute.xlu0 %4351
        %4353 = vrot.lane.b32.xlu0 %v4320, 78
        %v4354 = vpop.permute.xlu0 %4353
        %4355 = vrot.lane.b32.xlu0 %v4321, 78
        %v4356 = vpop.permute.xlu0 %4355
        %4357 = vrot.lane.b32.xlu0 %v4322, 78
        %v4358 = vpop.permute.xlu0 %4357
        %v4359 = vsel %vm1762, %v4336, %v4338
        %v4360 = vsel %vm1762, %v4338, %v4340
        %v4361 = vsel %vm1762, %v4342, %v4344
        %v4362 = vsel %vm1762, %v4344, %v4346
        %v4363 = vsel %vm1762, %v4348, %v4350
        %v4364 = vsel %vm1762, %v4350, %v4352
        %v4365 = vsel %vm1762, %v4354, %v4356
        %v4366 = vsel %vm1762, %v4356, %v4358
        %v4375 = vadd.f32 %v4287, %v4359
        %v4376 = vadd.f32 %v4288, %v4360
        %v4377 = vadd.f32 %v4289, %v4361
        %v4378 = vadd.f32 %v4290, %v4362
        %v4379 = vadd.f32 %v4291, %v4363
        %v4380 = vadd.f32 %v4292, %v4364
        %v4381 = vadd.f32 %v4293, %v4365
        %v4382 = vadd.f32 %v4294, %v4366
        %4383 = vset.pattern.permute.xlu0 22
        %4384 = vperm.xlu0 %4383, %v3163
        %v4385 = vpop.permute.xlu0 %4384
        %4387 = vset.pattern.permute.xlu0 22
        %4388 = vperm.xlu0 %4387, %v3164
        %v4389 = vpop.permute.xlu0 %4388
        %4391 = vset.pattern.permute.xlu0 22
        %4392 = vperm.xlu0 %4391, %v3165
        %v4393 = vpop.permute.xlu0 %4392
        %4395 = vset.pattern.permute.xlu0 22
        %4396 = vperm.xlu0 %4395, %v3166
        %v4397 = vpop.permute.xlu0 %4396
        %v4399 = vmul.f32 %v4019, %v4385
        %v4400 = vmul.f32 %v4020, %v4385
        %v4401 = vmul.f32 %v4021, %v4385
        %v4402 = vmul.f32 %v4022, %v4389
        %v4403 = vmul.f32 %v4023, %v4389
        %v4404 = vmul.f32 %v4024, %v4389
        %v4405 = vmul.f32 %v4025, %v4393
        %v4406 = vmul.f32 %v4026, %v4393
        %v4407 = vmul.f32 %v4027, %v4393
        %v4408 = vmul.f32 %v4028, %v4397
        %v4409 = vmul.f32 %v4029, %v4397
        %v4410 = vmul.f32 %v4030, %v4397
        %4423 = vrot.lane.b32.xlu0 %v4399, 62
        %v4424 = vpop.permute.xlu0 %4423
        %4425 = vrot.lane.b32.xlu0 %v4400, 62
        %v4426 = vpop.permute.xlu0 %4425
        %4427 = vrot.lane.b32.xlu0 %v4401, 62
        %v4428 = vpop.permute.xlu0 %4427
        %4429 = vrot.lane.b32.xlu0 %v4402, 62
        %v4430 = vpop.permute.xlu0 %4429
        %4431 = vrot.lane.b32.xlu0 %v4403, 62
        %v4432 = vpop.permute.xlu0 %4431
        %4433 = vrot.lane.b32.xlu0 %v4404, 62
        %v4434 = vpop.permute.xlu0 %4433
        %4435 = vrot.lane.b32.xlu0 %v4405, 62
        %v4436 = vpop.permute.xlu0 %4435
        %4437 = vrot.lane.b32.xlu0 %v4406, 62
        %v4438 = vpop.permute.xlu0 %4437
        %4439 = vrot.lane.b32.xlu0 %v4407, 62
        %v4440 = vpop.permute.xlu0 %4439
        %4441 = vrot.lane.b32.xlu0 %v4408, 62
        %v4442 = vpop.permute.xlu0 %4441
        %4443 = vrot.lane.b32.xlu0 %v4409, 62
        %v4444 = vpop.permute.xlu0 %4443
        %4445 = vrot.lane.b32.xlu0 %v4410, 62
        %v4446 = vpop.permute.xlu0 %4445
        %v4447 = vsel %vm1851, %v4424, %v4426
        %v4448 = vsel %vm1851, %v4426, %v4428
        %v4449 = vsel %vm1851, %v4430, %v4432
        %v4450 = vsel %vm1851, %v4432, %v4434
        %v4451 = vsel %vm1851, %v4436, %v4438
        %v4452 = vsel %vm1851, %v4438, %v4440
        %v4453 = vsel %vm1851, %v4442, %v4444
        %v4454 = vsel %vm1851, %v4444, %v4446
        %v4463 = vadd.f32 %v4375, %v4447
        %v4464 = vadd.f32 %v4376, %v4448
        %v4465 = vadd.f32 %v4377, %v4449
        %v4466 = vadd.f32 %v4378, %v4450
        %v4467 = vadd.f32 %v4379, %v4451
        %v4468 = vadd.f32 %v4380, %v4452
        %v4469 = vadd.f32 %v4381, %v4453
        %v4470 = vadd.f32 %v4382, %v4454
        %v4471 = vmul.f32 %v3150, %v1892
        %v4472 = vmul.f32 %v3151, %v1898
        %v4473 = vmul.f32 %v3152, %v1899
        %v4474 = vmul.f32 %v3153, %v1892
        %v4475 = vmul.f32 %v3154, %v1898
        %v4476 = vmul.f32 %v3155, %v1899
        %v4477 = vmul.f32 %v3156, %v1892
        %v4478 = vmul.f32 %v3157, %v1898
        %v4479 = vmul.f32 %v3158, %v1899
        %v4480 = vmul.f32 %v3159, %v1892
        %v4481 = vmul.f32 %v3160, %v1898
        %v4482 = vmul.f32 %v3161, %v1899
        %4483 = vset.pattern.permute.xlu0 3
        %4484 = vperm.xlu0 %4483, %v3163
        %v4485 = vpop.permute.xlu0 %4484
        %4487 = vset.pattern.permute.xlu0 3
        %4488 = vperm.xlu0 %4487, %v3164
        %v4489 = vpop.permute.xlu0 %4488
        %4491 = vset.pattern.permute.xlu0 3
        %4492 = vperm.xlu0 %4491, %v3165
        %v4493 = vpop.permute.xlu0 %4492
        %4495 = vset.pattern.permute.xlu0 3
        %4496 = vperm.xlu0 %4495, %v3166
        %v4497 = vpop.permute.xlu0 %4496
        %v4499 = vmul.f32 %v4471, %v4485
        %v4500 = vmul.f32 %v4472, %v4485
        %v4501 = vmul.f32 %v4473, %v4485
        %v4502 = vmul.f32 %v4474, %v4489
        %v4503 = vmul.f32 %v4475, %v4489
        %v4504 = vmul.f32 %v4476, %v4489
        %v4505 = vmul.f32 %v4477, %v4493
        %v4506 = vmul.f32 %v4478, %v4493
        %v4507 = vmul.f32 %v4479, %v4493
        %v4508 = vmul.f32 %v4480, %v4497
        %v4509 = vmul.f32 %v4481, %v4497
        %v4510 = vmul.f32 %v4482, %v4497
        %4523 = vrot.lane.b32.xlu0 %v4499, 125
        %v4524 = vpop.permute.xlu0 %4523
        %4525 = vrot.lane.b32.xlu0 %v4500, 125
        %v4526 = vpop.permute.xlu0 %4525
        %4527 = vrot.lane.b32.xlu0 %v4501, 125
        %v4528 = vpop.permute.xlu0 %4527
        %4529 = vrot.lane.b32.xlu0 %v4502, 125
        %v4530 = vpop.permute.xlu0 %4529
        %4531 = vrot.lane.b32.xlu0 %v4503, 125
        %v4532 = vpop.permute.xlu0 %4531
        %4533 = vrot.lane.b32.xlu0 %v4504, 125
        %v4534 = vpop.permute.xlu0 %4533
        %4535 = vrot.lane.b32.xlu0 %v4505, 125
        %v4536 = vpop.permute.xlu0 %4535
        %4537 = vrot.lane.b32.xlu0 %v4506, 125
        %v4538 = vpop.permute.xlu0 %4537
        %4539 = vrot.lane.b32.xlu0 %v4507, 125
        %v4540 = vpop.permute.xlu0 %4539
        %4541 = vrot.lane.b32.xlu0 %v4508, 125
        %v4542 = vpop.permute.xlu0 %4541
        %4543 = vrot.lane.b32.xlu0 %v4509, 125
        %v4544 = vpop.permute.xlu0 %4543
        %4545 = vrot.lane.b32.xlu0 %v4510, 125
        %v4546 = vpop.permute.xlu0 %4545
        %v4547 = vsel %vm1979, %v4524, %v4526
        %v4548 = vsel %vm1979, %v4526, %v4528
        %v4549 = vsel %vm1979, %v4530, %v4532
        %v4550 = vsel %vm1979, %v4532, %v4534
        %v4551 = vsel %vm1979, %v4536, %v4538
        %v4552 = vsel %vm1979, %v4538, %v4540
        %v4553 = vsel %vm1979, %v4542, %v4544
        %v4554 = vsel %vm1979, %v4544, %v4546
        %v4563 = vadd.f32 %v4463, %v4547
        %v4564 = vadd.f32 %v4464, %v4548
        %v4565 = vadd.f32 %v4465, %v4549
        %v4566 = vadd.f32 %v4466, %v4550
        %v4567 = vadd.f32 %v4467, %v4551
        %v4568 = vadd.f32 %v4468, %v4552
        %v4569 = vadd.f32 %v4469, %v4553
        %v4570 = vadd.f32 %v4470, %v4554
        %4571 = vset.pattern.permute.xlu0 8
        %4572 = vperm.xlu0 %4571, %v3163
        %v4573 = vpop.permute.xlu0 %4572
        %4575 = vset.pattern.permute.xlu0 8
        %4576 = vperm.xlu0 %4575, %v3164
        %v4577 = vpop.permute.xlu0 %4576
        %4579 = vset.pattern.permute.xlu0 8
        %4580 = vperm.xlu0 %4579, %v3165
        %v4581 = vpop.permute.xlu0 %4580
        %4583 = vset.pattern.permute.xlu0 8
        %4584 = vperm.xlu0 %4583, %v3166
        %v4585 = vpop.permute.xlu0 %4584
        %v4587 = vmul.f32 %v4471, %v4573
        %v4588 = vmul.f32 %v4472, %v4573
        %v4589 = vmul.f32 %v4473, %v4573
        %v4590 = vmul.f32 %v4474, %v4577
        %v4591 = vmul.f32 %v4475, %v4577
        %v4592 = vmul.f32 %v4476, %v4577
        %v4593 = vmul.f32 %v4477, %v4581
        %v4594 = vmul.f32 %v4478, %v4581
        %v4595 = vmul.f32 %v4479, %v4581
        %v4596 = vmul.f32 %v4480, %v4585
        %v4597 = vmul.f32 %v4481, %v4585
        %v4598 = vmul.f32 %v4482, %v4585
        %4611 = vrot.lane.b32.xlu0 %v4587, 109
        %v4612 = vpop.permute.xlu0 %4611
        %4613 = vrot.lane.b32.xlu0 %v4588, 109
        %v4614 = vpop.permute.xlu0 %4613
        %4615 = vrot.lane.b32.xlu0 %v4589, 109
        %v4616 = vpop.permute.xlu0 %4615
        %4617 = vrot.lane.b32.xlu0 %v4590, 109
        %v4618 = vpop.permute.xlu0 %4617
        %4619 = vrot.lane.b32.xlu0 %v4591, 109
        %v4620 = vpop.permute.xlu0 %4619
        %4621 = vrot.lane.b32.xlu0 %v4592, 109
        %v4622 = vpop.permute.xlu0 %4621
        %4623 = vrot.lane.b32.xlu0 %v4593, 109
        %v4624 = vpop.permute.xlu0 %4623
        %4625 = vrot.lane.b32.xlu0 %v4594, 109
        %v4626 = vpop.permute.xlu0 %4625
        %4627 = vrot.lane.b32.xlu0 %v4595, 109
        %v4628 = vpop.permute.xlu0 %4627
        %4629 = vrot.lane.b32.xlu0 %v4596, 109
        %v4630 = vpop.permute.xlu0 %4629
        %4631 = vrot.lane.b32.xlu0 %v4597, 109
        %v4632 = vpop.permute.xlu0 %4631
        %4633 = vrot.lane.b32.xlu0 %v4598, 109
        %v4634 = vpop.permute.xlu0 %4633
        %v4635 = vsel %vm2068, %v4612, %v4614
        %v4636 = vsel %vm2068, %v4614, %v4616
        %v4637 = vsel %vm2068, %v4618, %v4620
        %v4638 = vsel %vm2068, %v4620, %v4622
        %v4639 = vsel %vm2068, %v4624, %v4626
        %v4640 = vsel %vm2068, %v4626, %v4628
        %v4641 = vsel %vm2068, %v4630, %v4632
        %v4642 = vsel %vm2068, %v4632, %v4634
        %v4651 = vadd.f32 %v4563, %v4635
        %v4652 = vadd.f32 %v4564, %v4636
        %v4653 = vadd.f32 %v4565, %v4637
        %v4654 = vadd.f32 %v4566, %v4638
        %v4655 = vadd.f32 %v4567, %v4639
        %v4656 = vadd.f32 %v4568, %v4640
        %v4657 = vadd.f32 %v4569, %v4641
        %v4658 = vadd.f32 %v4570, %v4642
        %4659 = vset.pattern.permute.xlu0 13
        %4660 = vperm.xlu0 %4659, %v3163
        %v4661 = vpop.permute.xlu0 %4660
        %4663 = vset.pattern.permute.xlu0 13
        %4664 = vperm.xlu0 %4663, %v3164
        %v4665 = vpop.permute.xlu0 %4664
        %4667 = vset.pattern.permute.xlu0 13
        %4668 = vperm.xlu0 %4667, %v3165
        %v4669 = vpop.permute.xlu0 %4668
        %4671 = vset.pattern.permute.xlu0 13
        %4672 = vperm.xlu0 %4671, %v3166
        %v4673 = vpop.permute.xlu0 %4672
        %v4675 = vmul.f32 %v4471, %v4661
        %v4676 = vmul.f32 %v4472, %v4661
        %v4677 = vmul.f32 %v4473, %v4661
        %v4678 = vmul.f32 %v4474, %v4665
        %v4679 = vmul.f32 %v4475, %v4665
        %v4680 = vmul.f32 %v4476, %v4665
        %v4681 = vmul.f32 %v4477, %v4669
        %v4682 = vmul.f32 %v4478, %v4669
        %v4683 = vmul.f32 %v4479, %v4669
        %v4684 = vmul.f32 %v4480, %v4673
        %v4685 = vmul.f32 %v4481, %v4673
        %v4686 = vmul.f32 %v4482, %v4673
        %4699 = vrot.lane.b32.xlu0 %v4675, 93
        %v4700 = vpop.permute.xlu0 %4699
        %4701 = vrot.lane.b32.xlu0 %v4676, 93
        %v4702 = vpop.permute.xlu0 %4701
        %4703 = vrot.lane.b32.xlu0 %v4677, 93
        %v4704 = vpop.permute.xlu0 %4703
        %4705 = vrot.lane.b32.xlu0 %v4678, 93
        %v4706 = vpop.permute.xlu0 %4705
        %4707 = vrot.lane.b32.xlu0 %v4679, 93
        %v4708 = vpop.permute.xlu0 %4707
        %4709 = vrot.lane.b32.xlu0 %v4680, 93
        %v4710 = vpop.permute.xlu0 %4709
        %4711 = vrot.lane.b32.xlu0 %v4681, 93
        %v4712 = vpop.permute.xlu0 %4711
        %4713 = vrot.lane.b32.xlu0 %v4682, 93
        %v4714 = vpop.permute.xlu0 %4713
        %4715 = vrot.lane.b32.xlu0 %v4683, 93
        %v4716 = vpop.permute.xlu0 %4715
        %4717 = vrot.lane.b32.xlu0 %v4684, 93
        %v4718 = vpop.permute.xlu0 %4717
        %4719 = vrot.lane.b32.xlu0 %v4685, 93
        %v4720 = vpop.permute.xlu0 %4719
        %4721 = vrot.lane.b32.xlu0 %v4686, 93
        %v4722 = vpop.permute.xlu0 %4721
        %v4723 = vsel %vm2157, %v4700, %v4702
        %v4724 = vsel %vm2157, %v4702, %v4704
        %v4725 = vsel %vm2157, %v4706, %v4708
        %v4726 = vsel %vm2157, %v4708, %v4710
        %v4727 = vsel %vm2157, %v4712, %v4714
        %v4728 = vsel %vm2157, %v4714, %v4716
        %v4729 = vsel %vm2157, %v4718, %v4720
        %v4730 = vsel %vm2157, %v4720, %v4722
        %v4739 = vadd.f32 %v4651, %v4723
        %v4740 = vadd.f32 %v4652, %v4724
        %v4741 = vadd.f32 %v4653, %v4725
        %v4742 = vadd.f32 %v4654, %v4726
        %v4743 = vadd.f32 %v4655, %v4727
        %v4744 = vadd.f32 %v4656, %v4728
        %v4745 = vadd.f32 %v4657, %v4729
        %v4746 = vadd.f32 %v4658, %v4730
        %4747 = vset.pattern.permute.xlu0 18
        %4748 = vperm.xlu0 %4747, %v3163
        %v4749 = vpop.permute.xlu0 %4748
        %4751 = vset.pattern.permute.xlu0 18
        %4752 = vperm.xlu0 %4751, %v3164
        %v4753 = vpop.permute.xlu0 %4752
        %4755 = vset.pattern.permute.xlu0 18
        %4756 = vperm.xlu0 %4755, %v3165
        %v4757 = vpop.permute.xlu0 %4756
        %4759 = vset.pattern.permute.xlu0 18
        %4760 = vperm.xlu0 %4759, %v3166
        %v4761 = vpop.permute.xlu0 %4760
        %v4763 = vmul.f32 %v4471, %v4749
        %v4764 = vmul.f32 %v4472, %v4749
        %v4765 = vmul.f32 %v4473, %v4749
        %v4766 = vmul.f32 %v4474, %v4753
        %v4767 = vmul.f32 %v4475, %v4753
        %v4768 = vmul.f32 %v4476, %v4753
        %v4769 = vmul.f32 %v4477, %v4757
        %v4770 = vmul.f32 %v4478, %v4757
        %v4771 = vmul.f32 %v4479, %v4757
        %v4772 = vmul.f32 %v4480, %v4761
        %v4773 = vmul.f32 %v4481, %v4761
        %v4774 = vmul.f32 %v4482, %v4761
        %4787 = vrot.lane.b32.xlu0 %v4763, 77
        %v4788 = vpop.permute.xlu0 %4787
        %4789 = vrot.lane.b32.xlu0 %v4764, 77
        %v4790 = vpop.permute.xlu0 %4789
        %4791 = vrot.lane.b32.xlu0 %v4765, 77
        %v4792 = vpop.permute.xlu0 %4791
        %4793 = vrot.lane.b32.xlu0 %v4766, 77
        %v4794 = vpop.permute.xlu0 %4793
        %4795 = vrot.lane.b32.xlu0 %v4767, 77
        %v4796 = vpop.permute.xlu0 %4795
        %4797 = vrot.lane.b32.xlu0 %v4768, 77
        %v4798 = vpop.permute.xlu0 %4797
        %4799 = vrot.lane.b32.xlu0 %v4769, 77
        %v4800 = vpop.permute.xlu0 %4799
        %4801 = vrot.lane.b32.xlu0 %v4770, 77
        %v4802 = vpop.permute.xlu0 %4801
        %4803 = vrot.lane.b32.xlu0 %v4771, 77
        %v4804 = vpop.permute.xlu0 %4803
        %4805 = vrot.lane.b32.xlu0 %v4772, 77
        %v4806 = vpop.permute.xlu0 %4805
        %4807 = vrot.lane.b32.xlu0 %v4773, 77
        %v4808 = vpop.permute.xlu0 %4807
        %4809 = vrot.lane.b32.xlu0 %v4774, 77
        %v4810 = vpop.permute.xlu0 %4809
        %v4811 = vsel %vm2246, %v4788, %v4790
        %v4812 = vsel %vm2246, %v4790, %v4792
        %v4813 = vsel %vm2246, %v4794, %v4796
        %v4814 = vsel %vm2246, %v4796, %v4798
        %v4815 = vsel %vm2246, %v4800, %v4802
        %v4816 = vsel %vm2246, %v4802, %v4804
        %v4817 = vsel %vm2246, %v4806, %v4808
        %v4818 = vsel %vm2246, %v4808, %v4810
        %v4827 = vadd.f32 %v4739, %v4811
        %v4828 = vadd.f32 %v4740, %v4812
        %v4829 = vadd.f32 %v4741, %v4813
        %v4830 = vadd.f32 %v4742, %v4814
        %v4831 = vadd.f32 %v4743, %v4815
        %v4832 = vadd.f32 %v4744, %v4816
        %v4833 = vadd.f32 %v4745, %v4817
        %v4834 = vadd.f32 %v4746, %v4818
        %4835 = vset.pattern.permute.xlu0 23
        %4836 = vperm.xlu0 %4835, %v3163
        %v4837 = vpop.permute.xlu0 %4836
        %4839 = vset.pattern.permute.xlu0 23
        %4840 = vperm.xlu0 %4839, %v3164
        %v4841 = vpop.permute.xlu0 %4840
        %4843 = vset.pattern.permute.xlu0 23
        %4844 = vperm.xlu0 %4843, %v3165
        %v4845 = vpop.permute.xlu0 %4844
        %4847 = vset.pattern.permute.xlu0 23
        %4848 = vperm.xlu0 %4847, %v3166
        %v4849 = vpop.permute.xlu0 %4848
        %v4851 = vmul.f32 %v4471, %v4837
        %v4852 = vmul.f32 %v4472, %v4837
        %v4853 = vmul.f32 %v4473, %v4837
        %v4854 = vmul.f32 %v4474, %v4841
        %v4855 = vmul.f32 %v4475, %v4841
        %v4856 = vmul.f32 %v4476, %v4841
        %v4857 = vmul.f32 %v4477, %v4845
        %v4858 = vmul.f32 %v4478, %v4845
        %v4859 = vmul.f32 %v4479, %v4845
        %v4860 = vmul.f32 %v4480, %v4849
        %v4861 = vmul.f32 %v4481, %v4849
        %v4862 = vmul.f32 %v4482, %v4849
        %4875 = vrot.lane.b32.xlu0 %v4851, 61
        %v4876 = vpop.permute.xlu0 %4875
        %4877 = vrot.lane.b32.xlu0 %v4852, 61
        %v4878 = vpop.permute.xlu0 %4877
        %4879 = vrot.lane.b32.xlu0 %v4853, 61
        %v4880 = vpop.permute.xlu0 %4879
        %4881 = vrot.lane.b32.xlu0 %v4854, 61
        %v4882 = vpop.permute.xlu0 %4881
        %4883 = vrot.lane.b32.xlu0 %v4855, 61
        %v4884 = vpop.permute.xlu0 %4883
        %4885 = vrot.lane.b32.xlu0 %v4856, 61
        %v4886 = vpop.permute.xlu0 %4885
        %4887 = vrot.lane.b32.xlu0 %v4857, 61
        %v4888 = vpop.permute.xlu0 %4887
        %4889 = vrot.lane.b32.xlu0 %v4858, 61
        %v4890 = vpop.permute.xlu0 %4889
        %4891 = vrot.lane.b32.xlu0 %v4859, 61
        %v4892 = vpop.permute.xlu0 %4891
        %4893 = vrot.lane.b32.xlu0 %v4860, 61
        %v4894 = vpop.permute.xlu0 %4893
        %4895 = vrot.lane.b32.xlu0 %v4861, 61
        %v4896 = vpop.permute.xlu0 %4895
        %4897 = vrot.lane.b32.xlu0 %v4862, 61
        %v4898 = vpop.permute.xlu0 %4897
        %v4899 = vsel %vm2335, %v4876, %v4878
        %v4900 = vsel %vm2335, %v4878, %v4880
        %v4901 = vsel %vm2335, %v4882, %v4884
        %v4902 = vsel %vm2335, %v4884, %v4886
        %v4903 = vsel %vm2335, %v4888, %v4890
        %v4904 = vsel %vm2335, %v4890, %v4892
        %v4905 = vsel %vm2335, %v4894, %v4896
        %v4906 = vsel %vm2335, %v4896, %v4898
        %v4915 = vadd.f32 %v4827, %v4899
        %v4916 = vadd.f32 %v4828, %v4900
        %v4917 = vadd.f32 %v4829, %v4901
        %v4918 = vadd.f32 %v4830, %v4902
        %v4919 = vadd.f32 %v4831, %v4903
        %v4920 = vadd.f32 %v4832, %v4904
        %v4921 = vadd.f32 %v4833, %v4905
        %v4922 = vadd.f32 %v4834, %v4906
        %v4923 = vmul.f32 %v3150, %v2376
        %v4924 = vmul.f32 %v3151, %v2382
        %v4925 = vmul.f32 %v3152, %v2383
        %v4926 = vmul.f32 %v3153, %v2376
        %v4927 = vmul.f32 %v3154, %v2382
        %v4928 = vmul.f32 %v3155, %v2383
        %v4929 = vmul.f32 %v3156, %v2376
        %v4930 = vmul.f32 %v3157, %v2382
        %v4931 = vmul.f32 %v3158, %v2383
        %v4932 = vmul.f32 %v3159, %v2376
        %v4933 = vmul.f32 %v3160, %v2382
        %v4934 = vmul.f32 %v3161, %v2383
        %4935 = vset.pattern.permute.xlu0 4
        %4936 = vperm.xlu0 %4935, %v3163
        %v4937 = vpop.permute.xlu0 %4936
        %4939 = vset.pattern.permute.xlu0 4
        %4940 = vperm.xlu0 %4939, %v3164
        %v4941 = vpop.permute.xlu0 %4940
        %4943 = vset.pattern.permute.xlu0 4
        %4944 = vperm.xlu0 %4943, %v3165
        %v4945 = vpop.permute.xlu0 %4944
        %4947 = vset.pattern.permute.xlu0 4
        %4948 = vperm.xlu0 %4947, %v3166
        %v4949 = vpop.permute.xlu0 %4948
        %v4951 = vmul.f32 %v4923, %v4937
        %v4952 = vmul.f32 %v4924, %v4937
        %v4953 = vmul.f32 %v4925, %v4937
        %v4954 = vmul.f32 %v4926, %v4941
        %v4955 = vmul.f32 %v4927, %v4941
        %v4956 = vmul.f32 %v4928, %v4941
        %v4957 = vmul.f32 %v4929, %v4945
        %v4958 = vmul.f32 %v4930, %v4945
        %v4959 = vmul.f32 %v4931, %v4945
        %v4960 = vmul.f32 %v4932, %v4949
        %v4961 = vmul.f32 %v4933, %v4949
        %v4962 = vmul.f32 %v4934, %v4949
        %4975 = vrot.lane.b32.xlu0 %v4951, 124
        %v4976 = vpop.permute.xlu0 %4975
        %4977 = vrot.lane.b32.xlu0 %v4952, 124
        %v4978 = vpop.permute.xlu0 %4977
        %4979 = vrot.lane.b32.xlu0 %v4953, 124
        %v4980 = vpop.permute.xlu0 %4979
        %4981 = vrot.lane.b32.xlu0 %v4954, 124
        %v4982 = vpop.permute.xlu0 %4981
        %4983 = vrot.lane.b32.xlu0 %v4955, 124
        %v4984 = vpop.permute.xlu0 %4983
        %4985 = vrot.lane.b32.xlu0 %v4956, 124
        %v4986 = vpop.permute.xlu0 %4985
        %4987 = vrot.lane.b32.xlu0 %v4957, 124
        %v4988 = vpop.permute.xlu0 %4987
        %4989 = vrot.lane.b32.xlu0 %v4958, 124
        %v4990 = vpop.permute.xlu0 %4989
        %4991 = vrot.lane.b32.xlu0 %v4959, 124
        %v4992 = vpop.permute.xlu0 %4991
        %4993 = vrot.lane.b32.xlu0 %v4960, 124
        %v4994 = vpop.permute.xlu0 %4993
        %4995 = vrot.lane.b32.xlu0 %v4961, 124
        %v4996 = vpop.permute.xlu0 %4995
        %4997 = vrot.lane.b32.xlu0 %v4962, 124
        %v4998 = vpop.permute.xlu0 %4997
        %v4999 = vsel %vm2463, %v4976, %v4978
        %v5000 = vsel %vm2463, %v4978, %v4980
        %v5001 = vsel %vm2463, %v4982, %v4984
        %v5002 = vsel %vm2463, %v4984, %v4986
        %v5003 = vsel %vm2463, %v4988, %v4990
        %v5004 = vsel %vm2463, %v4990, %v4992
        %v5005 = vsel %vm2463, %v4994, %v4996
        %v5006 = vsel %vm2463, %v4996, %v4998
        %v5015 = vadd.f32 %v4915, %v4999
        %v5016 = vadd.f32 %v4916, %v5000
        %v5017 = vadd.f32 %v4917, %v5001
        %v5018 = vadd.f32 %v4918, %v5002
        %v5019 = vadd.f32 %v4919, %v5003
        %v5020 = vadd.f32 %v4920, %v5004
        %v5021 = vadd.f32 %v4921, %v5005
        %v5022 = vadd.f32 %v4922, %v5006
        %5023 = vset.pattern.permute.xlu0 9
        %5024 = vperm.xlu0 %5023, %v3163
        %v5025 = vpop.permute.xlu0 %5024
        %5027 = vset.pattern.permute.xlu0 9
        %5028 = vperm.xlu0 %5027, %v3164
        %v5029 = vpop.permute.xlu0 %5028
        %5031 = vset.pattern.permute.xlu0 9
        %5032 = vperm.xlu0 %5031, %v3165
        %v5033 = vpop.permute.xlu0 %5032
        %5035 = vset.pattern.permute.xlu0 9
        %5036 = vperm.xlu0 %5035, %v3166
        %v5037 = vpop.permute.xlu0 %5036
        %v5039 = vmul.f32 %v4923, %v5025
        %v5040 = vmul.f32 %v4924, %v5025
        %v5041 = vmul.f32 %v4925, %v5025
        %v5042 = vmul.f32 %v4926, %v5029
        %v5043 = vmul.f32 %v4927, %v5029
        %v5044 = vmul.f32 %v4928, %v5029
        %v5045 = vmul.f32 %v4929, %v5033
        %v5046 = vmul.f32 %v4930, %v5033
        %v5047 = vmul.f32 %v4931, %v5033
        %v5048 = vmul.f32 %v4932, %v5037
        %v5049 = vmul.f32 %v4933, %v5037
        %v5050 = vmul.f32 %v4934, %v5037
        %5063 = vrot.lane.b32.xlu0 %v5039, 108
        %v5064 = vpop.permute.xlu0 %5063
        %5065 = vrot.lane.b32.xlu0 %v5040, 108
        %v5066 = vpop.permute.xlu0 %5065
        %5067 = vrot.lane.b32.xlu0 %v5041, 108
        %v5068 = vpop.permute.xlu0 %5067
        %5069 = vrot.lane.b32.xlu0 %v5042, 108
        %v5070 = vpop.permute.xlu0 %5069
        %5071 = vrot.lane.b32.xlu0 %v5043, 108
        %v5072 = vpop.permute.xlu0 %5071
        %5073 = vrot.lane.b32.xlu0 %v5044, 108
        %v5074 = vpop.permute.xlu0 %5073
        %5075 = vrot.lane.b32.xlu0 %v5045, 108
        %v5076 = vpop.permute.xlu0 %5075
        %5077 = vrot.lane.b32.xlu0 %v5046, 108
        %v5078 = vpop.permute.xlu0 %5077
        %5079 = vrot.lane.b32.xlu0 %v5047, 108
        %v5080 = vpop.permute.xlu0 %5079
        %5081 = vrot.lane.b32.xlu0 %v5048, 108
        %v5082 = vpop.permute.xlu0 %5081
        %5083 = vrot.lane.b32.xlu0 %v5049, 108
        %v5084 = vpop.permute.xlu0 %5083
        %5085 = vrot.lane.b32.xlu0 %v5050, 108
        %v5086 = vpop.permute.xlu0 %5085
        %v5087 = vsel %vm2552, %v5064, %v5066
        %v5088 = vsel %vm2552, %v5066, %v5068
        %v5089 = vsel %vm2552, %v5070, %v5072
        %v5090 = vsel %vm2552, %v5072, %v5074
        %v5091 = vsel %vm2552, %v5076, %v5078
        %v5092 = vsel %vm2552, %v5078, %v5080
        %v5093 = vsel %vm2552, %v5082, %v5084
        %v5094 = vsel %vm2552, %v5084, %v5086
        %v5103 = vadd.f32 %v5015, %v5087
        %v5104 = vadd.f32 %v5016, %v5088
        %v5105 = vadd.f32 %v5017, %v5089
        %v5106 = vadd.f32 %v5018, %v5090
        %v5107 = vadd.f32 %v5019, %v5091
        %v5108 = vadd.f32 %v5020, %v5092
        %v5109 = vadd.f32 %v5021, %v5093
        %v5110 = vadd.f32 %v5022, %v5094
        %5111 = vset.pattern.permute.xlu0 14
        %5112 = vperm.xlu0 %5111, %v3163
        %v5113 = vpop.permute.xlu0 %5112
        %5115 = vset.pattern.permute.xlu0 14
        %5116 = vperm.xlu0 %5115, %v3164
        %v5117 = vpop.permute.xlu0 %5116
        %5119 = vset.pattern.permute.xlu0 14
        %5120 = vperm.xlu0 %5119, %v3165
        %v5121 = vpop.permute.xlu0 %5120
        %5123 = vset.pattern.permute.xlu0 14
        %5124 = vperm.xlu0 %5123, %v3166
        %v5125 = vpop.permute.xlu0 %5124
        %v5127 = vmul.f32 %v4923, %v5113
        %v5128 = vmul.f32 %v4924, %v5113
        %v5129 = vmul.f32 %v4925, %v5113
        %v5130 = vmul.f32 %v4926, %v5117
        %v5131 = vmul.f32 %v4927, %v5117
        %v5132 = vmul.f32 %v4928, %v5117
        %v5133 = vmul.f32 %v4929, %v5121
        %v5134 = vmul.f32 %v4930, %v5121
        %v5135 = vmul.f32 %v4931, %v5121
        %v5136 = vmul.f32 %v4932, %v5125
        %v5137 = vmul.f32 %v4933, %v5125
        %v5138 = vmul.f32 %v4934, %v5125
        %5151 = vrot.lane.b32.xlu0 %v5127, 92
        %v5152 = vpop.permute.xlu0 %5151
        %5153 = vrot.lane.b32.xlu0 %v5128, 92
        %v5154 = vpop.permute.xlu0 %5153
        %5155 = vrot.lane.b32.xlu0 %v5129, 92
        %v5156 = vpop.permute.xlu0 %5155
        %5157 = vrot.lane.b32.xlu0 %v5130, 92
        %v5158 = vpop.permute.xlu0 %5157
        %5159 = vrot.lane.b32.xlu0 %v5131, 92
        %v5160 = vpop.permute.xlu0 %5159
        %5161 = vrot.lane.b32.xlu0 %v5132, 92
        %v5162 = vpop.permute.xlu0 %5161
        %5163 = vrot.lane.b32.xlu0 %v5133, 92
        %v5164 = vpop.permute.xlu0 %5163
        %5165 = vrot.lane.b32.xlu0 %v5134, 92
        %v5166 = vpop.permute.xlu0 %5165
        %5167 = vrot.lane.b32.xlu0 %v5135, 92
        %v5168 = vpop.permute.xlu0 %5167
        %5169 = vrot.lane.b32.xlu0 %v5136, 92
        %v5170 = vpop.permute.xlu0 %5169
        %5171 = vrot.lane.b32.xlu0 %v5137, 92
        %v5172 = vpop.permute.xlu0 %5171
        %5173 = vrot.lane.b32.xlu0 %v5138, 92
        %v5174 = vpop.permute.xlu0 %5173
        %v5175 = vsel %vm2641, %v5152, %v5154
        %v5176 = vsel %vm2641, %v5154, %v5156
        %v5177 = vsel %vm2641, %v5158, %v5160
        %v5178 = vsel %vm2641, %v5160, %v5162
        %v5179 = vsel %vm2641, %v5164, %v5166
        %v5180 = vsel %vm2641, %v5166, %v5168
        %v5181 = vsel %vm2641, %v5170, %v5172
        %v5182 = vsel %vm2641, %v5172, %v5174
        %v5191 = vadd.f32 %v5103, %v5175
        %v5192 = vadd.f32 %v5104, %v5176
        %v5193 = vadd.f32 %v5105, %v5177
        %v5194 = vadd.f32 %v5106, %v5178
        %v5195 = vadd.f32 %v5107, %v5179
        %v5196 = vadd.f32 %v5108, %v5180
        %v5197 = vadd.f32 %v5109, %v5181
        %v5198 = vadd.f32 %v5110, %v5182
        %5199 = vset.pattern.permute.xlu0 19
        %5200 = vperm.xlu0 %5199, %v3163
        %v5201 = vpop.permute.xlu0 %5200
        %5203 = vset.pattern.permute.xlu0 19
        %5204 = vperm.xlu0 %5203, %v3164
        %v5205 = vpop.permute.xlu0 %5204
        %5207 = vset.pattern.permute.xlu0 19
        %5208 = vperm.xlu0 %5207, %v3165
        %v5209 = vpop.permute.xlu0 %5208
        %5211 = vset.pattern.permute.xlu0 19
        %5212 = vperm.xlu0 %5211, %v3166
        %v5213 = vpop.permute.xlu0 %5212
        %v5215 = vmul.f32 %v4923, %v5201
        %v5216 = vmul.f32 %v4924, %v5201
        %v5217 = vmul.f32 %v4925, %v5201
        %v5218 = vmul.f32 %v4926, %v5205
        %v5219 = vmul.f32 %v4927, %v5205
        %v5220 = vmul.f32 %v4928, %v5205
        %v5221 = vmul.f32 %v4929, %v5209
        %v5222 = vmul.f32 %v4930, %v5209
        %v5223 = vmul.f32 %v4931, %v5209
        %v5224 = vmul.f32 %v4932, %v5213
        %v5225 = vmul.f32 %v4933, %v5213
        %v5226 = vmul.f32 %v4934, %v5213
        %5239 = vrot.lane.b32.xlu0 %v5215, 76
        %v5240 = vpop.permute.xlu0 %5239
        %5241 = vrot.lane.b32.xlu0 %v5216, 76
        %v5242 = vpop.permute.xlu0 %5241
        %5243 = vrot.lane.b32.xlu0 %v5217, 76
        %v5244 = vpop.permute.xlu0 %5243
        %5245 = vrot.lane.b32.xlu0 %v5218, 76
        %v5246 = vpop.permute.xlu0 %5245
        %5247 = vrot.lane.b32.xlu0 %v5219, 76
        %v5248 = vpop.permute.xlu0 %5247
        %5249 = vrot.lane.b32.xlu0 %v5220, 76
        %v5250 = vpop.permute.xlu0 %5249
        %5251 = vrot.lane.b32.xlu0 %v5221, 76
        %v5252 = vpop.permute.xlu0 %5251
        %5253 = vrot.lane.b32.xlu0 %v5222, 76
        %v5254 = vpop.permute.xlu0 %5253
        %5255 = vrot.lane.b32.xlu0 %v5223, 76
        %v5256 = vpop.permute.xlu0 %5255
        %5257 = vrot.lane.b32.xlu0 %v5224, 76
        %v5258 = vpop.permute.xlu0 %5257
        %5259 = vrot.lane.b32.xlu0 %v5225, 76
        %v5260 = vpop.permute.xlu0 %5259
        %5261 = vrot.lane.b32.xlu0 %v5226, 76
        %v5262 = vpop.permute.xlu0 %5261
        %v5263 = vsel %vm2730, %v5240, %v5242
        %v5264 = vsel %vm2730, %v5242, %v5244
        %v5265 = vsel %vm2730, %v5246, %v5248
        %v5266 = vsel %vm2730, %v5248, %v5250
        %v5267 = vsel %vm2730, %v5252, %v5254
        %v5268 = vsel %vm2730, %v5254, %v5256
        %v5269 = vsel %vm2730, %v5258, %v5260
        %v5270 = vsel %vm2730, %v5260, %v5262
        %v5279 = vadd.f32 %v5191, %v5263
        %v5280 = vadd.f32 %v5192, %v5264
        %v5281 = vadd.f32 %v5193, %v5265
        %v5282 = vadd.f32 %v5194, %v5266
        %v5283 = vadd.f32 %v5195, %v5267
        %v5284 = vadd.f32 %v5196, %v5268
        %v5285 = vadd.f32 %v5197, %v5269
        %v5286 = vadd.f32 %v5198, %v5270
        %5287 = vset.pattern.permute.xlu0 24
        %5288 = vperm.xlu0 %5287, %v3163
        %v5289 = vpop.permute.xlu0 %5288
        %5291 = vset.pattern.permute.xlu0 24
        %5292 = vperm.xlu0 %5291, %v3164
        %v5293 = vpop.permute.xlu0 %5292
        %5295 = vset.pattern.permute.xlu0 24
        %5296 = vperm.xlu0 %5295, %v3165
        %v5297 = vpop.permute.xlu0 %5296
        %5299 = vset.pattern.permute.xlu0 24
        %5300 = vperm.xlu0 %5299, %v3166
        %v5301 = vpop.permute.xlu0 %5300
        %v5303 = vmul.f32 %v4923, %v5289
        %v5304 = vmul.f32 %v4924, %v5289
        %v5305 = vmul.f32 %v4925, %v5289
        %v5306 = vmul.f32 %v4926, %v5293
        %v5307 = vmul.f32 %v4927, %v5293
        %v5308 = vmul.f32 %v4928, %v5293
        %v5309 = vmul.f32 %v4929, %v5297
        %v5310 = vmul.f32 %v4930, %v5297
        %v5311 = vmul.f32 %v4931, %v5297
        %v5312 = vmul.f32 %v4932, %v5301
        %v5313 = vmul.f32 %v4933, %v5301
        %v5314 = vmul.f32 %v4934, %v5301
        %5327 = vrot.lane.b32.xlu0 %v5303, 60
        %v5328 = vpop.permute.xlu0 %5327
        %5329 = vrot.lane.b32.xlu0 %v5304, 60
        %v5330 = vpop.permute.xlu0 %5329
        %5331 = vrot.lane.b32.xlu0 %v5305, 60
        %v5332 = vpop.permute.xlu0 %5331
        %5333 = vrot.lane.b32.xlu0 %v5306, 60
        %v5334 = vpop.permute.xlu0 %5333
        %5335 = vrot.lane.b32.xlu0 %v5307, 60
        %v5336 = vpop.permute.xlu0 %5335
        %5337 = vrot.lane.b32.xlu0 %v5308, 60
        %v5338 = vpop.permute.xlu0 %5337
        %5339 = vrot.lane.b32.xlu0 %v5309, 60
        %v5340 = vpop.permute.xlu0 %5339
        %5341 = vrot.lane.b32.xlu0 %v5310, 60
        %v5342 = vpop.permute.xlu0 %5341
        %5343 = vrot.lane.b32.xlu0 %v5311, 60
        %v5344 = vpop.permute.xlu0 %5343
        %5345 = vrot.lane.b32.xlu0 %v5312, 60
        %v5346 = vpop.permute.xlu0 %5345
        %5347 = vrot.lane.b32.xlu0 %v5313, 60
        %v5348 = vpop.permute.xlu0 %5347
        %5349 = vrot.lane.b32.xlu0 %v5314, 60
        %v5350 = vpop.permute.xlu0 %5349
        %v5351 = vsel %vm2819, %v5328, %v5330
        %v5352 = vsel %vm2819, %v5330, %v5332
        %v5353 = vsel %vm2819, %v5334, %v5336
        %v5354 = vsel %vm2819, %v5336, %v5338
        %v5355 = vsel %vm2819, %v5340, %v5342
        %v5356 = vsel %vm2819, %v5342, %v5344
        %v5357 = vsel %vm2819, %v5346, %v5348
        %v5358 = vsel %vm2819, %v5348, %v5350
        %v5367 = vadd.f32 %v5279, %v5351
        %v5368 = vadd.f32 %v5280, %v5352
        %v5369 = vadd.f32 %v5281, %v5353
        %v5370 = vadd.f32 %v5282, %v5354
        %v5371 = vadd.f32 %v5283, %v5355
        %v5372 = vadd.f32 %v5284, %v5356
        %v5373 = vadd.f32 %v5285, %v5357
        %v5374 = vadd.f32 %v5286, %v5358
        %s5375 = scalar_lea.vmem %s2, 32
        %v5376 = vld [vmem:[%s5375] sm:$0xff]
        %v5377 = vld [vmem:[%s5375 + $0x8] sm:$0xff]
        %v5378 = vld [vmem:[%s5375 + $0x10] sm:$0xff]
        %v5379 = vld [vmem:[%s5375 + $0x18] sm:$0xff]
        %5381 = vset.pattern.permute.xlu0 0
        %5382 = vperm.xlu0 %5381, %v5376
        %v5383 = vpop.permute.xlu0 %5382
        %5386 = vset.pattern.permute.xlu0 0
        %5387 = vperm.xlu0 %5386, %v5377
        %v5388 = vpop.permute.xlu0 %5387
        %5391 = vset.pattern.permute.xlu0 0
        %5392 = vperm.xlu0 %5391, %v5378
        %v5393 = vpop.permute.xlu0 %5392
        %5396 = vset.pattern.permute.xlu0 0
        %5397 = vperm.xlu0 %5396, %v5379
        %v5398 = vpop.permute.xlu0 %5397
        %v5400 = vadd.f32 %v5367, %v5383
        %v5401 = vadd.f32 %v5368, %v5383
        %v5402 = vadd.f32 %v5369, %v5388
        %v5403 = vadd.f32 %v5370, %v5388
        %v5404 = vadd.f32 %v5371, %v5393
        %v5405 = vadd.f32 %v5372, %v5393
        %v5406 = vadd.f32 %v5373, %v5398
        %v5407 = vadd.f32 %v5374, %v5398
        %v5408 = vadd.f32 %v5400, 3.0
        %v5409 = vadd.f32 %v5401, 3.0
        %v5410 = vadd.f32 %v5402, 3.0
        %v5411 = vadd.f32 %v5403, 3.0
        %v5412 = vadd.f32 %v5404, 3.0
        %v5413 = vadd.f32 %v5405, 3.0
        %v5414 = vadd.f32 %v5406, 3.0
        %v5415 = vadd.f32 %v5407, 3.0
        %v5416 = vmax.f32 %v5408, 0.0
        %v5417 = vmax.f32 %v5409, 0.0
        %v5418 = vmax.f32 %v5410, 0.0
        %v5419 = vmax.f32 %v5411, 0.0
        %v5420 = vmax.f32 %v5412, 0.0
        %v5421 = vmax.f32 %v5413, 0.0
        %v5422 = vmax.f32 %v5414, 0.0
        %v5423 = vmax.f32 %v5415, 0.0
        %v5424 = vmin.f32 %v5416, 6.0
        %v5425 = vmin.f32 %v5417, 6.0
        %v5426 = vmin.f32 %v5418, 6.0
        %v5427 = vmin.f32 %v5419, 6.0
        %v5428 = vmin.f32 %v5420, 6.0
        %v5429 = vmin.f32 %v5421, 6.0
        %v5430 = vmin.f32 %v5422, 6.0
        %v5431 = vmin.f32 %v5423, 6.0
        %v5432 = vmul.f32 %v5400, %v5424
        %v5433 = vmul.f32 %v5401, %v5425
        %v5434 = vmul.f32 %v5402, %v5426
        %v5435 = vmul.f32 %v5403, %v5427
        %v5436 = vmul.f32 %v5404, %v5428
        %v5437 = vmul.f32 %v5405, %v5429
        %v5438 = vmul.f32 %v5406, %v5430
        %v5439 = vmul.f32 %v5407, %v5431
        %v5440 = vmul.f32 %v5432, 0.16666667
        %v5441 = vmul.f32 %v5433, 0.16666667
        %v5442 = vmul.f32 %v5434, 0.16666667
        %v5443 = vmul.f32 %v5435, 0.16666667
        %v5444 = vmul.f32 %v5436, 0.16666667
        %v5445 = vmul.f32 %v5437, 0.16666667
        %v5446 = vmul.f32 %v5438, 0.16666667
        %v5447 = vmul.f32 %v5439, 0.16666667
        %s5448 = scalar_lea.vmem %s3, 32
        %v5449 = vld [vmem:[%s5448] sm:$0xff]
        %v5450 = vld [vmem:[%s5448 + $0x8] sm:$0xff]
        %v5451 = vld [vmem:[%s5448 + $0x10] sm:$0xff]
        %v5452 = vld [vmem:[%s5448 + $0x18] sm:$0xff]
        %s5453 = scalar_lea.vmem %s4, 32
        %v5454 = vld [vmem:[%s5453] sm:$0xff]
        %v5455 = vld [vmem:[%s5453 + $0x8] sm:$0xff]
        %v5456 = vld [vmem:[%s5453 + $0x10] sm:$0xff]
        %v5457 = vld [vmem:[%s5453 + $0x18] sm:$0xff]
        %5459 = vset.pattern.permute.xlu0 0
        %5460 = vperm.xlu0 %5459, %v5454
        %v5461 = vpop.permute.xlu0 %5460
        %5464 = vset.pattern.permute.xlu0 0
        %5465 = vperm.xlu0 %5464, %v5455
        %v5466 = vpop.permute.xlu0 %5465
        %5469 = vset.pattern.permute.xlu0 0
        %5470 = vperm.xlu0 %5469, %v5456
        %v5471 = vpop.permute.xlu0 %5470
        %5474 = vset.pattern.permute.xlu0 0
        %5475 = vperm.xlu0 %5474, %v5457
        %v5476 = vpop.permute.xlu0 %5475
        %v5479 = vsel %vm2944, %v5449, 0
        %v5482 = vsel %vm2944, %v5450, 0
        %v5485 = vsel %vm2944, %v5451, 0
        %v5488 = vsel %vm2944, %v5452, 0
        %5490 = vmatprep.subr.mxu0 %v5441
        %5491 = vmatpush1.msra.mxu0 %v5440
        %5492 = vmatprep.subr.mxu0 %v5443
        %5493 = vmatpush1.msra.mxu0 %v5442
        %5494 = vmatprep.subr.mxu0 %v5445
        %5495 = vmatpush1.msra.mxu0 %v5444
        %5496 = vmatprep.subr.mxu0 %v5447
        %5497 = vmatpush1.msra.mxu0 %v5446
        %5498 = vmatprep.subr.mxu0 0.0
        %5499 = vmatpush1.msra.mxu0 0.0
        %5500 = vmatprep.subr.mxu0 0.0
        %5501 = vmatpush1.msra.mxu0 0.0
        %5502 = vmatprep.subr.mxu0 0.0
        %5503 = vmatpush1.msra.mxu0 0.0
        %5504 = vmatprep.subr.mxu0 0.0
        %5505 = vmatpush1.msra.mxu0 0.0
        %5506 = vmatprep.subr.mxu0 0.0
        %5507 = vmatpush1.msra.mxu0 0.0
        %5508 = vmatprep.subr.mxu0 0.0
        %5509 = vmatpush1.msra.mxu0 0.0
        %5510 = vmatprep.subr.mxu0 0.0
        %5511 = vmatpush1.msra.mxu0 0.0
        %5512 = vmatprep.subr.mxu0 0.0
        %5513 = vmatpush1.msra.mxu0 0.0
        %5514 = vmatprep.subr.mxu0 0.0
        %5515 = vmatpush1.msra.mxu0 0.0
        %5516 = vmatprep.subr.mxu0 0.0
        %5517 = vmatpush1.msra.mxu0 0.0
        %5518 = vmatprep.subr.mxu0 0.0
        %5519 = vmatpush1.msra.mxu0 0.0
        %5520 = vmatprep.subr.mxu0 0.0
        %5521 = vmatpush1.msra.mxu0 0.0
        %5522 = vmatprep.subr.mxu0 0.0
        %5523 = vmatpush1.msra.mxu0 0.0
        %5524 = vmatprep.subr.mxu0 0.0
        %5525 = vmatpush1.msra.mxu0 0.0
        %5526 = vmatprep.subr.mxu0 0.0
        %5527 = vmatpush1.msra.mxu0 0.0
        %5528 = vmatprep.subr.mxu0 0.0
        %5529 = vmatpush1.msra.mxu0 0.0
        %5530 = vmatprep.subr.mxu0 0.0
        %5531 = vmatpush1.msra.mxu0 0.0
        %5532 = vmatprep.subr.mxu0 0.0
        %5533 = vmatpush1.msra.mxu0 0.0
        %5534 = vmatprep.subr.mxu0 0.0
        %5535 = vmatpush1.msra.mxu0 0.0
        %5536 = vmatprep.subr.mxu0 0.0
        %5537 = vmatpush1.msra.mxu0 0.0
        %5538 = vmatprep.subr.mxu0 0.0
        %5539 = vmatpush1.msra.mxu0 0.0
        %5540 = vmatprep.subr.mxu0 0.0
        %5541 = vmatpush1.msra.mxu0 0.0
        %5542 = vmatprep.subr.mxu0 0.0
        %5543 = vmatpush1.msra.mxu0 0.0
        %5544 = vmatprep.subr.mxu0 0.0
        %5545 = vmatpush1.msra.mxu0 0.0
        %5546 = vmatprep.subr.mxu0 0.0
        %5547 = vmatpush1.msra.mxu0 0.0
        %5548 = vmatprep.subr.mxu0 0.0
        %5549 = vmatpush1.msra.mxu0 0.0
        %5550 = vmatprep.subr.mxu0 0.0
        %5551 = vmatpush1.msra.mxu0 0.0
        %5552 = vmatprep.subr.mxu0 0.0
        %5553 = vmatpush1.msra.mxu0 0.0
        %5554 = vmatprep.mubr.f32.mxu0 0.0
        %5555 = vmatmul.mubr.f32.gmra.mrb[0].mxu0 %v5479
        %v5556 = vpop.f32.mrb[0].mxu0
        %v5557 = vadd.f32 %v5461, %v5556
        %v5558 = vpop.f32.mrb[0].mxu0
        %v5559 = vadd.f32 %v5461, %v5558
        %5560 = vmatprep.mubr.f32.mxu0 0.0
        %5561 = vmatmul.mubr.f32.gmra.mrb[0].mxu0 %v5482
        %v5562 = vpop.f32.mrb[0].mxu0
        %v5563 = vadd.f32 %v5466, %v5562
        %v5564 = vpop.f32.mrb[0].mxu0
        %v5565 = vadd.f32 %v5466, %v5564
        %5566 = vmatprep.mubr.f32.mxu0 0.0
        %5567 = vmatmul.mubr.f32.gmra.mrb[0].mxu0 %v5485
        %v5568 = vpop.f32.mrb[0].mxu0
        %v5569 = vadd.f32 %v5471, %v5568
        %v5570 = vpop.f32.mrb[0].mxu0
        %v5571 = vadd.f32 %v5471, %v5570
        %5572 = vmatprep.mubr.f32.mxu0 0.0
        %5573 = vmatmul.mubr.f32.gmra.mrb[0].mxu0 %v5488
        %v5574 = vpop.f32.mrb[0].mxu0
        %v5575 = vadd.f32 %v5476, %v5574
        %v5576 = vpop.f32.mrb[0].mxu0
        %v5577 = vadd.f32 %v5476, %v5576
        %5578 = vdwg.mxu0
        %v5579 = vadd.f32 %v5557, 3.0
        %v5580 = vadd.f32 %v5559, 3.0
        %v5581 = vadd.f32 %v5563, 3.0
        %v5582 = vadd.f32 %v5565, 3.0
        %v5583 = vadd.f32 %v5569, 3.0
        %v5584 = vadd.f32 %v5571, 3.0
        %v5585 = vadd.f32 %v5575, 3.0
        %v5586 = vadd.f32 %v5577, 3.0
        %v5587 = vmax.f32 %v5579, 0.0
        %v5588 = vmax.f32 %v5580, 0.0
        %v5589 = vmax.f32 %v5581, 0.0
        %v5590 = vmax.f32 %v5582, 0.0
        %v5591 = vmax.f32 %v5583, 0.0
        %v5592 = vmax.f32 %v5584, 0.0
        %v5593 = vmax.f32 %v5585, 0.0
        %v5594 = vmax.f32 %v5586, 0.0
        %v5595 = vmin.f32 %v5587, 6.0
        %v5596 = vmin.f32 %v5588, 6.0
        %v5597 = vmin.f32 %v5589, 6.0
        %v5598 = vmin.f32 %v5590, 6.0
        %v5599 = vmin.f32 %v5591, 6.0
        %v5600 = vmin.f32 %v5592, 6.0
        %v5601 = vmin.f32 %v5593, 6.0
        %v5602 = vmin.f32 %v5594, 6.0
        %v5603 = vmul.f32 %v5557, %v5595
        %v5604 = vmul.f32 %v5559, %v5596
        %v5605 = vmul.f32 %v5563, %v5597
        %v5606 = vmul.f32 %v5565, %v5598
        %v5607 = vmul.f32 %v5569, %v5599
        %v5608 = vmul.f32 %v5571, %v5600
        %v5609 = vmul.f32 %v5575, %v5601
        %v5610 = vmul.f32 %v5577, %v5602
        %v5611 = vmul.f32 %v5603, 0.16666667
        %v5612 = vmul.f32 %v5604, 0.16666667
        %v5613 = vmul.f32 %v5605, 0.16666667
        %v5614 = vmul.f32 %v5606, 0.16666667
        %v5615 = vmul.f32 %v5607, 0.16666667
        %v5616 = vmul.f32 %v5608, 0.16666667
        %v5617 = vmul.f32 %v5609, 0.16666667
        %v5618 = vmul.f32 %v5610, 0.16666667
        %s5619 = scalar_lea.vmem %s3, 64
        %v5620 = vld [vmem:[%s5619] sm:$0xff]
        %v5621 = vld [vmem:[%s5619 + $0x8] sm:$0xff]
        %v5622 = vld [vmem:[%s5619 + $0x10] sm:$0xff]
        %v5623 = vld [vmem:[%s5619 + $0x18] sm:$0xff]
        %s5624 = scalar_lea.vmem %s4, 64
        %v5625 = vld [vmem:[%s5624] sm:$0xff]
        %v5626 = vld [vmem:[%s5624 + $0x8] sm:$0xff]
        %v5627 = vld [vmem:[%s5624 + $0x10] sm:$0xff]
        %v5628 = vld [vmem:[%s5624 + $0x18] sm:$0xff]
        %5630 = vset.pattern.permute.xlu0 0
        %5631 = vperm.xlu0 %5630, %v5625
        %v5632 = vpop.permute.xlu0 %5631
        %5635 = vset.pattern.permute.xlu0 0
        %5636 = vperm.xlu0 %5635, %v5626
        %v5637 = vpop.permute.xlu0 %5636
        %5640 = vset.pattern.permute.xlu0 0
        %5641 = vperm.xlu0 %5640, %v5627
        %v5642 = vpop.permute.xlu0 %5641
        %5645 = vset.pattern.permute.xlu0 0
        %5646 = vperm.xlu0 %5645, %v5628
        %v5647 = vpop.permute.xlu0 %5646
        %v5650 = vsel %vm2944, %v5620, 0
        %v5653 = vsel %vm2944, %v5621, 0
        %v5656 = vsel %vm2944, %v5622, 0
        %v5659 = vsel %vm2944, %v5623, 0
        %5661 = vmatprep.subr.mxu0 %v5612
        %5662 = vmatpush1.msra.mxu0 %v5611
        %5663 = vmatprep.subr.mxu0 %v5614
        %5664 = vmatpush1.msra.mxu0 %v5613
        %5665 = vmatprep.subr.mxu0 %v5616
        %5666 = vmatpush1.msra.mxu0 %v5615
        %5667 = vmatprep.subr.mxu0 %v5618
        %5668 = vmatpush1.msra.mxu0 %v5617
        %5669 = vmatprep.subr.mxu0 0.0
        %5670 = vmatpush1.msra.mxu0 0.0
        %5671 = vmatprep.subr.mxu0 0.0
        %5672 = vmatpush1.msra.mxu0 0.0
        %5673 = vmatprep.subr.mxu0 0.0
        %5674 = vmatpush1.msra.mxu0 0.0
        %5675 = vmatprep.subr.mxu0 0.0
        %5676 = vmatpush1.msra.mxu0 0.0
        %5677 = vmatprep.subr.mxu0 0.0
        %5678 = vmatpush1.msra.mxu0 0.0
        %5679 = vmatprep.subr.mxu0 0.0
        %5680 = vmatpush1.msra.mxu0 0.0
        %5681 = vmatprep.subr.mxu0 0.0
        %5682 = vmatpush1.msra.mxu0 0.0
        %5683 = vmatprep.subr.mxu0 0.0
        %5684 = vmatpush1.msra.mxu0 0.0
        %5685 = vmatprep.subr.mxu0 0.0
        %5686 = vmatpush1.msra.mxu0 0.0
        %5687 = vmatprep.subr.mxu0 0.0
        %5688 = vmatpush1.msra.mxu0 0.0
        %5689 = vmatprep.subr.mxu0 0.0
        %5690 = vmatpush1.msra.mxu0 0.0
        %5691 = vmatprep.subr.mxu0 0.0
        %5692 = vmatpush1.msra.mxu0 0.0
        %5693 = vmatprep.subr.mxu0 0.0
        %5694 = vmatpush1.msra.mxu0 0.0
        %5695 = vmatprep.subr.mxu0 0.0
        %5696 = vmatpush1.msra.mxu0 0.0
        %5697 = vmatprep.subr.mxu0 0.0
        %5698 = vmatpush1.msra.mxu0 0.0
        %5699 = vmatprep.subr.mxu0 0.0
        %5700 = vmatpush1.msra.mxu0 0.0
        %5701 = vmatprep.subr.mxu0 0.0
        %5702 = vmatpush1.msra.mxu0 0.0
        %5703 = vmatprep.subr.mxu0 0.0
        %5704 = vmatpush1.msra.mxu0 0.0
        %5705 = vmatprep.subr.mxu0 0.0
        %5706 = vmatpush1.msra.mxu0 0.0
        %5707 = vmatprep.subr.mxu0 0.0
        %5708 = vmatpush1.msra.mxu0 0.0
        %5709 = vmatprep.subr.mxu0 0.0
        %5710 = vmatpush1.msra.mxu0 0.0
        %5711 = vmatprep.subr.mxu0 0.0
        %5712 = vmatpush1.msra.mxu0 0.0
        %5713 = vmatprep.subr.mxu0 0.0
        %5714 = vmatpush1.msra.mxu0 0.0
        %5715 = vmatprep.subr.mxu0 0.0
        %5716 = vmatpush1.msra.mxu0 0.0
        %5717 = vmatprep.subr.mxu0 0.0
        %5718 = vmatpush1.msra.mxu0 0.0
        %5719 = vmatprep.subr.mxu0 0.0
        %5720 = vmatpush1.msra.mxu0 0.0
        %5721 = vmatprep.subr.mxu0 0.0
        %5722 = vmatpush1.msra.mxu0 0.0
        %5723 = vmatprep.subr.mxu0 0.0
        %5724 = vmatpush1.msra.mxu0 0.0
        %5725 = vmatprep.mubr.f32.mxu0 0.0
        %5726 = vmatmul.mubr.f32.gmra.mrb[0].mxu0 %v5650
        %v5727 = vpop.f32.mrb[0].mxu0
        %v5728 = vadd.f32 %v5632, %v5727
        %v5729 = vpop.f32.mrb[0].mxu0
        %v5730 = vadd.f32 %v5632, %v5729
        %5731 = vmatprep.mubr.f32.mxu0 0.0
        %5732 = vmatmul.mubr.f32.gmra.mrb[0].mxu0 %v5653
        %v5733 = vpop.f32.mrb[0].mxu0
        %v5734 = vadd.f32 %v5637, %v5733
        %v5735 = vpop.f32.mrb[0].mxu0
        %v5736 = vadd.f32 %v5637, %v5735
        %5737 = vmatprep.mubr.f32.mxu0 0.0
        %5738 = vmatmul.mubr.f32.gmra.mrb[0].mxu0 %v5656
        %v5739 = vpop.f32.mrb[0].mxu0
        %v5740 = vadd.f32 %v5642, %v5739
        %v5741 = vpop.f32.mrb[0].mxu0
        %v5742 = vadd.f32 %v5642, %v5741
        %5743 = vmatprep.mubr.f32.mxu0 0.0
        %5744 = vmatmul.mubr.f32.gmra.mrb[0].mxu0 %v5659
        %v5745 = vpop.f32.mrb[0].mxu0
        %v5746 = vadd.f32 %v5647, %v5745
        %v5747 = vpop.f32.mrb[0].mxu0
        %v5748 = vadd.f32 %v5647, %v5747
        %5749 = vdwg.mxu0
        %v5750 = vadd.f32 %v5728, 3.0
        %v5751 = vadd.f32 %v5730, 3.0
        %v5752 = vadd.f32 %v5734, 3.0
        %v5753 = vadd.f32 %v5736, 3.0
        %v5754 = vadd.f32 %v5740, 3.0
        %v5755 = vadd.f32 %v5742, 3.0
        %v5756 = vadd.f32 %v5746, 3.0
        %v5757 = vadd.f32 %v5748, 3.0
        %v5758 = vmax.f32 %v5750, 0.0
        %v5759 = vmax.f32 %v5751, 0.0
        %v5760 = vmax.f32 %v5752, 0.0
        %v5761 = vmax.f32 %v5753, 0.0
        %v5762 = vmax.f32 %v5754, 0.0
        %v5763 = vmax.f32 %v5755, 0.0
        %v5764 = vmax.f32 %v5756, 0.0
        %v5765 = vmax.f32 %v5757, 0.0
        %v5766 = vmin.f32 %v5758, 6.0
        %v5767 = vmin.f32 %v5759, 6.0
        %v5768 = vmin.f32 %v5760, 6.0
        %v5769 = vmin.f32 %v5761, 6.0
        %v5770 = vmin.f32 %v5762, 6.0
        %v5771 = vmin.f32 %v5763, 6.0
        %v5772 = vmin.f32 %v5764, 6.0
        %v5773 = vmin.f32 %v5765, 6.0
        %v5774 = vmul.f32 %v5728, %v5766
        %v5775 = vmul.f32 %v5730, %v5767
        %v5776 = vmul.f32 %v5734, %v5768
        %v5777 = vmul.f32 %v5736, %v5769
        %v5778 = vmul.f32 %v5740, %v5770
        %v5779 = vmul.f32 %v5742, %v5771
        %v5780 = vmul.f32 %v5746, %v5772
        %v5781 = vmul.f32 %v5748, %v5773
        %v5782 = vmul.f32 %v5774, 0.16666667
        %v5783 = vmul.f32 %v5775, 0.16666667
        %v5784 = vmul.f32 %v5776, 0.16666667
        %v5785 = vmul.f32 %v5777, 0.16666667
        %v5786 = vmul.f32 %v5778, 0.16666667
        %v5787 = vmul.f32 %v5779, 0.16666667
        %v5788 = vmul.f32 %v5780, 0.16666667
        %v5789 = vmul.f32 %v5781, 0.16666667
        %5790 = vst [vmem:[#allocation2] sm:$0xff] 0.0
        %5791 = vst [vmem:[#allocation2 + $0x8] sm:$0xff] 0.0
        %5792 = vst.msk [vmem:[#allocation2 + $0x10] sm:$0xff] %vm411, 0.0
        %5793 = vst [vmem:[#allocation2 + $0x18] sm:$0xff] 0.0
        %5794 = vst [vmem:[#allocation2 + $0x20] sm:$0xff] 0.0
        %5795 = vst.msk [vmem:[#allocation2 + $0x28] sm:$0xff] %vm411, 0.0
        %5796 = vst [vmem:[#allocation2 + $0x30] sm:$0xff] 0.0
        %5797 = vst [vmem:[#allocation2 + $0x38] sm:$0xff] 0.0
        %5798 = vst.msk [vmem:[#allocation2 + $0x40] sm:$0xff] %vm411, 0.0
        %5799 = vst [vmem:[#allocation2 + $0x48] sm:$0xff] 0.0
        %5800 = vst [vmem:[#allocation2 + $0x50] sm:$0xff] 0.0
        %5801 = vst.msk [vmem:[#allocation2 + $0x58] sm:$0xff] %vm411, 0.0
        %5810 = vrot.lane.b32.xlu0 %v5611, 17
        %v5811 = vpop.permute.xlu0 %5810
        %5812 = vrot.lane.b32.xlu0 %v5612, 17
        %v5813 = vpop.permute.xlu0 %5812
        %5814 = vrot.lane.b32.xlu0 %v5613, 17
        %v5815 = vpop.permute.xlu0 %5814
        %5816 = vrot.lane.b32.xlu0 %v5614, 17
        %v5817 = vpop.permute.xlu0 %5816
        %5818 = vrot.lane.b32.xlu0 %v5615, 17
        %v5819 = vpop.permute.xlu0 %5818
        %5820 = vrot.lane.b32.xlu0 %v5616, 17
        %v5821 = vpop.permute.xlu0 %5820
        %5822 = vrot.lane.b32.xlu0 %v5617, 17
        %v5823 = vpop.permute.xlu0 %5822
        %5824 = vrot.lane.b32.xlu0 %v5618, 17
        %v5825 = vpop.permute.xlu0 %5824
        %vm5826 = vcmask 138240
        %v5827 = vsel %vm5826, %v5811, %v5813
        %v5828 = vsel %vm5826, %v5815, %v5817
        %v5829 = vsel %vm5826, %v5819, %v5821
        %v5830 = vsel %vm5826, %v5823, %v5825
        %vm5843 = vcmask 1047688
        %5844 = vst.msk [vmem:[#allocation2] sm:$0xff] %vm5843, %v5811
        %5845 = vst [vmem:[#allocation2 + $0x8] sm:$0xff] %v5827
        %5846 = vst.msk [vmem:[#allocation2 + $0x10] sm:$0xff] %vm5826, %v5813
        %5847 = vst.msk [vmem:[#allocation2 + $0x18] sm:$0xff] %vm5843, %v5815
        %5848 = vst [vmem:[#allocation2 + $0x20] sm:$0xff] %v5828
        %5849 = vst.msk [vmem:[#allocation2 + $0x28] sm:$0xff] %vm5826, %v5817
        %5850 = vst.msk [vmem:[#allocation2 + $0x30] sm:$0xff] %vm5843, %v5819
        %5851 = vst [vmem:[#allocation2 + $0x38] sm:$0xff] %v5829
        %5852 = vst.msk [vmem:[#allocation2 + $0x40] sm:$0xff] %vm5826, %v5821
        %5853 = vst.msk [vmem:[#allocation2 + $0x48] sm:$0xff] %vm5843, %v5823
        %5854 = vst [vmem:[#allocation2 + $0x50] sm:$0xff] %v5830
        %5855 = vst.msk [vmem:[#allocation2 + $0x58] sm:$0xff] %vm5826, %v5825
        %v5856 = vld [vmem:[#allocation2] sm:$0xff]
        %v5857 = vld [vmem:[#allocation2 + $0x8] sm:$0xff]
        %v5858 = vld [vmem:[#allocation2 + $0x10] sm:$0xff]
        %v5859 = vld [vmem:[#allocation2 + $0x18] sm:$0xff]
        %v5860 = vld [vmem:[#allocation2 + $0x20] sm:$0xff]
        %v5861 = vld [vmem:[#allocation2 + $0x28] sm:$0xff]
        %v5862 = vld [vmem:[#allocation2 + $0x30] sm:$0xff]
        %v5863 = vld [vmem:[#allocation2 + $0x38] sm:$0xff]
        %v5864 = vld [vmem:[#allocation2 + $0x40] sm:$0xff]
        %v5865 = vld [vmem:[#allocation2 + $0x48] sm:$0xff]
        %v5866 = vld [vmem:[#allocation2 + $0x50] sm:$0xff]
        %v5867 = vld [vmem:[#allocation2 + $0x58] sm:$0xff]
        %v5868 = vmul.f32 %v5856, %v911
        %v5869 = vmul.f32 %v5857, %v915
        %v5870 = vmul.f32 %v5858, %v919
        %v5871 = vmul.f32 %v5859, %v911
        %v5872 = vmul.f32 %v5860, %v915
        %v5873 = vmul.f32 %v5861, %v919
        %v5874 = vmul.f32 %v5862, %v911
        %v5875 = vmul.f32 %v5863, %v915
        %v5876 = vmul.f32 %v5864, %v919
        %v5877 = vmul.f32 %v5865, %v911
        %v5878 = vmul.f32 %v5866, %v915
        %v5879 = vmul.f32 %v5867, %v919
        %v5880 = vld [vmem:[%s5] sm:$0xff]
        %v5881 = vld [vmem:[%s5 + $0x8] sm:$0xff]
        %v5882 = vld [vmem:[%s5 + $0x10] sm:$0xff]
        %v5883 = vld [vmem:[%s5 + $0x18] sm:$0xff]
        %v5884 = vld [vmem:[%s5 + $0x20] sm:$0xff]
        %v5885 = vld [vmem:[%s5 + $0x28] sm:$0xff]
        %v5886 = vld [vmem:[%s5 + $0x30] sm:$0xff]
        %v5887 = vld [vmem:[%s5 + $0x38] sm:$0xff]
        %v5888 = vld [vmem:[%s5 + $0x40] sm:$0xff]
        %v5889 = vld [vmem:[%s5 + $0x48] sm:$0xff]
        %s5890 = scalar_lea.vmem %s5, 240
        %v5891 = vld [vmem:[%s5890] sm:$0xff]
        %v5892 = vld [vmem:[%s5890 + $0x8] sm:$0xff]
        %v5893 = vld [vmem:[%s5890 + $0x10] sm:$0xff]
        %v5894 = vld [vmem:[%s5890 + $0x18] sm:$0xff]
        %v5895 = vld [vmem:[%s5890 + $0x20] sm:$0xff]
        %v5896 = vld [vmem:[%s5890 + $0x28] sm:$0xff]
        %v5897 = vld [vmem:[%s5890 + $0x30] sm:$0xff]
        %v5898 = vld [vmem:[%s5890 + $0x38] sm:$0xff]
        %v5899 = vld [vmem:[%s5890 + $0x40] sm:$0xff]
        %v5900 = vld [vmem:[%s5890 + $0x48] sm:$0xff]
        %5913 = vrot.lane.b32.xlu0 %v5868, 112
        %v5914 = vpop.permute.xlu0 %5913
        %5915 = vrot.lane.b32.xlu0 %v5869, 112
        %v5916 = vpop.permute.xlu0 %5915
        %5917 = vrot.lane.b32.xlu0 %v5870, 112
        %v5918 = vpop.permute.xlu0 %5917
        %5919 = vrot.lane.b32.xlu0 %v5871, 112
        %v5920 = vpop.permute.xlu0 %5919
        %5921 = vrot.lane.b32.xlu0 %v5872, 112
        %v5922 = vpop.permute.xlu0 %5921
        %5923 = vrot.lane.b32.xlu0 %v5873, 112
        %v5924 = vpop.permute.xlu0 %5923
        %5925 = vrot.lane.b32.xlu0 %v5874, 112
        %v5926 = vpop.permute.xlu0 %5925
        %5927 = vrot.lane.b32.xlu0 %v5875, 112
        %v5928 = vpop.permute.xlu0 %5927
        %5929 = vrot.lane.b32.xlu0 %v5876, 112
        %v5930 = vpop.permute.xlu0 %5929
        %5931 = vrot.lane.b32.xlu0 %v5877, 112
        %v5932 = vpop.permute.xlu0 %5931
        %5933 = vrot.lane.b32.xlu0 %v5878, 112
        %v5934 = vpop.permute.xlu0 %5933
        %5935 = vrot.lane.b32.xlu0 %v5879, 112
        %v5936 = vpop.permute.xlu0 %5935
        %v5937 = vsel %vm616, %v5914, %v5916
        %v5938 = vsel %vm616, %v5916, %v5918
        %v5939 = vsel %vm616, %v5920, %v5922
        %v5940 = vsel %vm616, %v5922, %v5924
        %v5941 = vsel %vm616, %v5926, %v5928
        %v5942 = vsel %vm616, %v5928, %v5930
        %v5943 = vsel %vm616, %v5932, %v5934
        %v5944 = vsel %vm616, %v5934, %v5936
        %v5954 = vsel %vm2944, %v5891, 0
        %v5957 = vsel %vm2944, %v5892, 0
        %v5960 = vsel %vm2944, %v5893, 0
        %v5963 = vsel %vm2944, %v5894, 0
        %v5966 = vsel %vm2944, %v5895, 0
        %v5969 = vsel %vm2944, %v5896, 0
        %v5972 = vsel %vm2944, %v5897, 0
        %v5975 = vsel %vm2944, %v5898, 0
        %v5978 = vsel %vm2944, %v5899, 0
        %v5981 = vsel %vm2944, %v5900, 0
        %5983 = vmatprep.subr.mxu0 %v5938
        %5984 = vmatpush1.msra.mxu0 %v5937
        %5985 = vmatprep.subr.mxu0 %v5940
        %5986 = vmatpush1.msra.mxu0 %v5939
        %5987 = vmatprep.subr.mxu0 %v5942
        %5988 = vmatpush1.msra.mxu0 %v5941
        %5989 = vmatprep.subr.mxu0 %v5944
        %5990 = vmatpush1.msra.mxu0 %v5943
        %5991 = vmatprep.subr.mxu0 0.0
        %5992 = vmatpush1.msra.mxu0 0.0
        %5993 = vmatprep.subr.mxu0 0.0
        %5994 = vmatpush1.msra.mxu0 0.0
        %5995 = vmatprep.subr.mxu0 0.0
        %5996 = vmatpush1.msra.mxu0 0.0
        %5997 = vmatprep.subr.mxu0 0.0
        %5998 = vmatpush1.msra.mxu0 0.0
        %5999 = vmatprep.subr.mxu0 0.0
        %6000 = vmatpush1.msra.mxu0 0.0
        %6001 = vmatprep.subr.mxu0 0.0
        %6002 = vmatpush1.msra.mxu0 0.0
        %6003 = vmatprep.subr.mxu0 0.0
        %6004 = vmatpush1.msra.mxu0 0.0
        %6005 = vmatprep.subr.mxu0 0.0
        %6006 = vmatpush1.msra.mxu0 0.0
        %6007 = vmatprep.subr.mxu0 0.0
        %6008 = vmatpush1.msra.mxu0 0.0
        %6009 = vmatprep.subr.mxu0 0.0
        %6010 = vmatpush1.msra.mxu0 0.0
        %6011 = vmatprep.subr.mxu0 0.0
        %6012 = vmatpush1.msra.mxu0 0.0
        %6013 = vmatprep.subr.mxu0 0.0
        %6014 = vmatpush1.msra.mxu0 0.0
        %6015 = vmatprep.subr.mxu0 0.0
        %6016 = vmatpush1.msra.mxu0 0.0
        %6017 = vmatprep.subr.mxu0 0.0
        %6018 = vmatpush1.msra.mxu0 0.0
        %6019 = vmatprep.subr.mxu0 0.0
        %6020 = vmatpush1.msra.mxu0 0.0
        %6021 = vmatprep.subr.mxu0 0.0
        %6022 = vmatpush1.msra.mxu0 0.0
        %6023 = vmatprep.subr.mxu0 0.0
        %6024 = vmatpush1.msra.mxu0 0.0
        %6025 = vmatprep.subr.mxu0 0.0
        %6026 = vmatpush1.msra.mxu0 0.0
        %6027 = vmatprep.subr.mxu0 0.0
        %6028 = vmatpush1.msra.mxu0 0.0
        %6029 = vmatprep.subr.mxu0 0.0
        %6030 = vmatpush1.msra.mxu0 0.0
        %6031 = vmatprep.subr.mxu0 0.0
        %6032 = vmatpush1.msra.mxu0 0.0
        %6033 = vmatprep.subr.mxu0 0.0
        %6034 = vmatpush1.msra.mxu0 0.0
        %6035 = vmatprep.subr.mxu0 0.0
        %6036 = vmatpush1.msra.mxu0 0.0
        %6037 = vmatprep.subr.mxu0 0.0
        %6038 = vmatpush1.msra.mxu0 0.0
        %6039 = vmatprep.subr.mxu0 0.0
        %6040 = vmatpush1.msra.mxu0 0.0
        %6041 = vmatprep.subr.mxu0 0.0
        %6042 = vmatpush1.msra.mxu0 0.0
        %6043 = vmatprep.subr.mxu0 0.0
        %6044 = vmatpush1.msra.mxu0 0.0
        %6045 = vmatprep.subr.mxu0 0.0
        %6046 = vmatpush1.msra.mxu0 0.0
        %6047 = vmatprep.mubr.f32.mxu0 0.0
        %6048 = vmatmul.mubr.f32.gmra.mrb[0].mxu0 %v5954
        %v6049 = vpop.f32.mrb[0].mxu0
        %v6050 = vadd.f32 0.0, %v6049
        %v6051 = vpop.f32.mrb[0].mxu0
        %v6052 = vadd.f32 0.0, %v6051
        %6053 = vmatprep.mubr.f32.mxu0 0.0
        %6054 = vmatmul.mubr.f32.gmra.mrb[0].mxu0 %v5957
        %v6055 = vpop.f32.mrb[0].mxu0
        %v6056 = vadd.f32 0.0, %v6055
        %v6057 = vpop.f32.mrb[0].mxu0
        %v6058 = vadd.f32 0.0, %v6057
        %6059 = vmatprep.mubr.f32.mxu0 0.0
        %6060 = vmatmul.mubr.f32.gmra.mrb[0].mxu0 %v5960
        %v6061 = vpop.f32.mrb[0].mxu0
        %v6062 = vadd.f32 0.0, %v6061
        %v6063 = vpop.f32.mrb[0].mxu0
        %v6064 = vadd.f32 0.0, %v6063
        %6065 = vmatprep.mubr.f32.mxu0 0.0
        %6066 = vmatmul.mubr.f32.gmra.mrb[0].mxu0 %v5963
        %v6067 = vpop.f32.mrb[0].mxu0
        %v6068 = vadd.f32 0.0, %v6067
        %v6069 = vpop.f32.mrb[0].mxu0
        %v6070 = vadd.f32 0.0, %v6069
        %6071 = vmatprep.mubr.f32.mxu0 0.0
        %6072 = vmatmul.mubr.f32.gmra.mrb[0].mxu0 %v5966
        %v6073 = vpop.f32.mrb[0].mxu0
        %v6074 = vadd.f32 0.0, %v6073
        %v6075 = vpop.f32.mrb[0].mxu0
        %v6076 = vadd.f32 0.0, %v6075
        %6077 = vmatprep.mubr.f32.mxu0 0.0
        %6078 = vmatmul.mubr.f32.gmra.mrb[0].mxu0 %v5969
        %v6079 = vpop.f32.mrb[0].mxu0
        %v6080 = vadd.f32 0.0, %v6079
        %v6081 = vpop.f32.mrb[0].mxu0
        %v6082 = vadd.f32 0.0, %v6081
        %6083 = vmatprep.mubr.f32.mxu0 0.0
        %6084 = vmatmul.mubr.f32.gmra.mrb[0].mxu0 %v5972
        %v6085 = vpop.f32.mrb[0].mxu0
        %v6086 = vadd.f32 0.0, %v6085
        %v6087 = vpop.f32.mrb[0].mxu0
        %v6088 = vadd.f32 0.0, %v6087
        %6089 = vmatprep.mubr.f32.mxu0 0.0
        %6090 = vmatmul.mubr.f32.gmra.mrb[0].mxu0 %v5975
        %v6091 = vpop.f32.mrb[0].mxu0
        %v6092 = vadd.f32 0.0, %v6091
        %v6093 = vpop.f32.mrb[0].mxu0
        %v6094 = vadd.f32 0.0, %v6093
        %6095 = vmatprep.mubr.f32.mxu0 0.0
        %6096 = vmatmul.mubr.f32.gmra.mrb[0].mxu0 %v5978
        %v6097 = vpop.f32.mrb[0].mxu0
        %v6098 = vadd.f32 0.0, %v6097
        %v6099 = vpop.f32.mrb[0].mxu0
        %v6100 = vadd.f32 0.0, %v6099
        %6101 = vmatprep.mubr.f32.mxu0 0.0
        %6102 = vmatmul.mubr.f32.gmra.mrb[0].mxu0 %v5981
        %v6103 = vpop.f32.mrb[0].mxu0
        %v6104 = vadd.f32 0.0, %v6103
        %v6105 = vpop.f32.mrb[0].mxu0
        %v6106 = vadd.f32 0.0, %v6105
        %6107 = vdwg.mxu0
        %v6109 = vsel %vm2944, %v5880, 0
        %v6112 = vsel %vm2944, %v5881, 0
        %v6115 = vsel %vm2944, %v5882, 0
        %v6118 = vsel %vm2944, %v5883, 0
        %v6121 = vsel %vm2944, %v5884, 0
        %v6124 = vsel %vm2944, %v5885, 0
        %v6127 = vsel %vm2944, %v5886, 0
        %v6130 = vsel %vm2944, %v5887, 0
        %v6133 = vsel %vm2944, %v5888, 0
        %v6136 = vsel %vm2944, %v5889, 0
        %6138 = vmatprep.subr.mxu0 %v5869
        %6139 = vmatpush1.msra.mxu0 %v5868
        %6140 = vmatprep.subr.mxu0 %v5872
        %6141 = vmatpush1.msra.mxu0 %v5871
        %6142 = vmatprep.subr.mxu0 %v5875
        %6143 = vmatpush1.msra.mxu0 %v5874
        %6144 = vmatprep.subr.mxu0 %v5878
        %6145 = vmatpush1.msra.mxu0 %v5877
        %6146 = vmatprep.subr.mxu0 0.0
        %6147 = vmatpush1.msra.mxu0 0.0
        %6148 = vmatprep.subr.mxu0 0.0
        %6149 = vmatpush1.msra.mxu0 0.0
        %6150 = vmatprep.subr.mxu0 0.0
        %6151 = vmatpush1.msra.mxu0 0.0
        %6152 = vmatprep.subr.mxu0 0.0
        %6153 = vmatpush1.msra.mxu0 0.0
        %6154 = vmatprep.subr.mxu0 0.0
        %6155 = vmatpush1.msra.mxu0 0.0
        %6156 = vmatprep.subr.mxu0 0.0
        %6157 = vmatpush1.msra.mxu0 0.0
        %6158 = vmatprep.subr.mxu0 0.0
        %6159 = vmatpush1.msra.mxu0 0.0
        %6160 = vmatprep.subr.mxu0 0.0
        %6161 = vmatpush1.msra.mxu0 0.0
        %6162 = vmatprep.subr.mxu0 0.0
        %6163 = vmatpush1.msra.mxu0 0.0
        %6164 = vmatprep.subr.mxu0 0.0
        %6165 = vmatpush1.msra.mxu0 0.0
        %6166 = vmatprep.subr.mxu0 0.0
        %6167 = vmatpush1.msra.mxu0 0.0
        %6168 = vmatprep.subr.mxu0 0.0
        %6169 = vmatpush1.msra.mxu0 0.0
        %6170 = vmatprep.subr.mxu0 0.0
        %6171 = vmatpush1.msra.mxu0 0.0
        %6172 = vmatprep.subr.mxu0 0.0
        %6173 = vmatpush1.msra.mxu0 0.0
        %6174 = vmatprep.subr.mxu0 0.0
        %6175 = vmatpush1.msra.mxu0 0.0
        %6176 = vmatprep.subr.mxu0 0.0
        %6177 = vmatpush1.msra.mxu0 0.0
        %6178 = vmatprep.subr.mxu0 0.0
        %6179 = vmatpush1.msra.mxu0 0.0
        %6180 = vmatprep.subr.mxu0 0.0
        %6181 = vmatpush1.msra.mxu0 0.0
        %6182 = vmatprep.subr.mxu0 0.0
        %6183 = vmatpush1.msra.mxu0 0.0
        %6184 = vmatprep.subr.mxu0 0.0
        %6185 = vmatpush1.msra.mxu0 0.0
        %6186 = vmatprep.subr.mxu0 0.0
        %6187 = vmatpush1.msra.mxu0 0.0
        %6188 = vmatprep.subr.mxu0 0.0
        %6189 = vmatpush1.msra.mxu0 0.0
        %6190 = vmatprep.subr.mxu0 0.0
        %6191 = vmatpush1.msra.mxu0 0.0
        %6192 = vmatprep.subr.mxu0 0.0
        %6193 = vmatpush1.msra.mxu0 0.0
        %6194 = vmatprep.subr.mxu0 0.0
        %6195 = vmatpush1.msra.mxu0 0.0
        %6196 = vmatprep.subr.mxu0 0.0
        %6197 = vmatpush1.msra.mxu0 0.0
        %6198 = vmatprep.subr.mxu0 0.0
        %6199 = vmatpush1.msra.mxu0 0.0
        %6200 = vmatprep.subr.mxu0 0.0
        %6201 = vmatpush1.msra.mxu0 0.0
        %6202 = vmatprep.mubr.f32.mxu0 0.0
        %6203 = vmatmul.mubr.f32.gmra.mrb[0].mxu0 %v6109
        %v6204 = vpop.f32.mrb[0].mxu0
        %v6205 = vadd.f32 %v6050, %v6204
        %v6206 = vpop.f32.mrb[0].mxu0
        %v6207 = vadd.f32 %v6052, %v6206
        %6208 = vmatprep.mubr.f32.mxu0 0.0
        %6209 = vmatmul.mubr.f32.gmra.mrb[0].mxu0 %v6112
        %v6210 = vpop.f32.mrb[0].mxu0
        %v6211 = vadd.f32 %v6056, %v6210
        %v6212 = vpop.f32.mrb[0].mxu0
        %v6213 = vadd.f32 %v6058, %v6212
        %6214 = vmatprep.mubr.f32.mxu0 0.0
        %6215 = vmatmul.mubr.f32.gmra.mrb[0].mxu0 %v6115
        %v6216 = vpop.f32.mrb[0].mxu0
        %v6217 = vadd.f32 %v6062, %v6216
        %v6218 = vpop.f32.mrb[0].mxu0
        %v6219 = vadd.f32 %v6064, %v6218
        %6220 = vmatprep.mubr.f32.mxu0 0.0
        %6221 = vmatmul.mubr.f32.gmra.mrb[0].mxu0 %v6118
        %v6222 = vpop.f32.mrb[0].mxu0
        %v6223 = vadd.f32 %v6068, %v6222
        %v6224 = vpop.f32.mrb[0].mxu0
        %v6225 = vadd.f32 %v6070, %v6224
        %6226 = vmatprep.mubr.f32.mxu0 0.0
        %6227 = vmatmul.mubr.f32.gmra.mrb[0].mxu0 %v6121
        %v6228 = vpop.f32.mrb[0].mxu0
        %v6229 = vadd.f32 %v6074, %v6228
        %v6230 = vpop.f32.mrb[0].mxu0
        %v6231 = vadd.f32 %v6076, %v6230
        %6232 = vmatprep.mubr.f32.mxu0 0.0
        %6233 = vmatmul.mubr.f32.gmra.mrb[0].mxu0 %v6124
        %v6234 = vpop.f32.mrb[0].mxu0
        %v6235 = vadd.f32 %v6080, %v6234
        %v6236 = vpop.f32.mrb[0].mxu0
        %v6237 = vadd.f32 %v6082, %v6236
        %6238 = vmatprep.mubr.f32.mxu0 0.0
        %6239 = vmatmul.mubr.f32.gmra.mrb[0].mxu0 %v6127
        %v6240 = vpop.f32.mrb[0].mxu0
        %v6241 = vadd.f32 %v6086, %v6240
        %v6242 = vpop.f32.mrb[0].mxu0
        %v6243 = vadd.f32 %v6088, %v6242
        %6244 = vmatprep.mubr.f32.mxu0 0.0
        %6245 = vmatmul.mubr.f32.gmra.mrb[0].mxu0 %v6130
        %v6246 = vpop.f32.mrb[0].mxu0
        %v6247 = vadd.f32 %v6092, %v6246
        %v6248 = vpop.f32.mrb[0].mxu0
        %v6249 = vadd.f32 %v6094, %v6248
        %6250 = vmatprep.mubr.f32.mxu0 0.0
        %6251 = vmatmul.mubr.f32.gmra.mrb[0].mxu0 %v6133
        %v6252 = vpop.f32.mrb[0].mxu0
        %v6253 = vadd.f32 %v6098, %v6252
        %v6254 = vpop.f32.mrb[0].mxu0
        %v6255 = vadd.f32 %v6100, %v6254
        %6256 = vmatprep.mubr.f32.mxu0 0.0
        %6257 = vmatmul.mubr.f32.gmra.mrb[0].mxu0 %v6136
        %v6258 = vpop.f32.mrb[0].mxu0
        %v6259 = vadd.f32 %v6104, %v6258
        %v6260 = vpop.f32.mrb[0].mxu0
        %v6261 = vadd.f32 %v6106, %v6260
        %6262 = vdwg.mxu0
        %s6263 = scalar_lea.vmem %s5, 480
        %v6264 = vld [vmem:[%s6263] sm:$0xff]
        %v6265 = vld [vmem:[%s6263 + $0x8] sm:$0xff]
        %v6266 = vld [vmem:[%s6263 + $0x10] sm:$0xff]
        %v6267 = vld [vmem:[%s6263 + $0x18] sm:$0xff]
        %v6268 = vld [vmem:[%s6263 + $0x20] sm:$0xff]
        %v6269 = vld [vmem:[%s6263 + $0x28] sm:$0xff]
        %v6270 = vld [vmem:[%s6263 + $0x30] sm:$0xff]
        %v6271 = vld [vmem:[%s6263 + $0x38] sm:$0xff]
        %v6272 = vld [vmem:[%s6263 + $0x40] sm:$0xff]
        %v6273 = vld [vmem:[%s6263 + $0x48] sm:$0xff]
        %6274 = vrot.lane.b32.xlu0 %v5868, 96
        %v6275 = vpop.permute.xlu0 %6274
        %6276 = vrot.lane.b32.xlu0 %v5869, 96
        %v6277 = vpop.permute.xlu0 %6276
        %6278 = vrot.lane.b32.xlu0 %v5870, 96
        %v6279 = vpop.permute.xlu0 %6278
        %6280 = vrot.lane.b32.xlu0 %v5871, 96
        %v6281 = vpop.permute.xlu0 %6280
        %6282 = vrot.lane.b32.xlu0 %v5872, 96
        %v6283 = vpop.permute.xlu0 %6282
        %6284 = vrot.lane.b32.xlu0 %v5873, 96
        %v6285 = vpop.permute.xlu0 %6284
        %6286 = vrot.lane.b32.xlu0 %v5874, 96
        %v6287 = vpop.permute.xlu0 %6286
        %6288 = vrot.lane.b32.xlu0 %v5875, 96
        %v6289 = vpop.permute.xlu0 %6288
        %6290 = vrot.lane.b32.xlu0 %v5876, 96
        %v6291 = vpop.permute.xlu0 %6290
        %6292 = vrot.lane.b32.xlu0 %v5877, 96
        %v6293 = vpop.permute.xlu0 %6292
        %6294 = vrot.lane.b32.xlu0 %v5878, 96
        %v6295 = vpop.permute.xlu0 %6294
        %6296 = vrot.lane.b32.xlu0 %v5879, 96
        %v6297 = vpop.permute.xlu0 %6296
        %v6298 = vsel %vm705, %v6275, %v6277
        %v6299 = vsel %vm705, %v6277, %v6279
        %v6300 = vsel %vm705, %v6281, %v6283
        %v6301 = vsel %vm705, %v6283, %v6285
        %v6302 = vsel %vm705, %v6287, %v6289
        %v6303 = vsel %vm705, %v6289, %v6291
        %v6304 = vsel %vm705, %v6293, %v6295
        %v6305 = vsel %vm705, %v6295, %v6297
        %v6315 = vsel %vm2944, %v6264, 0
        %v6318 = vsel %vm2944, %v6265, 0
        %v6321 = vsel %vm2944, %v6266, 0
        %v6324 = vsel %vm2944, %v6267, 0
        %v6327 = vsel %vm2944, %v6268, 0
        %v6330 = vsel %vm2944, %v6269, 0
        %v6333 = vsel %vm2944, %v6270, 0
        %v6336 = vsel %vm2944, %v6271, 0
        %v6339 = vsel %vm2944, %v6272, 0
        %v6342 = vsel %vm2944, %v6273, 0
        %6344 = vmatprep.subr.mxu0 %v6299
        %6345 = vmatpush1.msra.mxu0 %v6298
        %6346 = vmatprep.subr.mxu0 %v6301
        %6347 = vmatpush1.msra.mxu0 %v6300
        %6348 = vmatprep.subr.mxu0 %v6303
        %6349 = vmatpush1.msra.mxu0 %v6302
        %6350 = vmatprep.subr.mxu0 %v6305
        %6351 = vmatpush1.msra.mxu0 %v6304
        %6352 = vmatprep.subr.mxu0 0.0
        %6353 = vmatpush1.msra.mxu0 0.0
        %6354 = vmatprep.subr.mxu0 0.0
        %6355 = vmatpush1.msra.mxu0 0.0
        %6356 = vmatprep.subr.mxu0 0.0
        %6357 = vmatpush1.msra.mxu0 0.0
        %6358 = vmatprep.subr.mxu0 0.0
        %6359 = vmatpush1.msra.mxu0 0.0
        %6360 = vmatprep.subr.mxu0 0.0
        %6361 = vmatpush1.msra.mxu0 0.0
        %6362 = vmatprep.subr.mxu0 0.0
        %6363 = vmatpush1.msra.mxu0 0.0
        %6364 = vmatprep.subr.mxu0 0.0
        %6365 = vmatpush1.msra.mxu0 0.0
        %6366 = vmatprep.subr.mxu0 0.0
        %6367 = vmatpush1.msra.mxu0 0.0
        %6368 = vmatprep.subr.mxu0 0.0
        %6369 = vmatpush1.msra.mxu0 0.0
        %6370 = vmatprep.subr.mxu0 0.0
        %6371 = vmatpush1.msra.mxu0 0.0
        %6372 = vmatprep.subr.mxu0 0.0
        %6373 = vmatpush1.msra.mxu0 0.0
        %6374 = vmatprep.subr.mxu0 0.0
        %6375 = vmatpush1.msra.mxu0 0.0
        %6376 = vmatprep.subr.mxu0 0.0
        %6377 = vmatpush1.msra.mxu0 0.0
        %6378 = vmatprep.subr.mxu0 0.0
        %6379 = vmatpush1.msra.mxu0 0.0
        %6380 = vmatprep.subr.mxu0 0.0
        %6381 = vmatpush1.msra.mxu0 0.0
        %6382 = vmatprep.subr.mxu0 0.0
        %6383 = vmatpush1.msra.mxu0 0.0
        %6384 = vmatprep.subr.mxu0 0.0
        %6385 = vmatpush1.msra.mxu0 0.0
        %6386 = vmatprep.subr.mxu0 0.0
        %6387 = vmatpush1.msra.mxu0 0.0
        %6388 = vmatprep.subr.mxu0 0.0
        %6389 = vmatpush1.msra.mxu0 0.0
        %6390 = vmatprep.subr.mxu0 0.0
        %6391 = vmatpush1.msra.mxu0 0.0
        %6392 = vmatprep.subr.mxu0 0.0
        %6393 = vmatpush1.msra.mxu0 0.0
        %6394 = vmatprep.subr.mxu0 0.0
        %6395 = vmatpush1.msra.mxu0 0.0
        %6396 = vmatprep.subr.mxu0 0.0
        %6397 = vmatpush1.msra.mxu0 0.0
        %6398 = vmatprep.subr.mxu0 0.0
        %6399 = vmatpush1.msra.mxu0 0.0
        %6400 = vmatprep.subr.mxu0 0.0
        %6401 = vmatpush1.msra.mxu0 0.0
        %6402 = vmatprep.subr.mxu0 0.0
        %6403 = vmatpush1.msra.mxu0 0.0
        %6404 = vmatprep.subr.mxu0 0.0
        %6405 = vmatpush1.msra.mxu0 0.0
        %6406 = vmatprep.subr.mxu0 0.0
        %6407 = vmatpush1.msra.mxu0 0.0
        %6408 = vmatprep.mubr.f32.mxu0 0.0
        %6409 = vmatmul.mubr.f32.gmra.mrb[0].mxu0 %v6315
        %v6410 = vpop.f32.mrb[0].mxu0
        %v6411 = vadd.f32 0.0, %v6410
        %v6412 = vpop.f32.mrb[0].mxu0
        %v6413 = vadd.f32 0.0, %v6412
        %6414 = vmatprep.mubr.f32.mxu0 0.0
        %6415 = vmatmul.mubr.f32.gmra.mrb[0].mxu0 %v6318
        %v6416 = vpop.f32.mrb[0].mxu0
        %v6417 = vadd.f32 0.0, %v6416
        %v6418 = vpop.f32.mrb[0].mxu0
        %v6419 = vadd.f32 0.0, %v6418
        %6420 = vmatprep.mubr.f32.mxu0 0.0
        %6421 = vmatmul.mubr.f32.gmra.mrb[0].mxu0 %v6321
        %v6422 = vpop.f32.mrb[0].mxu0
        %v6423 = vadd.f32 0.0, %v6422
        %v6424 = vpop.f32.mrb[0].mxu0
        %v6425 = vadd.f32 0.0, %v6424
        %6426 = vmatprep.mubr.f32.mxu0 0.0
        %6427 = vmatmul.mubr.f32.gmra.mrb[0].mxu0 %v6324
        %v6428 = vpop.f32.mrb[0].mxu0
        %v6429 = vadd.f32 0.0, %v6428
        %v6430 = vpop.f32.mrb[0].mxu0
        %v6431 = vadd.f32 0.0, %v6430
        %6432 = vmatprep.mubr.f32.mxu0 0.0
        %6433 = vmatmul.mubr.f32.gmra.mrb[0].mxu0 %v6327
        %v6434 = vpop.f32.mrb[0].mxu0
        %v6435 = vadd.f32 0.0, %v6434
        %v6436 = vpop.f32.mrb[0].mxu0
        %v6437 = vadd.f32 0.0, %v6436
        %6438 = vmatprep.mubr.f32.mxu0 0.0
        %6439 = vmatmul.mubr.f32.gmra.mrb[0].mxu0 %v6330
        %v6440 = vpop.f32.mrb[0].mxu0
        %v6441 = vadd.f32 0.0, %v6440
        %v6442 = vpop.f32.mrb[0].mxu0
        %v6443 = vadd.f32 0.0, %v6442
        %6444 = vmatprep.mubr.f32.mxu0 0.0
        %6445 = vmatmul.mubr.f32.gmra.mrb[0].mxu0 %v6333
        %v6446 = vpop.f32.mrb[0].mxu0
        %v6447 = vadd.f32 0.0, %v6446
        %v6448 = vpop.f32.mrb[0].mxu0
        %v6449 = vadd.f32 0.0, %v6448
        %6450 = vmatprep.mubr.f32.mxu0 0.0
        %6451 = vmatmul.mubr.f32.gmra.mrb[0].mxu0 %v6336
        %v6452 = vpop.f32.mrb[0].mxu0
        %v6453 = vadd.f32 0.0, %v6452
        %v6454 = vpop.f32.mrb[0].mxu0
        %v6455 = vadd.f32 0.0, %v6454
        %6456 = vmatprep.mubr.f32.mxu0 0.0
        %6457 = vmatmul.mubr.f32.gmra.mrb[0].mxu0 %v6339
        %v6458 = vpop.f32.mrb[0].mxu0
        %v6459 = vadd.f32 0.0, %v6458
        %v6460 = vpop.f32.mrb[0].mxu0
        %v6461 = vadd.f32 0.0, %v6460
        %6462 = vmatprep.mubr.f32.mxu0 0.0
        %6463 = vmatmul.mubr.f32.gmra.mrb[0].mxu0 %v6342
        %v6464 = vpop.f32.mrb[0].mxu0
        %v6465 = vadd.f32 0.0, %v6464
        %v6466 = vpop.f32.mrb[0].mxu0
        %v6467 = vadd.f32 0.0, %v6466
        %6468 = vdwg.mxu0
        %v6469 = vadd.f32 %v6205, %v6411
        %v6470 = vadd.f32 %v6207, %v6413
        %v6471 = vadd.f32 %v6211, %v6417
        %v6472 = vadd.f32 %v6213, %v6419
        %v6473 = vadd.f32 %v6217, %v6423
        %v6474 = vadd.f32 %v6219, %v6425
        %v6475 = vadd.f32 %v6223, %v6429
        %v6476 = vadd.f32 %v6225, %v6431
        %v6477 = vadd.f32 %v6229, %v6435
        %v6478 = vadd.f32 %v6231, %v6437
        %v6479 = vadd.f32 %v6235, %v6441
        %v6480 = vadd.f32 %v6237, %v6443
        %v6481 = vadd.f32 %v6241, %v6447
        %v6482 = vadd.f32 %v6243, %v6449
        %v6483 = vadd.f32 %v6247, %v6453
        %v6484 = vadd.f32 %v6249, %v6455
        %v6485 = vadd.f32 %v6253, %v6459
        %v6486 = vadd.f32 %v6255, %v6461
        %v6487 = vadd.f32 %v6259, %v6465
        %v6488 = vadd.f32 %v6261, %v6467
        %6489 = vrot.lane.b32.xlu0 %v1395, 1
        %v6490 = vpop.permute.xlu0 %6489
        %6491 = vrot.lane.b32.xlu0 %v1399, 1
        %v6492 = vpop.permute.xlu0 %6491
        %6493 = vrot.lane.b32.xlu0 %v1403, 1
        %v6494 = vpop.permute.xlu0 %6493
        %v6495 = vsel %vm929, %v6490, %v6492
        %v6496 = vsel %vm929, %v6492, %v6494
        %v6500 = vmul.f32 %v5856, %v6490
        %v6501 = vmul.f32 %v5857, %v6495
        %v6502 = vmul.f32 %v5858, %v6496
        %v6503 = vmul.f32 %v5859, %v6490
        %v6504 = vmul.f32 %v5860, %v6495
        %v6505 = vmul.f32 %v5861, %v6496
        %v6506 = vmul.f32 %v5862, %v6490
        %v6507 = vmul.f32 %v5863, %v6495
        %v6508 = vmul.f32 %v5864, %v6496
        %v6509 = vmul.f32 %v5865, %v6490
        %v6510 = vmul.f32 %v5866, %v6495
        %v6511 = vmul.f32 %v5867, %v6496
        %s6512 = scalar_lea.vmem %s5, 80
        %v6513 = vld [vmem:[%s6512] sm:$0xff]
        %v6514 = vld [vmem:[%s6512 + $0x8] sm:$0xff]
        %v6515 = vld [vmem:[%s6512 + $0x10] sm:$0xff]
        %v6516 = vld [vmem:[%s6512 + $0x18] sm:$0xff]
        %v6517 = vld [vmem:[%s6512 + $0x20] sm:$0xff]
        %v6518 = vld [vmem:[%s6512 + $0x28] sm:$0xff]
        %v6519 = vld [vmem:[%s6512 + $0x30] sm:$0xff]
        %v6520 = vld [vmem:[%s6512 + $0x38] sm:$0xff]
        %v6521 = vld [vmem:[%s6512 + $0x40] sm:$0xff]
        %v6522 = vld [vmem:[%s6512 + $0x48] sm:$0xff]
        %6535 = vrot.lane.b32.xlu0 %v6500, 127
        %v6536 = vpop.permute.xlu0 %6535
        %6537 = vrot.lane.b32.xlu0 %v6501, 127
        %v6538 = vpop.permute.xlu0 %6537
        %6539 = vrot.lane.b32.xlu0 %v6502, 127
        %v6540 = vpop.permute.xlu0 %6539
        %6541 = vrot.lane.b32.xlu0 %v6503, 127
        %v6542 = vpop.permute.xlu0 %6541
        %6543 = vrot.lane.b32.xlu0 %v6504, 127
        %v6544 = vpop.permute.xlu0 %6543
        %6545 = vrot.lane.b32.xlu0 %v6505, 127
        %v6546 = vpop.permute.xlu0 %6545
        %6547 = vrot.lane.b32.xlu0 %v6506, 127
        %v6548 = vpop.permute.xlu0 %6547
        %6549 = vrot.lane.b32.xlu0 %v6507, 127
        %v6550 = vpop.permute.xlu0 %6549
        %6551 = vrot.lane.b32.xlu0 %v6508, 127
        %v6552 = vpop.permute.xlu0 %6551
        %6553 = vrot.lane.b32.xlu0 %v6509, 127
        %v6554 = vpop.permute.xlu0 %6553
        %6555 = vrot.lane.b32.xlu0 %v6510, 127
        %v6556 = vpop.permute.xlu0 %6555
        %6557 = vrot.lane.b32.xlu0 %v6511, 127
        %v6558 = vpop.permute.xlu0 %6557
        %v6559 = vsel %vm1011, %v6536, %v6538
        %v6560 = vsel %vm1011, %v6538, %v6540
        %v6561 = vsel %vm1011, %v6542, %v6544
        %v6562 = vsel %vm1011, %v6544, %v6546
        %v6563 = vsel %vm1011, %v6548, %v6550
        %v6564 = vsel %vm1011, %v6550, %v6552
        %v6565 = vsel %vm1011, %v6554, %v6556
        %v6566 = vsel %vm1011, %v6556, %v6558
        %v6576 = vsel %vm2944, %v6513, 0
        %v6579 = vsel %vm2944, %v6514, 0
        %v6582 = vsel %vm2944, %v6515, 0
        %v6585 = vsel %vm2944, %v6516, 0
        %v6588 = vsel %vm2944, %v6517, 0
        %v6591 = vsel %vm2944, %v6518, 0
        %v6594 = vsel %vm2944, %v6519, 0
        %v6597 = vsel %vm2944, %v6520, 0
        %v6600 = vsel %vm2944, %v6521, 0
        %v6603 = vsel %vm2944, %v6522, 0
        %6605 = vmatprep.subr.mxu0 %v6560
        %6606 = vmatpush1.msra.mxu0 %v6559
        %6607 = vmatprep.subr.mxu0 %v6562
        %6608 = vmatpush1.msra.mxu0 %v6561
        %6609 = vmatprep.subr.mxu0 %v6564
        %6610 = vmatpush1.msra.mxu0 %v6563
        %6611 = vmatprep.subr.mxu0 %v6566
        %6612 = vmatpush1.msra.mxu0 %v6565
        %6613 = vmatprep.subr.mxu0 0.0
        %6614 = vmatpush1.msra.mxu0 0.0
        %6615 = vmatprep.subr.mxu0 0.0
        %6616 = vmatpush1.msra.mxu0 0.0
        %6617 = vmatprep.subr.mxu0 0.0
        %6618 = vmatpush1.msra.mxu0 0.0
        %6619 = vmatprep.subr.mxu0 0.0
        %6620 = vmatpush1.msra.mxu0 0.0
        %6621 = vmatprep.subr.mxu0 0.0
        %6622 = vmatpush1.msra.mxu0 0.0
        %6623 = vmatprep.subr.mxu0 0.0
        %6624 = vmatpush1.msra.mxu0 0.0
        %6625 = vmatprep.subr.mxu0 0.0
        %6626 = vmatpush1.msra.mxu0 0.0
        %6627 = vmatprep.subr.mxu0 0.0
        %6628 = vmatpush1.msra.mxu0 0.0
        %6629 = vmatprep.subr.mxu0 0.0
        %6630 = vmatpush1.msra.mxu0 0.0
        %6631 = vmatprep.subr.mxu0 0.0
        %6632 = vmatpush1.msra.mxu0 0.0
        %6633 = vmatprep.subr.mxu0 0.0
        %6634 = vmatpush1.msra.mxu0 0.0
        %6635 = vmatprep.subr.mxu0 0.0
        %6636 = vmatpush1.msra.mxu0 0.0
        %6637 = vmatprep.subr.mxu0 0.0
        %6638 = vmatpush1.msra.mxu0 0.0
        %6639 = vmatprep.subr.mxu0 0.0
        %6640 = vmatpush1.msra.mxu0 0.0
        %6641 = vmatprep.subr.mxu0 0.0
        %6642 = vmatpush1.msra.mxu0 0.0
        %6643 = vmatprep.subr.mxu0 0.0
        %6644 = vmatpush1.msra.mxu0 0.0
        %6645 = vmatprep.subr.mxu0 0.0
        %6646 = vmatpush1.msra.mxu0 0.0
        %6647 = vmatprep.subr.mxu0 0.0
        %6648 = vmatpush1.msra.mxu0 0.0
        %6649 = vmatprep.subr.mxu0 0.0
        %6650 = vmatpush1.msra.mxu0 0.0
        %6651 = vmatprep.subr.mxu0 0.0
        %6652 = vmatpush1.msra.mxu0 0.0
        %6653 = vmatprep.subr.mxu0 0.0
        %6654 = vmatpush1.msra.mxu0 0.0
        %6655 = vmatprep.subr.mxu0 0.0
        %6656 = vmatpush1.msra.mxu0 0.0
        %6657 = vmatprep.subr.mxu0 0.0
        %6658 = vmatpush1.msra.mxu0 0.0
        %6659 = vmatprep.subr.mxu0 0.0
        %6660 = vmatpush1.msra.mxu0 0.0
        %6661 = vmatprep.subr.mxu0 0.0
        %6662 = vmatpush1.msra.mxu0 0.0
        %6663 = vmatprep.subr.mxu0 0.0
        %6664 = vmatpush1.msra.mxu0 0.0
        %6665 = vmatprep.subr.mxu0 0.0
        %6666 = vmatpush1.msra.mxu0 0.0
        %6667 = vmatprep.subr.mxu0 0.0
        %6668 = vmatpush1.msra.mxu0 0.0
        %6669 = vmatprep.mubr.f32.mxu0 0.0
        %6670 = vmatmul.mubr.f32.gmra.mrb[0].mxu0 %v6576
        %v6671 = vpop.f32.mrb[0].mxu0
        %v6672 = vadd.f32 0.0, %v6671
        %v6673 = vpop.f32.mrb[0].mxu0
        %v6674 = vadd.f32 0.0, %v6673
        %6675 = vmatprep.mubr.f32.mxu0 0.0
        %6676 = vmatmul.mubr.f32.gmra.mrb[0].mxu0 %v6579
        %v6677 = vpop.f32.mrb[0].mxu0
        %v6678 = vadd.f32 0.0, %v6677
        %v6679 = vpop.f32.mrb[0].mxu0
        %v6680 = vadd.f32 0.0, %v6679
        %6681 = vmatprep.mubr.f32.mxu0 0.0
        %6682 = vmatmul.mubr.f32.gmra.mrb[0].mxu0 %v6582
        %v6683 = vpop.f32.mrb[0].mxu0
        %v6684 = vadd.f32 0.0, %v6683
        %v6685 = vpop.f32.mrb[0].mxu0
        %v6686 = vadd.f32 0.0, %v6685
        %6687 = vmatprep.mubr.f32.mxu0 0.0
        %6688 = vmatmul.mubr.f32.gmra.mrb[0].mxu0 %v6585
        %v6689 = vpop.f32.mrb[0].mxu0
        %v6690 = vadd.f32 0.0, %v6689
        %v6691 = vpop.f32.mrb[0].mxu0
        %v6692 = vadd.f32 0.0, %v6691
        %6693 = vmatprep.mubr.f32.mxu0 0.0
        %6694 = vmatmul.mubr.f32.gmra.mrb[0].mxu0 %v6588
        %v6695 = vpop.f32.mrb[0].mxu0
        %v6696 = vadd.f32 0.0, %v6695
        %v6697 = vpop.f32.mrb[0].mxu0
        %v6698 = vadd.f32 0.0, %v6697
        %6699 = vmatprep.mubr.f32.mxu0 0.0
        %6700 = vmatmul.mubr.f32.gmra.mrb[0].mxu0 %v6591
        %v6701 = vpop.f32.mrb[0].mxu0
        %v6702 = vadd.f32 0.0, %v6701
        %v6703 = vpop.f32.mrb[0].mxu0
        %v6704 = vadd.f32 0.0, %v6703
        %6705 = vmatprep.mubr.f32.mxu0 0.0
        %6706 = vmatmul.mubr.f32.gmra.mrb[0].mxu0 %v6594
        %v6707 = vpop.f32.mrb[0].mxu0
        %v6708 = vadd.f32 0.0, %v6707
        %v6709 = vpop.f32.mrb[0].mxu0
        %v6710 = vadd.f32 0.0, %v6709
        %6711 = vmatprep.mubr.f32.mxu0 0.0
        %6712 = vmatmul.mubr.f32.gmra.mrb[0].mxu0 %v6597
        %v6713 = vpop.f32.mrb[0].mxu0
        %v6714 = vadd.f32 0.0, %v6713
        %v6715 = vpop.f32.mrb[0].mxu0
        %v6716 = vadd.f32 0.0, %v6715
        %6717 = vmatprep.mubr.f32.mxu0 0.0
        %6718 = vmatmul.mubr.f32.gmra.mrb[0].mxu0 %v6600
        %v6719 = vpop.f32.mrb[0].mxu0
        %v6720 = vadd.f32 0.0, %v6719
        %v6721 = vpop.f32.mrb[0].mxu0
        %v6722 = vadd.f32 0.0, %v6721
        %6723 = vmatprep.mubr.f32.mxu0 0.0
        %6724 = vmatmul.mubr.f32.gmra.mrb[0].mxu0 %v6603
        %v6725 = vpop.f32.mrb[0].mxu0
        %v6726 = vadd.f32 0.0, %v6725
        %v6727 = vpop.f32.mrb[0].mxu0
        %v6728 = vadd.f32 0.0, %v6727
        %6729 = vdwg.mxu0
        %v6730 = vadd.f32 %v6469, %v6672
        %v6731 = vadd.f32 %v6470, %v6674
        %v6732 = vadd.f32 %v6471, %v6678
        %v6733 = vadd.f32 %v6472, %v6680
        %v6734 = vadd.f32 %v6473, %v6684
        %v6735 = vadd.f32 %v6474, %v6686
        %v6736 = vadd.f32 %v6475, %v6690
        %v6737 = vadd.f32 %v6476, %v6692
        %v6738 = vadd.f32 %v6477, %v6696
        %v6739 = vadd.f32 %v6478, %v6698
        %v6740 = vadd.f32 %v6479, %v6702
        %v6741 = vadd.f32 %v6480, %v6704
        %v6742 = vadd.f32 %v6481, %v6708
        %v6743 = vadd.f32 %v6482, %v6710
        %v6744 = vadd.f32 %v6483, %v6714
        %v6745 = vadd.f32 %v6484, %v6716
        %v6746 = vadd.f32 %v6485, %v6720
        %v6747 = vadd.f32 %v6486, %v6722
        %v6748 = vadd.f32 %v6487, %v6726
        %v6749 = vadd.f32 %v6488, %v6728
        %s6750 = scalar_lea.vmem %s5, 320
        %v6751 = vld [vmem:[%s6750] sm:$0xff]
        %v6752 = vld [vmem:[%s6750 + $0x8] sm:$0xff]
        %v6753 = vld [vmem:[%s6750 + $0x10] sm:$0xff]
        %v6754 = vld [vmem:[%s6750 + $0x18] sm:$0xff]
        %v6755 = vld [vmem:[%s6750 + $0x20] sm:$0xff]
        %v6756 = vld [vmem:[%s6750 + $0x28] sm:$0xff]
        %v6757 = vld [vmem:[%s6750 + $0x30] sm:$0xff]
        %v6758 = vld [vmem:[%s6750 + $0x38] sm:$0xff]
        %v6759 = vld [vmem:[%s6750 + $0x40] sm:$0xff]
        %v6760 = vld [vmem:[%s6750 + $0x48] sm:$0xff]
        %6761 = vrot.lane.b32.xlu0 %v6500, 111
        %v6762 = vpop.permute.xlu0 %6761
        %6763 = vrot.lane.b32.xlu0 %v6501, 111
        %v6764 = vpop.permute.xlu0 %6763
        %6765 = vrot.lane.b32.xlu0 %v6502, 111
        %v6766 = vpop.permute.xlu0 %6765
        %6767 = vrot.lane.b32.xlu0 %v6503, 111
        %v6768 = vpop.permute.xlu0 %6767
        %6769 = vrot.lane.b32.xlu0 %v6504, 111
        %v6770 = vpop.permute.xlu0 %6769
        %6771 = vrot.lane.b32.xlu0 %v6505, 111
        %v6772 = vpop.permute.xlu0 %6771
        %6773 = vrot.lane.b32.xlu0 %v6506, 111
        %v6774 = vpop.permute.xlu0 %6773
        %6775 = vrot.lane.b32.xlu0 %v6507, 111
        %v6776 = vpop.permute.xlu0 %6775
        %6777 = vrot.lane.b32.xlu0 %v6508, 111
        %v6778 = vpop.permute.xlu0 %6777
        %6779 = vrot.lane.b32.xlu0 %v6509, 111
        %v6780 = vpop.permute.xlu0 %6779
        %6781 = vrot.lane.b32.xlu0 %v6510, 111
        %v6782 = vpop.permute.xlu0 %6781
        %6783 = vrot.lane.b32.xlu0 %v6511, 111
        %v6784 = vpop.permute.xlu0 %6783
        %v6785 = vsel %vm1100, %v6762, %v6764
        %v6786 = vsel %vm1100, %v6764, %v6766
        %v6787 = vsel %vm1100, %v6768, %v6770
        %v6788 = vsel %vm1100, %v6770, %v6772
        %v6789 = vsel %vm1100, %v6774, %v6776
        %v6790 = vsel %vm1100, %v6776, %v6778
        %v6791 = vsel %vm1100, %v6780, %v6782
        %v6792 = vsel %vm1100, %v6782, %v6784
        %v6802 = vsel %vm2944, %v6751, 0
        %v6805 = vsel %vm2944, %v6752, 0
        %v6808 = vsel %vm2944, %v6753, 0
        %v6811 = vsel %vm2944, %v6754, 0
        %v6814 = vsel %vm2944, %v6755, 0
        %v6817 = vsel %vm2944, %v6756, 0
        %v6820 = vsel %vm2944, %v6757, 0
        %v6823 = vsel %vm2944, %v6758, 0
        %v6826 = vsel %vm2944, %v6759, 0
        %v6829 = vsel %vm2944, %v6760, 0
        %6831 = vmatprep.subr.mxu0 %v6786
        %6832 = vmatpush1.msra.mxu0 %v6785
        %6833 = vmatprep.subr.mxu0 %v6788
        %6834 = vmatpush1.msra.mxu0 %v6787
        %6835 = vmatprep.subr.mxu0 %v6790
        %6836 = vmatpush1.msra.mxu0 %v6789
        %6837 = vmatprep.subr.mxu0 %v6792
        %6838 = vmatpush1.msra.mxu0 %v6791
        %6839 = vmatprep.subr.mxu0 0.0
        %6840 = vmatpush1.msra.mxu0 0.0
        %6841 = vmatprep.subr.mxu0 0.0
        %6842 = vmatpush1.msra.mxu0 0.0
        %6843 = vmatprep.subr.mxu0 0.0
        %6844 = vmatpush1.msra.mxu0 0.0
        %6845 = vmatprep.subr.mxu0 0.0
        %6846 = vmatpush1.msra.mxu0 0.0
        %6847 = vmatprep.subr.mxu0 0.0
        %6848 = vmatpush1.msra.mxu0 0.0
        %6849 = vmatprep.subr.mxu0 0.0
        %6850 = vmatpush1.msra.mxu0 0.0
        %6851 = vmatprep.subr.mxu0 0.0
        %6852 = vmatpush1.msra.mxu0 0.0
        %6853 = vmatprep.subr.mxu0 0.0
        %6854 = vmatpush1.msra.mxu0 0.0
        %6855 = vmatprep.subr.mxu0 0.0
        %6856 = vmatpush1.msra.mxu0 0.0
        %6857 = vmatprep.subr.mxu0 0.0
        %6858 = vmatpush1.msra.mxu0 0.0
        %6859 = vmatprep.subr.mxu0 0.0
        %6860 = vmatpush1.msra.mxu0 0.0
        %6861 = vmatprep.subr.mxu0 0.0
        %6862 = vmatpush1.msra.mxu0 0.0
        %6863 = vmatprep.subr.mxu0 0.0
        %6864 = vmatpush1.msra.mxu0 0.0
        %6865 = vmatprep.subr.mxu0 0.0
        %6866 = vmatpush1.msra.mxu0 0.0
        %6867 = vmatprep.subr.mxu0 0.0
        %6868 = vmatpush1.msra.mxu0 0.0
        %6869 = vmatprep.subr.mxu0 0.0
        %6870 = vmatpush1.msra.mxu0 0.0
        %6871 = vmatprep.subr.mxu0 0.0
        %6872 = vmatpush1.msra.mxu0 0.0
        %6873 = vmatprep.subr.mxu0 0.0
        %6874 = vmatpush1.msra.mxu0 0.0
        %6875 = vmatprep.subr.mxu0 0.0
        %6876 = vmatpush1.msra.mxu0 0.0
        %6877 = vmatprep.subr.mxu0 0.0
        %6878 = vmatpush1.msra.mxu0 0.0
        %6879 = vmatprep.subr.mxu0 0.0
        %6880 = vmatpush1.msra.mxu0 0.0
        %6881 = vmatprep.subr.mxu0 0.0
        %6882 = vmatpush1.msra.mxu0 0.0
        %6883 = vmatprep.subr.mxu0 0.0
        %6884 = vmatpush1.msra.mxu0 0.0
        %6885 = vmatprep.subr.mxu0 0.0
        %6886 = vmatpush1.msra.mxu0 0.0
        %6887 = vmatprep.subr.mxu0 0.0
        %6888 = vmatpush1.msra.mxu0 0.0
        %6889 = vmatprep.subr.mxu0 0.0
        %6890 = vmatpush1.msra.mxu0 0.0
        %6891 = vmatprep.subr.mxu0 0.0
        %6892 = vmatpush1.msra.mxu0 0.0
        %6893 = vmatprep.subr.mxu0 0.0
        %6894 = vmatpush1.msra.mxu0 0.0
        %6895 = vmatprep.mubr.f32.mxu0 0.0
        %6896 = vmatmul.mubr.f32.gmra.mrb[0].mxu0 %v6802
        %v6897 = vpop.f32.mrb[0].mxu0
        %v6898 = vadd.f32 0.0, %v6897
        %v6899 = vpop.f32.mrb[0].mxu0
        %v6900 = vadd.f32 0.0, %v6899
        %6901 = vmatprep.mubr.f32.mxu0 0.0
        %6902 = vmatmul.mubr.f32.gmra.mrb[0].mxu0 %v6805
        %v6903 = vpop.f32.mrb[0].mxu0
        %v6904 = vadd.f32 0.0, %v6903
        %v6905 = vpop.f32.mrb[0].mxu0
        %v6906 = vadd.f32 0.0, %v6905
        %6907 = vmatprep.mubr.f32.mxu0 0.0
        %6908 = vmatmul.mubr.f32.gmra.mrb[0].mxu0 %v6808
        %v6909 = vpop.f32.mrb[0].mxu0
        %v6910 = vadd.f32 0.0, %v6909
        %v6911 = vpop.f32.mrb[0].mxu0
        %v6912 = vadd.f32 0.0, %v6911
        %6913 = vmatprep.mubr.f32.mxu0 0.0
        %6914 = vmatmul.mubr.f32.gmra.mrb[0].mxu0 %v6811
        %v6915 = vpop.f32.mrb[0].mxu0
        %v6916 = vadd.f32 0.0, %v6915
        %v6917 = vpop.f32.mrb[0].mxu0
        %v6918 = vadd.f32 0.0, %v6917
        %6919 = vmatprep.mubr.f32.mxu0 0.0
        %6920 = vmatmul.mubr.f32.gmra.mrb[0].mxu0 %v6814
        %v6921 = vpop.f32.mrb[0].mxu0
        %v6922 = vadd.f32 0.0, %v6921
        %v6923 = vpop.f32.mrb[0].mxu0
        %v6924 = vadd.f32 0.0, %v6923
        %6925 = vmatprep.mubr.f32.mxu0 0.0
        %6926 = vmatmul.mubr.f32.gmra.mrb[0].mxu0 %v6817
        %v6927 = vpop.f32.mrb[0].mxu0
        %v6928 = vadd.f32 0.0, %v6927
        %v6929 = vpop.f32.mrb[0].mxu0
        %v6930 = vadd.f32 0.0, %v6929
        %6931 = vmatprep.mubr.f32.mxu0 0.0
        %6932 = vmatmul.mubr.f32.gmra.mrb[0].mxu0 %v6820
        %v6933 = vpop.f32.mrb[0].mxu0
        %v6934 = vadd.f32 0.0, %v6933
        %v6935 = vpop.f32.mrb[0].mxu0
        %v6936 = vadd.f32 0.0, %v6935
        %6937 = vmatprep.mubr.f32.mxu0 0.0
        %6938 = vmatmul.mubr.f32.gmra.mrb[0].mxu0 %v6823
        %v6939 = vpop.f32.mrb[0].mxu0
        %v6940 = vadd.f32 0.0, %v6939
        %v6941 = vpop.f32.mrb[0].mxu0
        %v6942 = vadd.f32 0.0, %v6941
        %6943 = vmatprep.mubr.f32.mxu0 0.0
        %6944 = vmatmul.mubr.f32.gmra.mrb[0].mxu0 %v6826
        %v6945 = vpop.f32.mrb[0].mxu0
        %v6946 = vadd.f32 0.0, %v6945
        %v6947 = vpop.f32.mrb[0].mxu0
        %v6948 = vadd.f32 0.0, %v6947
        %6949 = vmatprep.mubr.f32.mxu0 0.0
        %6950 = vmatmul.mubr.f32.gmra.mrb[0].mxu0 %v6829
        %v6951 = vpop.f32.mrb[0].mxu0
        %v6952 = vadd.f32 0.0, %v6951
        %v6953 = vpop.f32.mrb[0].mxu0
        %v6954 = vadd.f32 0.0, %v6953
        %6955 = vdwg.mxu0
        %v6956 = vadd.f32 %v6730, %v6898
        %v6957 = vadd.f32 %v6731, %v6900
        %v6958 = vadd.f32 %v6732, %v6904
        %v6959 = vadd.f32 %v6733, %v6906
        %v6960 = vadd.f32 %v6734, %v6910
        %v6961 = vadd.f32 %v6735, %v6912
        %v6962 = vadd.f32 %v6736, %v6916
        %v6963 = vadd.f32 %v6737, %v6918
        %v6964 = vadd.f32 %v6738, %v6922
        %v6965 = vadd.f32 %v6739, %v6924
        %v6966 = vadd.f32 %v6740, %v6928
        %v6967 = vadd.f32 %v6741, %v6930
        %v6968 = vadd.f32 %v6742, %v6934
        %v6969 = vadd.f32 %v6743, %v6936
        %v6970 = vadd.f32 %v6744, %v6940
        %v6971 = vadd.f32 %v6745, %v6942
        %v6972 = vadd.f32 %v6746, %v6946
        %v6973 = vadd.f32 %v6747, %v6948
        %v6974 = vadd.f32 %v6748, %v6952
        %v6975 = vadd.f32 %v6749, %v6954
        %s6976 = scalar_lea.vmem %s5, 560
        %v6977 = vld [vmem:[%s6976] sm:$0xff]
        %v6978 = vld [vmem:[%s6976 + $0x8] sm:$0xff]
        %v6979 = vld [vmem:[%s6976 + $0x10] sm:$0xff]
        %v6980 = vld [vmem:[%s6976 + $0x18] sm:$0xff]
        %v6981 = vld [vmem:[%s6976 + $0x20] sm:$0xff]
        %v6982 = vld [vmem:[%s6976 + $0x28] sm:$0xff]
        %v6983 = vld [vmem:[%s6976 + $0x30] sm:$0xff]
        %v6984 = vld [vmem:[%s6976 + $0x38] sm:$0xff]
        %v6985 = vld [vmem:[%s6976 + $0x40] sm:$0xff]
        %v6986 = vld [vmem:[%s6976 + $0x48] sm:$0xff]
        %6987 = vrot.lane.b32.xlu0 %v6500, 95
        %v6988 = vpop.permute.xlu0 %6987
        %6989 = vrot.lane.b32.xlu0 %v6501, 95
        %v6990 = vpop.permute.xlu0 %6989
        %6991 = vrot.lane.b32.xlu0 %v6502, 95
        %v6992 = vpop.permute.xlu0 %6991
        %6993 = vrot.lane.b32.xlu0 %v6503, 95
        %v6994 = vpop.permute.xlu0 %6993
        %6995 = vrot.lane.b32.xlu0 %v6504, 95
        %v6996 = vpop.permute.xlu0 %6995
        %6997 = vrot.lane.b32.xlu0 %v6505, 95
        %v6998 = vpop.permute.xlu0 %6997
        %6999 = vrot.lane.b32.xlu0 %v6506, 95
        %v7000 = vpop.permute.xlu0 %6999
        %7001 = vrot.lane.b32.xlu0 %v6507, 95
        %v7002 = vpop.permute.xlu0 %7001
        %7003 = vrot.lane.b32.xlu0 %v6508, 95
        %v7004 = vpop.permute.xlu0 %7003
        %7005 = vrot.lane.b32.xlu0 %v6509, 95
        %v7006 = vpop.permute.xlu0 %7005
        %7007 = vrot.lane.b32.xlu0 %v6510, 95
        %v7008 = vpop.permute.xlu0 %7007
        %7009 = vrot.lane.b32.xlu0 %v6511, 95
        %v7010 = vpop.permute.xlu0 %7009
        %v7011 = vsel %vm1189, %v6988, %v6990
        %v7012 = vsel %vm1189, %v6990, %v6992
        %v7013 = vsel %vm1189, %v6994, %v6996
        %v7014 = vsel %vm1189, %v6996, %v6998
        %v7015 = vsel %vm1189, %v7000, %v7002
        %v7016 = vsel %vm1189, %v7002, %v7004
        %v7017 = vsel %vm1189, %v7006, %v7008
        %v7018 = vsel %vm1189, %v7008, %v7010
        %v7028 = vsel %vm2944, %v6977, 0
        %v7031 = vsel %vm2944, %v6978, 0
        %v7034 = vsel %vm2944, %v6979, 0
        %v7037 = vsel %vm2944, %v6980, 0
        %v7040 = vsel %vm2944, %v6981, 0
        %v7043 = vsel %vm2944, %v6982, 0
        %v7046 = vsel %vm2944, %v6983, 0
        %v7049 = vsel %vm2944, %v6984, 0
        %v7052 = vsel %vm2944, %v6985, 0
        %v7055 = vsel %vm2944, %v6986, 0
        %7057 = vmatprep.subr.mxu0 %v7012
        %7058 = vmatpush1.msra.mxu0 %v7011
        %7059 = vmatprep.subr.mxu0 %v7014
        %7060 = vmatpush1.msra.mxu0 %v7013
        %7061 = vmatprep.subr.mxu0 %v7016
        %7062 = vmatpush1.msra.mxu0 %v7015
        %7063 = vmatprep.subr.mxu0 %v7018
        %7064 = vmatpush1.msra.mxu0 %v7017
        %7065 = vmatprep.subr.mxu0 0.0
        %7066 = vmatpush1.msra.mxu0 0.0
        %7067 = vmatprep.subr.mxu0 0.0
        %7068 = vmatpush1.msra.mxu0 0.0
        %7069 = vmatprep.subr.mxu0 0.0
        %7070 = vmatpush1.msra.mxu0 0.0
        %7071 = vmatprep.subr.mxu0 0.0
        %7072 = vmatpush1.msra.mxu0 0.0
        %7073 = vmatprep.subr.mxu0 0.0
        %7074 = vmatpush1.msra.mxu0 0.0
        %7075 = vmatprep.subr.mxu0 0.0
        %7076 = vmatpush1.msra.mxu0 0.0
        %7077 = vmatprep.subr.mxu0 0.0
        %7078 = vmatpush1.msra.mxu0 0.0
        %7079 = vmatprep.subr.mxu0 0.0
        %7080 = vmatpush1.msra.mxu0 0.0
        %7081 = vmatprep.subr.mxu0 0.0
        %7082 = vmatpush1.msra.mxu0 0.0
        %7083 = vmatprep.subr.mxu0 0.0
        %7084 = vmatpush1.msra.mxu0 0.0
        %7085 = vmatprep.subr.mxu0 0.0
        %7086 = vmatpush1.msra.mxu0 0.0
        %7087 = vmatprep.subr.mxu0 0.0
        %7088 = vmatpush1.msra.mxu0 0.0
        %7089 = vmatprep.subr.mxu0 0.0
        %7090 = vmatpush1.msra.mxu0 0.0
        %7091 = vmatprep.subr.mxu0 0.0
        %7092 = vmatpush1.msra.mxu0 0.0
        %7093 = vmatprep.subr.mxu0 0.0
        %7094 = vmatpush1.msra.mxu0 0.0
        %7095 = vmatprep.subr.mxu0 0.0
        %7096 = vmatpush1.msra.mxu0 0.0
        %7097 = vmatprep.subr.mxu0 0.0
        %7098 = vmatpush1.msra.mxu0 0.0
        %7099 = vmatprep.subr.mxu0 0.0
        %7100 = vmatpush1.msra.mxu0 0.0
        %7101 = vmatprep.subr.mxu0 0.0
        %7102 = vmatpush1.msra.mxu0 0.0
        %7103 = vmatprep.subr.mxu0 0.0
        %7104 = vmatpush1.msra.mxu0 0.0
        %7105 = vmatprep.subr.mxu0 0.0
        %7106 = vmatpush1.msra.mxu0 0.0
        %7107 = vmatprep.subr.mxu0 0.0
        %7108 = vmatpush1.msra.mxu0 0.0
        %7109 = vmatprep.subr.mxu0 0.0
        %7110 = vmatpush1.msra.mxu0 0.0
        %7111 = vmatprep.subr.mxu0 0.0
        %7112 = vmatpush1.msra.mxu0 0.0
        %7113 = vmatprep.subr.mxu0 0.0
        %7114 = vmatpush1.msra.mxu0 0.0
        %7115 = vmatprep.subr.mxu0 0.0
        %7116 = vmatpush1.msra.mxu0 0.0
        %7117 = vmatprep.subr.mxu0 0.0
        %7118 = vmatpush1.msra.mxu0 0.0
        %7119 = vmatprep.subr.mxu0 0.0
        %7120 = vmatpush1.msra.mxu0 0.0
        %7121 = vmatprep.mubr.f32.mxu0 0.0
        %7122 = vmatmul.mubr.f32.gmra.mrb[0].mxu0 %v7028
        %v7123 = vpop.f32.mrb[0].mxu0
        %v7124 = vadd.f32 0.0, %v7123
        %v7125 = vpop.f32.mrb[0].mxu0
        %v7126 = vadd.f32 0.0, %v7125
        %7127 = vmatprep.mubr.f32.mxu0 0.0
        %7128 = vmatmul.mubr.f32.gmra.mrb[0].mxu0 %v7031
        %v7129 = vpop.f32.mrb[0].mxu0
        %v7130 = vadd.f32 0.0, %v7129
        %v7131 = vpop.f32.mrb[0].mxu0
        %v7132 = vadd.f32 0.0, %v7131
        %7133 = vmatprep.mubr.f32.mxu0 0.0
        %7134 = vmatmul.mubr.f32.gmra.mrb[0].mxu0 %v7034
        %v7135 = vpop.f32.mrb[0].mxu0
        %v7136 = vadd.f32 0.0, %v7135
        %v7137 = vpop.f32.mrb[0].mxu0
        %v7138 = vadd.f32 0.0, %v7137
        %7139 = vmatprep.mubr.f32.mxu0 0.0
        %7140 = vmatmul.mubr.f32.gmra.mrb[0].mxu0 %v7037
        %v7141 = vpop.f32.mrb[0].mxu0
        %v7142 = vadd.f32 0.0, %v7141
        %v7143 = vpop.f32.mrb[0].mxu0
        %v7144 = vadd.f32 0.0, %v7143
        %7145 = vmatprep.mubr.f32.mxu0 0.0
        %7146 = vmatmul.mubr.f32.gmra.mrb[0].mxu0 %v7040
        %v7147 = vpop.f32.mrb[0].mxu0
        %v7148 = vadd.f32 0.0, %v7147
        %v7149 = vpop.f32.mrb[0].mxu0
        %v7150 = vadd.f32 0.0, %v7149
        %7151 = vmatprep.mubr.f32.mxu0 0.0
        %7152 = vmatmul.mubr.f32.gmra.mrb[0].mxu0 %v7043
        %v7153 = vpop.f32.mrb[0].mxu0
        %v7154 = vadd.f32 0.0, %v7153
        %v7155 = vpop.f32.mrb[0].mxu0
        %v7156 = vadd.f32 0.0, %v7155
        %7157 = vmatprep.mubr.f32.mxu0 0.0
        %7158 = vmatmul.mubr.f32.gmra.mrb[0].mxu0 %v7046
        %v7159 = vpop.f32.mrb[0].mxu0
        %v7160 = vadd.f32 0.0, %v7159
        %v7161 = vpop.f32.mrb[0].mxu0
        %v7162 = vadd.f32 0.0, %v7161
        %7163 = vmatprep.mubr.f32.mxu0 0.0
        %7164 = vmatmul.mubr.f32.gmra.mrb[0].mxu0 %v7049
        %v7165 = vpop.f32.mrb[0].mxu0
        %v7166 = vadd.f32 0.0, %v7165
        %v7167 = vpop.f32.mrb[0].mxu0
        %v7168 = vadd.f32 0.0, %v7167
        %7169 = vmatprep.mubr.f32.mxu0 0.0
        %7170 = vmatmul.mubr.f32.gmra.mrb[0].mxu0 %v7052
        %v7171 = vpop.f32.mrb[0].mxu0
        %v7172 = vadd.f32 0.0, %v7171
        %v7173 = vpop.f32.mrb[0].mxu0
        %v7174 = vadd.f32 0.0, %v7173
        %7175 = vmatprep.mubr.f32.mxu0 0.0
        %7176 = vmatmul.mubr.f32.gmra.mrb[0].mxu0 %v7055
        %v7177 = vpop.f32.mrb[0].mxu0
        %v7178 = vadd.f32 0.0, %v7177
        %v7179 = vpop.f32.mrb[0].mxu0
        %v7180 = vadd.f32 0.0, %v7179
        %7181 = vdwg.mxu0
        %v7182 = vadd.f32 %v6956, %v7124
        %v7183 = vadd.f32 %v6957, %v7126
        %v7184 = vadd.f32 %v6958, %v7130
        %v7185 = vadd.f32 %v6959, %v7132
        %v7186 = vadd.f32 %v6960, %v7136
        %v7187 = vadd.f32 %v6961, %v7138
        %v7188 = vadd.f32 %v6962, %v7142
        %v7189 = vadd.f32 %v6963, %v7144
        %v7190 = vadd.f32 %v6964, %v7148
        %v7191 = vadd.f32 %v6965, %v7150
        %v7192 = vadd.f32 %v6966, %v7154
        %v7193 = vadd.f32 %v6967, %v7156
        %v7194 = vadd.f32 %v6968, %v7160
        %v7195 = vadd.f32 %v6969, %v7162
        %v7196 = vadd.f32 %v6970, %v7166
        %v7197 = vadd.f32 %v6971, %v7168
        %v7198 = vadd.f32 %v6972, %v7172
        %v7199 = vadd.f32 %v6973, %v7174
        %v7200 = vadd.f32 %v6974, %v7178
        %v7201 = vadd.f32 %v6975, %v7180
        %7202 = vrot.lane.b32.xlu0 %v1879, 2
        %v7203 = vpop.permute.xlu0 %7202
        %7204 = vrot.lane.b32.xlu0 %v1883, 2
        %v7205 = vpop.permute.xlu0 %7204
        %7206 = vrot.lane.b32.xlu0 %v1887, 2
        %v7207 = vpop.permute.xlu0 %7206
        %v7208 = vsel %vm1413, %v7203, %v7205
        %v7209 = vsel %vm1413, %v7205, %v7207
        %v7213 = vmul.f32 %v5856, %v7203
        %v7214 = vmul.f32 %v5857, %v7208
        %v7215 = vmul.f32 %v5858, %v7209
        %v7216 = vmul.f32 %v5859, %v7203
        %v7217 = vmul.f32 %v5860, %v7208
        %v7218 = vmul.f32 %v5861, %v7209
        %v7219 = vmul.f32 %v5862, %v7203
        %v7220 = vmul.f32 %v5863, %v7208
        %v7221 = vmul.f32 %v5864, %v7209
        %v7222 = vmul.f32 %v5865, %v7203
        %v7223 = vmul.f32 %v5866, %v7208
        %v7224 = vmul.f32 %v5867, %v7209
        %s7225 = scalar_lea.vmem %s5, 160
        %v7226 = vld [vmem:[%s7225] sm:$0xff]
        %v7227 = vld [vmem:[%s7225 + $0x8] sm:$0xff]
        %v7228 = vld [vmem:[%s7225 + $0x10] sm:$0xff]
        %v7229 = vld [vmem:[%s7225 + $0x18] sm:$0xff]
        %v7230 = vld [vmem:[%s7225 + $0x20] sm:$0xff]
        %v7231 = vld [vmem:[%s7225 + $0x28] sm:$0xff]
        %v7232 = vld [vmem:[%s7225 + $0x30] sm:$0xff]
        %v7233 = vld [vmem:[%s7225 + $0x38] sm:$0xff]
        %v7234 = vld [vmem:[%s7225 + $0x40] sm:$0xff]
        %v7235 = vld [vmem:[%s7225 + $0x48] sm:$0xff]
        %7248 = vrot.lane.b32.xlu0 %v7213, 126
        %v7249 = vpop.permute.xlu0 %7248
        %7250 = vrot.lane.b32.xlu0 %v7214, 126
        %v7251 = vpop.permute.xlu0 %7250
        %7252 = vrot.lane.b32.xlu0 %v7215, 126
        %v7253 = vpop.permute.xlu0 %7252
        %7254 = vrot.lane.b32.xlu0 %v7216, 126
        %v7255 = vpop.permute.xlu0 %7254
        %7256 = vrot.lane.b32.xlu0 %v7217, 126
        %v7257 = vpop.permute.xlu0 %7256
        %7258 = vrot.lane.b32.xlu0 %v7218, 126
        %v7259 = vpop.permute.xlu0 %7258
        %7260 = vrot.lane.b32.xlu0 %v7219, 126
        %v7261 = vpop.permute.xlu0 %7260
        %7262 = vrot.lane.b32.xlu0 %v7220, 126
        %v7263 = vpop.permute.xlu0 %7262
        %7264 = vrot.lane.b32.xlu0 %v7221, 126
        %v7265 = vpop.permute.xlu0 %7264
        %7266 = vrot.lane.b32.xlu0 %v7222, 126
        %v7267 = vpop.permute.xlu0 %7266
        %7268 = vrot.lane.b32.xlu0 %v7223, 126
        %v7269 = vpop.permute.xlu0 %7268
        %7270 = vrot.lane.b32.xlu0 %v7224, 126
        %v7271 = vpop.permute.xlu0 %7270
        %v7272 = vsel %vm1495, %v7249, %v7251
        %v7273 = vsel %vm1495, %v7251, %v7253
        %v7274 = vsel %vm1495, %v7255, %v7257
        %v7275 = vsel %vm1495, %v7257, %v7259
        %v7276 = vsel %vm1495, %v7261, %v7263
        %v7277 = vsel %vm1495, %v7263, %v7265
        %v7278 = vsel %vm1495, %v7267, %v7269
        %v7279 = vsel %vm1495, %v7269, %v7271
        %v7289 = vsel %vm2944, %v7226, 0
        %v7292 = vsel %vm2944, %v7227, 0
        %v7295 = vsel %vm2944, %v7228, 0
        %v7298 = vsel %vm2944, %v7229, 0
        %v7301 = vsel %vm2944, %v7230, 0
        %v7304 = vsel %vm2944, %v7231, 0
        %v7307 = vsel %vm2944, %v7232, 0
        %v7310 = vsel %vm2944, %v7233, 0
        %v7313 = vsel %vm2944, %v7234, 0
        %v7316 = vsel %vm2944, %v7235, 0
        %7318 = vmatprep.subr.mxu0 %v7273
        %7319 = vmatpush1.msra.mxu0 %v7272
        %7320 = vmatprep.subr.mxu0 %v7275
        %7321 = vmatpush1.msra.mxu0 %v7274
        %7322 = vmatprep.subr.mxu0 %v7277
        %7323 = vmatpush1.msra.mxu0 %v7276
        %7324 = vmatprep.subr.mxu0 %v7279
        %7325 = vmatpush1.msra.mxu0 %v7278
        %7326 = vmatprep.subr.mxu0 0.0
        %7327 = vmatpush1.msra.mxu0 0.0
        %7328 = vmatprep.subr.mxu0 0.0
        %7329 = vmatpush1.msra.mxu0 0.0
        %7330 = vmatprep.subr.mxu0 0.0
        %7331 = vmatpush1.msra.mxu0 0.0
        %7332 = vmatprep.subr.mxu0 0.0
        %7333 = vmatpush1.msra.mxu0 0.0
        %7334 = vmatprep.subr.mxu0 0.0
        %7335 = vmatpush1.msra.mxu0 0.0
        %7336 = vmatprep.subr.mxu0 0.0
        %7337 = vmatpush1.msra.mxu0 0.0
        %7338 = vmatprep.subr.mxu0 0.0
        %7339 = vmatpush1.msra.mxu0 0.0
        %7340 = vmatprep.subr.mxu0 0.0
        %7341 = vmatpush1.msra.mxu0 0.0
        %7342 = vmatprep.subr.mxu0 0.0
        %7343 = vmatpush1.msra.mxu0 0.0
        %7344 = vmatprep.subr.mxu0 0.0
        %7345 = vmatpush1.msra.mxu0 0.0
        %7346 = vmatprep.subr.mxu0 0.0
        %7347 = vmatpush1.msra.mxu0 0.0
        %7348 = vmatprep.subr.mxu0 0.0
        %7349 = vmatpush1.msra.mxu0 0.0
        %7350 = vmatprep.subr.mxu0 0.0
        %7351 = vmatpush1.msra.mxu0 0.0
        %7352 = vmatprep.subr.mxu0 0.0
        %7353 = vmatpush1.msra.mxu0 0.0
        %7354 = vmatprep.subr.mxu0 0.0
        %7355 = vmatpush1.msra.mxu0 0.0
        %7356 = vmatprep.subr.mxu0 0.0
        %7357 = vmatpush1.msra.mxu0 0.0
        %7358 = vmatprep.subr.mxu0 0.0
        %7359 = vmatpush1.msra.mxu0 0.0
        %7360 = vmatprep.subr.mxu0 0.0
        %7361 = vmatpush1.msra.mxu0 0.0
        %7362 = vmatprep.subr.mxu0 0.0
        %7363 = vmatpush1.msra.mxu0 0.0
        %7364 = vmatprep.subr.mxu0 0.0
        %7365 = vmatpush1.msra.mxu0 0.0
        %7366 = vmatprep.subr.mxu0 0.0
        %7367 = vmatpush1.msra.mxu0 0.0
        %7368 = vmatprep.subr.mxu0 0.0
        %7369 = vmatpush1.msra.mxu0 0.0
        %7370 = vmatprep.subr.mxu0 0.0
        %7371 = vmatpush1.msra.mxu0 0.0
        %7372 = vmatprep.subr.mxu0 0.0
        %7373 = vmatpush1.msra.mxu0 0.0
        %7374 = vmatprep.subr.mxu0 0.0
        %7375 = vmatpush1.msra.mxu0 0.0
        %7376 = vmatprep.subr.mxu0 0.0
        %7377 = vmatpush1.msra.mxu0 0.0
        %7378 = vmatprep.subr.mxu0 0.0
        %7379 = vmatpush1.msra.mxu0 0.0
        %7380 = vmatprep.subr.mxu0 0.0
        %7381 = vmatpush1.msra.mxu0 0.0
        %7382 = vmatprep.mubr.f32.mxu0 0.0
        %7383 = vmatmul.mubr.f32.gmra.mrb[0].mxu0 %v7289
        %v7384 = vpop.f32.mrb[0].mxu0
        %v7385 = vadd.f32 0.0, %v7384
        %v7386 = vpop.f32.mrb[0].mxu0
        %v7387 = vadd.f32 0.0, %v7386
        %7388 = vmatprep.mubr.f32.mxu0 0.0
        %7389 = vmatmul.mubr.f32.gmra.mrb[0].mxu0 %v7292
        %v7390 = vpop.f32.mrb[0].mxu0
        %v7391 = vadd.f32 0.0, %v7390
        %v7392 = vpop.f32.mrb[0].mxu0
        %v7393 = vadd.f32 0.0, %v7392
        %7394 = vmatprep.mubr.f32.mxu0 0.0
        %7395 = vmatmul.mubr.f32.gmra.mrb[0].mxu0 %v7295
        %v7396 = vpop.f32.mrb[0].mxu0
        %v7397 = vadd.f32 0.0, %v7396
        %v7398 = vpop.f32.mrb[0].mxu0
        %v7399 = vadd.f32 0.0, %v7398
        %7400 = vmatprep.mubr.f32.mxu0 0.0
        %7401 = vmatmul.mubr.f32.gmra.mrb[0].mxu0 %v7298
        %v7402 = vpop.f32.mrb[0].mxu0
        %v7403 = vadd.f32 0.0, %v7402
        %v7404 = vpop.f32.mrb[0].mxu0
        %v7405 = vadd.f32 0.0, %v7404
        %7406 = vmatprep.mubr.f32.mxu0 0.0
        %7407 = vmatmul.mubr.f32.gmra.mrb[0].mxu0 %v7301
        %v7408 = vpop.f32.mrb[0].mxu0
        %v7409 = vadd.f32 0.0, %v7408
        %v7410 = vpop.f32.mrb[0].mxu0
        %v7411 = vadd.f32 0.0, %v7410
        %7412 = vmatprep.mubr.f32.mxu0 0.0
        %7413 = vmatmul.mubr.f32.gmra.mrb[0].mxu0 %v7304
        %v7414 = vpop.f32.mrb[0].mxu0
        %v7415 = vadd.f32 0.0, %v7414
        %v7416 = vpop.f32.mrb[0].mxu0
        %v7417 = vadd.f32 0.0, %v7416
        %7418 = vmatprep.mubr.f32.mxu0 0.0
        %7419 = vmatmul.mubr.f32.gmra.mrb[0].mxu0 %v7307
        %v7420 = vpop.f32.mrb[0].mxu0
        %v7421 = vadd.f32 0.0, %v7420
        %v7422 = vpop.f32.mrb[0].mxu0
        %v7423 = vadd.f32 0.0, %v7422
        %7424 = vmatprep.mubr.f32.mxu0 0.0
        %7425 = vmatmul.mubr.f32.gmra.mrb[0].mxu0 %v7310
        %v7426 = vpop.f32.mrb[0].mxu0
        %v7427 = vadd.f32 0.0, %v7426
        %v7428 = vpop.f32.mrb[0].mxu0
        %v7429 = vadd.f32 0.0, %v7428
        %7430 = vmatprep.mubr.f32.mxu0 0.0
        %7431 = vmatmul.mubr.f32.gmra.mrb[0].mxu0 %v7313
        %v7432 = vpop.f32.mrb[0].mxu0
        %v7433 = vadd.f32 0.0, %v7432
        %v7434 = vpop.f32.mrb[0].mxu0
        %v7435 = vadd.f32 0.0, %v7434
        %7436 = vmatprep.mubr.f32.mxu0 0.0
        %7437 = vmatmul.mubr.f32.gmra.mrb[0].mxu0 %v7316
        %v7438 = vpop.f32.mrb[0].mxu0
        %v7439 = vadd.f32 0.0, %v7438
        %v7440 = vpop.f32.mrb[0].mxu0
        %v7441 = vadd.f32 0.0, %v7440
        %7442 = vdwg.mxu0
        %v7443 = vadd.f32 %v7182, %v7385
        %v7444 = vadd.f32 %v7183, %v7387
        %v7445 = vadd.f32 %v7184, %v7391
        %v7446 = vadd.f32 %v7185, %v7393
        %v7447 = vadd.f32 %v7186, %v7397
        %v7448 = vadd.f32 %v7187, %v7399
        %v7449 = vadd.f32 %v7188, %v7403
        %v7450 = vadd.f32 %v7189, %v7405
        %v7451 = vadd.f32 %v7190, %v7409
        %v7452 = vadd.f32 %v7191, %v7411
        %v7453 = vadd.f32 %v7192, %v7415
        %v7454 = vadd.f32 %v7193, %v7417
        %v7455 = vadd.f32 %v7194, %v7421
        %v7456 = vadd.f32 %v7195, %v7423
        %v7457 = vadd.f32 %v7196, %v7427
        %v7458 = vadd.f32 %v7197, %v7429
        %v7459 = vadd.f32 %v7198, %v7433
        %v7460 = vadd.f32 %v7199, %v7435
        %v7461 = vadd.f32 %v7200, %v7439
        %v7462 = vadd.f32 %v7201, %v7441
        %s7463 = scalar_lea.vmem %s5, 400
        %v7464 = vld [vmem:[%s7463] sm:$0xff]
        %v7465 = vld [vmem:[%s7463 + $0x8] sm:$0xff]
        %v7466 = vld [vmem:[%s7463 + $0x10] sm:$0xff]
        %v7467 = vld [vmem:[%s7463 + $0x18] sm:$0xff]
        %v7468 = vld [vmem:[%s7463 + $0x20] sm:$0xff]
        %v7469 = vld [vmem:[%s7463 + $0x28] sm:$0xff]
        %v7470 = vld [vmem:[%s7463 + $0x30] sm:$0xff]
        %v7471 = vld [vmem:[%s7463 + $0x38] sm:$0xff]
        %v7472 = vld [vmem:[%s7463 + $0x40] sm:$0xff]
        %v7473 = vld [vmem:[%s7463 + $0x48] sm:$0xff]
        %7474 = vrot.lane.b32.xlu0 %v7213, 110
        %v7475 = vpop.permute.xlu0 %7474
        %7476 = vrot.lane.b32.xlu0 %v7214, 110
        %v7477 = vpop.permute.xlu0 %7476
        %7478 = vrot.lane.b32.xlu0 %v7215, 110
        %v7479 = vpop.permute.xlu0 %7478
        %7480 = vrot.lane.b32.xlu0 %v7216, 110
        %v7481 = vpop.permute.xlu0 %7480
        %7482 = vrot.lane.b32.xlu0 %v7217, 110
        %v7483 = vpop.permute.xlu0 %7482
        %7484 = vrot.lane.b32.xlu0 %v7218, 110
        %v7485 = vpop.permute.xlu0 %7484
        %7486 = vrot.lane.b32.xlu0 %v7219, 110
        %v7487 = vpop.permute.xlu0 %7486
        %7488 = vrot.lane.b32.xlu0 %v7220, 110
        %v7489 = vpop.permute.xlu0 %7488
        %7490 = vrot.lane.b32.xlu0 %v7221, 110
        %v7491 = vpop.permute.xlu0 %7490
        %7492 = vrot.lane.b32.xlu0 %v7222, 110
        %v7493 = vpop.permute.xlu0 %7492
        %7494 = vrot.lane.b32.xlu0 %v7223, 110
        %v7495 = vpop.permute.xlu0 %7494
        %7496 = vrot.lane.b32.xlu0 %v7224, 110
        %v7497 = vpop.permute.xlu0 %7496
        %v7498 = vsel %vm1584, %v7475, %v7477
        %v7499 = vsel %vm1584, %v7477, %v7479
        %v7500 = vsel %vm1584, %v7481, %v7483
        %v7501 = vsel %vm1584, %v7483, %v7485
        %v7502 = vsel %vm1584, %v7487, %v7489
        %v7503 = vsel %vm1584, %v7489, %v7491
        %v7504 = vsel %vm1584, %v7493, %v7495
        %v7505 = vsel %vm1584, %v7495, %v7497
        %v7515 = vsel %vm2944, %v7464, 0
        %v7518 = vsel %vm2944, %v7465, 0
        %v7521 = vsel %vm2944, %v7466, 0
        %v7524 = vsel %vm2944, %v7467, 0
        %v7527 = vsel %vm2944, %v7468, 0
        %v7530 = vsel %vm2944, %v7469, 0
        %v7533 = vsel %vm2944, %v7470, 0
        %v7536 = vsel %vm2944, %v7471, 0
        %v7539 = vsel %vm2944, %v7472, 0
        %v7542 = vsel %vm2944, %v7473, 0
        %7544 = vmatprep.subr.mxu0 %v7499
        %7545 = vmatpush1.msra.mxu0 %v7498
        %7546 = vmatprep.subr.mxu0 %v7501
        %7547 = vmatpush1.msra.mxu0 %v7500
        %7548 = vmatprep.subr.mxu0 %v7503
        %7549 = vmatpush1.msra.mxu0 %v7502
        %7550 = vmatprep.subr.mxu0 %v7505
        %7551 = vmatpush1.msra.mxu0 %v7504
        %7552 = vmatprep.subr.mxu0 0.0
        %7553 = vmatpush1.msra.mxu0 0.0
        %7554 = vmatprep.subr.mxu0 0.0
        %7555 = vmatpush1.msra.mxu0 0.0
        %7556 = vmatprep.subr.mxu0 0.0
        %7557 = vmatpush1.msra.mxu0 0.0
        %7558 = vmatprep.subr.mxu0 0.0
        %7559 = vmatpush1.msra.mxu0 0.0
        %7560 = vmatprep.subr.mxu0 0.0
        %7561 = vmatpush1.msra.mxu0 0.0
        %7562 = vmatprep.subr.mxu0 0.0
        %7563 = vmatpush1.msra.mxu0 0.0
        %7564 = vmatprep.subr.mxu0 0.0
        %7565 = vmatpush1.msra.mxu0 0.0
        %7566 = vmatprep.subr.mxu0 0.0
        %7567 = vmatpush1.msra.mxu0 0.0
        %7568 = vmatprep.subr.mxu0 0.0
        %7569 = vmatpush1.msra.mxu0 0.0
        %7570 = vmatprep.subr.mxu0 0.0
        %7571 = vmatpush1.msra.mxu0 0.0
        %7572 = vmatprep.subr.mxu0 0.0
        %7573 = vmatpush1.msra.mxu0 0.0
        %7574 = vmatprep.subr.mxu0 0.0
        %7575 = vmatpush1.msra.mxu0 0.0
        %7576 = vmatprep.subr.mxu0 0.0
        %7577 = vmatpush1.msra.mxu0 0.0
        %7578 = vmatprep.subr.mxu0 0.0
        %7579 = vmatpush1.msra.mxu0 0.0
        %7580 = vmatprep.subr.mxu0 0.0
        %7581 = vmatpush1.msra.mxu0 0.0
        %7582 = vmatprep.subr.mxu0 0.0
        %7583 = vmatpush1.msra.mxu0 0.0
        %7584 = vmatprep.subr.mxu0 0.0
        %7585 = vmatpush1.msra.mxu0 0.0
        %7586 = vmatprep.subr.mxu0 0.0
        %7587 = vmatpush1.msra.mxu0 0.0
        %7588 = vmatprep.subr.mxu0 0.0
        %7589 = vmatpush1.msra.mxu0 0.0
        %7590 = vmatprep.subr.mxu0 0.0
        %7591 = vmatpush1.msra.mxu0 0.0
        %7592 = vmatprep.subr.mxu0 0.0
        %7593 = vmatpush1.msra.mxu0 0.0
        %7594 = vmatprep.subr.mxu0 0.0
        %7595 = vmatpush1.msra.mxu0 0.0
        %7596 = vmatprep.subr.mxu0 0.0
        %7597 = vmatpush1.msra.mxu0 0.0
        %7598 = vmatprep.subr.mxu0 0.0
        %7599 = vmatpush1.msra.mxu0 0.0
        %7600 = vmatprep.subr.mxu0 0.0
        %7601 = vmatpush1.msra.mxu0 0.0
        %7602 = vmatprep.subr.mxu0 0.0
        %7603 = vmatpush1.msra.mxu0 0.0
        %7604 = vmatprep.subr.mxu0 0.0
        %7605 = vmatpush1.msra.mxu0 0.0
        %7606 = vmatprep.subr.mxu0 0.0
        %7607 = vmatpush1.msra.mxu0 0.0
        %7608 = vmatprep.mubr.f32.mxu0 0.0
        %7609 = vmatmul.mubr.f32.gmra.mrb[0].mxu0 %v7515
        %v7610 = vpop.f32.mrb[0].mxu0
        %v7611 = vadd.f32 0.0, %v7610
        %v7612 = vpop.f32.mrb[0].mxu0
        %v7613 = vadd.f32 0.0, %v7612
        %7614 = vmatprep.mubr.f32.mxu0 0.0
        %7615 = vmatmul.mubr.f32.gmra.mrb[0].mxu0 %v7518
        %v7616 = vpop.f32.mrb[0].mxu0
        %v7617 = vadd.f32 0.0, %v7616
        %v7618 = vpop.f32.mrb[0].mxu0
        %v7619 = vadd.f32 0.0, %v7618
        %7620 = vmatprep.mubr.f32.mxu0 0.0
        %7621 = vmatmul.mubr.f32.gmra.mrb[0].mxu0 %v7521
        %v7622 = vpop.f32.mrb[0].mxu0
        %v7623 = vadd.f32 0.0, %v7622
        %v7624 = vpop.f32.mrb[0].mxu0
        %v7625 = vadd.f32 0.0, %v7624
        %7626 = vmatprep.mubr.f32.mxu0 0.0
        %7627 = vmatmul.mubr.f32.gmra.mrb[0].mxu0 %v7524
        %v7628 = vpop.f32.mrb[0].mxu0
        %v7629 = vadd.f32 0.0, %v7628
        %v7630 = vpop.f32.mrb[0].mxu0
        %v7631 = vadd.f32 0.0, %v7630
        %7632 = vmatprep.mubr.f32.mxu0 0.0
        %7633 = vmatmul.mubr.f32.gmra.mrb[0].mxu0 %v7527
        %v7634 = vpop.f32.mrb[0].mxu0
        %v7635 = vadd.f32 0.0, %v7634
        %v7636 = vpop.f32.mrb[0].mxu0
        %v7637 = vadd.f32 0.0, %v7636
        %7638 = vmatprep.mubr.f32.mxu0 0.0
        %7639 = vmatmul.mubr.f32.gmra.mrb[0].mxu0 %v7530
        %v7640 = vpop.f32.mrb[0].mxu0
        %v7641 = vadd.f32 0.0, %v7640
        %v7642 = vpop.f32.mrb[0].mxu0
        %v7643 = vadd.f32 0.0, %v7642
        %7644 = vmatprep.mubr.f32.mxu0 0.0
        %7645 = vmatmul.mubr.f32.gmra.mrb[0].mxu0 %v7533
        %v7646 = vpop.f32.mrb[0].mxu0
        %v7647 = vadd.f32 0.0, %v7646
        %v7648 = vpop.f32.mrb[0].mxu0
        %v7649 = vadd.f32 0.0, %v7648
        %7650 = vmatprep.mubr.f32.mxu0 0.0
        %7651 = vmatmul.mubr.f32.gmra.mrb[0].mxu0 %v7536
        %v7652 = vpop.f32.mrb[0].mxu0
        %v7653 = vadd.f32 0.0, %v7652
        %v7654 = vpop.f32.mrb[0].mxu0
        %v7655 = vadd.f32 0.0, %v7654
        %7656 = vmatprep.mubr.f32.mxu0 0.0
        %7657 = vmatmul.mubr.f32.gmra.mrb[0].mxu0 %v7539
        %v7658 = vpop.f32.mrb[0].mxu0
        %v7659 = vadd.f32 0.0, %v7658
        %v7660 = vpop.f32.mrb[0].mxu0
        %v7661 = vadd.f32 0.0, %v7660
        %7662 = vmatprep.mubr.f32.mxu0 0.0
        %7663 = vmatmul.mubr.f32.gmra.mrb[0].mxu0 %v7542
        %v7664 = vpop.f32.mrb[0].mxu0
        %v7665 = vadd.f32 0.0, %v7664
        %v7666 = vpop.f32.mrb[0].mxu0
        %v7667 = vadd.f32 0.0, %v7666
        %7668 = vdwg.mxu0
        %v7669 = vadd.f32 %v7443, %v7611
        %v7670 = vadd.f32 %v7444, %v7613
        %v7671 = vadd.f32 %v7445, %v7617
        %v7672 = vadd.f32 %v7446, %v7619
        %v7673 = vadd.f32 %v7447, %v7623
        %v7674 = vadd.f32 %v7448, %v7625
        %v7675 = vadd.f32 %v7449, %v7629
        %v7676 = vadd.f32 %v7450, %v7631
        %v7677 = vadd.f32 %v7451, %v7635
        %v7678 = vadd.f32 %v7452, %v7637
        %v7679 = vadd.f32 %v7453, %v7641
        %v7680 = vadd.f32 %v7454, %v7643
        %v7681 = vadd.f32 %v7455, %v7647
        %v7682 = vadd.f32 %v7456, %v7649
        %v7683 = vadd.f32 %v7457, %v7653
        %v7684 = vadd.f32 %v7458, %v7655
        %v7685 = vadd.f32 %v7459, %v7659
        %v7686 = vadd.f32 %v7460, %v7661
        %v7687 = vadd.f32 %v7461, %v7665
        %v7688 = vadd.f32 %v7462, %v7667
        %s7689 = scalar_lea.vmem %s5, 640
        %v7690 = vld [vmem:[%s7689] sm:$0xff]
        %v7691 = vld [vmem:[%s7689 + $0x8] sm:$0xff]
        %v7692 = vld [vmem:[%s7689 + $0x10] sm:$0xff]
        %v7693 = vld [vmem:[%s7689 + $0x18] sm:$0xff]
        %v7694 = vld [vmem:[%s7689 + $0x20] sm:$0xff]
        %v7695 = vld [vmem:[%s7689 + $0x28] sm:$0xff]
        %v7696 = vld [vmem:[%s7689 + $0x30] sm:$0xff]
        %v7697 = vld [vmem:[%s7689 + $0x38] sm:$0xff]
        %v7698 = vld [vmem:[%s7689 + $0x40] sm:$0xff]
        %v7699 = vld [vmem:[%s7689 + $0x48] sm:$0xff]
        %7700 = vrot.lane.b32.xlu0 %v7213, 94
        %v7701 = vpop.permute.xlu0 %7700
        %7702 = vrot.lane.b32.xlu0 %v7214, 94
        %v7703 = vpop.permute.xlu0 %7702
        %7704 = vrot.lane.b32.xlu0 %v7215, 94
        %v7705 = vpop.permute.xlu0 %7704
        %7706 = vrot.lane.b32.xlu0 %v7216, 94
        %v7707 = vpop.permute.xlu0 %7706
        %7708 = vrot.lane.b32.xlu0 %v7217, 94
        %v7709 = vpop.permute.xlu0 %7708
        %7710 = vrot.lane.b32.xlu0 %v7218, 94
        %v7711 = vpop.permute.xlu0 %7710
        %7712 = vrot.lane.b32.xlu0 %v7219, 94
        %v7713 = vpop.permute.xlu0 %7712
        %7714 = vrot.lane.b32.xlu0 %v7220, 94
        %v7715 = vpop.permute.xlu0 %7714
        %7716 = vrot.lane.b32.xlu0 %v7221, 94
        %v7717 = vpop.permute.xlu0 %7716
        %7718 = vrot.lane.b32.xlu0 %v7222, 94
        %v7719 = vpop.permute.xlu0 %7718
        %7720 = vrot.lane.b32.xlu0 %v7223, 94
        %v7721 = vpop.permute.xlu0 %7720
        %7722 = vrot.lane.b32.xlu0 %v7224, 94
        %v7723 = vpop.permute.xlu0 %7722
        %v7724 = vsel %vm1673, %v7701, %v7703
        %v7725 = vsel %vm1673, %v7703, %v7705
        %v7726 = vsel %vm1673, %v7707, %v7709
        %v7727 = vsel %vm1673, %v7709, %v7711
        %v7728 = vsel %vm1673, %v7713, %v7715
        %v7729 = vsel %vm1673, %v7715, %v7717
        %v7730 = vsel %vm1673, %v7719, %v7721
        %v7731 = vsel %vm1673, %v7721, %v7723
        %v7741 = vsel %vm2944, %v7690, 0
        %v7744 = vsel %vm2944, %v7691, 0
        %v7747 = vsel %vm2944, %v7692, 0
        %v7750 = vsel %vm2944, %v7693, 0
        %v7753 = vsel %vm2944, %v7694, 0
        %v7756 = vsel %vm2944, %v7695, 0
        %v7759 = vsel %vm2944, %v7696, 0
        %v7762 = vsel %vm2944, %v7697, 0
        %v7765 = vsel %vm2944, %v7698, 0
        %v7768 = vsel %vm2944, %v7699, 0
        %7770 = vmatprep.subr.mxu0 %v7725
        %7771 = vmatpush1.msra.mxu0 %v7724
        %7772 = vmatprep.subr.mxu0 %v7727
        %7773 = vmatpush1.msra.mxu0 %v7726
        %7774 = vmatprep.subr.mxu0 %v7729
        %7775 = vmatpush1.msra.mxu0 %v7728
        %7776 = vmatprep.subr.mxu0 %v7731
        %7777 = vmatpush1.msra.mxu0 %v7730
        %7778 = vmatprep.subr.mxu0 0.0
        %7779 = vmatpush1.msra.mxu0 0.0
        %7780 = vmatprep.subr.mxu0 0.0
        %7781 = vmatpush1.msra.mxu0 0.0
        %7782 = vmatprep.subr.mxu0 0.0
        %7783 = vmatpush1.msra.mxu0 0.0
        %7784 = vmatprep.subr.mxu0 0.0
        %7785 = vmatpush1.msra.mxu0 0.0
        %7786 = vmatprep.subr.mxu0 0.0
        %7787 = vmatpush1.msra.mxu0 0.0
        %7788 = vmatprep.subr.mxu0 0.0
        %7789 = vmatpush1.msra.mxu0 0.0
        %7790 = vmatprep.subr.mxu0 0.0
        %7791 = vmatpush1.msra.mxu0 0.0
        %7792 = vmatprep.subr.mxu0 0.0
        %7793 = vmatpush1.msra.mxu0 0.0
        %7794 = vmatprep.subr.mxu0 0.0
        %7795 = vmatpush1.msra.mxu0 0.0
        %7796 = vmatprep.subr.mxu0 0.0
        %7797 = vmatpush1.msra.mxu0 0.0
        %7798 = vmatprep.subr.mxu0 0.0
        %7799 = vmatpush1.msra.mxu0 0.0
        %7800 = vmatprep.subr.mxu0 0.0
        %7801 = vmatpush1.msra.mxu0 0.0
        %7802 = vmatprep.subr.mxu0 0.0
        %7803 = vmatpush1.msra.mxu0 0.0
        %7804 = vmatprep.subr.mxu0 0.0
        %7805 = vmatpush1.msra.mxu0 0.0
        %7806 = vmatprep.subr.mxu0 0.0
        %7807 = vmatpush1.msra.mxu0 0.0
        %7808 = vmatprep.subr.mxu0 0.0
        %7809 = vmatpush1.msra.mxu0 0.0
        %7810 = vmatprep.subr.mxu0 0.0
        %7811 = vmatpush1.msra.mxu0 0.0
        %7812 = vmatprep.subr.mxu0 0.0
        %7813 = vmatpush1.msra.mxu0 0.0
        %7814 = vmatprep.subr.mxu0 0.0
        %7815 = vmatpush1.msra.mxu0 0.0
        %7816 = vmatprep.subr.mxu0 0.0
        %7817 = vmatpush1.msra.mxu0 0.0
        %7818 = vmatprep.subr.mxu0 0.0
        %7819 = vmatpush1.msra.mxu0 0.0
        %7820 = vmatprep.subr.mxu0 0.0
        %7821 = vmatpush1.msra.mxu0 0.0
        %7822 = vmatprep.subr.mxu0 0.0
        %7823 = vmatpush1.msra.mxu0 0.0
        %7824 = vmatprep.subr.mxu0 0.0
        %7825 = vmatpush1.msra.mxu0 0.0
        %7826 = vmatprep.subr.mxu0 0.0
        %7827 = vmatpush1.msra.mxu0 0.0
        %7828 = vmatprep.subr.mxu0 0.0
        %7829 = vmatpush1.msra.mxu0 0.0
        %7830 = vmatprep.subr.mxu0 0.0
        %7831 = vmatpush1.msra.mxu0 0.0
        %7832 = vmatprep.subr.mxu0 0.0
        %7833 = vmatpush1.msra.mxu0 0.0
        %7834 = vmatprep.mubr.f32.mxu0 0.0
        %7835 = vmatmul.mubr.f32.gmra.mrb[0].mxu0 %v7741
        %v7836 = vpop.f32.mrb[0].mxu0
        %v7837 = vadd.f32 0.0, %v7836
        %v7838 = vpop.f32.mrb[0].mxu0
        %v7839 = vadd.f32 0.0, %v7838
        %7840 = vmatprep.mubr.f32.mxu0 0.0
        %7841 = vmatmul.mubr.f32.gmra.mrb[0].mxu0 %v7744
        %v7842 = vpop.f32.mrb[0].mxu0
        %v7843 = vadd.f32 0.0, %v7842
        %v7844 = vpop.f32.mrb[0].mxu0
        %v7845 = vadd.f32 0.0, %v7844
        %7846 = vmatprep.mubr.f32.mxu0 0.0
        %7847 = vmatmul.mubr.f32.gmra.mrb[0].mxu0 %v7747
        %v7848 = vpop.f32.mrb[0].mxu0
        %v7849 = vadd.f32 0.0, %v7848
        %v7850 = vpop.f32.mrb[0].mxu0
        %v7851 = vadd.f32 0.0, %v7850
        %7852 = vmatprep.mubr.f32.mxu0 0.0
        %7853 = vmatmul.mubr.f32.gmra.mrb[0].mxu0 %v7750
        %v7854 = vpop.f32.mrb[0].mxu0
        %v7855 = vadd.f32 0.0, %v7854
        %v7856 = vpop.f32.mrb[0].mxu0
        %v7857 = vadd.f32 0.0, %v7856
        %7858 = vmatprep.mubr.f32.mxu0 0.0
        %7859 = vmatmul.mubr.f32.gmra.mrb[0].mxu0 %v7753
        %v7860 = vpop.f32.mrb[0].mxu0
        %v7861 = vadd.f32 0.0, %v7860
        %v7862 = vpop.f32.mrb[0].mxu0
        %v7863 = vadd.f32 0.0, %v7862
        %7864 = vmatprep.mubr.f32.mxu0 0.0
        %7865 = vmatmul.mubr.f32.gmra.mrb[0].mxu0 %v7756
        %v7866 = vpop.f32.mrb[0].mxu0
        %v7867 = vadd.f32 0.0, %v7866
        %v7868 = vpop.f32.mrb[0].mxu0
        %v7869 = vadd.f32 0.0, %v7868
        %7870 = vmatprep.mubr.f32.mxu0 0.0
        %7871 = vmatmul.mubr.f32.gmra.mrb[0].mxu0 %v7759
        %v7872 = vpop.f32.mrb[0].mxu0
        %v7873 = vadd.f32 0.0, %v7872
        %v7874 = vpop.f32.mrb[0].mxu0
        %v7875 = vadd.f32 0.0, %v7874
        %7876 = vmatprep.mubr.f32.mxu0 0.0
        %7877 = vmatmul.mubr.f32.gmra.mrb[0].mxu0 %v7762
        %v7878 = vpop.f32.mrb[0].mxu0
        %v7879 = vadd.f32 0.0, %v7878
        %v7880 = vpop.f32.mrb[0].mxu0
        %v7881 = vadd.f32 0.0, %v7880
        %7882 = vmatprep.mubr.f32.mxu0 0.0
        %7883 = vmatmul.mubr.f32.gmra.mrb[0].mxu0 %v7765
        %v7884 = vpop.f32.mrb[0].mxu0
        %v7885 = vadd.f32 0.0, %v7884
        %v7886 = vpop.f32.mrb[0].mxu0
        %v7887 = vadd.f32 0.0, %v7886
        %7888 = vmatprep.mubr.f32.mxu0 0.0
        %7889 = vmatmul.mubr.f32.gmra.mrb[0].mxu0 %v7768
        %v7890 = vpop.f32.mrb[0].mxu0
        %v7891 = vadd.f32 0.0, %v7890
        %v7892 = vpop.f32.mrb[0].mxu0
        %v7893 = vadd.f32 0.0, %v7892
        %7894 = vdwg.mxu0
        %v7895 = vadd.f32 %v7669, %v7837
        %v7896 = vadd.f32 %v7670, %v7839
        %v7897 = vadd.f32 %v7671, %v7843
        %v7898 = vadd.f32 %v7672, %v7845
        %v7899 = vadd.f32 %v7673, %v7849
        %v7900 = vadd.f32 %v7674, %v7851
        %v7901 = vadd.f32 %v7675, %v7855
        %v7902 = vadd.f32 %v7676, %v7857
        %v7903 = vadd.f32 %v7677, %v7861
        %v7904 = vadd.f32 %v7678, %v7863
        %v7905 = vadd.f32 %v7679, %v7867
        %v7906 = vadd.f32 %v7680, %v7869
        %v7907 = vadd.f32 %v7681, %v7873
        %v7908 = vadd.f32 %v7682, %v7875
        %v7909 = vadd.f32 %v7683, %v7879
        %v7910 = vadd.f32 %v7684, %v7881
        %v7911 = vadd.f32 %v7685, %v7885
        %v7912 = vadd.f32 %v7686, %v7887
        %v7913 = vadd.f32 %v7687, %v7891
        %v7914 = vadd.f32 %v7688, %v7893
        %v7915 = vld [vmem:[%s6] sm:$0xff]
        %v7916 = vld [vmem:[%s6 + $0x8] sm:$0xff]
        %v7917 = vld [vmem:[%s6 + $0x10] sm:$0xff]
        %v7918 = vld [vmem:[%s6 + $0x18] sm:$0xff]
        %v7919 = vld [vmem:[%s6 + $0x20] sm:$0xff]
        %v7920 = vld [vmem:[%s6 + $0x28] sm:$0xff]
        %v7921 = vld [vmem:[%s6 + $0x30] sm:$0xff]
        %v7922 = vld [vmem:[%s6 + $0x38] sm:$0xff]
        %v7923 = vld [vmem:[%s6 + $0x40] sm:$0xff]
        %v7924 = vld [vmem:[%s6 + $0x48] sm:$0xff]
        %7926 = vset.pattern.permute.xlu0 0
        %7927 = vperm.xlu0 %7926, %v7915
        %v7928 = vpop.permute.xlu0 %7927
        %7931 = vset.pattern.permute.xlu0 0
        %7932 = vperm.xlu0 %7931, %v7916
        %v7933 = vpop.permute.xlu0 %7932
        %7936 = vset.pattern.permute.xlu0 0
        %7937 = vperm.xlu0 %7936, %v7917
        %v7938 = vpop.permute.xlu0 %7937
        %7941 = vset.pattern.permute.xlu0 0
        %7942 = vperm.xlu0 %7941, %v7918
        %v7943 = vpop.permute.xlu0 %7942
        %7946 = vset.pattern.permute.xlu0 0
        %7947 = vperm.xlu0 %7946, %v7919
        %v7948 = vpop.permute.xlu0 %7947
        %7951 = vset.pattern.permute.xlu0 0
        %7952 = vperm.xlu0 %7951, %v7920
        %v7953 = vpop.permute.xlu0 %7952
        %7956 = vset.pattern.permute.xlu0 0
        %7957 = vperm.xlu0 %7956, %v7921
        %v7958 = vpop.permute.xlu0 %7957
        %7961 = vset.pattern.permute.xlu0 0
        %7962 = vperm.xlu0 %7961, %v7922
        %v7963 = vpop.permute.xlu0 %7962
        %7966 = vset.pattern.permute.xlu0 0
        %7967 = vperm.xlu0 %7966, %v7923
        %v7968 = vpop.permute.xlu0 %7967
        %7971 = vset.pattern.permute.xlu0 0
        %7972 = vperm.xlu0 %7971, %v7924
        %v7973 = vpop.permute.xlu0 %7972
        %v7975 = vadd.f32 %v7895, %v7928
        %v7976 = vadd.f32 %v7896, %v7928
        %v7977 = vadd.f32 %v7897, %v7933
        %v7978 = vadd.f32 %v7898, %v7933
        %v7979 = vadd.f32 %v7899, %v7938
        %v7980 = vadd.f32 %v7900, %v7938
        %v7981 = vadd.f32 %v7901, %v7943
        %v7982 = vadd.f32 %v7902, %v7943
        %v7983 = vadd.f32 %v7903, %v7948
        %v7984 = vadd.f32 %v7904, %v7948
        %v7985 = vadd.f32 %v7905, %v7953
        %v7986 = vadd.f32 %v7906, %v7953
        %v7987 = vadd.f32 %v7907, %v7958
        %v7988 = vadd.f32 %v7908, %v7958
        %v7989 = vadd.f32 %v7909, %v7963
        %v7990 = vadd.f32 %v7910, %v7963
        %v7991 = vadd.f32 %v7911, %v7968
        %v7992 = vadd.f32 %v7912, %v7968
        %v7993 = vadd.f32 %v7913, %v7973
        %v7994 = vadd.f32 %v7914, %v7973
        %7995 = vst [vmem:[%s380] sm:$0xff] %v7975
        %7996 = vst [vmem:[%s380 + $0x8] sm:$0xff] %v7976
        %7997 = vst [vmem:[%s380 + $0x10] sm:$0xff] %v7977
        %7998 = vst [vmem:[%s380 + $0x18] sm:$0xff] %v7978
        %7999 = vst [vmem:[%s380 + $0x20] sm:$0xff] %v7979
        %8000 = vst [vmem:[%s380 + $0x28] sm:$0xff] %v7980
        %8001 = vst [vmem:[%s380 + $0x30] sm:$0xff] %v7981
        %8002 = vst [vmem:[%s380 + $0x38] sm:$0xff] %v7982
        %8003 = vst [vmem:[%s380 + $0x40] sm:$0xff] %v7983
        %8004 = vst [vmem:[%s380 + $0x48] sm:$0xff] %v7984
        %8005 = vst [vmem:[%s380 + $0x50] sm:$0xff] %v7985
        %8006 = vst [vmem:[%s380 + $0x58] sm:$0xff] %v7986
        %8007 = vst [vmem:[%s380 + $0x60] sm:$0xff] %v7987
        %8008 = vst [vmem:[%s380 + $0x68] sm:$0xff] %v7988
        %8009 = vst [vmem:[%s380 + $0x70] sm:$0xff] %v7989
        %8010 = vst [vmem:[%s380 + $0x78] sm:$0xff] %v7990
        %8011 = vst [vmem:[%s380 + $0x80] sm:$0xff] %v7991
        %8012 = vst [vmem:[%s380 + $0x88] sm:$0xff] %v7992
        %8013 = vst [vmem:[%s380 + $0x90] sm:$0xff] %v7993
        %8014 = vst [vmem:[%s380 + $0x98] sm:$0xff] %v7994
        %8015 = vst [vmem:[#allocation2] sm:$0xff] 0.0
        %8016 = vst [vmem:[#allocation2 + $0x8] sm:$0xff] 0.0
        %8017 = vst.msk [vmem:[#allocation2 + $0x10] sm:$0xff] %vm411, 0.0
        %8018 = vst [vmem:[#allocation2 + $0x18] sm:$0xff] 0.0
        %8019 = vst [vmem:[#allocation2 + $0x20] sm:$0xff] 0.0
        %8020 = vst.msk [vmem:[#allocation2 + $0x28] sm:$0xff] %vm411, 0.0
        %8021 = vst [vmem:[#allocation2 + $0x30] sm:$0xff] 0.0
        %8022 = vst [vmem:[#allocation2 + $0x38] sm:$0xff] 0.0
        %8023 = vst.msk [vmem:[#allocation2 + $0x40] sm:$0xff] %vm411, 0.0
        %8024 = vst [vmem:[#allocation2 + $0x48] sm:$0xff] 0.0
        %8025 = vst [vmem:[#allocation2 + $0x50] sm:$0xff] 0.0
        %8026 = vst.msk [vmem:[#allocation2 + $0x58] sm:$0xff] %vm411, 0.0
        %8035 = vrot.lane.b32.xlu0 %v5782, 17
        %v8036 = vpop.permute.xlu0 %8035
        %8037 = vrot.lane.b32.xlu0 %v5783, 17
        %v8038 = vpop.permute.xlu0 %8037
        %8039 = vrot.lane.b32.xlu0 %v5784, 17
        %v8040 = vpop.permute.xlu0 %8039
        %8041 = vrot.lane.b32.xlu0 %v5785, 17
        %v8042 = vpop.permute.xlu0 %8041
        %8043 = vrot.lane.b32.xlu0 %v5786, 17
        %v8044 = vpop.permute.xlu0 %8043
        %8045 = vrot.lane.b32.xlu0 %v5787, 17
        %v8046 = vpop.permute.xlu0 %8045
        %8047 = vrot.lane.b32.xlu0 %v5788, 17
        %v8048 = vpop.permute.xlu0 %8047
        %8049 = vrot.lane.b32.xlu0 %v5789, 17
        %v8050 = vpop.permute.xlu0 %8049
        %v8051 = vsel %vm5826, %v8036, %v8038
        %v8052 = vsel %vm5826, %v8040, %v8042
        %v8053 = vsel %vm5826, %v8044, %v8046
        %v8054 = vsel %vm5826, %v8048, %v8050
        %8067 = vst.msk [vmem:[#allocation2] sm:$0xff] %vm5843, %v8036
        %8068 = vst [vmem:[#allocation2 + $0x8] sm:$0xff] %v8051
        %8069 = vst.msk [vmem:[#allocation2 + $0x10] sm:$0xff] %vm5826, %v8038
        %8070 = vst.msk [vmem:[#allocation2 + $0x18] sm:$0xff] %vm5843, %v8040
        %8071 = vst [vmem:[#allocation2 + $0x20] sm:$0xff] %v8052
        %8072 = vst.msk [vmem:[#allocation2 + $0x28] sm:$0xff] %vm5826, %v8042
        %8073 = vst.msk [vmem:[#allocation2 + $0x30] sm:$0xff] %vm5843, %v8044
        %8074 = vst [vmem:[#allocation2 + $0x38] sm:$0xff] %v8053
        %8075 = vst.msk [vmem:[#allocation2 + $0x40] sm:$0xff] %vm5826, %v8046
        %8076 = vst.msk [vmem:[#allocation2 + $0x48] sm:$0xff] %vm5843, %v8048
        %8077 = vst [vmem:[#allocation2 + $0x50] sm:$0xff] %v8054
        %8078 = vst.msk [vmem:[#allocation2 + $0x58] sm:$0xff] %vm5826, %v8050
        %v8079 = vld [vmem:[#allocation2] sm:$0xff]
        %v8080 = vld [vmem:[#allocation2 + $0x8] sm:$0xff]
        %v8081 = vld [vmem:[#allocation2 + $0x10] sm:$0xff]
        %v8082 = vld [vmem:[#allocation2 + $0x18] sm:$0xff]
        %v8083 = vld [vmem:[#allocation2 + $0x20] sm:$0xff]
        %v8084 = vld [vmem:[#allocation2 + $0x28] sm:$0xff]
        %v8085 = vld [vmem:[#allocation2 + $0x30] sm:$0xff]
        %v8086 = vld [vmem:[#allocation2 + $0x38] sm:$0xff]
        %v8087 = vld [vmem:[#allocation2 + $0x40] sm:$0xff]
        %v8088 = vld [vmem:[#allocation2 + $0x48] sm:$0xff]
        %v8089 = vld [vmem:[#allocation2 + $0x50] sm:$0xff]
        %v8090 = vld [vmem:[#allocation2 + $0x58] sm:$0xff]
        %v8091 = vmul.f32 %v8079, %v911
        %v8092 = vmul.f32 %v8080, %v915
        %v8093 = vmul.f32 %v8081, %v919
        %v8094 = vmul.f32 %v8082, %v911
        %v8095 = vmul.f32 %v8083, %v915
        %v8096 = vmul.f32 %v8084, %v919
        %v8097 = vmul.f32 %v8085, %v911
        %v8098 = vmul.f32 %v8086, %v915
        %v8099 = vmul.f32 %v8087, %v919
        %v8100 = vmul.f32 %v8088, %v911
        %v8101 = vmul.f32 %v8089, %v915
        %v8102 = vmul.f32 %v8090, %v919
        %v8103 = vld [vmem:[%s7] sm:$0xff]
        %v8104 = vld [vmem:[%s7 + $0x8] sm:$0xff]
        %v8105 = vld [vmem:[%s7 + $0x10] sm:$0xff]
        %v8106 = vld [vmem:[%s7 + $0x18] sm:$0xff]
        %v8107 = vld [vmem:[%s7 + $0x20] sm:$0xff]
        %v8108 = vld [vmem:[%s7 + $0x28] sm:$0xff]
        %v8109 = vld [vmem:[%s7 + $0x30] sm:$0xff]
        %v8110 = vld [vmem:[%s7 + $0x38] sm:$0xff]
        %v8111 = vld [vmem:[%s7 + $0x40] sm:$0xf]
        %s8112 = scalar_lea.vmem %s7, 216
        %v8113 = vld [vmem:[%s8112] sm:$0xff]
        %v8114 = vld [vmem:[%s8112 + $0x8] sm:$0xff]
        %v8115 = vld [vmem:[%s8112 + $0x10] sm:$0xff]
        %v8116 = vld [vmem:[%s8112 + $0x18] sm:$0xff]
        %v8117 = vld [vmem:[%s8112 + $0x20] sm:$0xff]
        %v8118 = vld [vmem:[%s8112 + $0x28] sm:$0xff]
        %v8119 = vld [vmem:[%s8112 + $0x30] sm:$0xff]
        %v8120 = vld [vmem:[%s8112 + $0x38] sm:$0xff]
        %v8121 = vld [vmem:[%s8112 + $0x40] sm:$0xf]
        %8134 = vrot.lane.b32.xlu0 %v8091, 112
        %v8135 = vpop.permute.xlu0 %8134
        %8136 = vrot.lane.b32.xlu0 %v8092, 112
        %v8137 = vpop.permute.xlu0 %8136
        %8138 = vrot.lane.b32.xlu0 %v8093, 112
        %v8139 = vpop.permute.xlu0 %8138
        %8140 = vrot.lane.b32.xlu0 %v8094, 112
        %v8141 = vpop.permute.xlu0 %8140
        %8142 = vrot.lane.b32.xlu0 %v8095, 112
        %v8143 = vpop.permute.xlu0 %8142
        %8144 = vrot.lane.b32.xlu0 %v8096, 112
        %v8145 = vpop.permute.xlu0 %8144
        %8146 = vrot.lane.b32.xlu0 %v8097, 112
        %v8147 = vpop.permute.xlu0 %8146
        %8148 = vrot.lane.b32.xlu0 %v8098, 112
        %v8149 = vpop.permute.xlu0 %8148
        %8150 = vrot.lane.b32.xlu0 %v8099, 112
        %v8151 = vpop.permute.xlu0 %8150
        %8152 = vrot.lane.b32.xlu0 %v8100, 112
        %v8153 = vpop.permute.xlu0 %8152
        %8154 = vrot.lane.b32.xlu0 %v8101, 112
        %v8155 = vpop.permute.xlu0 %8154
        %8156 = vrot.lane.b32.xlu0 %v8102, 112
        %v8157 = vpop.permute.xlu0 %8156
        %v8158 = vsel %vm616, %v8135, %v8137
        %v8159 = vsel %vm616, %v8137, %v8139
        %v8160 = vsel %vm616, %v8141, %v8143
        %v8161 = vsel %vm616, %v8143, %v8145
        %v8162 = vsel %vm616, %v8147, %v8149
        %v8163 = vsel %vm616, %v8149, %v8151
        %v8164 = vsel %vm616, %v8153, %v8155
        %v8165 = vsel %vm616, %v8155, %v8157
        %v8175 = vsel %vm2944, %v8113, 0
        %v8178 = vsel %vm2944, %v8114, 0
        %v8181 = vsel %vm2944, %v8115, 0
        %v8184 = vsel %vm2944, %v8116, 0
        %v8187 = vsel %vm2944, %v8117, 0
        %v8190 = vsel %vm2944, %v8118, 0
        %v8193 = vsel %vm2944, %v8119, 0
        %v8196 = vsel %vm2944, %v8120, 0
        %v8199 = vsel %vm2944, %v8121, 0
        %8201 = vmatprep.subr.mxu0 %v8159
        %8202 = vmatpush1.msra.mxu0 %v8158
        %8203 = vmatprep.subr.mxu0 %v8161
        %8204 = vmatpush1.msra.mxu0 %v8160
        %8205 = vmatprep.subr.mxu0 %v8163
        %8206 = vmatpush1.msra.mxu0 %v8162
        %8207 = vmatprep.subr.mxu0 %v8165
        %8208 = vmatpush1.msra.mxu0 %v8164
        %8209 = vmatprep.subr.mxu0 0.0
        %8210 = vmatpush1.msra.mxu0 0.0
        %8211 = vmatprep.subr.mxu0 0.0
        %8212 = vmatpush1.msra.mxu0 0.0
        %8213 = vmatprep.subr.mxu0 0.0
        %8214 = vmatpush1.msra.mxu0 0.0
        %8215 = vmatprep.subr.mxu0 0.0
        %8216 = vmatpush1.msra.mxu0 0.0
        %8217 = vmatprep.subr.mxu0 0.0
        %8218 = vmatpush1.msra.mxu0 0.0
        %8219 = vmatprep.subr.mxu0 0.0
        %8220 = vmatpush1.msra.mxu0 0.0
        %8221 = vmatprep.subr.mxu0 0.0
        %8222 = vmatpush1.msra.mxu0 0.0
        %8223 = vmatprep.subr.mxu0 0.0
        %8224 = vmatpush1.msra.mxu0 0.0
        %8225 = vmatprep.subr.mxu0 0.0
        %8226 = vmatpush1.msra.mxu0 0.0
        %8227 = vmatprep.subr.mxu0 0.0
        %8228 = vmatpush1.msra.mxu0 0.0
        %8229 = vmatprep.subr.mxu0 0.0
        %8230 = vmatpush1.msra.mxu0 0.0
        %8231 = vmatprep.subr.mxu0 0.0
        %8232 = vmatpush1.msra.mxu0 0.0
        %8233 = vmatprep.subr.mxu0 0.0
        %8234 = vmatpush1.msra.mxu0 0.0
        %8235 = vmatprep.subr.mxu0 0.0
        %8236 = vmatpush1.msra.mxu0 0.0
        %8237 = vmatprep.subr.mxu0 0.0
        %8238 = vmatpush1.msra.mxu0 0.0
        %8239 = vmatprep.subr.mxu0 0.0
        %8240 = vmatpush1.msra.mxu0 0.0
        %8241 = vmatprep.subr.mxu0 0.0
        %8242 = vmatpush1.msra.mxu0 0.0
        %8243 = vmatprep.subr.mxu0 0.0
        %8244 = vmatpush1.msra.mxu0 0.0
        %8245 = vmatprep.subr.mxu0 0.0
        %8246 = vmatpush1.msra.mxu0 0.0
        %8247 = vmatprep.subr.mxu0 0.0
        %8248 = vmatpush1.msra.mxu0 0.0
        %8249 = vmatprep.subr.mxu0 0.0
        %8250 = vmatpush1.msra.mxu0 0.0
        %8251 = vmatprep.subr.mxu0 0.0
        %8252 = vmatpush1.msra.mxu0 0.0
        %8253 = vmatprep.subr.mxu0 0.0
        %8254 = vmatpush1.msra.mxu0 0.0
        %8255 = vmatprep.subr.mxu0 0.0
        %8256 = vmatpush1.msra.mxu0 0.0
        %8257 = vmatprep.subr.mxu0 0.0
        %8258 = vmatpush1.msra.mxu0 0.0
        %8259 = vmatprep.subr.mxu0 0.0
        %8260 = vmatpush1.msra.mxu0 0.0
        %8261 = vmatprep.subr.mxu0 0.0
        %8262 = vmatpush1.msra.mxu0 0.0
        %8263 = vmatprep.subr.mxu0 0.0
        %8264 = vmatpush1.msra.mxu0 0.0
        %8265 = vmatprep.mubr.f32.mxu0 0.0
        %8266 = vmatmul.mubr.f32.gmra.mrb[0].mxu0 %v8175
        %v8267 = vpop.f32.mrb[0].mxu0
        %v8268 = vadd.f32 0.0, %v8267
        %v8269 = vpop.f32.mrb[0].mxu0
        %v8270 = vadd.f32 0.0, %v8269
        %8271 = vmatprep.mubr.f32.mxu0 0.0
        %8272 = vmatmul.mubr.f32.gmra.mrb[0].mxu0 %v8178
        %v8273 = vpop.f32.mrb[0].mxu0
        %v8274 = vadd.f32 0.0, %v8273
        %v8275 = vpop.f32.mrb[0].mxu0
        %v8276 = vadd.f32 0.0, %v8275
        %8277 = vmatprep.mubr.f32.mxu0 0.0
        %8278 = vmatmul.mubr.f32.gmra.mrb[0].mxu0 %v8181
        %v8279 = vpop.f32.mrb[0].mxu0
        %v8280 = vadd.f32 0.0, %v8279
        %v8281 = vpop.f32.mrb[0].mxu0
        %v8282 = vadd.f32 0.0, %v8281
        %8283 = vmatprep.mubr.f32.mxu0 0.0
        %8284 = vmatmul.mubr.f32.gmra.mrb[0].mxu0 %v8184
        %v8285 = vpop.f32.mrb[0].mxu0
        %v8286 = vadd.f32 0.0, %v8285
        %v8287 = vpop.f32.mrb[0].mxu0
        %v8288 = vadd.f32 0.0, %v8287
        %8289 = vmatprep.mubr.f32.mxu0 0.0
        %8290 = vmatmul.mubr.f32.gmra.mrb[0].mxu0 %v8187
        %v8291 = vpop.f32.mrb[0].mxu0
        %v8292 = vadd.f32 0.0, %v8291
        %v8293 = vpop.f32.mrb[0].mxu0
        %v8294 = vadd.f32 0.0, %v8293
        %8295 = vmatprep.mubr.f32.mxu0 0.0
        %8296 = vmatmul.mubr.f32.gmra.mrb[0].mxu0 %v8190
        %v8297 = vpop.f32.mrb[0].mxu0
        %v8298 = vadd.f32 0.0, %v8297
        %v8299 = vpop.f32.mrb[0].mxu0
        %v8300 = vadd.f32 0.0, %v8299
        %8301 = vmatprep.mubr.f32.mxu0 0.0
        %8302 = vmatmul.mubr.f32.gmra.mrb[0].mxu0 %v8193
        %v8303 = vpop.f32.mrb[0].mxu0
        %v8304 = vadd.f32 0.0, %v8303
        %v8305 = vpop.f32.mrb[0].mxu0
        %v8306 = vadd.f32 0.0, %v8305
        %8307 = vmatprep.mubr.f32.mxu0 0.0
        %8308 = vmatmul.mubr.f32.gmra.mrb[0].mxu0 %v8196
        %v8309 = vpop.f32.mrb[0].mxu0
        %v8310 = vadd.f32 0.0, %v8309
        %v8311 = vpop.f32.mrb[0].mxu0
        %v8312 = vadd.f32 0.0, %v8311
        %8313 = vmatprep.mubr.f32.mxu0 0.0
        %8314 = vmatmul.mubr.f32.gmra.mrb[0].mxu0 %v8199
        %v8315 = vpop.f32.mrb[0].mxu0
        %v8316 = vadd.f32 0.0, %v8315
        %v8317 = vpop.f32.mrb[0].mxu0
        %v8318 = vadd.f32 0.0, %v8317
        %8319 = vdwg.mxu0
        %v8321 = vsel %vm2944, %v8103, 0
        %v8324 = vsel %vm2944, %v8104, 0
        %v8327 = vsel %vm2944, %v8105, 0
        %v8330 = vsel %vm2944, %v8106, 0
        %v8333 = vsel %vm2944, %v8107, 0
        %v8336 = vsel %vm2944, %v8108, 0
        %v8339 = vsel %vm2944, %v8109, 0
        %v8342 = vsel %vm2944, %v8110, 0
        %v8345 = vsel %vm2944, %v8111, 0
        %8347 = vmatprep.subr.mxu0 %v8092
        %8348 = vmatpush1.msra.mxu0 %v8091
        %8349 = vmatprep.subr.mxu0 %v8095
        %8350 = vmatpush1.msra.mxu0 %v8094
        %8351 = vmatprep.subr.mxu0 %v8098
        %8352 = vmatpush1.msra.mxu0 %v8097
        %8353 = vmatprep.subr.mxu0 %v8101
        %8354 = vmatpush1.msra.mxu0 %v8100
        %8355 = vmatprep.subr.mxu0 0.0
        %8356 = vmatpush1.msra.mxu0 0.0
        %8357 = vmatprep.subr.mxu0 0.0
        %8358 = vmatpush1.msra.mxu0 0.0
        %8359 = vmatprep.subr.mxu0 0.0
        %8360 = vmatpush1.msra.mxu0 0.0
        %8361 = vmatprep.subr.mxu0 0.0
        %8362 = vmatpush1.msra.mxu0 0.0
        %8363 = vmatprep.subr.mxu0 0.0
        %8364 = vmatpush1.msra.mxu0 0.0
        %8365 = vmatprep.subr.mxu0 0.0
        %8366 = vmatpush1.msra.mxu0 0.0
        %8367 = vmatprep.subr.mxu0 0.0
        %8368 = vmatpush1.msra.mxu0 0.0
        %8369 = vmatprep.subr.mxu0 0.0
        %8370 = vmatpush1.msra.mxu0 0.0
        %8371 = vmatprep.subr.mxu0 0.0
        %8372 = vmatpush1.msra.mxu0 0.0
        %8373 = vmatprep.subr.mxu0 0.0
        %8374 = vmatpush1.msra.mxu0 0.0
        %8375 = vmatprep.subr.mxu0 0.0
        %8376 = vmatpush1.msra.mxu0 0.0
        %8377 = vmatprep.subr.mxu0 0.0
        %8378 = vmatpush1.msra.mxu0 0.0
        %8379 = vmatprep.subr.mxu0 0.0
        %8380 = vmatpush1.msra.mxu0 0.0
        %8381 = vmatprep.subr.mxu0 0.0
        %8382 = vmatpush1.msra.mxu0 0.0
        %8383 = vmatprep.subr.mxu0 0.0
        %8384 = vmatpush1.msra.mxu0 0.0
        %8385 = vmatprep.subr.mxu0 0.0
        %8386 = vmatpush1.msra.mxu0 0.0
        %8387 = vmatprep.subr.mxu0 0.0
        %8388 = vmatpush1.msra.mxu0 0.0
        %8389 = vmatprep.subr.mxu0 0.0
        %8390 = vmatpush1.msra.mxu0 0.0
        %8391 = vmatprep.subr.mxu0 0.0
        %8392 = vmatpush1.msra.mxu0 0.0
        %8393 = vmatprep.subr.mxu0 0.0
        %8394 = vmatpush1.msra.mxu0 0.0
        %8395 = vmatprep.subr.mxu0 0.0
        %8396 = vmatpush1.msra.mxu0 0.0
        %8397 = vmatprep.subr.mxu0 0.0
        %8398 = vmatpush1.msra.mxu0 0.0
        %8399 = vmatprep.subr.mxu0 0.0
        %8400 = vmatpush1.msra.mxu0 0.0
        %8401 = vmatprep.subr.mxu0 0.0
        %8402 = vmatpush1.msra.mxu0 0.0
        %8403 = vmatprep.subr.mxu0 0.0
        %8404 = vmatpush1.msra.mxu0 0.0
        %8405 = vmatprep.subr.mxu0 0.0
        %8406 = vmatpush1.msra.mxu0 0.0
        %8407 = vmatprep.subr.mxu0 0.0
        %8408 = vmatpush1.msra.mxu0 0.0
        %8409 = vmatprep.subr.mxu0 0.0
        %8410 = vmatpush1.msra.mxu0 0.0
        %8411 = vmatprep.mubr.f32.mxu0 0.0
        %8412 = vmatmul.mubr.f32.gmra.mrb[0].mxu0 %v8321
        %v8413 = vpop.f32.mrb[0].mxu0
        %v8414 = vadd.f32 %v8268, %v8413
        %v8415 = vpop.f32.mrb[0].mxu0
        %v8416 = vadd.f32 %v8270, %v8415
        %8417 = vmatprep.mubr.f32.mxu0 0.0
        %8418 = vmatmul.mubr.f32.gmra.mrb[0].mxu0 %v8324
        %v8419 = vpop.f32.mrb[0].mxu0
        %v8420 = vadd.f32 %v8274, %v8419
        %v8421 = vpop.f32.mrb[0].mxu0
        %v8422 = vadd.f32 %v8276, %v8421
        %8423 = vmatprep.mubr.f32.mxu0 0.0
        %8424 = vmatmul.mubr.f32.gmra.mrb[0].mxu0 %v8327
        %v8425 = vpop.f32.mrb[0].mxu0
        %v8426 = vadd.f32 %v8280, %v8425
        %v8427 = vpop.f32.mrb[0].mxu0
        %v8428 = vadd.f32 %v8282, %v8427
        %8429 = vmatprep.mubr.f32.mxu0 0.0
        %8430 = vmatmul.mubr.f32.gmra.mrb[0].mxu0 %v8330
        %v8431 = vpop.f32.mrb[0].mxu0
        %v8432 = vadd.f32 %v8286, %v8431
        %v8433 = vpop.f32.mrb[0].mxu0
        %v8434 = vadd.f32 %v8288, %v8433
        %8435 = vmatprep.mubr.f32.mxu0 0.0
        %8436 = vmatmul.mubr.f32.gmra.mrb[0].mxu0 %v8333
        %v8437 = vpop.f32.mrb[0].mxu0
        %v8438 = vadd.f32 %v8292, %v8437
        %v8439 = vpop.f32.mrb[0].mxu0
        %v8440 = vadd.f32 %v8294, %v8439
        %8441 = vmatprep.mubr.f32.mxu0 0.0
        %8442 = vmatmul.mubr.f32.gmra.mrb[0].mxu0 %v8336
        %v8443 = vpop.f32.mrb[0].mxu0
        %v8444 = vadd.f32 %v8298, %v8443
        %v8445 = vpop.f32.mrb[0].mxu0
        %v8446 = vadd.f32 %v8300, %v8445
        %8447 = vmatprep.mubr.f32.mxu0 0.0
        %8448 = vmatmul.mubr.f32.gmra.mrb[0].mxu0 %v8339
        %v8449 = vpop.f32.mrb[0].mxu0
        %v8450 = vadd.f32 %v8304, %v8449
        %v8451 = vpop.f32.mrb[0].mxu0
        %v8452 = vadd.f32 %v8306, %v8451
        %8453 = vmatprep.mubr.f32.mxu0 0.0
        %8454 = vmatmul.mubr.f32.gmra.mrb[0].mxu0 %v8342
        %v8455 = vpop.f32.mrb[0].mxu0
        %v8456 = vadd.f32 %v8310, %v8455
        %v8457 = vpop.f32.mrb[0].mxu0
        %v8458 = vadd.f32 %v8312, %v8457
        %8459 = vmatprep.mubr.f32.mxu0 0.0
        %8460 = vmatmul.mubr.f32.gmra.mrb[0].mxu0 %v8345
        %v8461 = vpop.f32.mrb[0].mxu0
        %v8462 = vadd.f32 %v8316, %v8461
        %v8463 = vpop.f32.mrb[0].mxu0
        %v8464 = vadd.f32 %v8318, %v8463
        %8465 = vdwg.mxu0
        %s8466 = scalar_lea.vmem %s7, 432
        %v8467 = vld [vmem:[%s8466] sm:$0xff]
        %v8468 = vld [vmem:[%s8466 + $0x8] sm:$0xff]
        %v8469 = vld [vmem:[%s8466 + $0x10] sm:$0xff]
        %v8470 = vld [vmem:[%s8466 + $0x18] sm:$0xff]
        %v8471 = vld [vmem:[%s8466 + $0x20] sm:$0xff]
        %v8472 = vld [vmem:[%s8466 + $0x28] sm:$0xff]
        %v8473 = vld [vmem:[%s8466 + $0x30] sm:$0xff]
        %v8474 = vld [vmem:[%s8466 + $0x38] sm:$0xff]
        %v8475 = vld [vmem:[%s8466 + $0x40] sm:$0xf]
        %8476 = vrot.lane.b32.xlu0 %v8091, 96
        %v8477 = vpop.permute.xlu0 %8476
        %8478 = vrot.lane.b32.xlu0 %v8092, 96
        %v8479 = vpop.permute.xlu0 %8478
        %8480 = vrot.lane.b32.xlu0 %v8093, 96
        %v8481 = vpop.permute.xlu0 %8480
        %8482 = vrot.lane.b32.xlu0 %v8094, 96
        %v8483 = vpop.permute.xlu0 %8482
        %8484 = vrot.lane.b32.xlu0 %v8095, 96
        %v8485 = vpop.permute.xlu0 %8484
        %8486 = vrot.lane.b32.xlu0 %v8096, 96
        %v8487 = vpop.permute.xlu0 %8486
        %8488 = vrot.lane.b32.xlu0 %v8097, 96
        %v8489 = vpop.permute.xlu0 %8488
        %8490 = vrot.lane.b32.xlu0 %v8098, 96
        %v8491 = vpop.permute.xlu0 %8490
        %8492 = vrot.lane.b32.xlu0 %v8099, 96
        %v8493 = vpop.permute.xlu0 %8492
        %8494 = vrot.lane.b32.xlu0 %v8100, 96
        %v8495 = vpop.permute.xlu0 %8494
        %8496 = vrot.lane.b32.xlu0 %v8101, 96
        %v8497 = vpop.permute.xlu0 %8496
        %8498 = vrot.lane.b32.xlu0 %v8102, 96
        %v8499 = vpop.permute.xlu0 %8498
        %v8500 = vsel %vm705, %v8477, %v8479
        %v8501 = vsel %vm705, %v8479, %v8481
        %v8502 = vsel %vm705, %v8483, %v8485
        %v8503 = vsel %vm705, %v8485, %v8487
        %v8504 = vsel %vm705, %v8489, %v8491
        %v8505 = vsel %vm705, %v8491, %v8493
        %v8506 = vsel %vm705, %v8495, %v8497
        %v8507 = vsel %vm705, %v8497, %v8499
        %v8517 = vsel %vm2944, %v8467, 0
        %v8520 = vsel %vm2944, %v8468, 0
        %v8523 = vsel %vm2944, %v8469, 0
        %v8526 = vsel %vm2944, %v8470, 0
        %v8529 = vsel %vm2944, %v8471, 0
        %v8532 = vsel %vm2944, %v8472, 0
        %v8535 = vsel %vm2944, %v8473, 0
        %v8538 = vsel %vm2944, %v8474, 0
        %v8541 = vsel %vm2944, %v8475, 0
        %8543 = vmatprep.subr.mxu0 %v8501
        %8544 = vmatpush1.msra.mxu0 %v8500
        %8545 = vmatprep.subr.mxu0 %v8503
        %8546 = vmatpush1.msra.mxu0 %v8502
        %8547 = vmatprep.subr.mxu0 %v8505
        %8548 = vmatpush1.msra.mxu0 %v8504
        %8549 = vmatprep.subr.mxu0 %v8507
        %8550 = vmatpush1.msra.mxu0 %v8506
        %8551 = vmatprep.subr.mxu0 0.0
        %8552 = vmatpush1.msra.mxu0 0.0
        %8553 = vmatprep.subr.mxu0 0.0
        %8554 = vmatpush1.msra.mxu0 0.0
        %8555 = vmatprep.subr.mxu0 0.0
        %8556 = vmatpush1.msra.mxu0 0.0
        %8557 = vmatprep.subr.mxu0 0.0
        %8558 = vmatpush1.msra.mxu0 0.0
        %8559 = vmatprep.subr.mxu0 0.0
        %8560 = vmatpush1.msra.mxu0 0.0
        %8561 = vmatprep.subr.mxu0 0.0
        %8562 = vmatpush1.msra.mxu0 0.0
        %8563 = vmatprep.subr.mxu0 0.0
        %8564 = vmatpush1.msra.mxu0 0.0
        %8565 = vmatprep.subr.mxu0 0.0
        %8566 = vmatpush1.msra.mxu0 0.0
        %8567 = vmatprep.subr.mxu0 0.0
        %8568 = vmatpush1.msra.mxu0 0.0
        %8569 = vmatprep.subr.mxu0 0.0
        %8570 = vmatpush1.msra.mxu0 0.0
        %8571 = vmatprep.subr.mxu0 0.0
        %8572 = vmatpush1.msra.mxu0 0.0
        %8573 = vmatprep.subr.mxu0 0.0
        %8574 = vmatpush1.msra.mxu0 0.0
        %8575 = vmatprep.subr.mxu0 0.0
        %8576 = vmatpush1.msra.mxu0 0.0
        %8577 = vmatprep.subr.mxu0 0.0
        %8578 = vmatpush1.msra.mxu0 0.0
        %8579 = vmatprep.subr.mxu0 0.0
        %8580 = vmatpush1.msra.mxu0 0.0
        %8581 = vmatprep.subr.mxu0 0.0
        %8582 = vmatpush1.msra.mxu0 0.0
        %8583 = vmatprep.subr.mxu0 0.0
        %8584 = vmatpush1.msra.mxu0 0.0
        %8585 = vmatprep.subr.mxu0 0.0
        %8586 = vmatpush1.msra.mxu0 0.0
        %8587 = vmatprep.subr.mxu0 0.0
        %8588 = vmatpush1.msra.mxu0 0.0
        %8589 = vmatprep.subr.mxu0 0.0
        %8590 = vmatpush1.msra.mxu0 0.0
        %8591 = vmatprep.subr.mxu0 0.0
        %8592 = vmatpush1.msra.mxu0 0.0
        %8593 = vmatprep.subr.mxu0 0.0
        %8594 = vmatpush1.msra.mxu0 0.0
        %8595 = vmatprep.subr.mxu0 0.0
        %8596 = vmatpush1.msra.mxu0 0.0
        %8597 = vmatprep.subr.mxu0 0.0
        %8598 = vmatpush1.msra.mxu0 0.0
        %8599 = vmatprep.subr.mxu0 0.0
        %8600 = vmatpush1.msra.mxu0 0.0
        %8601 = vmatprep.subr.mxu0 0.0
        %8602 = vmatpush1.msra.mxu0 0.0
        %8603 = vmatprep.subr.mxu0 0.0
        %8604 = vmatpush1.msra.mxu0 0.0
        %8605 = vmatprep.subr.mxu0 0.0
        %8606 = vmatpush1.msra.mxu0 0.0
        %8607 = vmatprep.mubr.f32.mxu0 0.0
        %8608 = vmatmul.mubr.f32.gmra.mrb[0].mxu0 %v8517
        %v8609 = vpop.f32.mrb[0].mxu0
        %v8610 = vadd.f32 0.0, %v8609
        %v8611 = vpop.f32.mrb[0].mxu0
        %v8612 = vadd.f32 0.0, %v8611
        %8613 = vmatprep.mubr.f32.mxu0 0.0
        %8614 = vmatmul.mubr.f32.gmra.mrb[0].mxu0 %v8520
        %v8615 = vpop.f32.mrb[0].mxu0
        %v8616 = vadd.f32 0.0, %v8615
        %v8617 = vpop.f32.mrb[0].mxu0
        %v8618 = vadd.f32 0.0, %v8617
        %8619 = vmatprep.mubr.f32.mxu0 0.0
        %8620 = vmatmul.mubr.f32.gmra.mrb[0].mxu0 %v8523
        %v8621 = vpop.f32.mrb[0].mxu0
        %v8622 = vadd.f32 0.0, %v8621
        %v8623 = vpop.f32.mrb[0].mxu0
        %v8624 = vadd.f32 0.0, %v8623
        %8625 = vmatprep.mubr.f32.mxu0 0.0
        %8626 = vmatmul.mubr.f32.gmra.mrb[0].mxu0 %v8526
        %v8627 = vpop.f32.mrb[0].mxu0
        %v8628 = vadd.f32 0.0, %v8627
        %v8629 = vpop.f32.mrb[0].mxu0
        %v8630 = vadd.f32 0.0, %v8629
        %8631 = vmatprep.mubr.f32.mxu0 0.0
        %8632 = vmatmul.mubr.f32.gmra.mrb[0].mxu0 %v8529
        %v8633 = vpop.f32.mrb[0].mxu0
        %v8634 = vadd.f32 0.0, %v8633
        %v8635 = vpop.f32.mrb[0].mxu0
        %v8636 = vadd.f32 0.0, %v8635
        %8637 = vmatprep.mubr.f32.mxu0 0.0
        %8638 = vmatmul.mubr.f32.gmra.mrb[0].mxu0 %v8532
        %v8639 = vpop.f32.mrb[0].mxu0
        %v8640 = vadd.f32 0.0, %v8639
        %v8641 = vpop.f32.mrb[0].mxu0
        %v8642 = vadd.f32 0.0, %v8641
        %8643 = vmatprep.mubr.f32.mxu0 0.0
        %8644 = vmatmul.mubr.f32.gmra.mrb[0].mxu0 %v8535
        %v8645 = vpop.f32.mrb[0].mxu0
        %v8646 = vadd.f32 0.0, %v8645
        %v8647 = vpop.f32.mrb[0].mxu0
        %v8648 = vadd.f32 0.0, %v8647
        %8649 = vmatprep.mubr.f32.mxu0 0.0
        %8650 = vmatmul.mubr.f32.gmra.mrb[0].mxu0 %v8538
        %v8651 = vpop.f32.mrb[0].mxu0
        %v8652 = vadd.f32 0.0, %v8651
        %v8653 = vpop.f32.mrb[0].mxu0
        %v8654 = vadd.f32 0.0, %v8653
        %8655 = vmatprep.mubr.f32.mxu0 0.0
        %8656 = vmatmul.mubr.f32.gmra.mrb[0].mxu0 %v8541
        %v8657 = vpop.f32.mrb[0].mxu0
        %v8658 = vadd.f32 0.0, %v8657
        %v8659 = vpop.f32.mrb[0].mxu0
        %v8660 = vadd.f32 0.0, %v8659
        %8661 = vdwg.mxu0
        %v8662 = vadd.f32 %v8414, %v8610
        %v8663 = vadd.f32 %v8416, %v8612
        %v8664 = vadd.f32 %v8420, %v8616
        %v8665 = vadd.f32 %v8422, %v8618
        %v8666 = vadd.f32 %v8426, %v8622
        %v8667 = vadd.f32 %v8428, %v8624
        %v8668 = vadd.f32 %v8432, %v8628
        %v8669 = vadd.f32 %v8434, %v8630
        %v8670 = vadd.f32 %v8438, %v8634
        %v8671 = vadd.f32 %v8440, %v8636
        %v8672 = vadd.f32 %v8444, %v8640
        %v8673 = vadd.f32 %v8446, %v8642
        %v8674 = vadd.f32 %v8450, %v8646
        %v8675 = vadd.f32 %v8452, %v8648
        %v8676 = vadd.f32 %v8456, %v8652
        %v8677 = vadd.f32 %v8458, %v8654
        %v8678 = vadd.f32 %v8462, %v8658
        %v8679 = vadd.f32 %v8464, %v8660
        %v8680 = vmul.f32 %v8079, %v6490
        %v8681 = vmul.f32 %v8080, %v6495
        %v8682 = vmul.f32 %v8081, %v6496
        %v8683 = vmul.f32 %v8082, %v6490
        %v8684 = vmul.f32 %v8083, %v6495
        %v8685 = vmul.f32 %v8084, %v6496
        %v8686 = vmul.f32 %v8085, %v6490
        %v8687 = vmul.f32 %v8086, %v6495
        %v8688 = vmul.f32 %v8087, %v6496
        %v8689 = vmul.f32 %v8088, %v6490
        %v8690 = vmul.f32 %v8089, %v6495
        %v8691 = vmul.f32 %v8090, %v6496
        %s8692 = scalar_lea.vmem %s7, 72
        %v8693 = vld [vmem:[%s8692] sm:$0xff]
        %v8694 = vld [vmem:[%s8692 + $0x8] sm:$0xff]
        %v8695 = vld [vmem:[%s8692 + $0x10] sm:$0xff]
        %v8696 = vld [vmem:[%s8692 + $0x18] sm:$0xff]
        %v8697 = vld [vmem:[%s8692 + $0x20] sm:$0xff]
        %v8698 = vld [vmem:[%s8692 + $0x28] sm:$0xff]
        %v8699 = vld [vmem:[%s8692 + $0x30] sm:$0xff]
        %v8700 = vld [vmem:[%s8692 + $0x38] sm:$0xff]
        %v8701 = vld [vmem:[%s8692 + $0x40] sm:$0xf]
        %8714 = vrot.lane.b32.xlu0 %v8680, 127
        %v8715 = vpop.permute.xlu0 %8714
        %8716 = vrot.lane.b32.xlu0 %v8681, 127
        %v8717 = vpop.permute.xlu0 %8716
        %8718 = vrot.lane.b32.xlu0 %v8682, 127
        %v8719 = vpop.permute.xlu0 %8718
        %8720 = vrot.lane.b32.xlu0 %v8683, 127
        %v8721 = vpop.permute.xlu0 %8720
        %8722 = vrot.lane.b32.xlu0 %v8684, 127
        %v8723 = vpop.permute.xlu0 %8722
        %8724 = vrot.lane.b32.xlu0 %v8685, 127
        %v8725 = vpop.permute.xlu0 %8724
        %8726 = vrot.lane.b32.xlu0 %v8686, 127
        %v8727 = vpop.permute.xlu0 %8726
        %8728 = vrot.lane.b32.xlu0 %v8687, 127
        %v8729 = vpop.permute.xlu0 %8728
        %8730 = vrot.lane.b32.xlu0 %v8688, 127
        %v8731 = vpop.permute.xlu0 %8730
        %8732 = vrot.lane.b32.xlu0 %v8689, 127
        %v8733 = vpop.permute.xlu0 %8732
        %8734 = vrot.lane.b32.xlu0 %v8690, 127
        %v8735 = vpop.permute.xlu0 %8734
        %8736 = vrot.lane.b32.xlu0 %v8691, 127
        %v8737 = vpop.permute.xlu0 %8736
        %v8738 = vsel %vm1011, %v8715, %v8717
        %v8739 = vsel %vm1011, %v8717, %v8719
        %v8740 = vsel %vm1011, %v8721, %v8723
        %v8741 = vsel %vm1011, %v8723, %v8725
        %v8742 = vsel %vm1011, %v8727, %v8729
        %v8743 = vsel %vm1011, %v8729, %v8731
        %v8744 = vsel %vm1011, %v8733, %v8735
        %v8745 = vsel %vm1011, %v8735, %v8737
        %v8755 = vsel %vm2944, %v8693, 0
        %v8758 = vsel %vm2944, %v8694, 0
        %v8761 = vsel %vm2944, %v8695, 0
        %v8764 = vsel %vm2944, %v8696, 0
        %v8767 = vsel %vm2944, %v8697, 0
        %v8770 = vsel %vm2944, %v8698, 0
        %v8773 = vsel %vm2944, %v8699, 0
        %v8776 = vsel %vm2944, %v8700, 0
        %v8779 = vsel %vm2944, %v8701, 0
        %8781 = vmatprep.subr.mxu0 %v8739
        %8782 = vmatpush1.msra.mxu0 %v8738
        %8783 = vmatprep.subr.mxu0 %v8741
        %8784 = vmatpush1.msra.mxu0 %v8740
        %8785 = vmatprep.subr.mxu0 %v8743
        %8786 = vmatpush1.msra.mxu0 %v8742
        %8787 = vmatprep.subr.mxu0 %v8745
        %8788 = vmatpush1.msra.mxu0 %v8744
        %8789 = vmatprep.subr.mxu0 0.0
        %8790 = vmatpush1.msra.mxu0 0.0
        %8791 = vmatprep.subr.mxu0 0.0
        %8792 = vmatpush1.msra.mxu0 0.0
        %8793 = vmatprep.subr.mxu0 0.0
        %8794 = vmatpush1.msra.mxu0 0.0
        %8795 = vmatprep.subr.mxu0 0.0
        %8796 = vmatpush1.msra.mxu0 0.0
        %8797 = vmatprep.subr.mxu0 0.0
        %8798 = vmatpush1.msra.mxu0 0.0
        %8799 = vmatprep.subr.mxu0 0.0
        %8800 = vmatpush1.msra.mxu0 0.0
        %8801 = vmatprep.subr.mxu0 0.0
        %8802 = vmatpush1.msra.mxu0 0.0
        %8803 = vmatprep.subr.mxu0 0.0
        %8804 = vmatpush1.msra.mxu0 0.0
        %8805 = vmatprep.subr.mxu0 0.0
        %8806 = vmatpush1.msra.mxu0 0.0
        %8807 = vmatprep.subr.mxu0 0.0
        %8808 = vmatpush1.msra.mxu0 0.0
        %8809 = vmatprep.subr.mxu0 0.0
        %8810 = vmatpush1.msra.mxu0 0.0
        %8811 = vmatprep.subr.mxu0 0.0
        %8812 = vmatpush1.msra.mxu0 0.0
        %8813 = vmatprep.subr.mxu0 0.0
        %8814 = vmatpush1.msra.mxu0 0.0
        %8815 = vmatprep.subr.mxu0 0.0
        %8816 = vmatpush1.msra.mxu0 0.0
        %8817 = vmatprep.subr.mxu0 0.0
        %8818 = vmatpush1.msra.mxu0 0.0
        %8819 = vmatprep.subr.mxu0 0.0
        %8820 = vmatpush1.msra.mxu0 0.0
        %8821 = vmatprep.subr.mxu0 0.0
        %8822 = vmatpush1.msra.mxu0 0.0
        %8823 = vmatprep.subr.mxu0 0.0
        %8824 = vmatpush1.msra.mxu0 0.0
        %8825 = vmatprep.subr.mxu0 0.0
        %8826 = vmatpush1.msra.mxu0 0.0
        %8827 = vmatprep.subr.mxu0 0.0
        %8828 = vmatpush1.msra.mxu0 0.0
        %8829 = vmatprep.subr.mxu0 0.0
        %8830 = vmatpush1.msra.mxu0 0.0
        %8831 = vmatprep.subr.mxu0 0.0
        %8832 = vmatpush1.msra.mxu0 0.0
        %8833 = vmatprep.subr.mxu0 0.0
        %8834 = vmatpush1.msra.mxu0 0.0
        %8835 = vmatprep.subr.mxu0 0.0
        %8836 = vmatpush1.msra.mxu0 0.0
        %8837 = vmatprep.subr.mxu0 0.0
        %8838 = vmatpush1.msra.mxu0 0.0
        %8839 = vmatprep.subr.mxu0 0.0
        %8840 = vmatpush1.msra.mxu0 0.0
        %8841 = vmatprep.subr.mxu0 0.0
        %8842 = vmatpush1.msra.mxu0 0.0
        %8843 = vmatprep.subr.mxu0 0.0
        %8844 = vmatpush1.msra.mxu0 0.0
        %8845 = vmatprep.mubr.f32.mxu0 0.0
        %8846 = vmatmul.mubr.f32.gmra.mrb[0].mxu0 %v8755
        %v8847 = vpop.f32.mrb[0].mxu0
        %v8848 = vadd.f32 0.0, %v8847
        %v8849 = vpop.f32.mrb[0].mxu0
        %v8850 = vadd.f32 0.0, %v8849
        %8851 = vmatprep.mubr.f32.mxu0 0.0
        %8852 = vmatmul.mubr.f32.gmra.mrb[0].mxu0 %v8758
        %v8853 = vpop.f32.mrb[0].mxu0
        %v8854 = vadd.f32 0.0, %v8853
        %v8855 = vpop.f32.mrb[0].mxu0
        %v8856 = vadd.f32 0.0, %v8855
        %8857 = vmatprep.mubr.f32.mxu0 0.0
        %8858 = vmatmul.mubr.f32.gmra.mrb[0].mxu0 %v8761
        %v8859 = vpop.f32.mrb[0].mxu0
        %v8860 = vadd.f32 0.0, %v8859
        %v8861 = vpop.f32.mrb[0].mxu0
        %v8862 = vadd.f32 0.0, %v8861
        %8863 = vmatprep.mubr.f32.mxu0 0.0
        %8864 = vmatmul.mubr.f32.gmra.mrb[0].mxu0 %v8764
        %v8865 = vpop.f32.mrb[0].mxu0
        %v8866 = vadd.f32 0.0, %v8865
        %v8867 = vpop.f32.mrb[0].mxu0
        %v8868 = vadd.f32 0.0, %v8867
        %8869 = vmatprep.mubr.f32.mxu0 0.0
        %8870 = vmatmul.mubr.f32.gmra.mrb[0].mxu0 %v8767
        %v8871 = vpop.f32.mrb[0].mxu0
        %v8872 = vadd.f32 0.0, %v8871
        %v8873 = vpop.f32.mrb[0].mxu0
        %v8874 = vadd.f32 0.0, %v8873
        %8875 = vmatprep.mubr.f32.mxu0 0.0
        %8876 = vmatmul.mubr.f32.gmra.mrb[0].mxu0 %v8770
        %v8877 = vpop.f32.mrb[0].mxu0
        %v8878 = vadd.f32 0.0, %v8877
        %v8879 = vpop.f32.mrb[0].mxu0
        %v8880 = vadd.f32 0.0, %v8879
        %8881 = vmatprep.mubr.f32.mxu0 0.0
        %8882 = vmatmul.mubr.f32.gmra.mrb[0].mxu0 %v8773
        %v8883 = vpop.f32.mrb[0].mxu0
        %v8884 = vadd.f32 0.0, %v8883
        %v8885 = vpop.f32.mrb[0].mxu0
        %v8886 = vadd.f32 0.0, %v8885
        %8887 = vmatprep.mubr.f32.mxu0 0.0
        %8888 = vmatmul.mubr.f32.gmra.mrb[0].mxu0 %v8776
        %v8889 = vpop.f32.mrb[0].mxu0
        %v8890 = vadd.f32 0.0, %v8889
        %v8891 = vpop.f32.mrb[0].mxu0
        %v8892 = vadd.f32 0.0, %v8891
        %8893 = vmatprep.mubr.f32.mxu0 0.0
        %8894 = vmatmul.mubr.f32.gmra.mrb[0].mxu0 %v8779
        %v8895 = vpop.f32.mrb[0].mxu0
        %v8896 = vadd.f32 0.0, %v8895
        %v8897 = vpop.f32.mrb[0].mxu0
        %v8898 = vadd.f32 0.0, %v8897
        %8899 = vdwg.mxu0
        %v8900 = vadd.f32 %v8662, %v8848
        %v8901 = vadd.f32 %v8663, %v8850
        %v8902 = vadd.f32 %v8664, %v8854
        %v8903 = vadd.f32 %v8665, %v8856
        %v8904 = vadd.f32 %v8666, %v8860
        %v8905 = vadd.f32 %v8667, %v8862
        %v8906 = vadd.f32 %v8668, %v8866
        %v8907 = vadd.f32 %v8669, %v8868
        %v8908 = vadd.f32 %v8670, %v8872
        %v8909 = vadd.f32 %v8671, %v8874
        %v8910 = vadd.f32 %v8672, %v8878
        %v8911 = vadd.f32 %v8673, %v8880
        %v8912 = vadd.f32 %v8674, %v8884
        %v8913 = vadd.f32 %v8675, %v8886
        %v8914 = vadd.f32 %v8676, %v8890
        %v8915 = vadd.f32 %v8677, %v8892
        %v8916 = vadd.f32 %v8678, %v8896
        %v8917 = vadd.f32 %v8679, %v8898
        %s8918 = scalar_lea.vmem %s7, 288
        %v8919 = vld [vmem:[%s8918] sm:$0xff]
        %v8920 = vld [vmem:[%s8918 + $0x8] sm:$0xff]
        %v8921 = vld [vmem:[%s8918 + $0x10] sm:$0xff]
        %v8922 = vld [vmem:[%s8918 + $0x18] sm:$0xff]
        %v8923 = vld [vmem:[%s8918 + $0x20] sm:$0xff]
        %v8924 = vld [vmem:[%s8918 + $0x28] sm:$0xff]
        %v8925 = vld [vmem:[%s8918 + $0x30] sm:$0xff]
        %v8926 = vld [vmem:[%s8918 + $0x38] sm:$0xff]
        %v8927 = vld [vmem:[%s8918 + $0x40] sm:$0xf]
        %8928 = vrot.lane.b32.xlu0 %v8680, 111
        %v8929 = vpop.permute.xlu0 %8928
        %8930 = vrot.lane.b32.xlu0 %v8681, 111
        %v8931 = vpop.permute.xlu0 %8930
        %8932 = vrot.lane.b32.xlu0 %v8682, 111
        %v8933 = vpop.permute.xlu0 %8932
        %8934 = vrot.lane.b32.xlu0 %v8683, 111
        %v8935 = vpop.permute.xlu0 %8934
        %8936 = vrot.lane.b32.xlu0 %v8684, 111
        %v8937 = vpop.permute.xlu0 %8936
        %8938 = vrot.lane.b32.xlu0 %v8685, 111
        %v8939 = vpop.permute.xlu0 %8938
        %8940 = vrot.lane.b32.xlu0 %v8686, 111
        %v8941 = vpop.permute.xlu0 %8940
        %8942 = vrot.lane.b32.xlu0 %v8687, 111
        %v8943 = vpop.permute.xlu0 %8942
        %8944 = vrot.lane.b32.xlu0 %v8688, 111
        %v8945 = vpop.permute.xlu0 %8944
        %8946 = vrot.lane.b32.xlu0 %v8689, 111
        %v8947 = vpop.permute.xlu0 %8946
        %8948 = vrot.lane.b32.xlu0 %v8690, 111
        %v8949 = vpop.permute.xlu0 %8948
        %8950 = vrot.lane.b32.xlu0 %v8691, 111
        %v8951 = vpop.permute.xlu0 %8950
        %v8952 = vsel %vm1100, %v8929, %v8931
        %v8953 = vsel %vm1100, %v8931, %v8933
        %v8954 = vsel %vm1100, %v8935, %v8937
        %v8955 = vsel %vm1100, %v8937, %v8939
        %v8956 = vsel %vm1100, %v8941, %v8943
        %v8957 = vsel %vm1100, %v8943, %v8945
        %v8958 = vsel %vm1100, %v8947, %v8949
        %v8959 = vsel %vm1100, %v8949, %v8951
        %v8969 = vsel %vm2944, %v8919, 0
        %v8972 = vsel %vm2944, %v8920, 0
        %v8975 = vsel %vm2944, %v8921, 0
        %v8978 = vsel %vm2944, %v8922, 0
        %v8981 = vsel %vm2944, %v8923, 0
        %v8984 = vsel %vm2944, %v8924, 0
        %v8987 = vsel %vm2944, %v8925, 0
        %v8990 = vsel %vm2944, %v8926, 0
        %v8993 = vsel %vm2944, %v8927, 0
        %8995 = vmatprep.subr.mxu0 %v8953
        %8996 = vmatpush1.msra.mxu0 %v8952
        %8997 = vmatprep.subr.mxu0 %v8955
        %8998 = vmatpush1.msra.mxu0 %v8954
        %8999 = vmatprep.subr.mxu0 %v8957
        %9000 = vmatpush1.msra.mxu0 %v8956
        %9001 = vmatprep.subr.mxu0 %v8959
        %9002 = vmatpush1.msra.mxu0 %v8958
        %9003 = vmatprep.subr.mxu0 0.0
        %9004 = vmatpush1.msra.mxu0 0.0
        %9005 = vmatprep.subr.mxu0 0.0
        %9006 = vmatpush1.msra.mxu0 0.0
        %9007 = vmatprep.subr.mxu0 0.0
        %9008 = vmatpush1.msra.mxu0 0.0
        %9009 = vmatprep.subr.mxu0 0.0
        %9010 = vmatpush1.msra.mxu0 0.0
        %9011 = vmatprep.subr.mxu0 0.0
        %9012 = vmatpush1.msra.mxu0 0.0
        %9013 = vmatprep.subr.mxu0 0.0
        %9014 = vmatpush1.msra.mxu0 0.0
        %9015 = vmatprep.subr.mxu0 0.0
        %9016 = vmatpush1.msra.mxu0 0.0
        %9017 = vmatprep.subr.mxu0 0.0
        %9018 = vmatpush1.msra.mxu0 0.0
        %9019 = vmatprep.subr.mxu0 0.0
        %9020 = vmatpush1.msra.mxu0 0.0
        %9021 = vmatprep.subr.mxu0 0.0
        %9022 = vmatpush1.msra.mxu0 0.0
        %9023 = vmatprep.subr.mxu0 0.0
        %9024 = vmatpush1.msra.mxu0 0.0
        %9025 = vmatprep.subr.mxu0 0.0
        %9026 = vmatpush1.msra.mxu0 0.0
        %9027 = vmatprep.subr.mxu0 0.0
        %9028 = vmatpush1.msra.mxu0 0.0
        %9029 = vmatprep.subr.mxu0 0.0
        %9030 = vmatpush1.msra.mxu0 0.0
        %9031 = vmatprep.subr.mxu0 0.0
        %9032 = vmatpush1.msra.mxu0 0.0
        %9033 = vmatprep.subr.mxu0 0.0
        %9034 = vmatpush1.msra.mxu0 0.0
        %9035 = vmatprep.subr.mxu0 0.0
        %9036 = vmatpush1.msra.mxu0 0.0
        %9037 = vmatprep.subr.mxu0 0.0
        %9038 = vmatpush1.msra.mxu0 0.0
        %9039 = vmatprep.subr.mxu0 0.0
        %9040 = vmatpush1.msra.mxu0 0.0
        %9041 = vmatprep.subr.mxu0 0.0
        %9042 = vmatpush1.msra.mxu0 0.0
        %9043 = vmatprep.subr.mxu0 0.0
        %9044 = vmatpush1.msra.mxu0 0.0
        %9045 = vmatprep.subr.mxu0 0.0
        %9046 = vmatpush1.msra.mxu0 0.0
        %9047 = vmatprep.subr.mxu0 0.0
        %9048 = vmatpush1.msra.mxu0 0.0
        %9049 = vmatprep.subr.mxu0 0.0
        %9050 = vmatpush1.msra.mxu0 0.0
        %9051 = vmatprep.subr.mxu0 0.0
        %9052 = vmatpush1.msra.mxu0 0.0
        %9053 = vmatprep.subr.mxu0 0.0
        %9054 = vmatpush1.msra.mxu0 0.0
        %9055 = vmatprep.subr.mxu0 0.0
        %9056 = vmatpush1.msra.mxu0 0.0
        %9057 = vmatprep.subr.mxu0 0.0
        %9058 = vmatpush1.msra.mxu0 0.0
        %9059 = vmatprep.mubr.f32.mxu0 0.0
        %9060 = vmatmul.mubr.f32.gmra.mrb[0].mxu0 %v8969
        %v9061 = vpop.f32.mrb[0].mxu0
        %v9062 = vadd.f32 0.0, %v9061
        %v9063 = vpop.f32.mrb[0].mxu0
        %v9064 = vadd.f32 0.0, %v9063
        %9065 = vmatprep.mubr.f32.mxu0 0.0
        %9066 = vmatmul.mubr.f32.gmra.mrb[0].mxu0 %v8972
        %v9067 = vpop.f32.mrb[0].mxu0
        %v9068 = vadd.f32 0.0, %v9067
        %v9069 = vpop.f32.mrb[0].mxu0
        %v9070 = vadd.f32 0.0, %v9069
        %9071 = vmatprep.mubr.f32.mxu0 0.0
        %9072 = vmatmul.mubr.f32.gmra.mrb[0].mxu0 %v8975
        %v9073 = vpop.f32.mrb[0].mxu0
        %v9074 = vadd.f32 0.0, %v9073
        %v9075 = vpop.f32.mrb[0].mxu0
        %v9076 = vadd.f32 0.0, %v9075
        %9077 = vmatprep.mubr.f32.mxu0 0.0
        %9078 = vmatmul.mubr.f32.gmra.mrb[0].mxu0 %v8978
        %v9079 = vpop.f32.mrb[0].mxu0
        %v9080 = vadd.f32 0.0, %v9079
        %v9081 = vpop.f32.mrb[0].mxu0
        %v9082 = vadd.f32 0.0, %v9081
        %9083 = vmatprep.mubr.f32.mxu0 0.0
        %9084 = vmatmul.mubr.f32.gmra.mrb[0].mxu0 %v8981
        %v9085 = vpop.f32.mrb[0].mxu0
        %v9086 = vadd.f32 0.0, %v9085
        %v9087 = vpop.f32.mrb[0].mxu0
        %v9088 = vadd.f32 0.0, %v9087
        %9089 = vmatprep.mubr.f32.mxu0 0.0
        %9090 = vmatmul.mubr.f32.gmra.mrb[0].mxu0 %v8984
        %v9091 = vpop.f32.mrb[0].mxu0
        %v9092 = vadd.f32 0.0, %v9091
        %v9093 = vpop.f32.mrb[0].mxu0
        %v9094 = vadd.f32 0.0, %v9093
        %9095 = vmatprep.mubr.f32.mxu0 0.0
        %9096 = vmatmul.mubr.f32.gmra.mrb[0].mxu0 %v8987
        %v9097 = vpop.f32.mrb[0].mxu0
        %v9098 = vadd.f32 0.0, %v9097
        %v9099 = vpop.f32.mrb[0].mxu0
        %v9100 = vadd.f32 0.0, %v9099
        %9101 = vmatprep.mubr.f32.mxu0 0.0
        %9102 = vmatmul.mubr.f32.gmra.mrb[0].mxu0 %v8990
        %v9103 = vpop.f32.mrb[0].mxu0
        %v9104 = vadd.f32 0.0, %v9103
        %v9105 = vpop.f32.mrb[0].mxu0
        %v9106 = vadd.f32 0.0, %v9105
        %9107 = vmatprep.mubr.f32.mxu0 0.0
        %9108 = vmatmul.mubr.f32.gmra.mrb[0].mxu0 %v8993
        %v9109 = vpop.f32.mrb[0].mxu0
        %v9110 = vadd.f32 0.0, %v9109
        %v9111 = vpop.f32.mrb[0].mxu0
        %v9112 = vadd.f32 0.0, %v9111
        %9113 = vdwg.mxu0
        %v9114 = vadd.f32 %v8900, %v9062
        %v9115 = vadd.f32 %v8901, %v9064
        %v9116 = vadd.f32 %v8902, %v9068
        %v9117 = vadd.f32 %v8903, %v9070
        %v9118 = vadd.f32 %v8904, %v9074
        %v9119 = vadd.f32 %v8905, %v9076
        %v9120 = vadd.f32 %v8906, %v9080
        %v9121 = vadd.f32 %v8907, %v9082
        %v9122 = vadd.f32 %v8908, %v9086
        %v9123 = vadd.f32 %v8909, %v9088
        %v9124 = vadd.f32 %v8910, %v9092
        %v9125 = vadd.f32 %v8911, %v9094
        %v9126 = vadd.f32 %v8912, %v9098
        %v9127 = vadd.f32 %v8913, %v9100
        %v9128 = vadd.f32 %v8914, %v9104
        %v9129 = vadd.f32 %v8915, %v9106
        %v9130 = vadd.f32 %v8916, %v9110
        %v9131 = vadd.f32 %v8917, %v9112
        %s9132 = scalar_lea.vmem %s7, 504
        %v9133 = vld [vmem:[%s9132] sm:$0xff]
        %v9134 = vld [vmem:[%s9132 + $0x8] sm:$0xff]
        %v9135 = vld [vmem:[%s9132 + $0x10] sm:$0xff]
        %v9136 = vld [vmem:[%s9132 + $0x18] sm:$0xff]
        %v9137 = vld [vmem:[%s9132 + $0x20] sm:$0xff]
        %v9138 = vld [vmem:[%s9132 + $0x28] sm:$0xff]
        %v9139 = vld [vmem:[%s9132 + $0x30] sm:$0xff]
        %v9140 = vld [vmem:[%s9132 + $0x38] sm:$0xff]
        %v9141 = vld [vmem:[%s9132 + $0x40] sm:$0xf]
        %9142 = vrot.lane.b32.xlu0 %v8680, 95
        %v9143 = vpop.permute.xlu0 %9142
        %9144 = vrot.lane.b32.xlu0 %v8681, 95
        %v9145 = vpop.permute.xlu0 %9144
        %9146 = vrot.lane.b32.xlu0 %v8682, 95
        %v9147 = vpop.permute.xlu0 %9146
        %9148 = vrot.lane.b32.xlu0 %v8683, 95
        %v9149 = vpop.permute.xlu0 %9148
        %9150 = vrot.lane.b32.xlu0 %v8684, 95
        %v9151 = vpop.permute.xlu0 %9150
        %9152 = vrot.lane.b32.xlu0 %v8685, 95
        %v9153 = vpop.permute.xlu0 %9152
        %9154 = vrot.lane.b32.xlu0 %v8686, 95
        %v9155 = vpop.permute.xlu0 %9154
        %9156 = vrot.lane.b32.xlu0 %v8687, 95
        %v9157 = vpop.permute.xlu0 %9156
        %9158 = vrot.lane.b32.xlu0 %v8688, 95
        %v9159 = vpop.permute.xlu0 %9158
        %9160 = vrot.lane.b32.xlu0 %v8689, 95
        %v9161 = vpop.permute.xlu0 %9160
        %9162 = vrot.lane.b32.xlu0 %v8690, 95
        %v9163 = vpop.permute.xlu0 %9162
        %9164 = vrot.lane.b32.xlu0 %v8691, 95
        %v9165 = vpop.permute.xlu0 %9164
        %v9166 = vsel %vm1189, %v9143, %v9145
        %v9167 = vsel %vm1189, %v9145, %v9147
        %v9168 = vsel %vm1189, %v9149, %v9151
        %v9169 = vsel %vm1189, %v9151, %v9153
        %v9170 = vsel %vm1189, %v9155, %v9157
        %v9171 = vsel %vm1189, %v9157, %v9159
        %v9172 = vsel %vm1189, %v9161, %v9163
        %v9173 = vsel %vm1189, %v9163, %v9165
        %v9183 = vsel %vm2944, %v9133, 0
        %v9186 = vsel %vm2944, %v9134, 0
        %v9189 = vsel %vm2944, %v9135, 0
        %v9192 = vsel %vm2944, %v9136, 0
        %v9195 = vsel %vm2944, %v9137, 0
        %v9198 = vsel %vm2944, %v9138, 0
        %v9201 = vsel %vm2944, %v9139, 0
        %v9204 = vsel %vm2944, %v9140, 0
        %v9207 = vsel %vm2944, %v9141, 0
        %9209 = vmatprep.subr.mxu0 %v9167
        %9210 = vmatpush1.msra.mxu0 %v9166
        %9211 = vmatprep.subr.mxu0 %v9169
        %9212 = vmatpush1.msra.mxu0 %v9168
        %9213 = vmatprep.subr.mxu0 %v9171
        %9214 = vmatpush1.msra.mxu0 %v9170
        %9215 = vmatprep.subr.mxu0 %v9173
        %9216 = vmatpush1.msra.mxu0 %v9172
        %9217 = vmatprep.subr.mxu0 0.0
        %9218 = vmatpush1.msra.mxu0 0.0
        %9219 = vmatprep.subr.mxu0 0.0
        %9220 = vmatpush1.msra.mxu0 0.0
        %9221 = vmatprep.subr.mxu0 0.0
        %9222 = vmatpush1.msra.mxu0 0.0
        %9223 = vmatprep.subr.mxu0 0.0
        %9224 = vmatpush1.msra.mxu0 0.0
        %9225 = vmatprep.subr.mxu0 0.0
        %9226 = vmatpush1.msra.mxu0 0.0
        %9227 = vmatprep.subr.mxu0 0.0
        %9228 = vmatpush1.msra.mxu0 0.0
        %9229 = vmatprep.subr.mxu0 0.0
        %9230 = vmatpush1.msra.mxu0 0.0
        %9231 = vmatprep.subr.mxu0 0.0
        %9232 = vmatpush1.msra.mxu0 0.0
        %9233 = vmatprep.subr.mxu0 0.0
        %9234 = vmatpush1.msra.mxu0 0.0
        %9235 = vmatprep.subr.mxu0 0.0
        %9236 = vmatpush1.msra.mxu0 0.0
        %9237 = vmatprep.subr.mxu0 0.0
        %9238 = vmatpush1.msra.mxu0 0.0
        %9239 = vmatprep.subr.mxu0 0.0
        %9240 = vmatpush1.msra.mxu0 0.0
        %9241 = vmatprep.subr.mxu0 0.0
        %9242 = vmatpush1.msra.mxu0 0.0
        %9243 = vmatprep.subr.mxu0 0.0
        %9244 = vmatpush1.msra.mxu0 0.0
        %9245 = vmatprep.subr.mxu0 0.0
        %9246 = vmatpush1.msra.mxu0 0.0
        %9247 = vmatprep.subr.mxu0 0.0
        %9248 = vmatpush1.msra.mxu0 0.0
        %9249 = vmatprep.subr.mxu0 0.0
        %9250 = vmatpush1.msra.mxu0 0.0
        %9251 = vmatprep.subr.mxu0 0.0
        %9252 = vmatpush1.msra.mxu0 0.0
        %9253 = vmatprep.subr.mxu0 0.0
        %9254 = vmatpush1.msra.mxu0 0.0
        %9255 = vmatprep.subr.mxu0 0.0
        %9256 = vmatpush1.msra.mxu0 0.0
        %9257 = vmatprep.subr.mxu0 0.0
        %9258 = vmatpush1.msra.mxu0 0.0
        %9259 = vmatprep.subr.mxu0 0.0
        %9260 = vmatpush1.msra.mxu0 0.0
        %9261 = vmatprep.subr.mxu0 0.0
        %9262 = vmatpush1.msra.mxu0 0.0
        %9263 = vmatprep.subr.mxu0 0.0
        %9264 = vmatpush1.msra.mxu0 0.0
        %9265 = vmatprep.subr.mxu0 0.0
        %9266 = vmatpush1.msra.mxu0 0.0
        %9267 = vmatprep.subr.mxu0 0.0
        %9268 = vmatpush1.msra.mxu0 0.0
        %9269 = vmatprep.subr.mxu0 0.0
        %9270 = vmatpush1.msra.mxu0 0.0
        %9271 = vmatprep.subr.mxu0 0.0
        %9272 = vmatpush1.msra.mxu0 0.0
        %9273 = vmatprep.mubr.f32.mxu0 0.0
        %9274 = vmatmul.mubr.f32.gmra.mrb[0].mxu0 %v9183
        %v9275 = vpop.f32.mrb[0].mxu0
        %v9276 = vadd.f32 0.0, %v9275
        %v9277 = vpop.f32.mrb[0].mxu0
        %v9278 = vadd.f32 0.0, %v9277
        %9279 = vmatprep.mubr.f32.mxu0 0.0
        %9280 = vmatmul.mubr.f32.gmra.mrb[0].mxu0 %v9186
        %v9281 = vpop.f32.mrb[0].mxu0
        %v9282 = vadd.f32 0.0, %v9281
        %v9283 = vpop.f32.mrb[0].mxu0
        %v9284 = vadd.f32 0.0, %v9283
        %9285 = vmatprep.mubr.f32.mxu0 0.0
        %9286 = vmatmul.mubr.f32.gmra.mrb[0].mxu0 %v9189
        %v9287 = vpop.f32.mrb[0].mxu0
        %v9288 = vadd.f32 0.0, %v9287
        %v9289 = vpop.f32.mrb[0].mxu0
        %v9290 = vadd.f32 0.0, %v9289
        %9291 = vmatprep.mubr.f32.mxu0 0.0
        %9292 = vmatmul.mubr.f32.gmra.mrb[0].mxu0 %v9192
        %v9293 = vpop.f32.mrb[0].mxu0
        %v9294 = vadd.f32 0.0, %v9293
        %v9295 = vpop.f32.mrb[0].mxu0
        %v9296 = vadd.f32 0.0, %v9295
        %9297 = vmatprep.mubr.f32.mxu0 0.0
        %9298 = vmatmul.mubr.f32.gmra.mrb[0].mxu0 %v9195
        %v9299 = vpop.f32.mrb[0].mxu0
        %v9300 = vadd.f32 0.0, %v9299
        %v9301 = vpop.f32.mrb[0].mxu0
        %v9302 = vadd.f32 0.0, %v9301
        %9303 = vmatprep.mubr.f32.mxu0 0.0
        %9304 = vmatmul.mubr.f32.gmra.mrb[0].mxu0 %v9198
        %v9305 = vpop.f32.mrb[0].mxu0
        %v9306 = vadd.f32 0.0, %v9305
        %v9307 = vpop.f32.mrb[0].mxu0
        %v9308 = vadd.f32 0.0, %v9307
        %9309 = vmatprep.mubr.f32.mxu0 0.0
        %9310 = vmatmul.mubr.f32.gmra.mrb[0].mxu0 %v9201
        %v9311 = vpop.f32.mrb[0].mxu0
        %v9312 = vadd.f32 0.0, %v9311
        %v9313 = vpop.f32.mrb[0].mxu0
        %v9314 = vadd.f32 0.0, %v9313
        %9315 = vmatprep.mubr.f32.mxu0 0.0
        %9316 = vmatmul.mubr.f32.gmra.mrb[0].mxu0 %v9204
        %v9317 = vpop.f32.mrb[0].mxu0
        %v9318 = vadd.f32 0.0, %v9317
        %v9319 = vpop.f32.mrb[0].mxu0
        %v9320 = vadd.f32 0.0, %v9319
        %9321 = vmatprep.mubr.f32.mxu0 0.0
        %9322 = vmatmul.mubr.f32.gmra.mrb[0].mxu0 %v9207
        %v9323 = vpop.f32.mrb[0].mxu0
        %v9324 = vadd.f32 0.0, %v9323
        %v9325 = vpop.f32.mrb[0].mxu0
        %v9326 = vadd.f32 0.0, %v9325
        %9327 = vdwg.mxu0
        %v9328 = vadd.f32 %v9114, %v9276
        %v9329 = vadd.f32 %v9115, %v9278
        %v9330 = vadd.f32 %v9116, %v9282
        %v9331 = vadd.f32 %v9117, %v9284
        %v9332 = vadd.f32 %v9118, %v9288
        %v9333 = vadd.f32 %v9119, %v9290
        %v9334 = vadd.f32 %v9120, %v9294
        %v9335 = vadd.f32 %v9121, %v9296
        %v9336 = vadd.f32 %v9122, %v9300
        %v9337 = vadd.f32 %v9123, %v9302
        %v9338 = vadd.f32 %v9124, %v9306
        %v9339 = vadd.f32 %v9125, %v9308
        %v9340 = vadd.f32 %v9126, %v9312
        %v9341 = vadd.f32 %v9127, %v9314
        %v9342 = vadd.f32 %v9128, %v9318
        %v9343 = vadd.f32 %v9129, %v9320
        %v9344 = vadd.f32 %v9130, %v9324
        %v9345 = vadd.f32 %v9131, %v9326
        %v9346 = vmul.f32 %v8079, %v7203
        %v9347 = vmul.f32 %v8080, %v7208
        %v9348 = vmul.f32 %v8081, %v7209
        %v9349 = vmul.f32 %v8082, %v7203
        %v9350 = vmul.f32 %v8083, %v7208
        %v9351 = vmul.f32 %v8084, %v7209
        %v9352 = vmul.f32 %v8085, %v7203
        %v9353 = vmul.f32 %v8086, %v7208
        %v9354 = vmul.f32 %v8087, %v7209
        %v9355 = vmul.f32 %v8088, %v7203
        %v9356 = vmul.f32 %v8089, %v7208
        %v9357 = vmul.f32 %v8090, %v7209
        %s9358 = scalar_lea.vmem %s7, 144
        %v9359 = vld [vmem:[%s9358] sm:$0xff]
        %v9360 = vld [vmem:[%s9358 + $0x8] sm:$0xff]
        %v9361 = vld [vmem:[%s9358 + $0x10] sm:$0xff]
        %v9362 = vld [vmem:[%s9358 + $0x18] sm:$0xff]
        %v9363 = vld [vmem:[%s9358 + $0x20] sm:$0xff]
        %v9364 = vld [vmem:[%s9358 + $0x28] sm:$0xff]
        %v9365 = vld [vmem:[%s9358 + $0x30] sm:$0xff]
        %v9366 = vld [vmem:[%s9358 + $0x38] sm:$0xff]
        %v9367 = vld [vmem:[%s9358 + $0x40] sm:$0xf]
        %9380 = vrot.lane.b32.xlu0 %v9346, 126
        %v9381 = vpop.permute.xlu0 %9380
        %9382 = vrot.lane.b32.xlu0 %v9347, 126
        %v9383 = vpop.permute.xlu0 %9382
        %9384 = vrot.lane.b32.xlu0 %v9348, 126
        %v9385 = vpop.permute.xlu0 %9384
        %9386 = vrot.lane.b32.xlu0 %v9349, 126
        %v9387 = vpop.permute.xlu0 %9386
        %9388 = vrot.lane.b32.xlu0 %v9350, 126
        %v9389 = vpop.permute.xlu0 %9388
        %9390 = vrot.lane.b32.xlu0 %v9351, 126
        %v9391 = vpop.permute.xlu0 %9390
        %9392 = vrot.lane.b32.xlu0 %v9352, 126
        %v9393 = vpop.permute.xlu0 %9392
        %9394 = vrot.lane.b32.xlu0 %v9353, 126
        %v9395 = vpop.permute.xlu0 %9394
        %9396 = vrot.lane.b32.xlu0 %v9354, 126
        %v9397 = vpop.permute.xlu0 %9396
        %9398 = vrot.lane.b32.xlu0 %v9355, 126
        %v9399 = vpop.permute.xlu0 %9398
        %9400 = vrot.lane.b32.xlu0 %v9356, 126
        %v9401 = vpop.permute.xlu0 %9400
        %9402 = vrot.lane.b32.xlu0 %v9357, 126
        %v9403 = vpop.permute.xlu0 %9402
        %v9404 = vsel %vm1495, %v9381, %v9383
        %v9405 = vsel %vm1495, %v9383, %v9385
        %v9406 = vsel %vm1495, %v9387, %v9389
        %v9407 = vsel %vm1495, %v9389, %v9391
        %v9408 = vsel %vm1495, %v9393, %v9395
        %v9409 = vsel %vm1495, %v9395, %v9397
        %v9410 = vsel %vm1495, %v9399, %v9401
        %v9411 = vsel %vm1495, %v9401, %v9403
        %v9421 = vsel %vm2944, %v9359, 0
        %v9424 = vsel %vm2944, %v9360, 0
        %v9427 = vsel %vm2944, %v9361, 0
        %v9430 = vsel %vm2944, %v9362, 0
        %v9433 = vsel %vm2944, %v9363, 0
        %v9436 = vsel %vm2944, %v9364, 0
        %v9439 = vsel %vm2944, %v9365, 0
        %v9442 = vsel %vm2944, %v9366, 0
        %v9445 = vsel %vm2944, %v9367, 0
        %9447 = vmatprep.subr.mxu0 %v9405
        %9448 = vmatpush1.msra.mxu0 %v9404
        %9449 = vmatprep.subr.mxu0 %v9407
        %9450 = vmatpush1.msra.mxu0 %v9406
        %9451 = vmatprep.subr.mxu0 %v9409
        %9452 = vmatpush1.msra.mxu0 %v9408
        %9453 = vmatprep.subr.mxu0 %v9411
        %9454 = vmatpush1.msra.mxu0 %v9410
        %9455 = vmatprep.subr.mxu0 0.0
        %9456 = vmatpush1.msra.mxu0 0.0
        %9457 = vmatprep.subr.mxu0 0.0
        %9458 = vmatpush1.msra.mxu0 0.0
        %9459 = vmatprep.subr.mxu0 0.0
        %9460 = vmatpush1.msra.mxu0 0.0
        %9461 = vmatprep.subr.mxu0 0.0
        %9462 = vmatpush1.msra.mxu0 0.0
        %9463 = vmatprep.subr.mxu0 0.0
        %9464 = vmatpush1.msra.mxu0 0.0
        %9465 = vmatprep.subr.mxu0 0.0
        %9466 = vmatpush1.msra.mxu0 0.0
        %9467 = vmatprep.subr.mxu0 0.0
        %9468 = vmatpush1.msra.mxu0 0.0
        %9469 = vmatprep.subr.mxu0 0.0
        %9470 = vmatpush1.msra.mxu0 0.0
        %9471 = vmatprep.subr.mxu0 0.0
        %9472 = vmatpush1.msra.mxu0 0.0
        %9473 = vmatprep.subr.mxu0 0.0
        %9474 = vmatpush1.msra.mxu0 0.0
        %9475 = vmatprep.subr.mxu0 0.0
        %9476 = vmatpush1.msra.mxu0 0.0
        %9477 = vmatprep.subr.mxu0 0.0
        %9478 = vmatpush1.msra.mxu0 0.0
        %9479 = vmatprep.subr.mxu0 0.0
        %9480 = vmatpush1.msra.mxu0 0.0
        %9481 = vmatprep.subr.mxu0 0.0
        %9482 = vmatpush1.msra.mxu0 0.0
        %9483 = vmatprep.subr.mxu0 0.0
        %9484 = vmatpush1.msra.mxu0 0.0
        %9485 = vmatprep.subr.mxu0 0.0
        %9486 = vmatpush1.msra.mxu0 0.0
        %9487 = vmatprep.subr.mxu0 0.0
        %9488 = vmatpush1.msra.mxu0 0.0
        %9489 = vmatprep.subr.mxu0 0.0
        %9490 = vmatpush1.msra.mxu0 0.0
        %9491 = vmatprep.subr.mxu0 0.0
        %9492 = vmatpush1.msra.mxu0 0.0
        %9493 = vmatprep.subr.mxu0 0.0
        %9494 = vmatpush1.msra.mxu0 0.0
        %9495 = vmatprep.subr.mxu0 0.0
        %9496 = vmatpush1.msra.mxu0 0.0
        %9497 = vmatprep.subr.mxu0 0.0
        %9498 = vmatpush1.msra.mxu0 0.0
        %9499 = vmatprep.subr.mxu0 0.0
        %9500 = vmatpush1.msra.mxu0 0.0
        %9501 = vmatprep.subr.mxu0 0.0
        %9502 = vmatpush1.msra.mxu0 0.0
        %9503 = vmatprep.subr.mxu0 0.0
        %9504 = vmatpush1.msra.mxu0 0.0
        %9505 = vmatprep.subr.mxu0 0.0
        %9506 = vmatpush1.msra.mxu0 0.0
        %9507 = vmatprep.subr.mxu0 0.0
        %9508 = vmatpush1.msra.mxu0 0.0
        %9509 = vmatprep.subr.mxu0 0.0
        %9510 = vmatpush1.msra.mxu0 0.0
        %9511 = vmatprep.mubr.f32.mxu0 0.0
        %9512 = vmatmul.mubr.f32.gmra.mrb[0].mxu0 %v9421
        %v9513 = vpop.f32.mrb[0].mxu0
        %v9514 = vadd.f32 0.0, %v9513
        %v9515 = vpop.f32.mrb[0].mxu0
        %v9516 = vadd.f32 0.0, %v9515
        %9517 = vmatprep.mubr.f32.mxu0 0.0
        %9518 = vmatmul.mubr.f32.gmra.mrb[0].mxu0 %v9424
        %v9519 = vpop.f32.mrb[0].mxu0
        %v9520 = vadd.f32 0.0, %v9519
        %v9521 = vpop.f32.mrb[0].mxu0
        %v9522 = vadd.f32 0.0, %v9521
        %9523 = vmatprep.mubr.f32.mxu0 0.0
        %9524 = vmatmul.mubr.f32.gmra.mrb[0].mxu0 %v9427
        %v9525 = vpop.f32.mrb[0].mxu0
        %v9526 = vadd.f32 0.0, %v9525
        %v9527 = vpop.f32.mrb[0].mxu0
        %v9528 = vadd.f32 0.0, %v9527
        %9529 = vmatprep.mubr.f32.mxu0 0.0
        %9530 = vmatmul.mubr.f32.gmra.mrb[0].mxu0 %v9430
        %v9531 = vpop.f32.mrb[0].mxu0
        %v9532 = vadd.f32 0.0, %v9531
        %v9533 = vpop.f32.mrb[0].mxu0
        %v9534 = vadd.f32 0.0, %v9533
        %9535 = vmatprep.mubr.f32.mxu0 0.0
        %9536 = vmatmul.mubr.f32.gmra.mrb[0].mxu0 %v9433
        %v9537 = vpop.f32.mrb[0].mxu0
        %v9538 = vadd.f32 0.0, %v9537
        %v9539 = vpop.f32.mrb[0].mxu0
        %v9540 = vadd.f32 0.0, %v9539
        %9541 = vmatprep.mubr.f32.mxu0 0.0
        %9542 = vmatmul.mubr.f32.gmra.mrb[0].mxu0 %v9436
        %v9543 = vpop.f32.mrb[0].mxu0
        %v9544 = vadd.f32 0.0, %v9543
        %v9545 = vpop.f32.mrb[0].mxu0
        %v9546 = vadd.f32 0.0, %v9545
        %9547 = vmatprep.mubr.f32.mxu0 0.0
        %9548 = vmatmul.mubr.f32.gmra.mrb[0].mxu0 %v9439
        %v9549 = vpop.f32.mrb[0].mxu0
        %v9550 = vadd.f32 0.0, %v9549
        %v9551 = vpop.f32.mrb[0].mxu0
        %v9552 = vadd.f32 0.0, %v9551
        %9553 = vmatprep.mubr.f32.mxu0 0.0
        %9554 = vmatmul.mubr.f32.gmra.mrb[0].mxu0 %v9442
        %v9555 = vpop.f32.mrb[0].mxu0
        %v9556 = vadd.f32 0.0, %v9555
        %v9557 = vpop.f32.mrb[0].mxu0
        %v9558 = vadd.f32 0.0, %v9557
        %9559 = vmatprep.mubr.f32.mxu0 0.0
        %9560 = vmatmul.mubr.f32.gmra.mrb[0].mxu0 %v9445
        %v9561 = vpop.f32.mrb[0].mxu0
        %v9562 = vadd.f32 0.0, %v9561
        %v9563 = vpop.f32.mrb[0].mxu0
        %v9564 = vadd.f32 0.0, %v9563
        %9565 = vdwg.mxu0
        %v9566 = vadd.f32 %v9328, %v9514
        %v9567 = vadd.f32 %v9329, %v9516
        %v9568 = vadd.f32 %v9330, %v9520
        %v9569 = vadd.f32 %v9331, %v9522
        %v9570 = vadd.f32 %v9332, %v9526
        %v9571 = vadd.f32 %v9333, %v9528
        %v9572 = vadd.f32 %v9334, %v9532
        %v9573 = vadd.f32 %v9335, %v9534
        %v9574 = vadd.f32 %v9336, %v9538
        %v9575 = vadd.f32 %v9337, %v9540
        %v9576 = vadd.f32 %v9338, %v9544
        %v9577 = vadd.f32 %v9339, %v9546
        %v9578 = vadd.f32 %v9340, %v9550
        %v9579 = vadd.f32 %v9341, %v9552
        %v9580 = vadd.f32 %v9342, %v9556
        %v9581 = vadd.f32 %v9343, %v9558
        %v9582 = vadd.f32 %v9344, %v9562
        %v9583 = vadd.f32 %v9345, %v9564
        %s9584 = scalar_lea.vmem %s7, 360
        %v9585 = vld [vmem:[%s9584] sm:$0xff]
        %v9586 = vld [vmem:[%s9584 + $0x8] sm:$0xff]
        %v9587 = vld [vmem:[%s9584 + $0x10] sm:$0xff]
        %v9588 = vld [vmem:[%s9584 + $0x18] sm:$0xff]
        %v9589 = vld [vmem:[%s9584 + $0x20] sm:$0xff]
        %v9590 = vld [vmem:[%s9584 + $0x28] sm:$0xff]
        %v9591 = vld [vmem:[%s9584 + $0x30] sm:$0xff]
        %v9592 = vld [vmem:[%s9584 + $0x38] sm:$0xff]
        %v9593 = vld [vmem:[%s9584 + $0x40] sm:$0xf]
        %9594 = vrot.lane.b32.xlu0 %v9346, 110
        %v9595 = vpop.permute.xlu0 %9594
        %9596 = vrot.lane.b32.xlu0 %v9347, 110
        %v9597 = vpop.permute.xlu0 %9596
        %9598 = vrot.lane.b32.xlu0 %v9348, 110
        %v9599 = vpop.permute.xlu0 %9598
        %9600 = vrot.lane.b32.xlu0 %v9349, 110
        %v9601 = vpop.permute.xlu0 %9600
        %9602 = vrot.lane.b32.xlu0 %v9350, 110
        %v9603 = vpop.permute.xlu0 %9602
        %9604 = vrot.lane.b32.xlu0 %v9351, 110
        %v9605 = vpop.permute.xlu0 %9604
        %9606 = vrot.lane.b32.xlu0 %v9352, 110
        %v9607 = vpop.permute.xlu0 %9606
        %9608 = vrot.lane.b32.xlu0 %v9353, 110
        %v9609 = vpop.permute.xlu0 %9608
        %9610 = vrot.lane.b32.xlu0 %v9354, 110
        %v9611 = vpop.permute.xlu0 %9610
        %9612 = vrot.lane.b32.xlu0 %v9355, 110
        %v9613 = vpop.permute.xlu0 %9612
        %9614 = vrot.lane.b32.xlu0 %v9356, 110
        %v9615 = vpop.permute.xlu0 %9614
        %9616 = vrot.lane.b32.xlu0 %v9357, 110
        %v9617 = vpop.permute.xlu0 %9616
        %v9618 = vsel %vm1584, %v9595, %v9597
        %v9619 = vsel %vm1584, %v9597, %v9599
        %v9620 = vsel %vm1584, %v9601, %v9603
        %v9621 = vsel %vm1584, %v9603, %v9605
        %v9622 = vsel %vm1584, %v9607, %v9609
        %v9623 = vsel %vm1584, %v9609, %v9611
        %v9624 = vsel %vm1584, %v9613, %v9615
        %v9625 = vsel %vm1584, %v9615, %v9617
        %v9635 = vsel %vm2944, %v9585, 0
        %v9638 = vsel %vm2944, %v9586, 0
        %v9641 = vsel %vm2944, %v9587, 0
        %v9644 = vsel %vm2944, %v9588, 0
        %v9647 = vsel %vm2944, %v9589, 0
        %v9650 = vsel %vm2944, %v9590, 0
        %v9653 = vsel %vm2944, %v9591, 0
        %v9656 = vsel %vm2944, %v9592, 0
        %v9659 = vsel %vm2944, %v9593, 0
        %9661 = vmatprep.subr.mxu0 %v9619
        %9662 = vmatpush1.msra.mxu0 %v9618
        %9663 = vmatprep.subr.mxu0 %v9621
        %9664 = vmatpush1.msra.mxu0 %v9620
        %9665 = vmatprep.subr.mxu0 %v9623
        %9666 = vmatpush1.msra.mxu0 %v9622
        %9667 = vmatprep.subr.mxu0 %v9625
        %9668 = vmatpush1.msra.mxu0 %v9624
        %9669 = vmatprep.subr.mxu0 0.0
        %9670 = vmatpush1.msra.mxu0 0.0
        %9671 = vmatprep.subr.mxu0 0.0
        %9672 = vmatpush1.msra.mxu0 0.0
        %9673 = vmatprep.subr.mxu0 0.0
        %9674 = vmatpush1.msra.mxu0 0.0
        %9675 = vmatprep.subr.mxu0 0.0
        %9676 = vmatpush1.msra.mxu0 0.0
        %9677 = vmatprep.subr.mxu0 0.0
        %9678 = vmatpush1.msra.mxu0 0.0
        %9679 = vmatprep.subr.mxu0 0.0
        %9680 = vmatpush1.msra.mxu0 0.0
        %9681 = vmatprep.subr.mxu0 0.0
        %9682 = vmatpush1.msra.mxu0 0.0
        %9683 = vmatprep.subr.mxu0 0.0
        %9684 = vmatpush1.msra.mxu0 0.0
        %9685 = vmatprep.subr.mxu0 0.0
        %9686 = vmatpush1.msra.mxu0 0.0
        %9687 = vmatprep.subr.mxu0 0.0
        %9688 = vmatpush1.msra.mxu0 0.0
        %9689 = vmatprep.subr.mxu0 0.0
        %9690 = vmatpush1.msra.mxu0 0.0
        %9691 = vmatprep.subr.mxu0 0.0
        %9692 = vmatpush1.msra.mxu0 0.0
        %9693 = vmatprep.subr.mxu0 0.0
        %9694 = vmatpush1.msra.mxu0 0.0
        %9695 = vmatprep.subr.mxu0 0.0
        %9696 = vmatpush1.msra.mxu0 0.0
        %9697 = vmatprep.subr.mxu0 0.0
        %9698 = vmatpush1.msra.mxu0 0.0
        %9699 = vmatprep.subr.mxu0 0.0
        %9700 = vmatpush1.msra.mxu0 0.0
        %9701 = vmatprep.subr.mxu0 0.0
        %9702 = vmatpush1.msra.mxu0 0.0
        %9703 = vmatprep.subr.mxu0 0.0
        %9704 = vmatpush1.msra.mxu0 0.0
        %9705 = vmatprep.subr.mxu0 0.0
        %9706 = vmatpush1.msra.mxu0 0.0
        %9707 = vmatprep.subr.mxu0 0.0
        %9708 = vmatpush1.msra.mxu0 0.0
        %9709 = vmatprep.subr.mxu0 0.0
        %9710 = vmatpush1.msra.mxu0 0.0
        %9711 = vmatprep.subr.mxu0 0.0
        %9712 = vmatpush1.msra.mxu0 0.0
        %9713 = vmatprep.subr.mxu0 0.0
        %9714 = vmatpush1.msra.mxu0 0.0
        %9715 = vmatprep.subr.mxu0 0.0
        %9716 = vmatpush1.msra.mxu0 0.0
        %9717 = vmatprep.subr.mxu0 0.0
        %9718 = vmatpush1.msra.mxu0 0.0
        %9719 = vmatprep.subr.mxu0 0.0
        %9720 = vmatpush1.msra.mxu0 0.0
        %9721 = vmatprep.subr.mxu0 0.0
        %9722 = vmatpush1.msra.mxu0 0.0
        %9723 = vmatprep.subr.mxu0 0.0
        %9724 = vmatpush1.msra.mxu0 0.0
        %9725 = vmatprep.mubr.f32.mxu0 0.0
        %9726 = vmatmul.mubr.f32.gmra.mrb[0].mxu0 %v9635
        %v9727 = vpop.f32.mrb[0].mxu0
        %v9728 = vadd.f32 0.0, %v9727
        %v9729 = vpop.f32.mrb[0].mxu0
        %v9730 = vadd.f32 0.0, %v9729
        %9731 = vmatprep.mubr.f32.mxu0 0.0
        %9732 = vmatmul.mubr.f32.gmra.mrb[0].mxu0 %v9638
        %v9733 = vpop.f32.mrb[0].mxu0
        %v9734 = vadd.f32 0.0, %v9733
        %v9735 = vpop.f32.mrb[0].mxu0
        %v9736 = vadd.f32 0.0, %v9735
        %9737 = vmatprep.mubr.f32.mxu0 0.0
        %9738 = vmatmul.mubr.f32.gmra.mrb[0].mxu0 %v9641
        %v9739 = vpop.f32.mrb[0].mxu0
        %v9740 = vadd.f32 0.0, %v9739
        %v9741 = vpop.f32.mrb[0].mxu0
        %v9742 = vadd.f32 0.0, %v9741
        %9743 = vmatprep.mubr.f32.mxu0 0.0
        %9744 = vmatmul.mubr.f32.gmra.mrb[0].mxu0 %v9644
        %v9745 = vpop.f32.mrb[0].mxu0
        %v9746 = vadd.f32 0.0, %v9745
        %v9747 = vpop.f32.mrb[0].mxu0
        %v9748 = vadd.f32 0.0, %v9747
        %9749 = vmatprep.mubr.f32.mxu0 0.0
        %9750 = vmatmul.mubr.f32.gmra.mrb[0].mxu0 %v9647
        %v9751 = vpop.f32.mrb[0].mxu0
        %v9752 = vadd.f32 0.0, %v9751
        %v9753 = vpop.f32.mrb[0].mxu0
        %v9754 = vadd.f32 0.0, %v9753
        %9755 = vmatprep.mubr.f32.mxu0 0.0
        %9756 = vmatmul.mubr.f32.gmra.mrb[0].mxu0 %v9650
        %v9757 = vpop.f32.mrb[0].mxu0
        %v9758 = vadd.f32 0.0, %v9757
        %v9759 = vpop.f32.mrb[0].mxu0
        %v9760 = vadd.f32 0.0, %v9759
        %9761 = vmatprep.mubr.f32.mxu0 0.0
        %9762 = vmatmul.mubr.f32.gmra.mrb[0].mxu0 %v9653
        %v9763 = vpop.f32.mrb[0].mxu0
        %v9764 = vadd.f32 0.0, %v9763
        %v9765 = vpop.f32.mrb[0].mxu0
        %v9766 = vadd.f32 0.0, %v9765
        %9767 = vmatprep.mubr.f32.mxu0 0.0
        %9768 = vmatmul.mubr.f32.gmra.mrb[0].mxu0 %v9656
        %v9769 = vpop.f32.mrb[0].mxu0
        %v9770 = vadd.f32 0.0, %v9769
        %v9771 = vpop.f32.mrb[0].mxu0
        %v9772 = vadd.f32 0.0, %v9771
        %9773 = vmatprep.mubr.f32.mxu0 0.0
        %9774 = vmatmul.mubr.f32.gmra.mrb[0].mxu0 %v9659
        %v9775 = vpop.f32.mrb[0].mxu0
        %v9776 = vadd.f32 0.0, %v9775
        %v9777 = vpop.f32.mrb[0].mxu0
        %v9778 = vadd.f32 0.0, %v9777
        %9779 = vdwg.mxu0
        %v9780 = vadd.f32 %v9566, %v9728
        %v9781 = vadd.f32 %v9567, %v9730
        %v9782 = vadd.f32 %v9568, %v9734
        %v9783 = vadd.f32 %v9569, %v9736
        %v9784 = vadd.f32 %v9570, %v9740
        %v9785 = vadd.f32 %v9571, %v9742
        %v9786 = vadd.f32 %v9572, %v9746
        %v9787 = vadd.f32 %v9573, %v9748
        %v9788 = vadd.f32 %v9574, %v9752
        %v9789 = vadd.f32 %v9575, %v9754
        %v9790 = vadd.f32 %v9576, %v9758
        %v9791 = vadd.f32 %v9577, %v9760
        %v9792 = vadd.f32 %v9578, %v9764
        %v9793 = vadd.f32 %v9579, %v9766
        %v9794 = vadd.f32 %v9580, %v9770
        %v9795 = vadd.f32 %v9581, %v9772
        %v9796 = vadd.f32 %v9582, %v9776
        %v9797 = vadd.f32 %v9583, %v9778
        %s9798 = scalar_lea.vmem %s7, 576
        %v9799 = vld [vmem:[%s9798] sm:$0xff]
        %v9800 = vld [vmem:[%s9798 + $0x8] sm:$0xff]
        %v9801 = vld [vmem:[%s9798 + $0x10] sm:$0xff]
        %v9802 = vld [vmem:[%s9798 + $0x18] sm:$0xff]
        %v9803 = vld [vmem:[%s9798 + $0x20] sm:$0xff]
        %v9804 = vld [vmem:[%s9798 + $0x28] sm:$0xff]
        %v9805 = vld [vmem:[%s9798 + $0x30] sm:$0xff]
        %v9806 = vld [vmem:[%s9798 + $0x38] sm:$0xff]
        %v9807 = vld [vmem:[%s9798 + $0x40] sm:$0xf]
        %9808 = vrot.lane.b32.xlu0 %v9346, 94
        %v9809 = vpop.permute.xlu0 %9808
        %9810 = vrot.lane.b32.xlu0 %v9347, 94
        %v9811 = vpop.permute.xlu0 %9810
        %9812 = vrot.lane.b32.xlu0 %v9348, 94
        %v9813 = vpop.permute.xlu0 %9812
        %9814 = vrot.lane.b32.xlu0 %v9349, 94
        %v9815 = vpop.permute.xlu0 %9814
        %9816 = vrot.lane.b32.xlu0 %v9350, 94
        %v9817 = vpop.permute.xlu0 %9816
        %9818 = vrot.lane.b32.xlu0 %v9351, 94
        %v9819 = vpop.permute.xlu0 %9818
        %9820 = vrot.lane.b32.xlu0 %v9352, 94
        %v9821 = vpop.permute.xlu0 %9820
        %9822 = vrot.lane.b32.xlu0 %v9353, 94
        %v9823 = vpop.permute.xlu0 %9822
        %9824 = vrot.lane.b32.xlu0 %v9354, 94
        %v9825 = vpop.permute.xlu0 %9824
        %9826 = vrot.lane.b32.xlu0 %v9355, 94
        %v9827 = vpop.permute.xlu0 %9826
        %9828 = vrot.lane.b32.xlu0 %v9356, 94
        %v9829 = vpop.permute.xlu0 %9828
        %9830 = vrot.lane.b32.xlu0 %v9357, 94
        %v9831 = vpop.permute.xlu0 %9830
        %v9832 = vsel %vm1673, %v9809, %v9811
        %v9833 = vsel %vm1673, %v9811, %v9813
        %v9834 = vsel %vm1673, %v9815, %v9817
        %v9835 = vsel %vm1673, %v9817, %v9819
        %v9836 = vsel %vm1673, %v9821, %v9823
        %v9837 = vsel %vm1673, %v9823, %v9825
        %v9838 = vsel %vm1673, %v9827, %v9829
        %v9839 = vsel %vm1673, %v9829, %v9831
        %v9849 = vsel %vm2944, %v9799, 0
        %v9852 = vsel %vm2944, %v9800, 0
        %v9855 = vsel %vm2944, %v9801, 0
        %v9858 = vsel %vm2944, %v9802, 0
        %v9861 = vsel %vm2944, %v9803, 0
        %v9864 = vsel %vm2944, %v9804, 0
        %v9867 = vsel %vm2944, %v9805, 0
        %v9870 = vsel %vm2944, %v9806, 0
        %v9873 = vsel %vm2944, %v9807, 0
        %9875 = vmatprep.subr.mxu0 %v9833
        %9876 = vmatpush1.msra.mxu0 %v9832
        %9877 = vmatprep.subr.mxu0 %v9835
        %9878 = vmatpush1.msra.mxu0 %v9834
        %9879 = vmatprep.subr.mxu0 %v9837
        %9880 = vmatpush1.msra.mxu0 %v9836
        %9881 = vmatprep.subr.mxu0 %v9839
        %9882 = vmatpush1.msra.mxu0 %v9838
        %9883 = vmatprep.subr.mxu0 0.0
        %9884 = vmatpush1.msra.mxu0 0.0
        %9885 = vmatprep.subr.mxu0 0.0
        %9886 = vmatpush1.msra.mxu0 0.0
        %9887 = vmatprep.subr.mxu0 0.0
        %9888 = vmatpush1.msra.mxu0 0.0
        %9889 = vmatprep.subr.mxu0 0.0
        %9890 = vmatpush1.msra.mxu0 0.0
        %9891 = vmatprep.subr.mxu0 0.0
        %9892 = vmatpush1.msra.mxu0 0.0
        %9893 = vmatprep.subr.mxu0 0.0
        %9894 = vmatpush1.msra.mxu0 0.0
        %9895 = vmatprep.subr.mxu0 0.0
        %9896 = vmatpush1.msra.mxu0 0.0
        %9897 = vmatprep.subr.mxu0 0.0
        %9898 = vmatpush1.msra.mxu0 0.0
        %9899 = vmatprep.subr.mxu0 0.0
        %9900 = vmatpush1.msra.mxu0 0.0
        %9901 = vmatprep.subr.mxu0 0.0
        %9902 = vmatpush1.msra.mxu0 0.0
        %9903 = vmatprep.subr.mxu0 0.0
        %9904 = vmatpush1.msra.mxu0 0.0
        %9905 = vmatprep.subr.mxu0 0.0
        %9906 = vmatpush1.msra.mxu0 0.0
        %9907 = vmatprep.subr.mxu0 0.0
        %9908 = vmatpush1.msra.mxu0 0.0
        %9909 = vmatprep.subr.mxu0 0.0
        %9910 = vmatpush1.msra.mxu0 0.0
        %9911 = vmatprep.subr.mxu0 0.0
        %9912 = vmatpush1.msra.mxu0 0.0
        %9913 = vmatprep.subr.mxu0 0.0
        %9914 = vmatpush1.msra.mxu0 0.0
        %9915 = vmatprep.subr.mxu0 0.0
        %9916 = vmatpush1.msra.mxu0 0.0
        %9917 = vmatprep.subr.mxu0 0.0
        %9918 = vmatpush1.msra.mxu0 0.0
        %9919 = vmatprep.subr.mxu0 0.0
        %9920 = vmatpush1.msra.mxu0 0.0
        %9921 = vmatprep.subr.mxu0 0.0
        %9922 = vmatpush1.msra.mxu0 0.0
        %9923 = vmatprep.subr.mxu0 0.0
        %9924 = vmatpush1.msra.mxu0 0.0
        %9925 = vmatprep.subr.mxu0 0.0
        %9926 = vmatpush1.msra.mxu0 0.0
        %9927 = vmatprep.subr.mxu0 0.0
        %9928 = vmatpush1.msra.mxu0 0.0
        %9929 = vmatprep.subr.mxu0 0.0
        %9930 = vmatpush1.msra.mxu0 0.0
        %9931 = vmatprep.subr.mxu0 0.0
        %9932 = vmatpush1.msra.mxu0 0.0
        %9933 = vmatprep.subr.mxu0 0.0
        %9934 = vmatpush1.msra.mxu0 0.0
        %9935 = vmatprep.subr.mxu0 0.0
        %9936 = vmatpush1.msra.mxu0 0.0
        %9937 = vmatprep.subr.mxu0 0.0
        %9938 = vmatpush1.msra.mxu0 0.0
        %9939 = vmatprep.mubr.f32.mxu0 0.0
        %9940 = vmatmul.mubr.f32.gmra.mrb[0].mxu0 %v9849
        %v9941 = vpop.f32.mrb[0].mxu0
        %v9942 = vadd.f32 0.0, %v9941
        %v9943 = vpop.f32.mrb[0].mxu0
        %v9944 = vadd.f32 0.0, %v9943
        %9945 = vmatprep.mubr.f32.mxu0 0.0
        %9946 = vmatmul.mubr.f32.gmra.mrb[0].mxu0 %v9852
        %v9947 = vpop.f32.mrb[0].mxu0
        %v9948 = vadd.f32 0.0, %v9947
        %v9949 = vpop.f32.mrb[0].mxu0
        %v9950 = vadd.f32 0.0, %v9949
        %9951 = vmatprep.mubr.f32.mxu0 0.0
        %9952 = vmatmul.mubr.f32.gmra.mrb[0].mxu0 %v9855
        %v9953 = vpop.f32.mrb[0].mxu0
        %v9954 = vadd.f32 0.0, %v9953
        %v9955 = vpop.f32.mrb[0].mxu0
        %v9956 = vadd.f32 0.0, %v9955
        %9957 = vmatprep.mubr.f32.mxu0 0.0
        %9958 = vmatmul.mubr.f32.gmra.mrb[0].mxu0 %v9858
        %v9959 = vpop.f32.mrb[0].mxu0
        %v9960 = vadd.f32 0.0, %v9959
        %v9961 = vpop.f32.mrb[0].mxu0
        %v9962 = vadd.f32 0.0, %v9961
        %9963 = vmatprep.mubr.f32.mxu0 0.0
        %9964 = vmatmul.mubr.f32.gmra.mrb[0].mxu0 %v9861
        %v9965 = vpop.f32.mrb[0].mxu0
        %v9966 = vadd.f32 0.0, %v9965
        %v9967 = vpop.f32.mrb[0].mxu0
        %v9968 = vadd.f32 0.0, %v9967
        %9969 = vmatprep.mubr.f32.mxu0 0.0
        %9970 = vmatmul.mubr.f32.gmra.mrb[0].mxu0 %v9864
        %v9971 = vpop.f32.mrb[0].mxu0
        %v9972 = vadd.f32 0.0, %v9971
        %v9973 = vpop.f32.mrb[0].mxu0
        %v9974 = vadd.f32 0.0, %v9973
        %9975 = vmatprep.mubr.f32.mxu0 0.0
        %9976 = vmatmul.mubr.f32.gmra.mrb[0].mxu0 %v9867
        %v9977 = vpop.f32.mrb[0].mxu0
        %v9978 = vadd.f32 0.0, %v9977
        %v9979 = vpop.f32.mrb[0].mxu0
        %v9980 = vadd.f32 0.0, %v9979
        %9981 = vmatprep.mubr.f32.mxu0 0.0
        %9982 = vmatmul.mubr.f32.gmra.mrb[0].mxu0 %v9870
        %v9983 = vpop.f32.mrb[0].mxu0
        %v9984 = vadd.f32 0.0, %v9983
        %v9985 = vpop.f32.mrb[0].mxu0
        %v9986 = vadd.f32 0.0, %v9985
        %9987 = vmatprep.mubr.f32.mxu0 0.0
        %9988 = vmatmul.mubr.f32.gmra.mrb[0].mxu0 %v9873
        %v9989 = vpop.f32.mrb[0].mxu0
        %v9990 = vadd.f32 0.0, %v9989
        %v9991 = vpop.f32.mrb[0].mxu0
        %v9992 = vadd.f32 0.0, %v9991
        %9993 = vdwg.mxu0
        %v9994 = vadd.f32 %v9780, %v9942
        %v9995 = vadd.f32 %v9781, %v9944
        %v9996 = vadd.f32 %v9782, %v9948
        %v9997 = vadd.f32 %v9783, %v9950
        %v9998 = vadd.f32 %v9784, %v9954
        %v9999 = vadd.f32 %v9785, %v9956
        %v10000 = vadd.f32 %v9786, %v9960
        %v10001 = vadd.f32 %v9787, %v9962
        %v10002 = vadd.f32 %v9788, %v9966
        %v10003 = vadd.f32 %v9789, %v9968
        %v10004 = vadd.f32 %v9790, %v9972
        %v10005 = vadd.f32 %v9791, %v9974
        %v10006 = vadd.f32 %v9792, %v9978
        %v10007 = vadd.f32 %v9793, %v9980
        %v10008 = vadd.f32 %v9794, %v9984
        %v10009 = vadd.f32 %v9795, %v9986
        %v10010 = vadd.f32 %v9796, %v9990
        %v10011 = vadd.f32 %v9797, %v9992
        %v10012 = vld [vmem:[%s8] sm:$0xff]
        %v10013 = vld [vmem:[%s8 + $0x8] sm:$0xff]
        %v10014 = vld [vmem:[%s8 + $0x10] sm:$0xff]
        %v10015 = vld [vmem:[%s8 + $0x18] sm:$0xff]
        %v10016 = vld [vmem:[%s8 + $0x20] sm:$0xff]
        %v10017 = vld [vmem:[%s8 + $0x28] sm:$0xff]
        %v10018 = vld [vmem:[%s8 + $0x30] sm:$0xff]
        %v10019 = vld [vmem:[%s8 + $0x38] sm:$0xff]
        %v10020 = vld [vmem:[%s8 + $0x40] sm:$0xf]
        %10022 = vset.pattern.permute.xlu0 0
        %10023 = vperm.xlu0 %10022, %v10012
        %v10024 = vpop.permute.xlu0 %10023
        %10027 = vset.pattern.permute.xlu0 0
        %10028 = vperm.xlu0 %10027, %v10013
        %v10029 = vpop.permute.xlu0 %10028
        %10032 = vset.pattern.permute.xlu0 0
        %10033 = vperm.xlu0 %10032, %v10014
        %v10034 = vpop.permute.xlu0 %10033
        %10037 = vset.pattern.permute.xlu0 0
        %10038 = vperm.xlu0 %10037, %v10015
        %v10039 = vpop.permute.xlu0 %10038
        %10042 = vset.pattern.permute.xlu0 0
        %10043 = vperm.xlu0 %10042, %v10016
        %v10044 = vpop.permute.xlu0 %10043
        %10047 = vset.pattern.permute.xlu0 0
        %10048 = vperm.xlu0 %10047, %v10017
        %v10049 = vpop.permute.xlu0 %10048
        %10052 = vset.pattern.permute.xlu0 0
        %10053 = vperm.xlu0 %10052, %v10018
        %v10054 = vpop.permute.xlu0 %10053
        %10057 = vset.pattern.permute.xlu0 0
        %10058 = vperm.xlu0 %10057, %v10019
        %v10059 = vpop.permute.xlu0 %10058
        %10062 = vset.pattern.permute.xlu0 0
        %10063 = vperm.xlu0 %10062, %v10020
        %v10064 = vpop.permute.xlu0 %10063
        %v10066 = vadd.f32 %v9994, %v10024
        %v10067 = vadd.f32 %v9995, %v10024
        %v10068 = vadd.f32 %v9996, %v10029
        %v10069 = vadd.f32 %v9997, %v10029
        %v10070 = vadd.f32 %v9998, %v10034
        %v10071 = vadd.f32 %v9999, %v10034
        %v10072 = vadd.f32 %v10000, %v10039
        %v10073 = vadd.f32 %v10001, %v10039
        %v10074 = vadd.f32 %v10002, %v10044
        %v10075 = vadd.f32 %v10003, %v10044
        %v10076 = vadd.f32 %v10004, %v10049
        %v10077 = vadd.f32 %v10005, %v10049
        %v10078 = vadd.f32 %v10006, %v10054
        %v10079 = vadd.f32 %v10007, %v10054
        %v10080 = vadd.f32 %v10008, %v10059
        %v10081 = vadd.f32 %v10009, %v10059
        %v10082 = vadd.f32 %v10010, %v10064
        %v10083 = vadd.f32 %v10011, %v10064
        %10084 = vst [vmem:[%s397] sm:$0xff] %v10066
        %10085 = vst [vmem:[%s397 + $0x8] sm:$0xff] %v10067
        %10086 = vst [vmem:[%s397 + $0x10] sm:$0xff] %v10068
        %10087 = vst [vmem:[%s397 + $0x18] sm:$0xff] %v10069
        %10088 = vst [vmem:[%s397 + $0x20] sm:$0xff] %v10070
        %10089 = vst [vmem:[%s397 + $0x28] sm:$0xff] %v10071
        %10090 = vst [vmem:[%s397 + $0x30] sm:$0xff] %v10072
        %10091 = vst [vmem:[%s397 + $0x38] sm:$0xff] %v10073
        %10092 = vst [vmem:[%s397 + $0x40] sm:$0xff] %v10074
        %10093 = vst [vmem:[%s397 + $0x48] sm:$0xff] %v10075
        %10094 = vst [vmem:[%s397 + $0x50] sm:$0xff] %v10076
        %10095 = vst [vmem:[%s397 + $0x58] sm:$0xff] %v10077
        %10096 = vst [vmem:[%s397 + $0x60] sm:$0xff] %v10078
        %10097 = vst [vmem:[%s397 + $0x68] sm:$0xff] %v10079
        %10098 = vst [vmem:[%s397 + $0x70] sm:$0xff] %v10080
        %10099 = vst [vmem:[%s397 + $0x78] sm:$0xff] %v10081
        %10100 = vst [vmem:[%s397 + $0x80] sm:$0xf] %v10082
        %10101 = vst [vmem:[%s397 + $0x88] sm:$0xf] %v10083
        %s10102 = sand.u32 %s249, 1
        %s10103 = scalar_lea.sflag [#allocation4], %s10102
        %s10104 = sand.u32 %s249, 1
        %s10105 = smul.addr %s10104, 160
        %s10106 = scalar_lea.vmem [#allocation3], %s10105
        %p10107 = scmp.lt.s32.totalorder %s26, 1
        %s10108 = scalar_select %p10107, %s26, 1
        %s10109 = smul.addr %s10108, 18
        %s10110 = smul.addr %s10109, 8
        %s10111 = scalar_lea.vmem %s11, %s10110
        // Predicated region
        $region61: #{tpu_custom_call.1} parent=59 // pred_check
          %p10112 = pneg %p259
        $region62: #{tpu_custom_call.1} parent=59 // pred_check_branch
          %10114 = sbr.rel (%p10112) target = $region64
        $region63: #{tpu_custom_call.1} parent=59 // pred_region
          %s10116 = ssub.s32 2560, 2560
          %10117 = vsyncadd %s10103, %s10116
          %s10118 = smul.addr %s26, 20
          %s10119 = smul.addr %s10118, 128
          %s10120 = scalar_lea.hbm %s10, %s10119
          %s10121 = sshll.u32 %s10106, 4
          %s10122 = int_to_ptr.vmem [resolvable:$true] %s10121
          %10127 = dma.vmem_to_hbm [thread:$0]  %s10122, 2560, %s10120, %s10103, 256, 256, 16
        $region64: #{tpu_custom_call.1} parent=59 // pred_fallthru
          _
        // Predicated region
        $region65: #{tpu_custom_call.1} parent=59 // pred_check
          %p10128 = pneg %p285
        $region66: #{tpu_custom_call.1} parent=59 // pred_check_branch
          %10130 = sbr.rel (%p10128) target = $region68
        $region67: #{tpu_custom_call.1} parent=59 // pred_region
          _
        $region68: #{tpu_custom_call.1} parent=59 // pred_fallthru
          _
      $region60: #{tpu_custom_call.1} parent=5 // pred_fallthru
        _
      %p10131 = scmp.le.s32.totalorder 2, %s21
      // Predicated region
      $region69: #{tpu_custom_call.1} parent=5 // pred_check
        %p10132 = pneg %p10131
      $region70: #{tpu_custom_call.1} parent=5 // pred_check_branch
        %10134 = sbr.rel (%p10132) target = $region72
      $region71: #{tpu_custom_call.1} parent=5 // pred_region
        %s10135 = ssub.s32 %s21, 2
        // Predicated region
        $region73: #{tpu_custom_call.1} parent=71 // pred_check
          %p10136 = pneg %p265
        $region74: #{tpu_custom_call.1} parent=71 // pred_check_branch
          %10138 = sbr.rel (%p10136) target = $region76
        $region75: #{tpu_custom_call.1} parent=71 // pred_region
          %s10139 = sand.u32 %s250, 1
          %s10140 = scalar_lea.sflag [#allocation4], %s10139
          %s10141 = sand.u32 %s250, 1
          %s10142 = smul.addr %s10141, 160
          %s10143 = scalar_lea.vmem [#allocation3], %s10142
          %10144 = dma.done %s10140, 2560
        $region76: #{tpu_custom_call.1} parent=71 // pred_fallthru
          _
        // Predicated region
        $region77: #{tpu_custom_call.1} parent=71 // pred_check
          %p10145 = pneg %p291
        $region78: #{tpu_custom_call.1} parent=71 // pred_check_branch
          %10147 = sbr.rel (%p10145) target = $region80
        $region79: #{tpu_custom_call.1} parent=71 // pred_region
          %p10148 = scmp.lt.s32.totalorder %s27, 1
          %s10149 = scalar_select %p10148, %s27, 1
          %s10150 = smul.addr %s10149, 18
          %s10151 = smul.addr %s10150, 8
          %s10152 = scalar_lea.vmem %s11, %s10151
        $region80: #{tpu_custom_call.1} parent=71 // pred_fallthru
          _
      $region72: #{tpu_custom_call.1} parent=5 // pred_fallthru
        _
    $region6: #{tpu_custom_call.1} parent=1 // loop_footer
      %s25 = sadd.s32 1, %s21
    $region7: #{tpu_custom_call.1} parent=1 // loop_footer_branch
      %20 = sbr.rel target = $region3
    $region8: #{tpu_custom_call.1} parent=1 // loop_exit
      _
    %10153 = vsyncpa [#allocation4], 1
    %s10154 = scalar_lea.sflag [#allocation4], 1
    %10155 = vsyncpa %s10154, 1

</llo_original>
